<compile_context>
chip_gen: v7x
topology: tpu7x:2x2x1
jax: 0.10.0
libtpu: 0.0.40
codegen_flags: <defaults>
</compile_context>

<pallas_src>
import functools

import jax
import jax.numpy as jnp
from jax import lax
from jax.experimental import pallas as pl
from jax.experimental.pallas import tpu as pltpu

# ---- model hyper-parameters (fixed by the PyTorch module) --------------------
N_EMBD = 64
N_HEAD = 8
HEAD_SIZE = N_EMBD // N_HEAD      # 8
N_LAYER = 8
VOCAB_SIZE = 101
BLOCK_SIZE = 500
NUM_CLASSES = 4
LM_PAD = 128                      # lane-dense padded class dim
LN_EPS = 1e-5
ATTN_SCALE = N_EMBD ** (-0.5)     # PyTorch Head scales by C**-0.5 with C = n_embd (not head_size)
T_ALIGN = 128                     # pad sequence length to a lane multiple


# ---------------------------------------------------------------------------
# Pallas kernel (whole forward: all blocks + ln_f + lm_head, per batch row)
# ---------------------------------------------------------------------------
def _layernorm(x, gamma, beta):
    mu = jnp.mean(x, axis=-1, keepdims=True)
    var = jnp.mean((x - mu) ** 2, axis=-1, keepdims=True)
    return (x - mu) * lax.rsqrt(var + LN_EPS) * gamma + beta


def heart_gpt_kernel(x_ref,
                     ln1_g, ln1_b, a_qk, w_vp, bproj,
                     ln2_g, ln2_b, w1, b1, w2, b2,
                     lnf_g, lnf_b, w_lm, b_lm,
                     o_ref, x_vmem, attn_acc,
                     *, t_real, t_pad):
    """One batch-row grid step; loops all N_LAYER transformer blocks in-kernel.

    x_ref : (t_pad, C) f32 embedding input for this batch row.
    a_qk  : (L, C, H*C) bf16, heads of (Wq_h @ Wk_h^T)*scale packed along lanes.
    w_vp  : (L, C, H*C) bf16, heads of (Wv_h @ Wproj_h) packed along lanes.
    o_ref : (t_pad, LM_PAD) f32 padded logits.
    x_vmem / attn_acc : (t_pad, C) f32 VMEM scratch (residual / head accumulator).
    """
    x_vmem[...] = x_ref[...]

    # additive mask for padded key columns (static decision)
    if t_pad > t_real:
        col = lax.broadcasted_iota(jnp.int32, (1, t_pad), 1)
        key_bias = jnp.where(col < t_real, 0.0, -1e30).astype(jnp.float32)
    else:
        key_bias = None

    def layer_body(l, carry):
        x = x_vmem[...]                                          # (T, C) f32

        # ---------------- self-attention branch ----------------
        xn = _layernorm(x, ln1_g[l], ln1_b[l])                   # f32
        xn_b = xn.astype(jnp.bfloat16)
        xn_t = xn_b.T                                            # (C, T) bf16, shared by all heads

        # all-heads folded projections: two N=512-wide MXU matmuls per layer
        qa_all = jnp.dot(xn_b, a_qk[l], preferred_element_type=jnp.float32)   # (T, H*C)
        vp_all = jnp.dot(xn_b, w_vp[l], preferred_element_type=jnp.float32)   # (T, H*C)
        qa_all_b = qa_all.astype(jnp.bfloat16)
        vp_all_b = vp_all.astype(jnp.bfloat16)

        # unrolled head loop, accumulate into VMEM scratch
        for h in range(N_HEAD):
            sl = slice(h * N_EMBD, (h + 1) * N_EMBD)
            s = jnp.dot(qa_all_b[:, sl], xn_t,
                        preferred_element_type=jnp.float32)      # (T, T) f32
            if key_bias is not None:
                s = s + key_bias
            # no causal mask in this module (by spec); softmax kept in f32
            p = jnp.exp(s - jnp.max(s, axis=-1, keepdims=True))
            inv = pl.reciprocal(jnp.sum(p, axis=-1, keepdims=True), approx=True)
            # normalization folded into the (T, C) head output
            o_h = jnp.dot(p.astype(jnp.bfloat16), vp_all_b[:, sl],
                          preferred_element_type=jnp.float32) * inv
            if h == 0:
                attn_acc[...] = o_h
            else:
                attn_acc[...] += o_h

        x = x + attn_acc[...] + bproj[l]

        # ---------------- feed-forward branch ----------------
        xn2 = _layernorm(x, ln2_g[l], ln2_b[l]).astype(jnp.bfloat16)
        h1 = jnp.dot(xn2, w1[l], preferred_element_type=jnp.float32) + b1[l]
        h1 = jnp.maximum(h1, 0.0).astype(jnp.bfloat16)
        ff = jnp.dot(h1, w2[l], preferred_element_type=jnp.float32) + b2[l]
        x = x + ff

        x_vmem[...] = x
        return carry

    lax.fori_loop(0, N_LAYER, layer_body, 0)

    # ---------------- final LN + lm_head ----------------
    xf = _layernorm(x_vmem[...], lnf_g[...], lnf_b[...]).astype(jnp.bfloat16)
    o_ref[...] = jnp.dot(xf, w_lm[...],
                         preferred_element_type=jnp.float32) + b_lm[...]


# ---------------------------------------------------------------------------
# pallas_call wrapper
# ---------------------------------------------------------------------------
def _resident_spec(shape):
    """Full-array block with a constant index_map: DMA'd once, stays in VMEM."""
    nd = len(shape)
    return pl.BlockSpec(tuple(shape), lambda b, _nd=nd: (0,) * _nd)


def run_heart_gpt(x_emb, pp, t_real):
    """x_emb: (B, t_pad, C) f32 padded embeddings -> (B, t_pad, LM_PAD) padded logits."""
    B, t_pad, C = x_emb.shape
    kernel = functools.partial(heart_gpt_kernel, t_real=t_real, t_pad=t_pad)

    weight_names = ["ln1_g", "ln1_b", "a_qk", "w_vp", "bproj",
                    "ln2_g", "ln2_b", "w1", "b1", "w2", "b2",
                    "lnf_g", "lnf_b", "w_lm", "b_lm"]

    in_specs = [pl.BlockSpec((None, t_pad, C), lambda b: (b, 0, 0))]   # x (per batch row)
    in_specs += [_resident_spec(pp[name].shape) for name in weight_names]

    return pl.pallas_call(
        kernel,
        out_shape=jax.ShapeDtypeStruct((B, t_pad, LM_PAD), jnp.float32),
        grid_spec=pltpu.PrefetchScalarGridSpec(
            num_scalar_prefetch=0,
            grid=(B,),
            in_specs=in_specs,
            out_specs=pl.BlockSpec((None, t_pad, LM_PAD), lambda b: (b, 0, 0)),
            scratch_shapes=[pltpu.VMEM((t_pad, C), jnp.float32),   # residual stream
                            pltpu.VMEM((t_pad, C), jnp.float32)],  # head accumulator
        ),
        compiler_params=pltpu.CompilerParams(
            dimension_semantics=("parallel",),
            vmem_limit_bytes=32 * 1024 * 1024),
    )(x_emb, *[pp[name] for name in weight_names])


# ---------------------------------------------------------------------------
# Parameters: raw (PyTorch-like) init + packed/folded kernel weights
# ---------------------------------------------------------------------------
def init_params(key):
    keys = iter(jax.random.split(key, 160))

    def nrm(shape, scale=0.02):
        return (scale * jax.random.normal(next(keys), shape)).astype(jnp.float32)

    params = {
        "tok_emb": nrm((VOCAB_SIZE, N_EMBD)),
        "pos_emb": nrm((BLOCK_SIZE, N_EMBD)),
        "lnf_g": 1.0 + nrm((1, N_EMBD)),
        "lnf_b": nrm((1, N_EMBD)),
        "w_lm": nrm((N_EMBD, NUM_CLASSES)),
        "b_lm": nrm((1, NUM_CLASSES)),
        "blocks": [],
    }
    for _ in range(N_LAYER):
        params["blocks"].append({
            "ln1_g": 1.0 + nrm((1, N_EMBD)),
            "ln1_b": nrm((1, N_EMBD)),
            "wq": nrm((N_HEAD, N_EMBD, HEAD_SIZE)),
            "wk": nrm((N_HEAD, N_EMBD, HEAD_SIZE)),
            "wv": nrm((N_HEAD, N_EMBD, HEAD_SIZE)),
            "wproj": nrm((N_EMBD, N_EMBD)),
            "bproj": nrm((1, N_EMBD)),
            "ln2_g": 1.0 + nrm((1, N_EMBD)),
            "ln2_b": nrm((1, N_EMBD)),
            "w1": nrm((N_EMBD, 4 * N_EMBD)),
            "b1": nrm((1, 4 * N_EMBD)),
            "w2": nrm((4 * N_EMBD, N_EMBD)),
            "b2": nrm((1, N_EMBD)),
        })
    return params


def pack_params(params):
    """Fold Q/K and V/out-proj weights, pack heads along lanes, stack layers, cast to bf16."""
    blocks = params["blocks"]
    C = N_EMBD

    def stack(name, dtype=jnp.float32):
        return jnp.stack([bp[name] for bp in blocks]).astype(dtype)

    def pack_heads(per_layer_hcc):
        # (L, H, C, C) -> (L, C, H*C) so all heads share one wide matmul
        return jnp.transpose(per_layer_hcc, (0, 2, 1, 3)).reshape(N_LAYER, C, N_HEAD * C)

    a_qk = jnp.stack([
        jnp.einsum("hcd,hed->hce", bp["wq"], bp["wk"]) * ATTN_SCALE
        for bp in blocks])                                            # (L, H, C, C) f32
    a_qk = pack_heads(a_qk).astype(jnp.bfloat16)                      # (L, C, H*C)

    w_vp = jnp.stack([
        jnp.einsum("hcd,hde->hce", bp["wv"],
                   bp["wproj"].reshape(N_HEAD, HEAD_SIZE, C))
        for bp in blocks])                                            # (L, H, C, C) f32
    w_vp = pack_heads(w_vp).astype(jnp.bfloat16)                      # (L, C, H*C)

    pad = LM_PAD - NUM_CLASSES
    return {
        "tok_emb": params["tok_emb"],
        "pos_emb": params["pos_emb"],
        "ln1_g": stack("ln1_g"), "ln1_b": stack("ln1_b"),
        "a_qk": a_qk, "w_vp": w_vp,
        "bproj": stack("bproj"),
        "ln2_g": stack("ln2_g"), "ln2_b": stack("ln2_b"),
        "w1": stack("w1", jnp.bfloat16), "b1": stack("b1"),
        "w2": stack("w2", jnp.bfloat16), "b2": stack("b2"),
        "lnf_g": params["lnf_g"], "lnf_b": params["lnf_b"],
        "w_lm": jnp.pad(params["w_lm"], ((0, 0), (0, pad))).astype(jnp.bfloat16),
        "b_lm": jnp.pad(params["b_lm"], ((0, 0), (0, pad))),
    }


# ---------------------------------------------------------------------------
# Full forward (glue + fused Pallas kernel)
# ---------------------------------------------------------------------------
@jax.jit
def heart_gpt_forward(idx, pp):
    """idx: (B, T) int32 token ids. Returns logits (B, T, num_classes)."""
    # TODO(synk): targets/cross-entropy loss branch of the original module is not
    # implemented (unused at inference; the PyTorch code for it is inconsistent).
    B, T = idx.shape
    tok = jnp.take(pp["tok_emb"], idx, axis=0)                   # (B, T, C)
    x = (tok + pp["pos_emb"][:T][None]).astype(jnp.float32)
    t_pad = ((T + T_ALIGN - 1) // T_ALIGN) * T_ALIGN
    if t_pad != T:
        x = jnp.pad(x, ((0, 0), (0, t_pad - T), (0, 0)))
    logits_pad = run_heart_gpt(x, pp, t_real=T)                  # (B, t_pad, LM_PAD)
    return logits_pad[:, :T, :NUM_CLASSES]


def heart_gpt_classified(idx, pp):
    """Mirror of Heart_GPT_Model.classified: mean over T then argmax over classes."""
    idx_cond = idx[:, -BLOCK_SIZE:]
    logits = heart_gpt_forward(idx_cond, pp)
    return jnp.argmax(jnp.mean(logits, axis=1), axis=-1)


# ---------------------------------------------------------------------------
# Pure-JAX f32 reference (unfused, per-head) for correctness check
# ---------------------------------------------------------------------------
def reference_forward(idx, params):
    B, T = idx.shape
    tok = jnp.take(params["tok_emb"], idx, axis=0)
    x = (tok + params["pos_emb"][:T][None]).astype(jnp.float32)

    def ln(v, g, b):
        mu = jnp.mean(v, axis=-1, keepdims=True)
        var = jnp.mean((v - mu) ** 2, axis=-1, keepdims=True)
        return (v - mu) * lax.rsqrt(var + LN_EPS) * g + b

    for p in params["blocks"]:
        xn = ln(x, p["ln1_g"][0], p["ln1_b"][0])
        outs = []
        for h in range(N_HEAD):
            q = xn @ p["wq"][h]
            k = xn @ p["wk"][h]
            v = xn @ p["wv"][h]
            wei = jax.nn.softmax(q @ jnp.swapaxes(k, -1, -2) * ATTN_SCALE, axis=-1)
            outs.append(wei @ v)
        attn = jnp.concatenate(outs, axis=-1) @ p["wproj"] + p["bproj"][0]
        x = x + attn
        xn = ln(x, p["ln2_g"][0], p["ln2_b"][0])
        x = x + (jnp.maximum(xn @ p["w1"] + p["b1"][0], 0.0) @ p["w2"] + p["b2"][0])
    xn = ln(x, params["lnf_g"][0], params["lnf_b"][0])
    return xn @ params["w_lm"] + params["b_lm"][0]


# ---------------------------------------------------------------------------
if __name__ == "__main__":
    key = jax.random.PRNGKey(0)
    k_param, k_idx = jax.random.split(key)

    B, T = 2, 16                                  # small shapes, T <= block_size
    raw_params = init_params(k_param)
    packed = pack_params(raw_params)
    idx = jax.random.randint(k_idx, (B, T), 0, VOCAB_SIZE, dtype=jnp.int32)

    logits = jax.block_until_ready(heart_gpt_forward(idx, packed))
    assert logits.shape == (B, T, NUM_CLASSES), logits.shape
    assert bool(jnp.all(jnp.isfinite(logits)))

    ref = reference_forward(idx, raw_params)
    max_err = float(jnp.max(jnp.abs(logits - ref)))
    # bf16 matmul operands (f32 accumulation) vs f32 reference -> loosened tolerance
    assert jnp.allclose(logits, ref, atol=3e-2, rtol=3e-2), max_err

    classes = jax.block_until_ready(heart_gpt_classified(idx, packed))
    assert classes.shape == (B,)

    print("KERNEL_OK")
</pallas_src>

<mosaic_0001>
module attributes {stable_mosaic.version = 11 : i64} {
  func.func @heart_gpt_kernel(%arg0: i32, %arg1: memref<1x128x64xf32, #tpu.memory_space<vmem>>, %arg2: memref<8x1x64xf32, #tpu.memory_space<vmem>>, %arg3: memref<8x1x64xf32, #tpu.memory_space<vmem>>, %arg4: memref<8x64x512xbf16, #tpu.memory_space<vmem>>, %arg5: memref<8x64x512xbf16, #tpu.memory_space<vmem>>, %arg6: memref<8x1x64xf32, #tpu.memory_space<vmem>>, %arg7: memref<8x1x64xf32, #tpu.memory_space<vmem>>, %arg8: memref<8x1x64xf32, #tpu.memory_space<vmem>>, %arg9: memref<8x64x256xbf16, #tpu.memory_space<vmem>>, %arg10: memref<8x1x256xf32, #tpu.memory_space<vmem>>, %arg11: memref<8x256x64xbf16, #tpu.memory_space<vmem>>, %arg12: memref<8x1x64xf32, #tpu.memory_space<vmem>>, %arg13: memref<1x64xf32, #tpu.memory_space<vmem>>, %arg14: memref<1x64xf32, #tpu.memory_space<vmem>>, %arg15: memref<64x128xbf16, #tpu.memory_space<vmem>>, %arg16: memref<1x128xf32, #tpu.memory_space<vmem>>, %arg17: memref<1x128x128xf32, #tpu.memory_space<vmem>>, %arg18: memref<128x64xf32, #tpu.memory_space<vmem>>, %arg19: memref<128x64xf32, #tpu.memory_space<vmem>>) attributes {dimension_semantics = [#tpu.dimension_semantics<parallel>], iteration_bounds = array<i64: 2>, scalar_prefetch = 0 : i64, scratch_operands = 2 : i64, tpu.core_type = #tpu.core_type<tc>, window_params = [{transform_indices = @transform_0, window_bounds = array<i64: 1, 128, 64>}, {pipeline_mode = #tpu.pipeline_mode<synchronous>, transform_indices = @transform_1, window_bounds = array<i64: 8, 1, 64>}, {pipeline_mode = #tpu.pipeline_mode<synchronous>, transform_indices = @transform_2, window_bounds = array<i64: 8, 1, 64>}, {pipeline_mode = #tpu.pipeline_mode<synchronous>, transform_indices = @transform_3, window_bounds = array<i64: 8, 64, 512>}, {pipeline_mode = #tpu.pipeline_mode<synchronous>, transform_indices = @transform_4, window_bounds = array<i64: 8, 64, 512>}, {pipeline_mode = #tpu.pipeline_mode<synchronous>, transform_indices = @transform_5, window_bounds = array<i64: 8, 1, 64>}, {pipeline_mode = #tpu.pipeline_mode<synchronous>, transform_indices = @transform_6, window_bounds = array<i64: 8, 1, 64>}, {pipeline_mode = #tpu.pipeline_mode<synchronous>, transform_indices = @transform_7, window_bounds = array<i64: 8, 1, 64>}, {pipeline_mode = #tpu.pipeline_mode<synchronous>, transform_indices = @transform_8, window_bounds = array<i64: 8, 64, 256>}, {pipeline_mode = #tpu.pipeline_mode<synchronous>, transform_indices = @transform_9, window_bounds = array<i64: 8, 1, 256>}, {pipeline_mode = #tpu.pipeline_mode<synchronous>, transform_indices = @transform_10, window_bounds = array<i64: 8, 256, 64>}, {pipeline_mode = #tpu.pipeline_mode<synchronous>, transform_indices = @transform_11, window_bounds = array<i64: 8, 1, 64>}, {pipeline_mode = #tpu.pipeline_mode<synchronous>, transform_indices = @transform_12, window_bounds = array<i64: 1, 64>}, {pipeline_mode = #tpu.pipeline_mode<synchronous>, transform_indices = @transform_13, window_bounds = array<i64: 1, 64>}, {pipeline_mode = #tpu.pipeline_mode<synchronous>, transform_indices = @transform_14, window_bounds = array<i64: 64, 128>}, {pipeline_mode = #tpu.pipeline_mode<synchronous>, transform_indices = @transform_15, window_bounds = array<i64: 1, 128>}, {transform_indices = @transform_16, window_bounds = array<i64: 1, 128, 128>}]} {
    %c0 = arith.constant 0 : index
    %c0_0 = arith.constant 0 : index
    %c0_1 = arith.constant 0 : index
    %0 = vector.load %arg1[%c0, %c0_0, %c0_1] : memref<1x128x64xf32, #tpu.memory_space<vmem>>, vector<1x128x64xf32>
    %1 = vector.shape_cast %0 : vector<1x128x64xf32> to vector<128x64xf32>
    %c0_2 = arith.constant 0 : index
    %c0_3 = arith.constant 0 : index
    %2 = vector.load %arg18[%c0_2, %c0_3] : memref<128x64xf32, #tpu.memory_space<vmem>>, vector<128x64xf32>
    tpu.vector_store %arg18[%c0_2, %c0_3], %1 {strides = array<i32>} : memref<128x64xf32, #tpu.memory_space<vmem>>, vector<128x64xf32>,
    %3 = tpu.iota {dimensions = array<i32: 1>} : vector<1x128xi32>
    %c16_i32 = arith.constant 16 : i32
    %4 = vector.broadcast %c16_i32 : i32 to vector<1x128xi32>
    %5 = arith.cmpi slt, %3, %4 : vector<1x128xi32>
    %cst = arith.constant 0.000000e+00 : f32
    %cst_4 = arith.constant -1.000000e+30 : f32
    %6 = vector.broadcast %cst : f32 to vector<1x128xf32>
    %7 = vector.broadcast %cst_4 : f32 to vector<1x128xf32>
    %8 = arith.select %5, %6, %7 : vector<1x128xi1>, vector<1x128xf32>
    %c0_i32 = arith.constant 0 : i32
    %c8_i32 = arith.constant 8 : i32
    %9 = arith.addi %c0_i32, %c8_i32 : i32
    %c1_i32 = arith.constant 1 : i32
    scf.for %arg20 = %c0_i32 to %9 step %c1_i32  : i32 {
      %c0_25 = arith.constant 0 : index
      %c0_26 = arith.constant 0 : index
      %44 = vector.load %arg18[%c0_25, %c0_26] : memref<128x64xf32, #tpu.memory_space<vmem>>, vector<128x64xf32>
      %45 = arith.index_cast %arg20 : i32 to index
      %c0_27 = arith.constant 0 : index
      %c0_28 = arith.constant 0 : index
      %46 = vector.load %arg2[%45, %c0_27, %c0_28] : memref<8x1x64xf32, #tpu.memory_space<vmem>>, vector<1x1x64xf32>
      %47 = vector.shape_cast %46 : vector<1x1x64xf32> to vector<1x64xf32>
      %48 = arith.index_cast %arg20 : i32 to index
      %c0_29 = arith.constant 0 : index
      %c0_30 = arith.constant 0 : index
      %49 = vector.load %arg3[%48, %c0_29, %c0_30] : memref<8x1x64xf32, #tpu.memory_space<vmem>>, vector<1x1x64xf32>
      %50 = vector.shape_cast %49 : vector<1x1x64xf32> to vector<1x64xf32>
      %cst_31 = arith.constant dense<0.000000e+00> : vector<128xf32>
      %51 = vector.multi_reduction <add>, %44, %cst_31 [1] : vector<128x64xf32> to vector<128xf32>
      %52 = vector.shape_cast %51 : vector<128xf32> to vector<128x1xf32>
      %cst_32 = arith.constant 6.400000e+01 : f32
      %53 = vector.broadcast %cst_32 : f32 to vector<128x1xf32>
      %54 = arith.divf %52, %53 : vector<128x1xf32>
      %55 = vector.broadcast %54 : vector<128x1xf32> to vector<128x64xf32>
      %56 = arith.subf %44, %55 : vector<128x64xf32>
      %57 = arith.mulf %56, %56 : vector<128x64xf32>
      %cst_33 = arith.constant dense<0.000000e+00> : vector<128xf32>
      %58 = vector.multi_reduction <add>, %57, %cst_33 [1] : vector<128x64xf32> to vector<128xf32>
      %59 = vector.shape_cast %58 : vector<128xf32> to vector<128x1xf32>
      %cst_34 = arith.constant 6.400000e+01 : f32
      %60 = vector.broadcast %cst_34 : f32 to vector<128x1xf32>
      %61 = arith.divf %59, %60 : vector<128x1xf32>
      %62 = vector.broadcast %54 : vector<128x1xf32> to vector<128x64xf32>
      %63 = arith.subf %44, %62 : vector<128x64xf32>
      %cst_35 = arith.constant 9.99999974E-6 : f32
      %64 = vector.broadcast %cst_35 : f32 to vector<128x1xf32>
      %65 = arith.addf %61, %64 : vector<128x1xf32>
      %66 = math.rsqrt %65 : vector<128x1xf32>
      %67 = vector.broadcast %66 : vector<128x1xf32> to vector<128x64xf32>
      %68 = arith.mulf %63, %67 : vector<128x64xf32>
      %69 = vector.broadcast %47 : vector<1x64xf32> to vector<128x64xf32>
      %70 = arith.mulf %68, %69 : vector<128x64xf32>
      %71 = vector.broadcast %50 : vector<1x64xf32> to vector<128x64xf32>
      %72 = arith.addf %70, %71 : vector<128x64xf32>
      %73 = arith.truncf %72 : vector<128x64xf32> to vector<128x64xbf16>
      %74 = tpu.transpose %73, [1, 0] : vector<128x64xbf16> -> vector<64x128xbf16>
      %75 = arith.index_cast %arg20 : i32 to index
      %c0_36 = arith.constant 0 : index
      %c0_37 = arith.constant 0 : index
      %76 = vector.load %arg4[%75, %c0_36, %c0_37] : memref<8x64x512xbf16, #tpu.memory_space<vmem>>, vector<1x64x512xbf16>
      %77 = vector.shape_cast %76 : vector<1x64x512xbf16> to vector<64x512xbf16>
      %cst_38 = arith.constant dense<0.000000e+00> : vector<128x512xf32>
      %78 = tpu.matmul %73, %77, %cst_38 {dimension_numbers = #tpu.dot_dimension_numbers<[1], [0], [0], [1], [0, 0, 1, 1], [], []>} : vector<128x64xbf16>, vector<64x512xbf16>, vector<128x512xf32> -> vector<128x512xf32>
      %79 = arith.index_cast %arg20 : i32 to index
      %c0_39 = arith.constant 0 : index
      %c0_40 = arith.constant 0 : index
      %80 = vector.load %arg5[%79, %c0_39, %c0_40] : memref<8x64x512xbf16, #tpu.memory_space<vmem>>, vector<1x64x512xbf16>
      %81 = vector.shape_cast %80 : vector<1x64x512xbf16> to vector<64x512xbf16>
      %cst_41 = arith.constant dense<0.000000e+00> : vector<128x512xf32>
      %82 = tpu.matmul %73, %81, %cst_41 {dimension_numbers = #tpu.dot_dimension_numbers<[1], [0], [0], [1], [0, 0, 1, 1], [], []>} : vector<128x64xbf16>, vector<64x512xbf16>, vector<128x512xf32> -> vector<128x512xf32>
      %83 = arith.truncf %78 : vector<128x512xf32> to vector<128x512xbf16>
      %84 = arith.truncf %82 : vector<128x512xf32> to vector<128x512xbf16>
      %85 = vector.extract_strided_slice %83 {offsets = [0, 0], sizes = [128, 64], strides = [1, 1]} : vector<128x512xbf16> to vector<128x64xbf16>
      %cst_42 = arith.constant dense<0.000000e+00> : vector<128x128xf32>
      %86 = tpu.matmul %85, %74, %cst_42 {dimension_numbers = #tpu.dot_dimension_numbers<[1], [0], [0], [1], [0, 0, 1, 1], [], []>} : vector<128x64xbf16>, vector<64x128xbf16>, vector<128x128xf32> -> vector<128x128xf32>
      %87 = vector.broadcast %8 : vector<1x128xf32> to vector<128x128xf32>
      %88 = arith.addf %86, %87 : vector<128x128xf32>
      %cst_43 = arith.constant dense<0xFF800000> : vector<128xf32>
      %89 = vector.multi_reduction <maximumf>, %88, %cst_43 [1] : vector<128x128xf32> to vector<128xf32>
      %90 = vector.shape_cast %89 : vector<128xf32> to vector<128x1xf32>
      %91 = vector.broadcast %90 : vector<128x1xf32> to vector<128x128xf32>
      %92 = arith.subf %88, %91 : vector<128x128xf32>
      %93 = math.exp %92 : vector<128x128xf32>
      %cst_44 = arith.constant dense<0.000000e+00> : vector<128xf32>
      %94 = vector.multi_reduction <add>, %93, %cst_44 [1] : vector<128x128xf32> to vector<128xf32>
      %95 = vector.shape_cast %94 : vector<128xf32> to vector<128x1xf32>
      %96 = tpu.reciprocal %95 {approx = true} : vector<128x1xf32> -> vector<128x1xf32>
      %97 = arith.truncf %93 : vector<128x128xf32> to vector<128x128xbf16>
      %98 = vector.extract_strided_slice %84 {offsets = [0, 0], sizes = [128, 64], strides = [1, 1]} : vector<128x512xbf16> to vector<128x64xbf16>
      %cst_45 = arith.constant dense<0.000000e+00> : vector<128x64xf32>
      %99 = tpu.matmul %97, %98, %cst_45 {dimension_numbers = #tpu.dot_dimension_numbers<[1], [0], [0], [1], [0, 0, 1, 1], [], []>} : vector<128x128xbf16>, vector<128x64xbf16>, vector<128x64xf32> -> vector<128x64xf32>
      %100 = vector.broadcast %96 : vector<128x1xf32> to vector<128x64xf32>
      %101 = arith.mulf %99, %100 : vector<128x64xf32>
      %c0_46 = arith.constant 0 : index
      %c0_47 = arith.constant 0 : index
      %102 = vector.load %arg19[%c0_46, %c0_47] : memref<128x64xf32, #tpu.memory_space<vmem>>, vector<128x64xf32>
      tpu.vector_store %arg19[%c0_46, %c0_47], %101 {strides = array<i32>} : memref<128x64xf32, #tpu.memory_space<vmem>>, vector<128x64xf32>,
      %103 = vector.extract_strided_slice %83 {offsets = [0, 64], sizes = [128, 64], strides = [1, 1]} : vector<128x512xbf16> to vector<128x64xbf16>
      %cst_48 = arith.constant dense<0.000000e+00> : vector<128x128xf32>
      %104 = tpu.matmul %103, %74, %cst_48 {dimension_numbers = #tpu.dot_dimension_numbers<[1], [0], [0], [1], [0, 0, 1, 1], [], []>} : vector<128x64xbf16>, vector<64x128xbf16>, vector<128x128xf32> -> vector<128x128xf32>
      %105 = vector.broadcast %8 : vector<1x128xf32> to vector<128x128xf32>
      %106 = arith.addf %104, %105 : vector<128x128xf32>
      %cst_49 = arith.constant dense<0xFF800000> : vector<128xf32>
      %107 = vector.multi_reduction <maximumf>, %106, %cst_49 [1] : vector<128x128xf32> to vector<128xf32>
      %108 = vector.shape_cast %107 : vector<128xf32> to vector<128x1xf32>
      %109 = vector.broadcast %108 : vector<128x1xf32> to vector<128x128xf32>
      %110 = arith.subf %106, %109 : vector<128x128xf32>
      %111 = math.exp %110 : vector<128x128xf32>
      %cst_50 = arith.constant dense<0.000000e+00> : vector<128xf32>
      %112 = vector.multi_reduction <add>, %111, %cst_50 [1] : vector<128x128xf32> to vector<128xf32>
      %113 = vector.shape_cast %112 : vector<128xf32> to vector<128x1xf32>
      %114 = tpu.reciprocal %113 {approx = true} : vector<128x1xf32> -> vector<128x1xf32>
      %115 = arith.truncf %111 : vector<128x128xf32> to vector<128x128xbf16>
      %116 = vector.extract_strided_slice %84 {offsets = [0, 64], sizes = [128, 64], strides = [1, 1]} : vector<128x512xbf16> to vector<128x64xbf16>
      %cst_51 = arith.constant dense<0.000000e+00> : vector<128x64xf32>
      %117 = tpu.matmul %115, %116, %cst_51 {dimension_numbers = #tpu.dot_dimension_numbers<[1], [0], [0], [1], [0, 0, 1, 1], [], []>} : vector<128x128xbf16>, vector<128x64xbf16>, vector<128x64xf32> -> vector<128x64xf32>
      %118 = vector.broadcast %114 : vector<128x1xf32> to vector<128x64xf32>
      %119 = arith.mulf %117, %118 : vector<128x64xf32>
      %c0_52 = arith.constant 0 : index
      %c0_53 = arith.constant 0 : index
      %120 = vector.load %arg19[%c0_52, %c0_53] : memref<128x64xf32, #tpu.memory_space<vmem>>, vector<128x64xf32>
      %121 = arith.addf %120, %119 : vector<128x64xf32>
      %c0_54 = arith.constant 0 : index
      %c0_55 = arith.constant 0 : index
      %122 = vector.load %arg19[%c0_54, %c0_55] : memref<128x64xf32, #tpu.memory_space<vmem>>, vector<128x64xf32>
      tpu.vector_store %arg19[%c0_54, %c0_55], %121 {strides = array<i32>} : memref<128x64xf32, #tpu.memory_space<vmem>>, vector<128x64xf32>,
      %123 = vector.extract_strided_slice %83 {offsets = [0, 128], sizes = [128, 64], strides = [1, 1]} : vector<128x512xbf16> to vector<128x64xbf16>
      %cst_56 = arith.constant dense<0.000000e+00> : vector<128x128xf32>
      %124 = tpu.matmul %123, %74, %cst_56 {dimension_numbers = #tpu.dot_dimension_numbers<[1], [0], [0], [1], [0, 0, 1, 1], [], []>} : vector<128x64xbf16>, vector<64x128xbf16>, vector<128x128xf32> -> vector<128x128xf32>
      %125 = vector.broadcast %8 : vector<1x128xf32> to vector<128x128xf32>
      %126 = arith.addf %124, %125 : vector<128x128xf32>
      %cst_57 = arith.constant dense<0xFF800000> : vector<128xf32>
      %127 = vector.multi_reduction <maximumf>, %126, %cst_57 [1] : vector<128x128xf32> to vector<128xf32>
      %128 = vector.shape_cast %127 : vector<128xf32> to vector<128x1xf32>
      %129 = vector.broadcast %128 : vector<128x1xf32> to vector<128x128xf32>
      %130 = arith.subf %126, %129 : vector<128x128xf32>
      %131 = math.exp %130 : vector<128x128xf32>
      %cst_58 = arith.constant dense<0.000000e+00> : vector<128xf32>
      %132 = vector.multi_reduction <add>, %131, %cst_58 [1] : vector<128x128xf32> to vector<128xf32>
      %133 = vector.shape_cast %132 : vector<128xf32> to vector<128x1xf32>
      %134 = tpu.reciprocal %133 {approx = true} : vector<128x1xf32> -> vector<128x1xf32>
      %135 = arith.truncf %131 : vector<128x128xf32> to vector<128x128xbf16>
      %136 = vector.extract_strided_slice %84 {offsets = [0, 128], sizes = [128, 64], strides = [1, 1]} : vector<128x512xbf16> to vector<128x64xbf16>
      %cst_59 = arith.constant dense<0.000000e+00> : vector<128x64xf32>
      %137 = tpu.matmul %135, %136, %cst_59 {dimension_numbers = #tpu.dot_dimension_numbers<[1], [0], [0], [1], [0, 0, 1, 1], [], []>} : vector<128x128xbf16>, vector<128x64xbf16>, vector<128x64xf32> -> vector<128x64xf32>
      %138 = vector.broadcast %134 : vector<128x1xf32> to vector<128x64xf32>
      %139 = arith.mulf %137, %138 : vector<128x64xf32>
      %c0_60 = arith.constant 0 : index
      %c0_61 = arith.constant 0 : index
      %140 = vector.load %arg19[%c0_60, %c0_61] : memref<128x64xf32, #tpu.memory_space<vmem>>, vector<128x64xf32>
      %141 = arith.addf %140, %139 : vector<128x64xf32>
      %c0_62 = arith.constant 0 : index
      %c0_63 = arith.constant 0 : index
      %142 = vector.load %arg19[%c0_62, %c0_63] : memref<128x64xf32, #tpu.memory_space<vmem>>, vector<128x64xf32>
      tpu.vector_store %arg19[%c0_62, %c0_63], %141 {strides = array<i32>} : memref<128x64xf32, #tpu.memory_space<vmem>>, vector<128x64xf32>,
      %143 = vector.extract_strided_slice %83 {offsets = [0, 192], sizes = [128, 64], strides = [1, 1]} : vector<128x512xbf16> to vector<128x64xbf16>
      %cst_64 = arith.constant dense<0.000000e+00> : vector<128x128xf32>
      %144 = tpu.matmul %143, %74, %cst_64 {dimension_numbers = #tpu.dot_dimension_numbers<[1], [0], [0], [1], [0, 0, 1, 1], [], []>} : vector<128x64xbf16>, vector<64x128xbf16>, vector<128x128xf32> -> vector<128x128xf32>
      %145 = vector.broadcast %8 : vector<1x128xf32> to vector<128x128xf32>
      %146 = arith.addf %144, %145 : vector<128x128xf32>
      %cst_65 = arith.constant dense<0xFF800000> : vector<128xf32>
      %147 = vector.multi_reduction <maximumf>, %146, %cst_65 [1] : vector<128x128xf32> to vector<128xf32>
      %148 = vector.shape_cast %147 : vector<128xf32> to vector<128x1xf32>
      %149 = vector.broadcast %148 : vector<128x1xf32> to vector<128x128xf32>
      %150 = arith.subf %146, %149 : vector<128x128xf32>
      %151 = math.exp %150 : vector<128x128xf32>
      %cst_66 = arith.constant dense<0.000000e+00> : vector<128xf32>
      %152 = vector.multi_reduction <add>, %151, %cst_66 [1] : vector<128x128xf32> to vector<128xf32>
      %153 = vector.shape_cast %152 : vector<128xf32> to vector<128x1xf32>
      %154 = tpu.reciprocal %153 {approx = true} : vector<128x1xf32> -> vector<128x1xf32>
      %155 = arith.truncf %151 : vector<128x128xf32> to vector<128x128xbf16>
      %156 = vector.extract_strided_slice %84 {offsets = [0, 192], sizes = [128, 64], strides = [1, 1]} : vector<128x512xbf16> to vector<128x64xbf16>
      %cst_67 = arith.constant dense<0.000000e+00> : vector<128x64xf32>
      %157 = tpu.matmul %155, %156, %cst_67 {dimension_numbers = #tpu.dot_dimension_numbers<[1], [0], [0], [1], [0, 0, 1, 1], [], []>} : vector<128x128xbf16>, vector<128x64xbf16>, vector<128x64xf32> -> vector<128x64xf32>
      %158 = vector.broadcast %154 : vector<128x1xf32> to vector<128x64xf32>
      %159 = arith.mulf %157, %158 : vector<128x64xf32>
      %c0_68 = arith.constant 0 : index
      %c0_69 = arith.constant 0 : index
      %160 = vector.load %arg19[%c0_68, %c0_69] : memref<128x64xf32, #tpu.memory_space<vmem>>, vector<128x64xf32>
      %161 = arith.addf %160, %159 : vector<128x64xf32>
      %c0_70 = arith.constant 0 : index
      %c0_71 = arith.constant 0 : index
      %162 = vector.load %arg19[%c0_70, %c0_71] : memref<128x64xf32, #tpu.memory_space<vmem>>, vector<128x64xf32>
      tpu.vector_store %arg19[%c0_70, %c0_71], %161 {strides = array<i32>} : memref<128x64xf32, #tpu.memory_space<vmem>>, vector<128x64xf32>,
      %163 = vector.extract_strided_slice %83 {offsets = [0, 256], sizes = [128, 64], strides = [1, 1]} : vector<128x512xbf16> to vector<128x64xbf16>
      %cst_72 = arith.constant dense<0.000000e+00> : vector<128x128xf32>
      %164 = tpu.matmul %163, %74, %cst_72 {dimension_numbers = #tpu.dot_dimension_numbers<[1], [0], [0], [1], [0, 0, 1, 1], [], []>} : vector<128x64xbf16>, vector<64x128xbf16>, vector<128x128xf32> -> vector<128x128xf32>
      %165 = vector.broadcast %8 : vector<1x128xf32> to vector<128x128xf32>
      %166 = arith.addf %164, %165 : vector<128x128xf32>
      %cst_73 = arith.constant dense<0xFF800000> : vector<128xf32>
      %167 = vector.multi_reduction <maximumf>, %166, %cst_73 [1] : vector<128x128xf32> to vector<128xf32>
      %168 = vector.shape_cast %167 : vector<128xf32> to vector<128x1xf32>
      %169 = vector.broadcast %168 : vector<128x1xf32> to vector<128x128xf32>
      %170 = arith.subf %166, %169 : vector<128x128xf32>
      %171 = math.exp %170 : vector<128x128xf32>
      %cst_74 = arith.constant dense<0.000000e+00> : vector<128xf32>
      %172 = vector.multi_reduction <add>, %171, %cst_74 [1] : vector<128x128xf32> to vector<128xf32>
      %173 = vector.shape_cast %172 : vector<128xf32> to vector<128x1xf32>
      %174 = tpu.reciprocal %173 {approx = true} : vector<128x1xf32> -> vector<128x1xf32>
      %175 = arith.truncf %171 : vector<128x128xf32> to vector<128x128xbf16>
      %176 = vector.extract_strided_slice %84 {offsets = [0, 256], sizes = [128, 64], strides = [1, 1]} : vector<128x512xbf16> to vector<128x64xbf16>
      %cst_75 = arith.constant dense<0.000000e+00> : vector<128x64xf32>
      %177 = tpu.matmul %175, %176, %cst_75 {dimension_numbers = #tpu.dot_dimension_numbers<[1], [0], [0], [1], [0, 0, 1, 1], [], []>} : vector<128x128xbf16>, vector<128x64xbf16>, vector<128x64xf32> -> vector<128x64xf32>
      %178 = vector.broadcast %174 : vector<128x1xf32> to vector<128x64xf32>
      %179 = arith.mulf %177, %178 : vector<128x64xf32>
      %c0_76 = arith.constant 0 : index
      %c0_77 = arith.constant 0 : index
      %180 = vector.load %arg19[%c0_76, %c0_77] : memref<128x64xf32, #tpu.memory_space<vmem>>, vector<128x64xf32>
      %181 = arith.addf %180, %179 : vector<128x64xf32>
      %c0_78 = arith.constant 0 : index
      %c0_79 = arith.constant 0 : index
      %182 = vector.load %arg19[%c0_78, %c0_79] : memref<128x64xf32, #tpu.memory_space<vmem>>, vector<128x64xf32>
      tpu.vector_store %arg19[%c0_78, %c0_79], %181 {strides = array<i32>} : memref<128x64xf32, #tpu.memory_space<vmem>>, vector<128x64xf32>,
      %183 = vector.extract_strided_slice %83 {offsets = [0, 320], sizes = [128, 64], strides = [1, 1]} : vector<128x512xbf16> to vector<128x64xbf16>
      %cst_80 = arith.constant dense<0.000000e+00> : vector<128x128xf32>
      %184 = tpu.matmul %183, %74, %cst_80 {dimension_numbers = #tpu.dot_dimension_numbers<[1], [0], [0], [1], [0, 0, 1, 1], [], []>} : vector<128x64xbf16>, vector<64x128xbf16>, vector<128x128xf32> -> vector<128x128xf32>
      %185 = vector.broadcast %8 : vector<1x128xf32> to vector<128x128xf32>
      %186 = arith.addf %184, %185 : vector<128x128xf32>
      %cst_81 = arith.constant dense<0xFF800000> : vector<128xf32>
      %187 = vector.multi_reduction <maximumf>, %186, %cst_81 [1] : vector<128x128xf32> to vector<128xf32>
      %188 = vector.shape_cast %187 : vector<128xf32> to vector<128x1xf32>
      %189 = vector.broadcast %188 : vector<128x1xf32> to vector<128x128xf32>
      %190 = arith.subf %186, %189 : vector<128x128xf32>
      %191 = math.exp %190 : vector<128x128xf32>
      %cst_82 = arith.constant dense<0.000000e+00> : vector<128xf32>
      %192 = vector.multi_reduction <add>, %191, %cst_82 [1] : vector<128x128xf32> to vector<128xf32>
      %193 = vector.shape_cast %192 : vector<128xf32> to vector<128x1xf32>
      %194 = tpu.reciprocal %193 {approx = true} : vector<128x1xf32> -> vector<128x1xf32>
      %195 = arith.truncf %191 : vector<128x128xf32> to vector<128x128xbf16>
      %196 = vector.extract_strided_slice %84 {offsets = [0, 320], sizes = [128, 64], strides = [1, 1]} : vector<128x512xbf16> to vector<128x64xbf16>
      %cst_83 = arith.constant dense<0.000000e+00> : vector<128x64xf32>
      %197 = tpu.matmul %195, %196, %cst_83 {dimension_numbers = #tpu.dot_dimension_numbers<[1], [0], [0], [1], [0, 0, 1, 1], [], []>} : vector<128x128xbf16>, vector<128x64xbf16>, vector<128x64xf32> -> vector<128x64xf32>
      %198 = vector.broadcast %194 : vector<128x1xf32> to vector<128x64xf32>
      %199 = arith.mulf %197, %198 : vector<128x64xf32>
      %c0_84 = arith.constant 0 : index
      %c0_85 = arith.constant 0 : index
      %200 = vector.load %arg19[%c0_84, %c0_85] : memref<128x64xf32, #tpu.memory_space<vmem>>, vector<128x64xf32>
      %201 = arith.addf %200, %199 : vector<128x64xf32>
      %c0_86 = arith.constant 0 : index
      %c0_87 = arith.constant 0 : index
      %202 = vector.load %arg19[%c0_86, %c0_87] : memref<128x64xf32, #tpu.memory_space<vmem>>, vector<128x64xf32>
      tpu.vector_store %arg19[%c0_86, %c0_87], %201 {strides = array<i32>} : memref<128x64xf32, #tpu.memory_space<vmem>>, vector<128x64xf32>,
      %203 = vector.extract_strided_slice %83 {offsets = [0, 384], sizes = [128, 64], strides = [1, 1]} : vector<128x512xbf16> to vector<128x64xbf16>
      %cst_88 = arith.constant dense<0.000000e+00> : vector<128x128xf32>
      %204 = tpu.matmul %203, %74, %cst_88 {dimension_numbers = #tpu.dot_dimension_numbers<[1], [0], [0], [1], [0, 0, 1, 1], [], []>} : vector<128x64xbf16>, vector<64x128xbf16>, vector<128x128xf32> -> vector<128x128xf32>
      %205 = vector.broadcast %8 : vector<1x128xf32> to vector<128x128xf32>
      %206 = arith.addf %204, %205 : vector<128x128xf32>
      %cst_89 = arith.constant dense<0xFF800000> : vector<128xf32>
      %207 = vector.multi_reduction <maximumf>, %206, %cst_89 [1] : vector<128x128xf32> to vector<128xf32>
      %208 = vector.shape_cast %207 : vector<128xf32> to vector<128x1xf32>
      %209 = vector.broadcast %208 : vector<128x1xf32> to vector<128x128xf32>
      %210 = arith.subf %206, %209 : vector<128x128xf32>
      %211 = math.exp %210 : vector<128x128xf32>
      %cst_90 = arith.constant dense<0.000000e+00> : vector<128xf32>
      %212 = vector.multi_reduction <add>, %211, %cst_90 [1] : vector<128x128xf32> to vector<128xf32>
      %213 = vector.shape_cast %212 : vector<128xf32> to vector<128x1xf32>
      %214 = tpu.reciprocal %213 {approx = true} : vector<128x1xf32> -> vector<128x1xf32>
      %215 = arith.truncf %211 : vector<128x128xf32> to vector<128x128xbf16>
      %216 = vector.extract_strided_slice %84 {offsets = [0, 384], sizes = [128, 64], strides = [1, 1]} : vector<128x512xbf16> to vector<128x64xbf16>
      %cst_91 = arith.constant dense<0.000000e+00> : vector<128x64xf32>
      %217 = tpu.matmul %215, %216, %cst_91 {dimension_numbers = #tpu.dot_dimension_numbers<[1], [0], [0], [1], [0, 0, 1, 1], [], []>} : vector<128x128xbf16>, vector<128x64xbf16>, vector<128x64xf32> -> vector<128x64xf32>
      %218 = vector.broadcast %214 : vector<128x1xf32> to vector<128x64xf32>
      %219 = arith.mulf %217, %218 : vector<128x64xf32>
      %c0_92 = arith.constant 0 : index
      %c0_93 = arith.constant 0 : index
      %220 = vector.load %arg19[%c0_92, %c0_93] : memref<128x64xf32, #tpu.memory_space<vmem>>, vector<128x64xf32>
      %221 = arith.addf %220, %219 : vector<128x64xf32>
      %c0_94 = arith.constant 0 : index
      %c0_95 = arith.constant 0 : index
      %222 = vector.load %arg19[%c0_94, %c0_95] : memref<128x64xf32, #tpu.memory_space<vmem>>, vector<128x64xf32>
      tpu.vector_store %arg19[%c0_94, %c0_95], %221 {strides = array<i32>} : memref<128x64xf32, #tpu.memory_space<vmem>>, vector<128x64xf32>,
      %223 = vector.extract_strided_slice %83 {offsets = [0, 448], sizes = [128, 64], strides = [1, 1]} : vector<128x512xbf16> to vector<128x64xbf16>
      %cst_96 = arith.constant dense<0.000000e+00> : vector<128x128xf32>
      %224 = tpu.matmul %223, %74, %cst_96 {dimension_numbers = #tpu.dot_dimension_numbers<[1], [0], [0], [1], [0, 0, 1, 1], [], []>} : vector<128x64xbf16>, vector<64x128xbf16>, vector<128x128xf32> -> vector<128x128xf32>
      %225 = vector.broadcast %8 : vector<1x128xf32> to vector<128x128xf32>
      %226 = arith.addf %224, %225 : vector<128x128xf32>
      %cst_97 = arith.constant dense<0xFF800000> : vector<128xf32>
      %227 = vector.multi_reduction <maximumf>, %226, %cst_97 [1] : vector<128x128xf32> to vector<128xf32>
      %228 = vector.shape_cast %227 : vector<128xf32> to vector<128x1xf32>
      %229 = vector.broadcast %228 : vector<128x1xf32> to vector<128x128xf32>
      %230 = arith.subf %226, %229 : vector<128x128xf32>
      %231 = math.exp %230 : vector<128x128xf32>
      %cst_98 = arith.constant dense<0.000000e+00> : vector<128xf32>
      %232 = vector.multi_reduction <add>, %231, %cst_98 [1] : vector<128x128xf32> to vector<128xf32>
      %233 = vector.shape_cast %232 : vector<128xf32> to vector<128x1xf32>
      %234 = tpu.reciprocal %233 {approx = true} : vector<128x1xf32> -> vector<128x1xf32>
      %235 = arith.truncf %231 : vector<128x128xf32> to vector<128x128xbf16>
      %236 = vector.extract_strided_slice %84 {offsets = [0, 448], sizes = [128, 64], strides = [1, 1]} : vector<128x512xbf16> to vector<128x64xbf16>
      %cst_99 = arith.constant dense<0.000000e+00> : vector<128x64xf32>
      %237 = tpu.matmul %235, %236, %cst_99 {dimension_numbers = #tpu.dot_dimension_numbers<[1], [0], [0], [1], [0, 0, 1, 1], [], []>} : vector<128x128xbf16>, vector<128x64xbf16>, vector<128x64xf32> -> vector<128x64xf32>
      %238 = vector.broadcast %234 : vector<128x1xf32> to vector<128x64xf32>
      %239 = arith.mulf %237, %238 : vector<128x64xf32>
      %c0_100 = arith.constant 0 : index
      %c0_101 = arith.constant 0 : index
      %240 = vector.load %arg19[%c0_100, %c0_101] : memref<128x64xf32, #tpu.memory_space<vmem>>, vector<128x64xf32>
      %241 = arith.addf %240, %239 : vector<128x64xf32>
      %c0_102 = arith.constant 0 : index
      %c0_103 = arith.constant 0 : index
      %242 = vector.load %arg19[%c0_102, %c0_103] : memref<128x64xf32, #tpu.memory_space<vmem>>, vector<128x64xf32>
      tpu.vector_store %arg19[%c0_102, %c0_103], %241 {strides = array<i32>} : memref<128x64xf32, #tpu.memory_space<vmem>>, vector<128x64xf32>,
      %c0_104 = arith.constant 0 : index
      %c0_105 = arith.constant 0 : index
      %243 = vector.load %arg19[%c0_104, %c0_105] : memref<128x64xf32, #tpu.memory_space<vmem>>, vector<128x64xf32>
      %244 = arith.addf %44, %243 : vector<128x64xf32>
      %245 = arith.index_cast %arg20 : i32 to index
      %c0_106 = arith.constant 0 : index
      %c0_107 = arith.constant 0 : index
      %246 = vector.load %arg6[%245, %c0_106, %c0_107] : memref<8x1x64xf32, #tpu.memory_space<vmem>>, vector<1x1x64xf32>
      %247 = vector.shape_cast %246 : vector<1x1x64xf32> to vector<1x64xf32>
      %248 = vector.broadcast %247 : vector<1x64xf32> to vector<128x64xf32>
      %249 = arith.addf %244, %248 : vector<128x64xf32>
      %250 = arith.index_cast %arg20 : i32 to index
      %c0_108 = arith.constant 0 : index
      %c0_109 = arith.constant 0 : index
      %251 = vector.load %arg7[%250, %c0_108, %c0_109] : memref<8x1x64xf32, #tpu.memory_space<vmem>>, vector<1x1x64xf32>
      %252 = vector.shape_cast %251 : vector<1x1x64xf32> to vector<1x64xf32>
      %253 = arith.index_cast %arg20 : i32 to index
      %c0_110 = arith.constant 0 : index
      %c0_111 = arith.constant 0 : index
      %254 = vector.load %arg8[%253, %c0_110, %c0_111] : memref<8x1x64xf32, #tpu.memory_space<vmem>>, vector<1x1x64xf32>
      %255 = vector.shape_cast %254 : vector<1x1x64xf32> to vector<1x64xf32>
      %cst_112 = arith.constant dense<0.000000e+00> : vector<128xf32>
      %256 = vector.multi_reduction <add>, %249, %cst_112 [1] : vector<128x64xf32> to vector<128xf32>
      %257 = vector.shape_cast %256 : vector<128xf32> to vector<128x1xf32>
      %cst_113 = arith.constant 6.400000e+01 : f32
      %258 = vector.broadcast %cst_113 : f32 to vector<128x1xf32>
      %259 = arith.divf %257, %258 : vector<128x1xf32>
      %260 = vector.broadcast %259 : vector<128x1xf32> to vector<128x64xf32>
      %261 = arith.subf %249, %260 : vector<128x64xf32>
      %262 = arith.mulf %261, %261 : vector<128x64xf32>
      %cst_114 = arith.constant dense<0.000000e+00> : vector<128xf32>
      %263 = vector.multi_reduction <add>, %262, %cst_114 [1] : vector<128x64xf32> to vector<128xf32>
      %264 = vector.shape_cast %263 : vector<128xf32> to vector<128x1xf32>
      %cst_115 = arith.constant 6.400000e+01 : f32
      %265 = vector.broadcast %cst_115 : f32 to vector<128x1xf32>
      %266 = arith.divf %264, %265 : vector<128x1xf32>
      %267 = vector.broadcast %259 : vector<128x1xf32> to vector<128x64xf32>
      %268 = arith.subf %249, %267 : vector<128x64xf32>
      %cst_116 = arith.constant 9.99999974E-6 : f32
      %269 = vector.broadcast %cst_116 : f32 to vector<128x1xf32>
      %270 = arith.addf %266, %269 : vector<128x1xf32>
      %271 = math.rsqrt %270 : vector<128x1xf32>
      %272 = vector.broadcast %271 : vector<128x1xf32> to vector<128x64xf32>
      %273 = arith.mulf %268, %272 : vector<128x64xf32>
      %274 = vector.broadcast %252 : vector<1x64xf32> to vector<128x64xf32>
      %275 = arith.mulf %273, %274 : vector<128x64xf32>
      %276 = vector.broadcast %255 : vector<1x64xf32> to vector<128x64xf32>
      %277 = arith.addf %275, %276 : vector<128x64xf32>
      %278 = arith.truncf %277 : vector<128x64xf32> to vector<128x64xbf16>
      %279 = arith.index_cast %arg20 : i32 to index
      %c0_117 = arith.constant 0 : index
      %c0_118 = arith.constant 0 : index
      %280 = vector.load %arg9[%279, %c0_117, %c0_118] : memref<8x64x256xbf16, #tpu.memory_space<vmem>>, vector<1x64x256xbf16>
      %281 = vector.shape_cast %280 : vector<1x64x256xbf16> to vector<64x256xbf16>
      %cst_119 = arith.constant dense<0.000000e+00> : vector<128x256xf32>
      %282 = tpu.matmul %278, %281, %cst_119 {dimension_numbers = #tpu.dot_dimension_numbers<[1], [0], [0], [1], [0, 0, 1, 1], [], []>} : vector<128x64xbf16>, vector<64x256xbf16>, vector<128x256xf32> -> vector<128x256xf32>
      %283 = arith.index_cast %arg20 : i32 to index
      %c0_120 = arith.constant 0 : index
      %c0_121 = arith.constant 0 : index
      %284 = vector.load %arg10[%283, %c0_120, %c0_121] : memref<8x1x256xf32, #tpu.memory_space<vmem>>, vector<1x1x256xf32>
      %285 = vector.shape_cast %284 : vector<1x1x256xf32> to vector<1x256xf32>
      %286 = vector.broadcast %285 : vector<1x256xf32> to vector<128x256xf32>
      %287 = arith.addf %282, %286 : vector<128x256xf32>
      %cst_122 = arith.constant 0.000000e+00 : f32
      %288 = vector.broadcast %cst_122 : f32 to vector<128x256xf32>
      %289 = arith.maximumf %287, %288 : vector<128x256xf32>
      %290 = arith.truncf %289 : vector<128x256xf32> to vector<128x256xbf16>
      %291 = arith.index_cast %arg20 : i32 to index
      %c0_123 = arith.constant 0 : index
      %c0_124 = arith.constant 0 : index
      %292 = vector.load %arg11[%291, %c0_123, %c0_124] : memref<8x256x64xbf16, #tpu.memory_space<vmem>>, vector<1x256x64xbf16>
      %293 = vector.shape_cast %292 : vector<1x256x64xbf16> to vector<256x64xbf16>
      %cst_125 = arith.constant dense<0.000000e+00> : vector<128x64xf32>
      %294 = tpu.matmul %290, %293, %cst_125 {dimension_numbers = #tpu.dot_dimension_numbers<[1], [0], [0], [1], [0, 0, 1, 1], [], []>} : vector<128x256xbf16>, vector<256x64xbf16>, vector<128x64xf32> -> vector<128x64xf32>
      %295 = arith.index_cast %arg20 : i32 to index
      %c0_126 = arith.constant 0 : index
      %c0_127 = arith.constant 0 : index
      %296 = vector.load %arg12[%295, %c0_126, %c0_127] : memref<8x1x64xf32, #tpu.memory_space<vmem>>, vector<1x1x64xf32>
      %297 = vector.shape_cast %296 : vector<1x1x64xf32> to vector<1x64xf32>
      %298 = vector.broadcast %297 : vector<1x64xf32> to vector<128x64xf32>
      %299 = arith.addf %294, %298 : vector<128x64xf32>
      %300 = arith.addf %249, %299 : vector<128x64xf32>
      %c0_128 = arith.constant 0 : index
      %c0_129 = arith.constant 0 : index
      %301 = vector.load %arg18[%c0_128, %c0_129] : memref<128x64xf32, #tpu.memory_space<vmem>>, vector<128x64xf32>
      tpu.vector_store %arg18[%c0_128, %c0_129], %300 {strides = array<i32>} : memref<128x64xf32, #tpu.memory_space<vmem>>, vector<128x64xf32>,
    }
    %c8_i32_5 = arith.constant 8 : i32
    %c0_6 = arith.constant 0 : index
    %c0_7 = arith.constant 0 : index
    %10 = vector.load %arg18[%c0_6, %c0_7] : memref<128x64xf32, #tpu.memory_space<vmem>>, vector<128x64xf32>
    %c0_8 = arith.constant 0 : index
    %c0_9 = arith.constant 0 : index
    %11 = vector.load %arg13[%c0_8, %c0_9] : memref<1x64xf32, #tpu.memory_space<vmem>>, vector<1x64xf32>
    %c0_10 = arith.constant 0 : index
    %c0_11 = arith.constant 0 : index
    %12 = vector.load %arg14[%c0_10, %c0_11] : memref<1x64xf32, #tpu.memory_space<vmem>>, vector<1x64xf32>
    %cst_12 = arith.constant dense<0.000000e+00> : vector<128xf32>
    %13 = vector.multi_reduction <add>, %10, %cst_12 [1] : vector<128x64xf32> to vector<128xf32>
    %14 = vector.shape_cast %13 : vector<128xf32> to vector<128x1xf32>
    %cst_13 = arith.constant 6.400000e+01 : f32
    %15 = vector.broadcast %cst_13 : f32 to vector<128x1xf32>
    %16 = arith.divf %14, %15 : vector<128x1xf32>
    %17 = vector.broadcast %16 : vector<128x1xf32> to vector<128x64xf32>
    %18 = arith.subf %10, %17 : vector<128x64xf32>
    %19 = arith.mulf %18, %18 : vector<128x64xf32>
    %cst_14 = arith.constant dense<0.000000e+00> : vector<128xf32>
    %20 = vector.multi_reduction <add>, %19, %cst_14 [1] : vector<128x64xf32> to vector<128xf32>
    %21 = vector.shape_cast %20 : vector<128xf32> to vector<128x1xf32>
    %cst_15 = arith.constant 6.400000e+01 : f32
    %22 = vector.broadcast %cst_15 : f32 to vector<128x1xf32>
    %23 = arith.divf %21, %22 : vector<128x1xf32>
    %24 = vector.broadcast %16 : vector<128x1xf32> to vector<128x64xf32>
    %25 = arith.subf %10, %24 : vector<128x64xf32>
    %cst_16 = arith.constant 9.99999974E-6 : f32
    %26 = vector.broadcast %cst_16 : f32 to vector<128x1xf32>
    %27 = arith.addf %23, %26 : vector<128x1xf32>
    %28 = math.rsqrt %27 : vector<128x1xf32>
    %29 = vector.broadcast %28 : vector<128x1xf32> to vector<128x64xf32>
    %30 = arith.mulf %25, %29 : vector<128x64xf32>
    %31 = vector.broadcast %11 : vector<1x64xf32> to vector<128x64xf32>
    %32 = arith.mulf %30, %31 : vector<128x64xf32>
    %33 = vector.broadcast %12 : vector<1x64xf32> to vector<128x64xf32>
    %34 = arith.addf %32, %33 : vector<128x64xf32>
    %35 = arith.truncf %34 : vector<128x64xf32> to vector<128x64xbf16>
    %c0_17 = arith.constant 0 : index
    %c0_18 = arith.constant 0 : index
    %36 = vector.load %arg15[%c0_17, %c0_18] : memref<64x128xbf16, #tpu.memory_space<vmem>>, vector<64x128xbf16>
    %cst_19 = arith.constant dense<0.000000e+00> : vector<128x128xf32>
    %37 = tpu.matmul %35, %36, %cst_19 {dimension_numbers = #tpu.dot_dimension_numbers<[1], [0], [0], [1], [0, 0, 1, 1], [], []>} : vector<128x64xbf16>, vector<64x128xbf16>, vector<128x128xf32> -> vector<128x128xf32>
    %c0_20 = arith.constant 0 : index
    %c0_21 = arith.constant 0 : index
    %38 = vector.load %arg16[%c0_20, %c0_21] : memref<1x128xf32, #tpu.memory_space<vmem>>, vector<1x128xf32>
    %39 = vector.broadcast %38 : vector<1x128xf32> to vector<128x128xf32>
    %40 = arith.addf %37, %39 : vector<128x128xf32>
    %c0_22 = arith.constant 0 : index
    %c0_23 = arith.constant 0 : index
    %c0_24 = arith.constant 0 : index
    %41 = vector.load %arg17[%c0_22, %c0_23, %c0_24] : memref<1x128x128xf32, #tpu.memory_space<vmem>>, vector<1x128x128xf32>
    %42 = vector.shape_cast %41 : vector<1x128x128xf32> to vector<128x128xf32>
    %43 = vector.shape_cast %40 : vector<128x128xf32> to vector<1x128x128xf32>
    tpu.vector_store %arg17[%c0_22, %c0_23, %c0_24], %43 {strides = array<i32>} : memref<1x128x128xf32, #tpu.memory_space<vmem>>, vector<1x128x128xf32>,
    return
  }
  func.func @transform_0(%arg0: i32) -> (i32, i32, i32) {
    %c0_i32 = arith.constant 0 : i32
    %c0_i32_0 = arith.constant 0 : i32
    %c0_i32_1 = arith.constant 0 : i32
    return %arg0, %c0_i32, %c0_i32_0 : i32, i32, i32
  }
  func.func @transform_1(%arg0: i32) -> (i32, i32, i32) {
    %c0_i32 = arith.constant 0 : i32
    %c0_i32_0 = arith.constant 0 : i32
    %c0_i32_1 = arith.constant 0 : i32
    %c0_i32_2 = arith.constant 0 : i32
    return %c0_i32, %c0_i32_0, %c0_i32_1 : i32, i32, i32
  }
  func.func @transform_2(%arg0: i32) -> (i32, i32, i32) {
    %c0_i32 = arith.constant 0 : i32
    %c0_i32_0 = arith.constant 0 : i32
    %c0_i32_1 = arith.constant 0 : i32
    %c0_i32_2 = arith.constant 0 : i32
    return %c0_i32, %c0_i32_0, %c0_i32_1 : i32, i32, i32
  }
  func.func @transform_3(%arg0: i32) -> (i32, i32, i32) {
    %c0_i32 = arith.constant 0 : i32
    %c0_i32_0 = arith.constant 0 : i32
    %c0_i32_1 = arith.constant 0 : i32
    %c0_i32_2 = arith.constant 0 : i32
    return %c0_i32, %c0_i32_0, %c0_i32_1 : i32, i32, i32
  }
  func.func @transform_4(%arg0: i32) -> (i32, i32, i32) {
    %c0_i32 = arith.constant 0 : i32
    %c0_i32_0 = arith.constant 0 : i32
    %c0_i32_1 = arith.constant 0 : i32
    %c0_i32_2 = arith.constant 0 : i32
    return %c0_i32, %c0_i32_0, %c0_i32_1 : i32, i32, i32
  }
  func.func @transform_5(%arg0: i32) -> (i32, i32, i32) {
    %c0_i32 = arith.constant 0 : i32
    %c0_i32_0 = arith.constant 0 : i32
    %c0_i32_1 = arith.constant 0 : i32
    %c0_i32_2 = arith.constant 0 : i32
    return %c0_i32, %c0_i32_0, %c0_i32_1 : i32, i32, i32
  }
  func.func @transform_6(%arg0: i32) -> (i32, i32, i32) {
    %c0_i32 = arith.constant 0 : i32
    %c0_i32_0 = arith.constant 0 : i32
    %c0_i32_1 = arith.constant 0 : i32
    %c0_i32_2 = arith.constant 0 : i32
    return %c0_i32, %c0_i32_0, %c0_i32_1 : i32, i32, i32
  }
  func.func @transform_7(%arg0: i32) -> (i32, i32, i32) {
    %c0_i32 = arith.constant 0 : i32
    %c0_i32_0 = arith.constant 0 : i32
    %c0_i32_1 = arith.constant 0 : i32
    %c0_i32_2 = arith.constant 0 : i32
    return %c0_i32, %c0_i32_0, %c0_i32_1 : i32, i32, i32
  }
  func.func @transform_8(%arg0: i32) -> (i32, i32, i32) {
    %c0_i32 = arith.constant 0 : i32
    %c0_i32_0 = arith.constant 0 : i32
    %c0_i32_1 = arith.constant 0 : i32
    %c0_i32_2 = arith.constant 0 : i32
    return %c0_i32, %c0_i32_0, %c0_i32_1 : i32, i32, i32
  }
  func.func @transform_9(%arg0: i32) -> (i32, i32, i32) {
    %c0_i32 = arith.constant 0 : i32
    %c0_i32_0 = arith.constant 0 : i32
    %c0_i32_1 = arith.constant 0 : i32
    %c0_i32_2 = arith.constant 0 : i32
    return %c0_i32, %c0_i32_0, %c0_i32_1 : i32, i32, i32
  }
  func.func @transform_10(%arg0: i32) -> (i32, i32, i32) {
    %c0_i32 = arith.constant 0 : i32
    %c0_i32_0 = arith.constant 0 : i32
    %c0_i32_1 = arith.constant 0 : i32
    %c0_i32_2 = arith.constant 0 : i32
    return %c0_i32, %c0_i32_0, %c0_i32_1 : i32, i32, i32
  }
  func.func @transform_11(%arg0: i32) -> (i32, i32, i32) {
    %c0_i32 = arith.constant 0 : i32
    %c0_i32_0 = arith.constant 0 : i32
    %c0_i32_1 = arith.constant 0 : i32
    %c0_i32_2 = arith.constant 0 : i32
    return %c0_i32, %c0_i32_0, %c0_i32_1 : i32, i32, i32
  }
  func.func @transform_12(%arg0: i32) -> (i32, i32) {
    %c0_i32 = arith.constant 0 : i32
    %c0_i32_0 = arith.constant 0 : i32
    %c0_i32_1 = arith.constant 0 : i32
    return %c0_i32, %c0_i32_0 : i32, i32
  }
  func.func @transform_13(%arg0: i32) -> (i32, i32) {
    %c0_i32 = arith.constant 0 : i32
    %c0_i32_0 = arith.constant 0 : i32
    %c0_i32_1 = arith.constant 0 : i32
    return %c0_i32, %c0_i32_0 : i32, i32
  }
  func.func @transform_14(%arg0: i32) -> (i32, i32) {
    %c0_i32 = arith.constant 0 : i32
    %c0_i32_0 = arith.constant 0 : i32
    %c0_i32_1 = arith.constant 0 : i32
    return %c0_i32, %c0_i32_0 : i32, i32
  }
  func.func @transform_15(%arg0: i32) -> (i32, i32) {
    %c0_i32 = arith.constant 0 : i32
    %c0_i32_0 = arith.constant 0 : i32
    %c0_i32_1 = arith.constant 0 : i32
    return %c0_i32, %c0_i32_0 : i32, i32
  }
  func.func @transform_16(%arg0: i32) -> (i32, i32, i32) {
    %c0_i32 = arith.constant 0 : i32
    %c0_i32_0 = arith.constant 0 : i32
    %c0_i32_1 = arith.constant 0 : i32
    return %arg0, %c0_i32, %c0_i32_0 : i32, i32, i32
  }
}

</mosaic_0001>

<llo_original>
// kernel: heart_gpt_forward.1
$region0: #{heart_gpt_forward.1}
  #allocation0 [shape = 'u32[]', space=smem, size = 0x4, offset = 0x4, fixed_abs, tag = 'smem constant byte address 0x4 - core index']
  #allocation1 [shape = 'u32[144,128]{1,0:T(1,128)}', space=vmem, size = 0x12000, scoped, tag = 'internal scratch']
  #allocation2 [shape = 'f32[128,64]{1,0:T(8,128)}', space=vmem, size = 0x10000, scoped, tag = 'scratch operand']
  #allocation3 [shape = 'f32[128,64]{1,0:T(8,128)}', space=vmem, size = 0x10000, scoped, tag = 'scratch operand']
  %s0 = inlined_call_operand.vmem [shape: f32[2,128,64], index: 0, kind: input, shape index: {}]
  %s1 = inlined_call_operand.hbm [shape: f32[8,1,64], index: 1, kind: input, shape index: {}]
  %s2 = inlined_call_operand.hbm [shape: f32[8,1,64], index: 2, kind: input, shape index: {}]
  %s3 = inlined_call_operand.vmem [shape: bf16[8,64,512], index: 3, kind: input, shape index: {}]
  %s4 = inlined_call_operand.vmem [shape: bf16[8,64,512], index: 4, kind: input, shape index: {}]
  %s5 = inlined_call_operand.hbm [shape: f32[8,1,64], index: 5, kind: input, shape index: {}]
  %s6 = inlined_call_operand.hbm [shape: f32[8,1,64], index: 6, kind: input, shape index: {}]
  %s7 = inlined_call_operand.hbm [shape: f32[8,1,64], index: 7, kind: input, shape index: {}]
  %s8 = inlined_call_operand.hbm [shape: bf16[8,64,256], index: 8, kind: input, shape index: {}]
  %s9 = inlined_call_operand.hbm [shape: f32[8,1,256], index: 9, kind: input, shape index: {}]
  %s10 = inlined_call_operand.vmem [shape: bf16[8,256,64], index: 10, kind: input, shape index: {}]
  %s11 = inlined_call_operand.hbm [shape: f32[8,1,64], index: 11, kind: input, shape index: {}]
  %s12 = inlined_call_operand.vmem [shape: f32[1,64], index: 12, kind: input, shape index: {}]
  %s13 = inlined_call_operand.vmem [shape: f32[1,64], index: 13, kind: input, shape index: {}]
  %s14 = inlined_call_operand.hbm [shape: bf16[64,128], index: 14, kind: input, shape index: {}]
  %s15 = inlined_call_operand.hbm [shape: f32[1,128], index: 15, kind: input, shape index: {}]
  %s16 = inlined_call_operand.vmem [shape: f32[2,128,128], index: 16, kind: output, shape index: {}]
  %s17 = sld [smem:[#allocation0]]
  $region144: #{heart_gpt_forward.1} parent=0
    _
  %s19 = ssub.s32 1, %s17
  %s20 = scalar_select 0, %s19, %s17
  $region1: #{heart_gpt_forward.1} parent=0
    #allocation4 [shape = 'u8[4096]{0}', space=vmem, size = 0x1000, scoped, tag = 'input window, operand 1, single buffered']
    #allocation5 [shape = 's32[2]{0}', space=sflag, size = 0x8, scoped, tag = 'scoped memory for heart_gpt_forward.1']
    #allocation6 [shape = 'u8[4096]{0}', space=vmem, size = 0x1000, scoped, tag = 'input window, operand 2, single buffered']
    #allocation7 [shape = 's32[1]{0}', space=sflag, size = 0x4, scoped, tag = 'scoped memory for heart_gpt_forward.1']
    #allocation8 [shape = 'u8[4096]{0}', space=vmem, size = 0x1000, scoped, tag = 'input window, operand 5, single buffered']
    #allocation9 [shape = 'u8[4096]{0}', space=vmem, size = 0x1000, scoped, tag = 'input window, operand 6, single buffered']
    #allocation10 [shape = 's32[1]{0}', space=sflag, size = 0x4, scoped, tag = 'scoped memory for heart_gpt_forward.1']
    #allocation11 [shape = 'u8[4096]{0}', space=vmem, size = 0x1000, scoped, tag = 'input window, operand 7, single buffered']
    #allocation12 [shape = 'u8[262144]{0}', space=vmem, size = 0x40000, scoped, tag = 'input window, operand 8, single buffered']
    #allocation13 [shape = 's32[1]{0}', space=sflag, size = 0x4, scoped, tag = 'scoped memory for heart_gpt_forward.1']
    #allocation14 [shape = 'u8[8192]{0}', space=vmem, size = 0x2000, scoped, tag = 'input window, operand 9, single buffered']
    #allocation15 [shape = 'u8[4096]{0}', space=vmem, size = 0x1000, scoped, tag = 'input window, operand 11, single buffered']
    #allocation16 [shape = 's32[1]{0}', space=sflag, size = 0x4, scoped, tag = 'scoped memory for heart_gpt_forward.1']
    #allocation17 [shape = 'u8[16384]{0}', space=vmem, size = 0x4000, scoped, tag = 'input window, operand 14, single buffered']
    #allocation18 [shape = 'u8[512]{0}', space=vmem, size = 0x400, scoped, tag = 'input window, operand 15, single buffered']
    #allocation19 [shape = 's32[1]{0}', space=sflag, size = 0x4, scoped, tag = 'scoped memory for heart_gpt_forward.1']
    %21 = vsyncpa [#allocation5], 0
    %22 = vsyncpa [#allocation7], 0
    %23 = vsyncpa [#allocation10], 0
    %24 = vsyncpa [#allocation13], 0
    %25 = vsyncpa [#allocation16], 0
    %26 = vsyncpa [#allocation19], 0
    loop: start=0, step=1, limit=4
    $region2: #{heart_gpt_forward.1} parent=1 // loop_pre_header
      _
    $region3: #{heart_gpt_forward.1} parent=1 // loop_header
      %s28 = sphi 0, %s32
      %p29 = scmp.ge.s32.totalorder %s28, 4
      %s38 = sphi 0, %s40
      %s41 = sphi 0, %s38
      %s42 = sphi 0, %s41
      %s58 = sphi 0, %s42
      %s62 = sphi 0, %s62
      %s64 = sphi 0, %s62
      %s65 = sphi 0, %s64
      %s79 = sphi 0, %s65
      %s83 = sphi 0, %s83
      %s85 = sphi 0, %s83
      %s86 = sphi 0, %s85
      %s100 = sphi 0, %s86
      %s104 = sphi 0, %s104
      %s106 = sphi 0, %s104
      %s107 = sphi 0, %s106
      %s121 = sphi 0, %s107
      %s125 = sphi 0, %s125
      %s127 = sphi 0, %s125
      %s128 = sphi 0, %s127
      %s142 = sphi 0, %s128
      %s146 = sphi 0, %s146
      %s148 = sphi 0, %s146
      %s149 = sphi 0, %s148
      %s163 = sphi 0, %s149
      %s167 = sphi 0, %s167
      %s169 = sphi 0, %s167
      %s170 = sphi 0, %s169
      %s184 = sphi 0, %s170
      %s188 = sphi 0, %s188
      %s190 = sphi 0, %s188
      %s191 = sphi 0, %s190
      %s205 = sphi 0, %s191
      %s209 = sphi 0, %s209
      %s211 = sphi 0, %s209
      %s212 = sphi 0, %s211
      %s226 = sphi 0, %s212
      %s230 = sphi 0, %s230
      %s232 = sphi 0, %s230
      %s233 = sphi 0, %s232
      %s247 = sphi 0, %s233
      %s251 = sphi 0, %s251
      %s253 = sphi 0, %s251
      %s254 = sphi 0, %s253
      %s268 = sphi 0, %s254
      %s272 = sphi 0, %s272
      %s274 = sphi 0, %s272
      %s275 = sphi 0, %s274
      %s289 = sphi 0, %s275
      %s293 = sphi 0, %s293
      %s295 = sphi 0, %s293
      %s296 = sphi 0, %s295
      %s310 = sphi 0, %s296
      %s314 = sphi 0, %s314
      %s316 = sphi 0, %s314
      %s317 = sphi 0, %s316
      %s331 = sphi 0, %s317
      %s335 = sphi 0, %s335
      %s337 = sphi 0, %s335
      %s338 = sphi 0, %s337
      %s352 = sphi 0, %s338
      %s356 = sphi 0, %s356
      %s358 = sphi 0, %s356
      %s359 = sphi 0, %s358
      %s373 = sphi 0, %s359
      %s379 = sphi 0, %s381
      %s382 = sphi 0, %s379
      %s383 = sphi 0, %s382
      %s399 = sphi 0, %s383
    $region4: #{heart_gpt_forward.1} parent=1 // loop_header_branch
      %31 = sbr.rel (%p29) target = $region8
    $region5: #{heart_gpt_forward.1} parent=1 // loop_body
      %s33 = ssub.s32 %s28, 1
      %s34 = ssub.s32 %s28, 2
      %s35 = sadd.s32 %s28, 1
      %s36 = ssub.s32 %s28, %s35
      %p37 = scmp.eq.s32.totalorder %s36, 0
      %s39 = sadd.s32 %s38, 1
      %s40 = scalar_select %p37, %s38, %s39
      %p43 = pneg %p37
      %p44 = scmp.eq.s32.totalorder %s28, 1
      %p45 = por %p43, %p44
      %p46 = scmp.ne.s32.totalorder %s38, %s41
      %p47 = scmp.eq.s32.totalorder %s28, 0
      %p48 = por %p46, %p47
      %p49 = scmp.ne.s32.totalorder %s38, %s41
      %p50 = scmp.eq.s32.totalorder %s33, 1
      %p51 = por %p49, %p50
      %p52 = scmp.ne.s32.totalorder %s41, %s42
      %p53 = scmp.eq.s32.totalorder %s33, 0
      %p54 = por %p52, %p53
      %p55 = scmp.ne.s32.totalorder %s41, %s42
      %p56 = scmp.eq.s32.totalorder %s34, 1
      %p57 = por %p55, %p56
      %p59 = scmp.ne.s32.totalorder %s42, %s58
      %p60 = scmp.eq.s32.totalorder %s34, 0
      %p61 = por %p59, %p60
      %s63 = sadd.s32 %s62, 1
      %p66 = scmp.eq.s32.totalorder %s28, 1
      %p67 = scmp.ne.s32.totalorder %s62, %s64
      %p68 = scmp.eq.s32.totalorder %s28, 0
      %p69 = por %p67, %p68
      %p70 = scmp.ne.s32.totalorder %s62, %s64
      %p71 = scmp.eq.s32.totalorder %s33, 1
      %p72 = por %p70, %p71
      %p73 = scmp.ne.s32.totalorder %s64, %s65
      %p74 = scmp.eq.s32.totalorder %s33, 0
      %p75 = por %p73, %p74
      %p76 = scmp.ne.s32.totalorder %s64, %s65
      %p77 = scmp.eq.s32.totalorder %s34, 1
      %p78 = por %p76, %p77
      %p80 = scmp.ne.s32.totalorder %s65, %s79
      %p81 = scmp.eq.s32.totalorder %s34, 0
      %p82 = por %p80, %p81
      %s84 = sadd.s32 %s83, 1
      %p87 = scmp.eq.s32.totalorder %s28, 1
      %p88 = scmp.ne.s32.totalorder %s83, %s85
      %p89 = scmp.eq.s32.totalorder %s28, 0
      %p90 = por %p88, %p89
      %p91 = scmp.ne.s32.totalorder %s83, %s85
      %p92 = scmp.eq.s32.totalorder %s33, 1
      %p93 = por %p91, %p92
      %p94 = scmp.ne.s32.totalorder %s85, %s86
      %p95 = scmp.eq.s32.totalorder %s33, 0
      %p96 = por %p94, %p95
      %p97 = scmp.ne.s32.totalorder %s85, %s86
      %p98 = scmp.eq.s32.totalorder %s34, 1
      %p99 = por %p97, %p98
      %p101 = scmp.ne.s32.totalorder %s86, %s100
      %p102 = scmp.eq.s32.totalorder %s34, 0
      %p103 = por %p101, %p102
      %s105 = sadd.s32 %s104, 1
      %p108 = scmp.eq.s32.totalorder %s28, 1
      %p109 = scmp.ne.s32.totalorder %s104, %s106
      %p110 = scmp.eq.s32.totalorder %s28, 0
      %p111 = por %p109, %p110
      %p112 = scmp.ne.s32.totalorder %s104, %s106
      %p113 = scmp.eq.s32.totalorder %s33, 1
      %p114 = por %p112, %p113
      %p115 = scmp.ne.s32.totalorder %s106, %s107
      %p116 = scmp.eq.s32.totalorder %s33, 0
      %p117 = por %p115, %p116
      %p118 = scmp.ne.s32.totalorder %s106, %s107
      %p119 = scmp.eq.s32.totalorder %s34, 1
      %p120 = por %p118, %p119
      %p122 = scmp.ne.s32.totalorder %s107, %s121
      %p123 = scmp.eq.s32.totalorder %s34, 0
      %p124 = por %p122, %p123
      %s126 = sadd.s32 %s125, 1
      %p129 = scmp.eq.s32.totalorder %s28, 1
      %p130 = scmp.ne.s32.totalorder %s125, %s127
      %p131 = scmp.eq.s32.totalorder %s28, 0
      %p132 = por %p130, %p131
      %p133 = scmp.ne.s32.totalorder %s125, %s127
      %p134 = scmp.eq.s32.totalorder %s33, 1
      %p135 = por %p133, %p134
      %p136 = scmp.ne.s32.totalorder %s127, %s128
      %p137 = scmp.eq.s32.totalorder %s33, 0
      %p138 = por %p136, %p137
      %p139 = scmp.ne.s32.totalorder %s127, %s128
      %p140 = scmp.eq.s32.totalorder %s34, 1
      %p141 = por %p139, %p140
      %p143 = scmp.ne.s32.totalorder %s128, %s142
      %p144 = scmp.eq.s32.totalorder %s34, 0
      %p145 = por %p143, %p144
      %s147 = sadd.s32 %s146, 1
      %p150 = scmp.eq.s32.totalorder %s28, 1
      %p151 = scmp.ne.s32.totalorder %s146, %s148
      %p152 = scmp.eq.s32.totalorder %s28, 0
      %p153 = por %p151, %p152
      %p154 = scmp.ne.s32.totalorder %s146, %s148
      %p155 = scmp.eq.s32.totalorder %s33, 1
      %p156 = por %p154, %p155
      %p157 = scmp.ne.s32.totalorder %s148, %s149
      %p158 = scmp.eq.s32.totalorder %s33, 0
      %p159 = por %p157, %p158
      %p160 = scmp.ne.s32.totalorder %s148, %s149
      %p161 = scmp.eq.s32.totalorder %s34, 1
      %p162 = por %p160, %p161
      %p164 = scmp.ne.s32.totalorder %s149, %s163
      %p165 = scmp.eq.s32.totalorder %s34, 0
      %p166 = por %p164, %p165
      %s168 = sadd.s32 %s167, 1
      %p171 = scmp.eq.s32.totalorder %s28, 1
      %p172 = scmp.ne.s32.totalorder %s167, %s169
      %p173 = scmp.eq.s32.totalorder %s28, 0
      %p174 = por %p172, %p173
      %p175 = scmp.ne.s32.totalorder %s167, %s169
      %p176 = scmp.eq.s32.totalorder %s33, 1
      %p177 = por %p175, %p176
      %p178 = scmp.ne.s32.totalorder %s169, %s170
      %p179 = scmp.eq.s32.totalorder %s33, 0
      %p180 = por %p178, %p179
      %p181 = scmp.ne.s32.totalorder %s169, %s170
      %p182 = scmp.eq.s32.totalorder %s34, 1
      %p183 = por %p181, %p182
      %p185 = scmp.ne.s32.totalorder %s170, %s184
      %p186 = scmp.eq.s32.totalorder %s34, 0
      %p187 = por %p185, %p186
      %s189 = sadd.s32 %s188, 1
      %p192 = scmp.eq.s32.totalorder %s28, 1
      %p193 = scmp.ne.s32.totalorder %s188, %s190
      %p194 = scmp.eq.s32.totalorder %s28, 0
      %p195 = por %p193, %p194
      %p196 = scmp.ne.s32.totalorder %s188, %s190
      %p197 = scmp.eq.s32.totalorder %s33, 1
      %p198 = por %p196, %p197
      %p199 = scmp.ne.s32.totalorder %s190, %s191
      %p200 = scmp.eq.s32.totalorder %s33, 0
      %p201 = por %p199, %p200
      %p202 = scmp.ne.s32.totalorder %s190, %s191
      %p203 = scmp.eq.s32.totalorder %s34, 1
      %p204 = por %p202, %p203
      %p206 = scmp.ne.s32.totalorder %s191, %s205
      %p207 = scmp.eq.s32.totalorder %s34, 0
      %p208 = por %p206, %p207
      %s210 = sadd.s32 %s209, 1
      %p213 = scmp.eq.s32.totalorder %s28, 1
      %p214 = scmp.ne.s32.totalorder %s209, %s211
      %p215 = scmp.eq.s32.totalorder %s28, 0
      %p216 = por %p214, %p215
      %p217 = scmp.ne.s32.totalorder %s209, %s211
      %p218 = scmp.eq.s32.totalorder %s33, 1
      %p219 = por %p217, %p218
      %p220 = scmp.ne.s32.totalorder %s211, %s212
      %p221 = scmp.eq.s32.totalorder %s33, 0
      %p222 = por %p220, %p221
      %p223 = scmp.ne.s32.totalorder %s211, %s212
      %p224 = scmp.eq.s32.totalorder %s34, 1
      %p225 = por %p223, %p224
      %p227 = scmp.ne.s32.totalorder %s212, %s226
      %p228 = scmp.eq.s32.totalorder %s34, 0
      %p229 = por %p227, %p228
      %s231 = sadd.s32 %s230, 1
      %p234 = scmp.eq.s32.totalorder %s28, 1
      %p235 = scmp.ne.s32.totalorder %s230, %s232
      %p236 = scmp.eq.s32.totalorder %s28, 0
      %p237 = por %p235, %p236
      %p238 = scmp.ne.s32.totalorder %s230, %s232
      %p239 = scmp.eq.s32.totalorder %s33, 1
      %p240 = por %p238, %p239
      %p241 = scmp.ne.s32.totalorder %s232, %s233
      %p242 = scmp.eq.s32.totalorder %s33, 0
      %p243 = por %p241, %p242
      %p244 = scmp.ne.s32.totalorder %s232, %s233
      %p245 = scmp.eq.s32.totalorder %s34, 1
      %p246 = por %p244, %p245
      %p248 = scmp.ne.s32.totalorder %s233, %s247
      %p249 = scmp.eq.s32.totalorder %s34, 0
      %p250 = por %p248, %p249
      %s252 = sadd.s32 %s251, 1
      %p255 = scmp.eq.s32.totalorder %s28, 1
      %p256 = scmp.ne.s32.totalorder %s251, %s253
      %p257 = scmp.eq.s32.totalorder %s28, 0
      %p258 = por %p256, %p257
      %p259 = scmp.ne.s32.totalorder %s251, %s253
      %p260 = scmp.eq.s32.totalorder %s33, 1
      %p261 = por %p259, %p260
      %p262 = scmp.ne.s32.totalorder %s253, %s254
      %p263 = scmp.eq.s32.totalorder %s33, 0
      %p264 = por %p262, %p263
      %p265 = scmp.ne.s32.totalorder %s253, %s254
      %p266 = scmp.eq.s32.totalorder %s34, 1
      %p267 = por %p265, %p266
      %p269 = scmp.ne.s32.totalorder %s254, %s268
      %p270 = scmp.eq.s32.totalorder %s34, 0
      %p271 = por %p269, %p270
      %s273 = sadd.s32 %s272, 1
      %p276 = scmp.eq.s32.totalorder %s28, 1
      %p277 = scmp.ne.s32.totalorder %s272, %s274
      %p278 = scmp.eq.s32.totalorder %s28, 0
      %p279 = por %p277, %p278
      %p280 = scmp.ne.s32.totalorder %s272, %s274
      %p281 = scmp.eq.s32.totalorder %s33, 1
      %p282 = por %p280, %p281
      %p283 = scmp.ne.s32.totalorder %s274, %s275
      %p284 = scmp.eq.s32.totalorder %s33, 0
      %p285 = por %p283, %p284
      %p286 = scmp.ne.s32.totalorder %s274, %s275
      %p287 = scmp.eq.s32.totalorder %s34, 1
      %p288 = por %p286, %p287
      %p290 = scmp.ne.s32.totalorder %s275, %s289
      %p291 = scmp.eq.s32.totalorder %s34, 0
      %p292 = por %p290, %p291
      %s294 = sadd.s32 %s293, 1
      %p297 = scmp.eq.s32.totalorder %s28, 1
      %p298 = scmp.ne.s32.totalorder %s293, %s295
      %p299 = scmp.eq.s32.totalorder %s28, 0
      %p300 = por %p298, %p299
      %p301 = scmp.ne.s32.totalorder %s293, %s295
      %p302 = scmp.eq.s32.totalorder %s33, 1
      %p303 = por %p301, %p302
      %p304 = scmp.ne.s32.totalorder %s295, %s296
      %p305 = scmp.eq.s32.totalorder %s33, 0
      %p306 = por %p304, %p305
      %p307 = scmp.ne.s32.totalorder %s295, %s296
      %p308 = scmp.eq.s32.totalorder %s34, 1
      %p309 = por %p307, %p308
      %p311 = scmp.ne.s32.totalorder %s296, %s310
      %p312 = scmp.eq.s32.totalorder %s34, 0
      %p313 = por %p311, %p312
      %s315 = sadd.s32 %s314, 1
      %p318 = scmp.eq.s32.totalorder %s28, 1
      %p319 = scmp.ne.s32.totalorder %s314, %s316
      %p320 = scmp.eq.s32.totalorder %s28, 0
      %p321 = por %p319, %p320
      %p322 = scmp.ne.s32.totalorder %s314, %s316
      %p323 = scmp.eq.s32.totalorder %s33, 1
      %p324 = por %p322, %p323
      %p325 = scmp.ne.s32.totalorder %s316, %s317
      %p326 = scmp.eq.s32.totalorder %s33, 0
      %p327 = por %p325, %p326
      %p328 = scmp.ne.s32.totalorder %s316, %s317
      %p329 = scmp.eq.s32.totalorder %s34, 1
      %p330 = por %p328, %p329
      %p332 = scmp.ne.s32.totalorder %s317, %s331
      %p333 = scmp.eq.s32.totalorder %s34, 0
      %p334 = por %p332, %p333
      %s336 = sadd.s32 %s335, 1
      %p339 = scmp.eq.s32.totalorder %s28, 1
      %p340 = scmp.ne.s32.totalorder %s335, %s337
      %p341 = scmp.eq.s32.totalorder %s28, 0
      %p342 = por %p340, %p341
      %p343 = scmp.ne.s32.totalorder %s335, %s337
      %p344 = scmp.eq.s32.totalorder %s33, 1
      %p345 = por %p343, %p344
      %p346 = scmp.ne.s32.totalorder %s337, %s338
      %p347 = scmp.eq.s32.totalorder %s33, 0
      %p348 = por %p346, %p347
      %p349 = scmp.ne.s32.totalorder %s337, %s338
      %p350 = scmp.eq.s32.totalorder %s34, 1
      %p351 = por %p349, %p350
      %p353 = scmp.ne.s32.totalorder %s338, %s352
      %p354 = scmp.eq.s32.totalorder %s34, 0
      %p355 = por %p353, %p354
      %s357 = sadd.s32 %s356, 1
      %p360 = scmp.eq.s32.totalorder %s28, 1
      %p361 = scmp.ne.s32.totalorder %s356, %s358
      %p362 = scmp.eq.s32.totalorder %s28, 0
      %p363 = por %p361, %p362
      %p364 = scmp.ne.s32.totalorder %s356, %s358
      %p365 = scmp.eq.s32.totalorder %s33, 1
      %p366 = por %p364, %p365
      %p367 = scmp.ne.s32.totalorder %s358, %s359
      %p368 = scmp.eq.s32.totalorder %s33, 0
      %p369 = por %p367, %p368
      %p370 = scmp.ne.s32.totalorder %s358, %s359
      %p371 = scmp.eq.s32.totalorder %s34, 1
      %p372 = por %p370, %p371
      %p374 = scmp.ne.s32.totalorder %s359, %s373
      %p375 = scmp.eq.s32.totalorder %s34, 0
      %p376 = por %p374, %p375
      %s377 = ssub.s32 %s28, %s35
      %p378 = scmp.eq.s32.totalorder %s377, 0
      %s380 = sadd.s32 %s379, 1
      %s381 = scalar_select %p378, %s379, %s380
      %p384 = pneg %p378
      %p385 = scmp.eq.s32.totalorder %s28, 1
      %p386 = por %p384, %p385
      %p387 = scmp.ne.s32.totalorder %s379, %s382
      %p388 = scmp.eq.s32.totalorder %s28, 0
      %p389 = por %p387, %p388
      %p390 = scmp.ne.s32.totalorder %s379, %s382
      %p391 = scmp.eq.s32.totalorder %s33, 1
      %p392 = por %p390, %p391
      %p393 = scmp.ne.s32.totalorder %s382, %s383
      %p394 = scmp.eq.s32.totalorder %s33, 0
      %p395 = por %p393, %p394
      %p396 = scmp.ne.s32.totalorder %s382, %s383
      %p397 = scmp.eq.s32.totalorder %s34, 1
      %p398 = por %p396, %p397
      %p400 = scmp.ne.s32.totalorder %s383, %s399
      %p401 = scmp.eq.s32.totalorder %s34, 0
      %p402 = por %p400, %p401
      %p403 = scmp.le.s32.totalorder 1, %s28
      %p404 = scmp.lt.s32.totalorder %s28, 3
      %p405 = pnand %p403, %p404
      %p406 = pneg %p405
      // Predicated region
      $region9: #{heart_gpt_forward.1} parent=5 // pred_check
        _
      $region10: #{heart_gpt_forward.1} parent=5 // pred_check_branch
        %408 = sbr.rel (%p405) target = $region12
      $region11: #{heart_gpt_forward.1} parent=5 // pred_region
        %s409 = ssub.s32 %s28, 1
        // Predicated region
        $region13: #{heart_gpt_forward.1} parent=11 // pred_check
          %p410 = pneg %p75
        $region14: #{heart_gpt_forward.1} parent=11 // pred_check_branch
          %412 = sbr.rel (%p410) target = $region16
        $region15: #{heart_gpt_forward.1} parent=11 // pred_region
          %s414 = ssub.s32 128, 128
          %415 = vsyncadd [#allocation5], %s414
          %s416 = sshll.u32 [#allocation4], 4
          %s417 = int_to_ptr.vmem [resolvable:$true] %s416
          %422 = dma.hbm_to_vmem [thread:$0]  %s1, 128, %s417, [#allocation5], 16, 16, 1
        $region16: #{heart_gpt_forward.1} parent=11 // pred_fallthru
          _
        // Predicated region
        $region17: #{heart_gpt_forward.1} parent=11 // pred_check
          %p423 = pneg %p96
        $region18: #{heart_gpt_forward.1} parent=11 // pred_check_branch
          %425 = sbr.rel (%p423) target = $region20
        $region19: #{heart_gpt_forward.1} parent=11 // pred_region
          %s427 = ssub.s32 128, 128
          %428 = vsyncadd [#allocation7], %s427
          %s429 = sshll.u32 [#allocation6], 4
          %s430 = int_to_ptr.vmem [resolvable:$true] %s429
          %435 = dma.hbm_to_vmem [thread:$0]  %s2, 128, %s430, [#allocation7], 16, 16, 1
        $region20: #{heart_gpt_forward.1} parent=11 // pred_fallthru
          _
        // Predicated region
        $region21: #{heart_gpt_forward.1} parent=11 // pred_check
          %p436 = pneg %p117
        $region22: #{heart_gpt_forward.1} parent=11 // pred_check_branch
          %438 = sbr.rel (%p436) target = $region24
        $region23: #{heart_gpt_forward.1} parent=11 // pred_region
          _
        $region24: #{heart_gpt_forward.1} parent=11 // pred_fallthru
          _
        // Predicated region
        $region25: #{heart_gpt_forward.1} parent=11 // pred_check
          %p439 = pneg %p138
        $region26: #{heart_gpt_forward.1} parent=11 // pred_check_branch
          %441 = sbr.rel (%p439) target = $region28
        $region27: #{heart_gpt_forward.1} parent=11 // pred_region
          _
        $region28: #{heart_gpt_forward.1} parent=11 // pred_fallthru
          _
        // Predicated region
        $region29: #{heart_gpt_forward.1} parent=11 // pred_check
          %p442 = pneg %p159
        $region30: #{heart_gpt_forward.1} parent=11 // pred_check_branch
          %444 = sbr.rel (%p442) target = $region32
        $region31: #{heart_gpt_forward.1} parent=11 // pred_region
          %s446 = ssub.s32 128, 128
          %447 = vsyncadd [#allocation7], %s446
          %s448 = sshll.u32 [#allocation8], 4
          %s449 = int_to_ptr.vmem [resolvable:$true] %s448
          %454 = dma.hbm_to_vmem [thread:$0]  %s5, 128, %s449, [#allocation7], 16, 16, 1
        $region32: #{heart_gpt_forward.1} parent=11 // pred_fallthru
          _
        // Predicated region
        $region33: #{heart_gpt_forward.1} parent=11 // pred_check
          %p455 = pneg %p180
        $region34: #{heart_gpt_forward.1} parent=11 // pred_check_branch
          %457 = sbr.rel (%p455) target = $region36
        $region35: #{heart_gpt_forward.1} parent=11 // pred_region
          %s459 = ssub.s32 128, 128
          %460 = vsyncadd [#allocation10], %s459
          %s461 = sshll.u32 [#allocation9], 4
          %s462 = int_to_ptr.vmem [resolvable:$true] %s461
          %467 = dma.hbm_to_vmem [thread:$0]  %s6, 128, %s462, [#allocation10], 16, 16, 1
        $region36: #{heart_gpt_forward.1} parent=11 // pred_fallthru
          _
        // Predicated region
        $region37: #{heart_gpt_forward.1} parent=11 // pred_check
          %p468 = pneg %p201
        $region38: #{heart_gpt_forward.1} parent=11 // pred_check_branch
          %470 = sbr.rel (%p468) target = $region40
        $region39: #{heart_gpt_forward.1} parent=11 // pred_region
          %s472 = ssub.s32 128, 128
          %473 = vsyncadd [#allocation10], %s472
          %s474 = sshll.u32 [#allocation11], 4
          %s475 = int_to_ptr.vmem [resolvable:$true] %s474
          %480 = dma.hbm_to_vmem [thread:$0]  %s7, 128, %s475, [#allocation10], 16, 16, 1
        $region40: #{heart_gpt_forward.1} parent=11 // pred_fallthru
          _
        // Predicated region
        $region41: #{heart_gpt_forward.1} parent=11 // pred_check
          %p481 = pneg %p222
        $region42: #{heart_gpt_forward.1} parent=11 // pred_check_branch
          %483 = sbr.rel (%p481) target = $region44
        $region43: #{heart_gpt_forward.1} parent=11 // pred_region
          %s485 = ssub.s32 8192, 8192
          %486 = vsyncadd [#allocation13], %s485
          %s487 = sshll.u32 [#allocation12], 4
          %s488 = int_to_ptr.vmem [resolvable:$true] %s487
          %493 = dma.hbm_to_vmem [thread:$0]  %s8, 8192, %s488, [#allocation13], 128, 128, 8
        $region44: #{heart_gpt_forward.1} parent=11 // pred_fallthru
          _
        // Predicated region
        $region45: #{heart_gpt_forward.1} parent=11 // pred_check
          %p494 = pneg %p243
        $region46: #{heart_gpt_forward.1} parent=11 // pred_check_branch
          %496 = sbr.rel (%p494) target = $region48
        $region47: #{heart_gpt_forward.1} parent=11 // pred_region
          %s498 = ssub.s32 256, 256
          %499 = vsyncadd [#allocation13], %s498
          %s500 = sshll.u32 [#allocation14], 4
          %s501 = int_to_ptr.vmem [resolvable:$true] %s500
          %506 = dma.hbm_to_vmem [thread:$0]  %s9, 256, %s501, [#allocation13], 32, 32, 2
        $region48: #{heart_gpt_forward.1} parent=11 // pred_fallthru
          _
        // Predicated region
        $region49: #{heart_gpt_forward.1} parent=11 // pred_check
          %p507 = pneg %p264
        $region50: #{heart_gpt_forward.1} parent=11 // pred_check_branch
          %509 = sbr.rel (%p507) target = $region52
        $region51: #{heart_gpt_forward.1} parent=11 // pred_region
          _
        $region52: #{heart_gpt_forward.1} parent=11 // pred_fallthru
          _
        // Predicated region
        $region53: #{heart_gpt_forward.1} parent=11 // pred_check
          %p510 = pneg %p285
        $region54: #{heart_gpt_forward.1} parent=11 // pred_check_branch
          %512 = sbr.rel (%p510) target = $region56
        $region55: #{heart_gpt_forward.1} parent=11 // pred_region
          %s514 = ssub.s32 128, 128
          %515 = vsyncadd [#allocation16], %s514
          %s516 = sshll.u32 [#allocation15], 4
          %s517 = int_to_ptr.vmem [resolvable:$true] %s516
          %522 = dma.hbm_to_vmem [thread:$0]  %s11, 128, %s517, [#allocation16], 16, 16, 1
        $region56: #{heart_gpt_forward.1} parent=11 // pred_fallthru
          _
        // Predicated region
        $region57: #{heart_gpt_forward.1} parent=11 // pred_check
          %p523 = pneg %p306
        $region58: #{heart_gpt_forward.1} parent=11 // pred_check_branch
          %525 = sbr.rel (%p523) target = $region60
        $region59: #{heart_gpt_forward.1} parent=11 // pred_region
          _
        $region60: #{heart_gpt_forward.1} parent=11 // pred_fallthru
          _
        // Predicated region
        $region61: #{heart_gpt_forward.1} parent=11 // pred_check
          %p526 = pneg %p327
        $region62: #{heart_gpt_forward.1} parent=11 // pred_check_branch
          %528 = sbr.rel (%p526) target = $region64
        $region63: #{heart_gpt_forward.1} parent=11 // pred_region
          _
        $region64: #{heart_gpt_forward.1} parent=11 // pred_fallthru
          _
        // Predicated region
        $region65: #{heart_gpt_forward.1} parent=11 // pred_check
          %p529 = pneg %p348
        $region66: #{heart_gpt_forward.1} parent=11 // pred_check_branch
          %531 = sbr.rel (%p529) target = $region68
        $region67: #{heart_gpt_forward.1} parent=11 // pred_region
          %s533 = ssub.s32 512, 512
          %534 = vsyncadd [#allocation16], %s533
          %s535 = sshll.u32 [#allocation17], 4
          %s536 = int_to_ptr.vmem [resolvable:$true] %s535
          %541 = dma.hbm_to_vmem [thread:$0]  %s14, 512, %s536, [#allocation16], 64, 64, 4
        $region68: #{heart_gpt_forward.1} parent=11 // pred_fallthru
          _
        // Predicated region
        $region69: #{heart_gpt_forward.1} parent=11 // pred_check
          %p542 = pneg %p369
        $region70: #{heart_gpt_forward.1} parent=11 // pred_check_branch
          %544 = sbr.rel (%p542) target = $region72
        $region71: #{heart_gpt_forward.1} parent=11 // pred_region
          %s546 = ssub.s32 16, 16
          %547 = vsyncadd [#allocation19], %s546
          %s549 = sshll.u32 [#allocation18], 4
          %s550 = int_to_ptr.vmem [resolvable:$true] %s549
          %552 = dma.hbm_to_vmem [thread:$0]  %s15, 16, %s550, [#allocation19]
        $region72: #{heart_gpt_forward.1} parent=11 // pred_fallthru
          _
      $region12: #{heart_gpt_forward.1} parent=5 // pred_fallthru
        _
      %p553 = scmp.lt.s32.totalorder %s28, 2
      // Predicated region
      $region73: #{heart_gpt_forward.1} parent=5 // pred_check
        %p554 = pneg %p553
      $region74: #{heart_gpt_forward.1} parent=5 // pred_check_branch
        %556 = sbr.rel (%p554) target = $region76
      $region75: #{heart_gpt_forward.1} parent=5 // pred_region
        // Predicated region
        $region77: #{heart_gpt_forward.1} parent=75 // pred_check
          %p557 = pneg %p48
        $region78: #{heart_gpt_forward.1} parent=75 // pred_check_branch
          %559 = sbr.rel (%p557) target = $region80
        $region79: #{heart_gpt_forward.1} parent=75 // pred_region
          %p560 = scmp.lt.s32.totalorder %s28, 1
          %s561 = scalar_select %p560, %s28, 1
          %s562 = smul.addr %s561, 16
          %s563 = smul.addr %s562, 8
          %s564 = scalar_lea.vmem %s0, %s563
        $region80: #{heart_gpt_forward.1} parent=75 // pred_fallthru
          _
      $region76: #{heart_gpt_forward.1} parent=5 // pred_fallthru
        _
      %p565 = scmp.le.s32.totalorder 1, %s28
      %p566 = scmp.lt.s32.totalorder %s28, 3
      %p567 = pnand %p565, %p566
      %p568 = pneg %p567
      // Predicated region
      $region81: #{heart_gpt_forward.1} parent=5 // pred_check
        _
      $region82: #{heart_gpt_forward.1} parent=5 // pred_check_branch
        %570 = sbr.rel (%p567) target = $region84
      $region83: #{heart_gpt_forward.1} parent=5 // pred_region
        %s571 = ssub.s32 %s28, 1
        // Predicated region
        $region85: #{heart_gpt_forward.1} parent=83 // pred_check
          %p572 = pneg %p75
        $region86: #{heart_gpt_forward.1} parent=83 // pred_check_branch
          %574 = sbr.rel (%p572) target = $region88
        $region87: #{heart_gpt_forward.1} parent=83 // pred_region
          %575 = dma.done [#allocation5], 128
        $region88: #{heart_gpt_forward.1} parent=83 // pred_fallthru
          _
        // Predicated region
        $region89: #{heart_gpt_forward.1} parent=83 // pred_check
          %p576 = pneg %p96
        $region90: #{heart_gpt_forward.1} parent=83 // pred_check_branch
          %578 = sbr.rel (%p576) target = $region92
        $region91: #{heart_gpt_forward.1} parent=83 // pred_region
          %579 = dma.done [#allocation7], 128
        $region92: #{heart_gpt_forward.1} parent=83 // pred_fallthru
          _
        // Predicated region
        $region93: #{heart_gpt_forward.1} parent=83 // pred_check
          %p580 = pneg %p159
        $region94: #{heart_gpt_forward.1} parent=83 // pred_check_branch
          %582 = sbr.rel (%p580) target = $region96
        $region95: #{heart_gpt_forward.1} parent=83 // pred_region
          %583 = dma.done [#allocation7], 128
        $region96: #{heart_gpt_forward.1} parent=83 // pred_fallthru
          _
        // Predicated region
        $region97: #{heart_gpt_forward.1} parent=83 // pred_check
          %p584 = pneg %p180
        $region98: #{heart_gpt_forward.1} parent=83 // pred_check_branch
          %586 = sbr.rel (%p584) target = $region100
        $region99: #{heart_gpt_forward.1} parent=83 // pred_region
          %587 = dma.done [#allocation10], 128
        $region100: #{heart_gpt_forward.1} parent=83 // pred_fallthru
          _
        // Predicated region
        $region101: #{heart_gpt_forward.1} parent=83 // pred_check
          %p588 = pneg %p201
        $region102: #{heart_gpt_forward.1} parent=83 // pred_check_branch
          %590 = sbr.rel (%p588) target = $region104
        $region103: #{heart_gpt_forward.1} parent=83 // pred_region
          %591 = dma.done [#allocation10], 128
        $region104: #{heart_gpt_forward.1} parent=83 // pred_fallthru
          _
        // Predicated region
        $region105: #{heart_gpt_forward.1} parent=83 // pred_check
          %p592 = pneg %p222
        $region106: #{heart_gpt_forward.1} parent=83 // pred_check_branch
          %594 = sbr.rel (%p592) target = $region108
        $region107: #{heart_gpt_forward.1} parent=83 // pred_region
          %595 = dma.done [#allocation13], 8192
        $region108: #{heart_gpt_forward.1} parent=83 // pred_fallthru
          _
        // Predicated region
        $region109: #{heart_gpt_forward.1} parent=83 // pred_check
          %p596 = pneg %p243
        $region110: #{heart_gpt_forward.1} parent=83 // pred_check_branch
          %598 = sbr.rel (%p596) target = $region112
        $region111: #{heart_gpt_forward.1} parent=83 // pred_region
          %599 = dma.done [#allocation13], 256
        $region112: #{heart_gpt_forward.1} parent=83 // pred_fallthru
          _
        // Predicated region
        $region113: #{heart_gpt_forward.1} parent=83 // pred_check
          %p600 = pneg %p285
        $region114: #{heart_gpt_forward.1} parent=83 // pred_check_branch
          %602 = sbr.rel (%p600) target = $region116
        $region115: #{heart_gpt_forward.1} parent=83 // pred_region
          %603 = dma.done [#allocation16], 128
        $region116: #{heart_gpt_forward.1} parent=83 // pred_fallthru
          _
        // Predicated region
        $region117: #{heart_gpt_forward.1} parent=83 // pred_check
          %p604 = pneg %p348
        $region118: #{heart_gpt_forward.1} parent=83 // pred_check_branch
          %606 = sbr.rel (%p604) target = $region120
        $region119: #{heart_gpt_forward.1} parent=83 // pred_region
          %607 = dma.done [#allocation16], 512
        $region120: #{heart_gpt_forward.1} parent=83 // pred_fallthru
          _
        // Predicated region
        $region121: #{heart_gpt_forward.1} parent=83 // pred_check
          %p608 = pneg %p369
        $region122: #{heart_gpt_forward.1} parent=83 // pred_check_branch
          %610 = sbr.rel (%p608) target = $region124
        $region123: #{heart_gpt_forward.1} parent=83 // pred_region
          %611 = dma.done [#allocation19], 16
        $region124: #{heart_gpt_forward.1} parent=83 // pred_fallthru
          _
        %p612 = scmp.lt.s32.totalorder %s33, 1
        %s613 = scalar_select %p612, %s33, 1
        %s614 = smul.addr %s613, 16
        %s615 = smul.addr %s614, 8
        %s616 = scalar_lea.vmem %s0, %s615
        %p617 = pneg %p54
        %p618 = pneg %p51
        %p619 = pneg %p75
        %p620 = pneg %p72
        %p621 = pneg %p96
        %p622 = pneg %p93
        %p623 = pneg %p117
        %p624 = pneg %p114
        %p625 = pneg %p138
        %p626 = pneg %p135
        %p627 = pneg %p159
        %p628 = pneg %p156
        %p629 = pneg %p180
        %p630 = pneg %p177
        %p631 = pneg %p201
        %p632 = pneg %p198
        %p633 = pneg %p222
        %p634 = pneg %p219
        %p635 = pneg %p243
        %p636 = pneg %p240
        %p637 = pneg %p264
        %p638 = pneg %p261
        %p639 = pneg %p285
        %p640 = pneg %p282
        %p641 = pneg %p306
        %p642 = pneg %p303
        %p643 = pneg %p327
        %p644 = pneg %p324
        %p645 = pneg %p348
        %p646 = pneg %p345
        %p647 = pneg %p369
        %p648 = pneg %p366
        %p649 = pneg %p395
        %p650 = pneg %p392
        %p651 = scmp.lt.s32.totalorder %s33, 1
        %s652 = scalar_select %p651, %s33, 1
        %s653 = smul.addr %s652, 16
        %s654 = smul.addr %s653, 8
        %s655 = scalar_lea.vmem %s16, %s654
        %p656 = scmp.lt.s32.totalorder %s33, 1
        %s657 = scalar_select %p656, %s33, 1
        %s658 = smul.addr %s657, 16
        %s659 = smul.addr %s658, 8
        %s660 = scalar_lea.vmem %s0, %s659
        %p661 = scmp.lt.s32.totalorder %s33, 1
        %s662 = scalar_select %p661, %s33, 1
        %s663 = smul.addr %s662, 16
        %s664 = smul.addr %s663, 8
        %s665 = scalar_lea.vmem %s16, %s664
        %v667 = vld [vmem:[%s660] sm:$0xff]
        %v668 = vld [vmem:[%s660 + $0x8] sm:$0xff]
        %v669 = vld [vmem:[%s660 + $0x10] sm:$0xff]
        %v670 = vld [vmem:[%s660 + $0x18] sm:$0xff]
        %v671 = vld [vmem:[%s660 + $0x20] sm:$0xff]
        %v672 = vld [vmem:[%s660 + $0x28] sm:$0xff]
        %v673 = vld [vmem:[%s660 + $0x30] sm:$0xff]
        %v674 = vld [vmem:[%s660 + $0x38] sm:$0xff]
        %v675 = vld [vmem:[%s660 + $0x40] sm:$0xff]
        %v676 = vld [vmem:[%s660 + $0x48] sm:$0xff]
        %v677 = vld [vmem:[%s660 + $0x50] sm:$0xff]
        %v678 = vld [vmem:[%s660 + $0x58] sm:$0xff]
        %v679 = vld [vmem:[%s660 + $0x60] sm:$0xff]
        %v680 = vld [vmem:[%s660 + $0x68] sm:$0xff]
        %v681 = vld [vmem:[%s660 + $0x70] sm:$0xff]
        %v682 = vld [vmem:[%s660 + $0x78] sm:$0xff]
        %vm683 = vcmask 523264
        %684 = vst.msk [vmem:[#allocation2] sm:$0xff] %vm683, %v667
        %685 = vst.msk [vmem:[#allocation2 + $0x8] sm:$0xff] %vm683, %v668
        %686 = vst.msk [vmem:[#allocation2 + $0x10] sm:$0xff] %vm683, %v669
        %687 = vst.msk [vmem:[#allocation2 + $0x18] sm:$0xff] %vm683, %v670
        %688 = vst.msk [vmem:[#allocation2 + $0x20] sm:$0xff] %vm683, %v671
        %689 = vst.msk [vmem:[#allocation2 + $0x28] sm:$0xff] %vm683, %v672
        %690 = vst.msk [vmem:[#allocation2 + $0x30] sm:$0xff] %vm683, %v673
        %691 = vst.msk [vmem:[#allocation2 + $0x38] sm:$0xff] %vm683, %v674
        %692 = vst.msk [vmem:[#allocation2 + $0x40] sm:$0xff] %vm683, %v675
        %693 = vst.msk [vmem:[#allocation2 + $0x48] sm:$0xff] %vm683, %v676
        %694 = vst.msk [vmem:[#allocation2 + $0x50] sm:$0xff] %vm683, %v677
        %695 = vst.msk [vmem:[#allocation2 + $0x58] sm:$0xff] %vm683, %v678
        %696 = vst.msk [vmem:[#allocation2 + $0x60] sm:$0xff] %vm683, %v679
        %697 = vst.msk [vmem:[#allocation2 + $0x68] sm:$0xff] %vm683, %v680
        %698 = vst.msk [vmem:[#allocation2 + $0x70] sm:$0xff] %vm683, %v681
        %699 = vst.msk [vmem:[#allocation2 + $0x78] sm:$0xff] %vm683, %v682
        %v700 = vlaneseq
        %v701 = vand.u32 %v700, 127
        %vm702 = vcmp.lt.s32.totalorder %v701, 16
        %v703 = vsel %vm702, 0.0, -1e+30
        loop: start=0, step=1, limit=8
        $region125: #{heart_gpt_forward.1} parent=83 // loop_pre_header
          _
        $region126: #{heart_gpt_forward.1} parent=83 // loop_header
          %s705 = sphi 0, %s709
          %p706 = scmp.ge.s32.totalorder %s705, 8
        $region127: #{heart_gpt_forward.1} parent=83 // loop_header_branch
          %708 = sbr.rel (%p706) target = $region131
        $region128: #{heart_gpt_forward.1} parent=83 // loop_body
          %v710 = vld [vmem:[#allocation2] sm:$0xff]
          %v711 = vld [vmem:[#allocation2 + $0x8] sm:$0xff]
          %v712 = vld [vmem:[#allocation2 + $0x10] sm:$0xff]
          %v713 = vld [vmem:[#allocation2 + $0x18] sm:$0xff]
          %v714 = vld [vmem:[#allocation2 + $0x20] sm:$0xff]
          %v715 = vld [vmem:[#allocation2 + $0x28] sm:$0xff]
          %v716 = vld [vmem:[#allocation2 + $0x30] sm:$0xff]
          %v717 = vld [vmem:[#allocation2 + $0x38] sm:$0xff]
          %v718 = vld [vmem:[#allocation2 + $0x40] sm:$0xff]
          %v719 = vld [vmem:[#allocation2 + $0x48] sm:$0xff]
          %v720 = vld [vmem:[#allocation2 + $0x50] sm:$0xff]
          %v721 = vld [vmem:[#allocation2 + $0x58] sm:$0xff]
          %v722 = vld [vmem:[#allocation2 + $0x60] sm:$0xff]
          %v723 = vld [vmem:[#allocation2 + $0x68] sm:$0xff]
          %v724 = vld [vmem:[#allocation2 + $0x70] sm:$0xff]
          %v725 = vld [vmem:[#allocation2 + $0x78] sm:$0xff]
          %s726 = scalar_lea.vmem [#allocation4], %s705
          %v727 = vld [vmem:[%s726] sm:$0x1]
          %s728 = scalar_lea.vmem [#allocation6], %s705
          %v729 = vld [vmem:[%s728] sm:$0x1]
          %v730 = vsel %vm683, %v710, 0.0
          %731 = vadd.xlane.f32.xlu0 %v730
          %v732 = vpop.xlane.xlu0 %731
          %v733 = vsel %vm683, %v711, 0.0
          %734 = vadd.xlane.f32.xlu0 %v733
          %v735 = vpop.xlane.xlu0 %734
          %v736 = vsel %vm683, %v712, 0.0
          %737 = vadd.xlane.f32.xlu0 %v736
          %v738 = vpop.xlane.xlu0 %737
          %v739 = vsel %vm683, %v713, 0.0
          %740 = vadd.xlane.f32.xlu0 %v739
          %v741 = vpop.xlane.xlu0 %740
          %v742 = vsel %vm683, %v714, 0.0
          %743 = vadd.xlane.f32.xlu0 %v742
          %v744 = vpop.xlane.xlu0 %743
          %v745 = vsel %vm683, %v715, 0.0
          %746 = vadd.xlane.f32.xlu0 %v745
          %v747 = vpop.xlane.xlu0 %746
          %v748 = vsel %vm683, %v716, 0.0
          %749 = vadd.xlane.f32.xlu0 %v748
          %v750 = vpop.xlane.xlu0 %749
          %v751 = vsel %vm683, %v717, 0.0
          %752 = vadd.xlane.f32.xlu0 %v751
          %v753 = vpop.xlane.xlu0 %752
          %v754 = vsel %vm683, %v718, 0.0
          %755 = vadd.xlane.f32.xlu0 %v754
          %v756 = vpop.xlane.xlu0 %755
          %v757 = vsel %vm683, %v719, 0.0
          %758 = vadd.xlane.f32.xlu0 %v757
          %v759 = vpop.xlane.xlu0 %758
          %v760 = vsel %vm683, %v720, 0.0
          %761 = vadd.xlane.f32.xlu0 %v760
          %v762 = vpop.xlane.xlu0 %761
          %v763 = vsel %vm683, %v721, 0.0
          %764 = vadd.xlane.f32.xlu0 %v763
          %v765 = vpop.xlane.xlu0 %764
          %v766 = vsel %vm683, %v722, 0.0
          %767 = vadd.xlane.f32.xlu0 %v766
          %v768 = vpop.xlane.xlu0 %767
          %v769 = vsel %vm683, %v723, 0.0
          %770 = vadd.xlane.f32.xlu0 %v769
          %v771 = vpop.xlane.xlu0 %770
          %v772 = vsel %vm683, %v724, 0.0
          %773 = vadd.xlane.f32.xlu0 %v772
          %v774 = vpop.xlane.xlu0 %773
          %v775 = vsel %vm683, %v725, 0.0
          %776 = vadd.xlane.f32.xlu0 %v775
          %v777 = vpop.xlane.xlu0 %776
          %v778 = vrcp.pop 64.0
          %v779 = vmul.f32 %v732, %v778
          %v780 = vmul.f32 %v735, %v778
          %v781 = vmul.f32 %v738, %v778
          %v782 = vmul.f32 %v741, %v778
          %v783 = vmul.f32 %v744, %v778
          %v784 = vmul.f32 %v747, %v778
          %v785 = vmul.f32 %v750, %v778
          %v786 = vmul.f32 %v753, %v778
          %v787 = vmul.f32 %v756, %v778
          %v788 = vmul.f32 %v759, %v778
          %v789 = vmul.f32 %v762, %v778
          %v790 = vmul.f32 %v765, %v778
          %v791 = vmul.f32 %v768, %v778
          %v792 = vmul.f32 %v771, %v778
          %v793 = vmul.f32 %v774, %v778
          %v794 = vmul.f32 %v777, %v778
          %v795 = vsub.f32 %v710, %v779
          %v796 = vsub.f32 %v711, %v780
          %v797 = vsub.f32 %v712, %v781
          %v798 = vsub.f32 %v713, %v782
          %v799 = vsub.f32 %v714, %v783
          %v800 = vsub.f32 %v715, %v784
          %v801 = vsub.f32 %v716, %v785
          %v802 = vsub.f32 %v717, %v786
          %v803 = vsub.f32 %v718, %v787
          %v804 = vsub.f32 %v719, %v788
          %v805 = vsub.f32 %v720, %v789
          %v806 = vsub.f32 %v721, %v790
          %v807 = vsub.f32 %v722, %v791
          %v808 = vsub.f32 %v723, %v792
          %v809 = vsub.f32 %v724, %v793
          %v810 = vsub.f32 %v725, %v794
          %v811 = vmul.f32 %v795, %v795
          %v812 = vmul.f32 %v796, %v796
          %v813 = vmul.f32 %v797, %v797
          %v814 = vmul.f32 %v798, %v798
          %v815 = vmul.f32 %v799, %v799
          %v816 = vmul.f32 %v800, %v800
          %v817 = vmul.f32 %v801, %v801
          %v818 = vmul.f32 %v802, %v802
          %v819 = vmul.f32 %v803, %v803
          %v820 = vmul.f32 %v804, %v804
          %v821 = vmul.f32 %v805, %v805
          %v822 = vmul.f32 %v806, %v806
          %v823 = vmul.f32 %v807, %v807
          %v824 = vmul.f32 %v808, %v808
          %v825 = vmul.f32 %v809, %v809
          %v826 = vmul.f32 %v810, %v810
          %v827 = vsel %vm683, %v811, 0.0
          %828 = vadd.xlane.f32.xlu0 %v827
          %v829 = vpop.xlane.xlu0 %828
          %v830 = vsel %vm683, %v812, 0.0
          %831 = vadd.xlane.f32.xlu0 %v830
          %v832 = vpop.xlane.xlu0 %831
          %v833 = vsel %vm683, %v813, 0.0
          %834 = vadd.xlane.f32.xlu0 %v833
          %v835 = vpop.xlane.xlu0 %834
          %v836 = vsel %vm683, %v814, 0.0
          %837 = vadd.xlane.f32.xlu0 %v836
          %v838 = vpop.xlane.xlu0 %837
          %v839 = vsel %vm683, %v815, 0.0
          %840 = vadd.xlane.f32.xlu0 %v839
          %v841 = vpop.xlane.xlu0 %840
          %v842 = vsel %vm683, %v816, 0.0
          %843 = vadd.xlane.f32.xlu0 %v842
          %v844 = vpop.xlane.xlu0 %843
          %v845 = vsel %vm683, %v817, 0.0
          %846 = vadd.xlane.f32.xlu0 %v845
          %v847 = vpop.xlane.xlu0 %846
          %v848 = vsel %vm683, %v818, 0.0
          %849 = vadd.xlane.f32.xlu0 %v848
          %v850 = vpop.xlane.xlu0 %849
          %v851 = vsel %vm683, %v819, 0.0
          %852 = vadd.xlane.f32.xlu0 %v851
          %v853 = vpop.xlane.xlu0 %852
          %v854 = vsel %vm683, %v820, 0.0
          %855 = vadd.xlane.f32.xlu0 %v854
          %v856 = vpop.xlane.xlu0 %855
          %v857 = vsel %vm683, %v821, 0.0
          %858 = vadd.xlane.f32.xlu0 %v857
          %v859 = vpop.xlane.xlu0 %858
          %v860 = vsel %vm683, %v822, 0.0
          %861 = vadd.xlane.f32.xlu0 %v860
          %v862 = vpop.xlane.xlu0 %861
          %v863 = vsel %vm683, %v823, 0.0
          %864 = vadd.xlane.f32.xlu0 %v863
          %v865 = vpop.xlane.xlu0 %864
          %v866 = vsel %vm683, %v824, 0.0
          %867 = vadd.xlane.f32.xlu0 %v866
          %v868 = vpop.xlane.xlu0 %867
          %v869 = vsel %vm683, %v825, 0.0
          %870 = vadd.xlane.f32.xlu0 %v869
          %v871 = vpop.xlane.xlu0 %870
          %v872 = vsel %vm683, %v826, 0.0
          %873 = vadd.xlane.f32.xlu0 %v872
          %v874 = vpop.xlane.xlu0 %873
          %v875 = vmul.f32 %v829, %v778
          %v876 = vmul.f32 %v832, %v778
          %v877 = vmul.f32 %v835, %v778
          %v878 = vmul.f32 %v838, %v778
          %v879 = vmul.f32 %v841, %v778
          %v880 = vmul.f32 %v844, %v778
          %v881 = vmul.f32 %v847, %v778
          %v882 = vmul.f32 %v850, %v778
          %v883 = vmul.f32 %v853, %v778
          %v884 = vmul.f32 %v856, %v778
          %v885 = vmul.f32 %v859, %v778
          %v886 = vmul.f32 %v862, %v778
          %v887 = vmul.f32 %v865, %v778
          %v888 = vmul.f32 %v868, %v778
          %v889 = vmul.f32 %v871, %v778
          %v890 = vmul.f32 %v874, %v778
          %v891 = vadd.f32 %v875, 1e-05
          %v892 = vadd.f32 %v876, 1e-05
          %v893 = vadd.f32 %v877, 1e-05
          %v894 = vadd.f32 %v878, 1e-05
          %v895 = vadd.f32 %v879, 1e-05
          %v896 = vadd.f32 %v880, 1e-05
          %v897 = vadd.f32 %v881, 1e-05
          %v898 = vadd.f32 %v882, 1e-05
          %v899 = vadd.f32 %v883, 1e-05
          %v900 = vadd.f32 %v884, 1e-05
          %v901 = vadd.f32 %v885, 1e-05
          %v902 = vadd.f32 %v886, 1e-05
          %v903 = vadd.f32 %v887, 1e-05
          %v904 = vadd.f32 %v888, 1e-05
          %v905 = vadd.f32 %v889, 1e-05
          %v906 = vadd.f32 %v890, 1e-05
          %v907 = vrsqrt.pop %v891
          %v908 = vrsqrt.pop %v892
          %v909 = vrsqrt.pop %v893
          %v910 = vrsqrt.pop %v894
          %v911 = vrsqrt.pop %v895
          %v912 = vrsqrt.pop %v896
          %v913 = vrsqrt.pop %v897
          %v914 = vrsqrt.pop %v898
          %v915 = vrsqrt.pop %v899
          %v916 = vrsqrt.pop %v900
          %v917 = vrsqrt.pop %v901
          %v918 = vrsqrt.pop %v902
          %v919 = vrsqrt.pop %v903
          %v920 = vrsqrt.pop %v904
          %v921 = vrsqrt.pop %v905
          %v922 = vrsqrt.pop %v906
          %v923 = vmul.f32 %v795, %v907
          %v924 = vmul.f32 %v796, %v908
          %v925 = vmul.f32 %v797, %v909
          %v926 = vmul.f32 %v798, %v910
          %v927 = vmul.f32 %v799, %v911
          %v928 = vmul.f32 %v800, %v912
          %v929 = vmul.f32 %v801, %v913
          %v930 = vmul.f32 %v802, %v914
          %v931 = vmul.f32 %v803, %v915
          %v932 = vmul.f32 %v804, %v916
          %v933 = vmul.f32 %v805, %v917
          %v934 = vmul.f32 %v806, %v918
          %v935 = vmul.f32 %v807, %v919
          %v936 = vmul.f32 %v808, %v920
          %v937 = vmul.f32 %v809, %v921
          %v938 = vmul.f32 %v810, %v922
          %v940 = vlaneseq
          %v941 = vshrl.u32 %v940, 7
          %v942 = vsub.s32 0, %v941
          %v943 = vrot.slane %v727, %v942
          %v945 = vmul.f32 %v923, %v943
          %v946 = vmul.f32 %v924, %v943
          %v947 = vmul.f32 %v925, %v943
          %v948 = vmul.f32 %v926, %v943
          %v949 = vmul.f32 %v927, %v943
          %v950 = vmul.f32 %v928, %v943
          %v951 = vmul.f32 %v929, %v943
          %v952 = vmul.f32 %v930, %v943
          %v953 = vmul.f32 %v931, %v943
          %v954 = vmul.f32 %v932, %v943
          %v955 = vmul.f32 %v933, %v943
          %v956 = vmul.f32 %v934, %v943
          %v957 = vmul.f32 %v935, %v943
          %v958 = vmul.f32 %v936, %v943
          %v959 = vmul.f32 %v937, %v943
          %v960 = vmul.f32 %v938, %v943
          %v962 = vlaneseq
          %v963 = vshrl.u32 %v962, 7
          %v964 = vsub.s32 0, %v963
          %v965 = vrot.slane %v729, %v964
          %v967 = vadd.f32 %v945, %v965
          %v968 = vadd.f32 %v946, %v965
          %v969 = vadd.f32 %v947, %v965
          %v970 = vadd.f32 %v948, %v965
          %v971 = vadd.f32 %v949, %v965
          %v972 = vadd.f32 %v950, %v965
          %v973 = vadd.f32 %v951, %v965
          %v974 = vadd.f32 %v952, %v965
          %v975 = vadd.f32 %v953, %v965
          %v976 = vadd.f32 %v954, %v965
          %v977 = vadd.f32 %v955, %v965
          %v978 = vadd.f32 %v956, %v965
          %v979 = vadd.f32 %v957, %v965
          %v980 = vadd.f32 %v958, %v965
          %v981 = vadd.f32 %v959, %v965
          %v982 = vadd.f32 %v960, %v965
          %v983 = vpack.c.bf16 %v968, %v967
          %v984 = vpack.c.bf16 %v970, %v969
          %v985 = vpack.c.bf16 %v972, %v971
          %v986 = vpack.c.bf16 %v974, %v973
          %v987 = vpack.c.bf16 %v976, %v975
          %v988 = vpack.c.bf16 %v978, %v977
          %v989 = vpack.c.bf16 %v980, %v979
          %v990 = vpack.c.bf16 %v982, %v981
          %s991 = smul.u32 %s705, 32
          %s992 = smul.addr %s991, 4
          %s993 = scalar_lea.vmem %s3, %s992
          %v994 = vld [vmem:[%s993] sm:$0xff]
          %v995 = vld [vmem:[%s993 + $0x8] sm:$0xff]
          %v996 = vld [vmem:[%s993 + $0x10] sm:$0xff]
          %v997 = vld [vmem:[%s993 + $0x18] sm:$0xff]
          %v998 = vld [vmem:[%s993 + $0x20] sm:$0xff]
          %v999 = vld [vmem:[%s993 + $0x28] sm:$0xff]
          %v1000 = vld [vmem:[%s993 + $0x30] sm:$0xff]
          %v1001 = vld [vmem:[%s993 + $0x38] sm:$0xff]
          %v1002 = vld [vmem:[%s993 + $0x40] sm:$0xff]
          %v1003 = vld [vmem:[%s993 + $0x48] sm:$0xff]
          %v1004 = vld [vmem:[%s993 + $0x50] sm:$0xff]
          %v1005 = vld [vmem:[%s993 + $0x58] sm:$0xff]
          %v1006 = vld [vmem:[%s993 + $0x60] sm:$0xff]
          %v1007 = vld [vmem:[%s993 + $0x68] sm:$0xff]
          %v1008 = vld [vmem:[%s993 + $0x70] sm:$0xff]
          %v1009 = vld [vmem:[%s993 + $0x78] sm:$0xff]
          %v1026 = vunpack.c.l.b16 %v994
          %v1027 = vunpack.c.h.b16 %v994
          %v1028 = vunpack.c.l.b16 %v995
          %v1029 = vunpack.c.h.b16 %v995
          %v1030 = vunpack.c.l.b16 %v996
          %v1031 = vunpack.c.h.b16 %v996
          %v1032 = vunpack.c.l.b16 %v997
          %v1033 = vunpack.c.h.b16 %v997
          %v1034 = vunpack.c.l.b16 %v998
          %v1035 = vunpack.c.h.b16 %v998
          %v1036 = vunpack.c.l.b16 %v999
          %v1037 = vunpack.c.h.b16 %v999
          %v1038 = vunpack.c.l.b16 %v1000
          %v1039 = vunpack.c.h.b16 %v1000
          %v1040 = vunpack.c.l.b16 %v1001
          %v1041 = vunpack.c.h.b16 %v1001
          %v1042 = vunpack.c.l.b16 %v1002
          %v1043 = vunpack.c.h.b16 %v1002
          %v1044 = vunpack.c.l.b16 %v1003
          %v1045 = vunpack.c.h.b16 %v1003
          %v1046 = vunpack.c.l.b16 %v1004
          %v1047 = vunpack.c.h.b16 %v1004
          %v1048 = vunpack.c.l.b16 %v1005
          %v1049 = vunpack.c.h.b16 %v1005
          %v1050 = vunpack.c.l.b16 %v1006
          %v1051 = vunpack.c.h.b16 %v1006
          %v1052 = vunpack.c.l.b16 %v1007
          %v1053 = vunpack.c.h.b16 %v1007
          %v1054 = vunpack.c.l.b16 %v1008
          %v1055 = vunpack.c.h.b16 %v1008
          %v1056 = vunpack.c.l.b16 %v1009
          %v1057 = vunpack.c.h.b16 %v1009
          %v1058 = vpack.c.b16 %v1030, %v1026
          %v1059 = vpack.c.b16 %v1031, %v1027
          %v1060 = vpack.c.b16 %v1032, %v1028
          %v1061 = vpack.c.b16 %v1033, %v1029
          %v1062 = vpack.c.b16 %v1038, %v1034
          %v1063 = vpack.c.b16 %v1039, %v1035
          %v1064 = vpack.c.b16 %v1040, %v1036
          %v1065 = vpack.c.b16 %v1041, %v1037
          %v1066 = vpack.c.b16 %v1046, %v1042
          %v1067 = vpack.c.b16 %v1047, %v1043
          %v1068 = vpack.c.b16 %v1048, %v1044
          %v1069 = vpack.c.b16 %v1049, %v1045
          %v1070 = vpack.c.b16 %v1054, %v1050
          %v1071 = vpack.c.b16 %v1055, %v1051
          %v1072 = vpack.c.b16 %v1056, %v1052
          %v1073 = vpack.c.b16 %v1057, %v1053
          %v1091 = vsel %vm683, %v983, 0
          %v1094 = vsel %vm683, %v984, 0
          %v1097 = vsel %vm683, %v985, 0
          %v1100 = vsel %vm683, %v986, 0
          %v1103 = vsel %vm683, %v987, 0
          %v1106 = vsel %vm683, %v988, 0
          %v1109 = vsel %vm683, %v989, 0
          %v1112 = vsel %vm683, %v990, 0
          %1114 = vmatprep.subr.bf16.mxu0 %v1059
          %1115 = vmatpush1.bf16.msra.mxu0 %v1058
          %1116 = vmatprep.subr.bf16.mxu0 %v1063
          %1117 = vmatpush1.bf16.msra.mxu0 %v1062
          %1118 = vmatprep.subr.bf16.mxu0 %v1067
          %1119 = vmatpush1.bf16.msra.mxu0 %v1066
          %1120 = vmatprep.subr.bf16.mxu0 %v1071
          %1121 = vmatpush1.bf16.msra.mxu0 %v1070
          %1122 = vmatprep.subr.bf16.mxu0 0
          %1123 = vmatpush1.bf16.msra.mxu0 0
          %1124 = vmatprep.subr.bf16.mxu0 0
          %1125 = vmatpush1.bf16.msra.mxu0 0
          %1126 = vmatprep.subr.bf16.mxu0 0
          %1127 = vmatpush1.bf16.msra.mxu0 0
          %1128 = vmatprep.subr.bf16.mxu0 0
          %1129 = vmatpush1.bf16.msra.mxu0 0
          %1130 = vmatprep.subr.bf16.mxu0 0
          %1131 = vmatpush1.bf16.msra.mxu0 0
          %1132 = vmatprep.subr.bf16.mxu0 0
          %1133 = vmatpush1.bf16.msra.mxu0 0
          %1134 = vmatprep.subr.bf16.mxu0 0
          %1135 = vmatpush1.bf16.msra.mxu0 0
          %1136 = vmatprep.subr.bf16.mxu0 0
          %1137 = vmatpush1.bf16.msra.mxu0 0
          %1138 = vmatprep.subr.bf16.mxu0 0
          %1139 = vmatpush1.bf16.msra.mxu0 0
          %1140 = vmatprep.subr.bf16.mxu0 0
          %1141 = vmatpush1.bf16.msra.mxu0 0
          %1142 = vmatprep.subr.bf16.mxu0 0
          %1143 = vmatpush1.bf16.msra.mxu0 0
          %1144 = vmatprep.subr.bf16.mxu0 0
          %1145 = vmatpush1.bf16.msra.mxu0 0
          %1146 = vmatprep.mubr.bf16.mxu0 0
          %1147 = vmatmul.mubr.bf16.gmra.mrb[0].mxu0 %v1091
          %v1148 = vpop.f32.mrb[0].mxu0
          %v1149 = vadd.f32 0.0, %v1148
          %v1150 = vpop.f32.mrb[0].mxu0
          %v1151 = vadd.f32 0.0, %v1150
          %v1152 = vpop.f32.mrb[0].mxu0
          %v1153 = vadd.f32 0.0, %v1152
          %v1154 = vpop.f32.mrb[0].mxu0
          %v1155 = vadd.f32 0.0, %v1154
          %1156 = vmatprep.mubr.bf16.mxu0 0
          %1157 = vmatmul.mubr.bf16.gmra.mrb[0].mxu0 %v1094
          %v1158 = vpop.f32.mrb[0].mxu0
          %v1159 = vadd.f32 0.0, %v1158
          %v1160 = vpop.f32.mrb[0].mxu0
          %v1161 = vadd.f32 0.0, %v1160
          %v1162 = vpop.f32.mrb[0].mxu0
          %v1163 = vadd.f32 0.0, %v1162
          %v1164 = vpop.f32.mrb[0].mxu0
          %v1165 = vadd.f32 0.0, %v1164
          %1166 = vmatprep.mubr.bf16.mxu0 0
          %1167 = vmatmul.mubr.bf16.gmra.mrb[0].mxu0 %v1097
          %v1168 = vpop.f32.mrb[0].mxu0
          %v1169 = vadd.f32 0.0, %v1168
          %v1170 = vpop.f32.mrb[0].mxu0
          %v1171 = vadd.f32 0.0, %v1170
          %v1172 = vpop.f32.mrb[0].mxu0
          %v1173 = vadd.f32 0.0, %v1172
          %v1174 = vpop.f32.mrb[0].mxu0
          %v1175 = vadd.f32 0.0, %v1174
          %1176 = vmatprep.mubr.bf16.mxu0 0
          %1177 = vmatmul.mubr.bf16.gmra.mrb[0].mxu0 %v1100
          %v1178 = vpop.f32.mrb[0].mxu0
          %v1179 = vadd.f32 0.0, %v1178
          %v1180 = vpop.f32.mrb[0].mxu0
          %v1181 = vadd.f32 0.0, %v1180
          %v1182 = vpop.f32.mrb[0].mxu0
          %v1183 = vadd.f32 0.0, %v1182
          %v1184 = vpop.f32.mrb[0].mxu0
          %v1185 = vadd.f32 0.0, %v1184
          %1186 = vmatprep.mubr.bf16.mxu0 0
          %1187 = vmatmul.mubr.bf16.gmra.mrb[0].mxu0 %v1103
          %v1188 = vpop.f32.mrb[0].mxu0
          %v1189 = vadd.f32 0.0, %v1188
          %v1190 = vpop.f32.mrb[0].mxu0
          %v1191 = vadd.f32 0.0, %v1190
          %v1192 = vpop.f32.mrb[0].mxu0
          %v1193 = vadd.f32 0.0, %v1192
          %v1194 = vpop.f32.mrb[0].mxu0
          %v1195 = vadd.f32 0.0, %v1194
          %1196 = vmatprep.mubr.bf16.mxu0 0
          %1197 = vmatmul.mubr.bf16.gmra.mrb[0].mxu0 %v1106
          %v1198 = vpop.f32.mrb[0].mxu0
          %v1199 = vadd.f32 0.0, %v1198
          %v1200 = vpop.f32.mrb[0].mxu0
          %v1201 = vadd.f32 0.0, %v1200
          %v1202 = vpop.f32.mrb[0].mxu0
          %v1203 = vadd.f32 0.0, %v1202
          %v1204 = vpop.f32.mrb[0].mxu0
          %v1205 = vadd.f32 0.0, %v1204
          %1206 = vmatprep.mubr.bf16.mxu0 0
          %1207 = vmatmul.mubr.bf16.gmra.mrb[0].mxu0 %v1109
          %v1208 = vpop.f32.mrb[0].mxu0
          %v1209 = vadd.f32 0.0, %v1208
          %v1210 = vpop.f32.mrb[0].mxu0
          %v1211 = vadd.f32 0.0, %v1210
          %v1212 = vpop.f32.mrb[0].mxu0
          %v1213 = vadd.f32 0.0, %v1212
          %v1214 = vpop.f32.mrb[0].mxu0
          %v1215 = vadd.f32 0.0, %v1214
          %1216 = vmatprep.mubr.bf16.mxu0 0
          %1217 = vmatmul.mubr.bf16.gmra.mrb[0].mxu0 %v1112
          %v1218 = vpop.f32.mrb[0].mxu0
          %v1219 = vadd.f32 0.0, %v1218
          %v1220 = vpop.f32.mrb[0].mxu0
          %v1221 = vadd.f32 0.0, %v1220
          %v1222 = vpop.f32.mrb[0].mxu0
          %v1223 = vadd.f32 0.0, %v1222
          %v1224 = vpop.f32.mrb[0].mxu0
          %v1225 = vadd.f32 0.0, %v1224
          %1226 = vdwg.mxu0
          %1227 = vmatprep.subr.bf16.mxu0 %v1061
          %1228 = vmatpush1.bf16.msra.mxu0 %v1060
          %1229 = vmatprep.subr.bf16.mxu0 %v1065
          %1230 = vmatpush1.bf16.msra.mxu0 %v1064
          %1231 = vmatprep.subr.bf16.mxu0 %v1069
          %1232 = vmatpush1.bf16.msra.mxu0 %v1068
          %1233 = vmatprep.subr.bf16.mxu0 %v1073
          %1234 = vmatpush1.bf16.msra.mxu0 %v1072
          %1235 = vmatprep.subr.bf16.mxu0 0
          %1236 = vmatpush1.bf16.msra.mxu0 0
          %1237 = vmatprep.subr.bf16.mxu0 0
          %1238 = vmatpush1.bf16.msra.mxu0 0
          %1239 = vmatprep.subr.bf16.mxu0 0
          %1240 = vmatpush1.bf16.msra.mxu0 0
          %1241 = vmatprep.subr.bf16.mxu0 0
          %1242 = vmatpush1.bf16.msra.mxu0 0
          %1243 = vmatprep.subr.bf16.mxu0 0
          %1244 = vmatpush1.bf16.msra.mxu0 0
          %1245 = vmatprep.subr.bf16.mxu0 0
          %1246 = vmatpush1.bf16.msra.mxu0 0
          %1247 = vmatprep.subr.bf16.mxu0 0
          %1248 = vmatpush1.bf16.msra.mxu0 0
          %1249 = vmatprep.subr.bf16.mxu0 0
          %1250 = vmatpush1.bf16.msra.mxu0 0
          %1251 = vmatprep.subr.bf16.mxu0 0
          %1252 = vmatpush1.bf16.msra.mxu0 0
          %1253 = vmatprep.subr.bf16.mxu0 0
          %1254 = vmatpush1.bf16.msra.mxu0 0
          %1255 = vmatprep.subr.bf16.mxu0 0
          %1256 = vmatpush1.bf16.msra.mxu0 0
          %1257 = vmatprep.subr.bf16.mxu0 0
          %1258 = vmatpush1.bf16.msra.mxu0 0
          %1259 = vmatprep.mubr.bf16.mxu0 0
          %1260 = vmatmul.mubr.bf16.gmra.mrb[0].mxu0 %v1091
          %v1261 = vpop.f32.mrb[0].mxu0
          %v1262 = vadd.f32 0.0, %v1261
          %v1263 = vpop.f32.mrb[0].mxu0
          %v1264 = vadd.f32 0.0, %v1263
          %v1265 = vpop.f32.mrb[0].mxu0
          %v1266 = vadd.f32 0.0, %v1265
          %v1267 = vpop.f32.mrb[0].mxu0
          %v1268 = vadd.f32 0.0, %v1267
          %1269 = vmatprep.mubr.bf16.mxu0 0
          %1270 = vmatmul.mubr.bf16.gmra.mrb[0].mxu0 %v1094
          %v1271 = vpop.f32.mrb[0].mxu0
          %v1272 = vadd.f32 0.0, %v1271
          %v1273 = vpop.f32.mrb[0].mxu0
          %v1274 = vadd.f32 0.0, %v1273
          %v1275 = vpop.f32.mrb[0].mxu0
          %v1276 = vadd.f32 0.0, %v1275
          %v1277 = vpop.f32.mrb[0].mxu0
          %v1278 = vadd.f32 0.0, %v1277
          %1279 = vmatprep.mubr.bf16.mxu0 0
          %1280 = vmatmul.mubr.bf16.gmra.mrb[0].mxu0 %v1097
          %v1281 = vpop.f32.mrb[0].mxu0
          %v1282 = vadd.f32 0.0, %v1281
          %v1283 = vpop.f32.mrb[0].mxu0
          %v1284 = vadd.f32 0.0, %v1283
          %v1285 = vpop.f32.mrb[0].mxu0
          %v1286 = vadd.f32 0.0, %v1285
          %v1287 = vpop.f32.mrb[0].mxu0
          %v1288 = vadd.f32 0.0, %v1287
          %1289 = vmatprep.mubr.bf16.mxu0 0
          %1290 = vmatmul.mubr.bf16.gmra.mrb[0].mxu0 %v1100
          %v1291 = vpop.f32.mrb[0].mxu0
          %v1292 = vadd.f32 0.0, %v1291
          %v1293 = vpop.f32.mrb[0].mxu0
          %v1294 = vadd.f32 0.0, %v1293
          %v1295 = vpop.f32.mrb[0].mxu0
          %v1296 = vadd.f32 0.0, %v1295
          %v1297 = vpop.f32.mrb[0].mxu0
          %v1298 = vadd.f32 0.0, %v1297
          %1299 = vmatprep.mubr.bf16.mxu0 0
          %1300 = vmatmul.mubr.bf16.gmra.mrb[0].mxu0 %v1103
          %v1301 = vpop.f32.mrb[0].mxu0
          %v1302 = vadd.f32 0.0, %v1301
          %v1303 = vpop.f32.mrb[0].mxu0
          %v1304 = vadd.f32 0.0, %v1303
          %v1305 = vpop.f32.mrb[0].mxu0
          %v1306 = vadd.f32 0.0, %v1305
          %v1307 = vpop.f32.mrb[0].mxu0
          %v1308 = vadd.f32 0.0, %v1307
          %1309 = vmatprep.mubr.bf16.mxu0 0
          %1310 = vmatmul.mubr.bf16.gmra.mrb[0].mxu0 %v1106
          %v1311 = vpop.f32.mrb[0].mxu0
          %v1312 = vadd.f32 0.0, %v1311
          %v1313 = vpop.f32.mrb[0].mxu0
          %v1314 = vadd.f32 0.0, %v1313
          %v1315 = vpop.f32.mrb[0].mxu0
          %v1316 = vadd.f32 0.0, %v1315
          %v1317 = vpop.f32.mrb[0].mxu0
          %v1318 = vadd.f32 0.0, %v1317
          %1319 = vmatprep.mubr.bf16.mxu0 0
          %1320 = vmatmul.mubr.bf16.gmra.mrb[0].mxu0 %v1109
          %v1321 = vpop.f32.mrb[0].mxu0
          %v1322 = vadd.f32 0.0, %v1321
          %v1323 = vpop.f32.mrb[0].mxu0
          %v1324 = vadd.f32 0.0, %v1323
          %v1325 = vpop.f32.mrb[0].mxu0
          %v1326 = vadd.f32 0.0, %v1325
          %v1327 = vpop.f32.mrb[0].mxu0
          %v1328 = vadd.f32 0.0, %v1327
          %1329 = vmatprep.mubr.bf16.mxu0 0
          %1330 = vmatmul.mubr.bf16.gmra.mrb[0].mxu0 %v1112
          %v1331 = vpop.f32.mrb[0].mxu0
          %v1332 = vadd.f32 0.0, %v1331
          %v1333 = vpop.f32.mrb[0].mxu0
          %v1334 = vadd.f32 0.0, %v1333
          %v1335 = vpop.f32.mrb[0].mxu0
          %v1336 = vadd.f32 0.0, %v1335
          %v1337 = vpop.f32.mrb[0].mxu0
          %v1338 = vadd.f32 0.0, %v1337
          %1339 = vdwg.mxu0
          %s1340 = smul.addr %s991, 4
          %s1341 = scalar_lea.vmem %s4, %s1340
          %v1342 = vld [vmem:[%s1341] sm:$0xff]
          %v1343 = vld [vmem:[%s1341 + $0x8] sm:$0xff]
          %v1344 = vld [vmem:[%s1341 + $0x10] sm:$0xff]
          %v1345 = vld [vmem:[%s1341 + $0x18] sm:$0xff]
          %v1346 = vld [vmem:[%s1341 + $0x20] sm:$0xff]
          %v1347 = vld [vmem:[%s1341 + $0x28] sm:$0xff]
          %v1348 = vld [vmem:[%s1341 + $0x30] sm:$0xff]
          %v1349 = vld [vmem:[%s1341 + $0x38] sm:$0xff]
          %v1350 = vld [vmem:[%s1341 + $0x40] sm:$0xff]
          %v1351 = vld [vmem:[%s1341 + $0x48] sm:$0xff]
          %v1352 = vld [vmem:[%s1341 + $0x50] sm:$0xff]
          %v1353 = vld [vmem:[%s1341 + $0x58] sm:$0xff]
          %v1354 = vld [vmem:[%s1341 + $0x60] sm:$0xff]
          %v1355 = vld [vmem:[%s1341 + $0x68] sm:$0xff]
          %v1356 = vld [vmem:[%s1341 + $0x70] sm:$0xff]
          %v1357 = vld [vmem:[%s1341 + $0x78] sm:$0xff]
          %v1374 = vunpack.c.l.b16 %v1342
          %v1375 = vunpack.c.h.b16 %v1342
          %v1376 = vunpack.c.l.b16 %v1343
          %v1377 = vunpack.c.h.b16 %v1343
          %v1378 = vunpack.c.l.b16 %v1344
          %v1379 = vunpack.c.h.b16 %v1344
          %v1380 = vunpack.c.l.b16 %v1345
          %v1381 = vunpack.c.h.b16 %v1345
          %v1382 = vunpack.c.l.b16 %v1346
          %v1383 = vunpack.c.h.b16 %v1346
          %v1384 = vunpack.c.l.b16 %v1347
          %v1385 = vunpack.c.h.b16 %v1347
          %v1386 = vunpack.c.l.b16 %v1348
          %v1387 = vunpack.c.h.b16 %v1348
          %v1388 = vunpack.c.l.b16 %v1349
          %v1389 = vunpack.c.h.b16 %v1349
          %v1390 = vunpack.c.l.b16 %v1350
          %v1391 = vunpack.c.h.b16 %v1350
          %v1392 = vunpack.c.l.b16 %v1351
          %v1393 = vunpack.c.h.b16 %v1351
          %v1394 = vunpack.c.l.b16 %v1352
          %v1395 = vunpack.c.h.b16 %v1352
          %v1396 = vunpack.c.l.b16 %v1353
          %v1397 = vunpack.c.h.b16 %v1353
          %v1398 = vunpack.c.l.b16 %v1354
          %v1399 = vunpack.c.h.b16 %v1354
          %v1400 = vunpack.c.l.b16 %v1355
          %v1401 = vunpack.c.h.b16 %v1355
          %v1402 = vunpack.c.l.b16 %v1356
          %v1403 = vunpack.c.h.b16 %v1356
          %v1404 = vunpack.c.l.b16 %v1357
          %v1405 = vunpack.c.h.b16 %v1357
          %v1406 = vpack.c.b16 %v1378, %v1374
          %v1407 = vpack.c.b16 %v1379, %v1375
          %v1408 = vpack.c.b16 %v1380, %v1376
          %v1409 = vpack.c.b16 %v1381, %v1377
          %v1410 = vpack.c.b16 %v1386, %v1382
          %v1411 = vpack.c.b16 %v1387, %v1383
          %v1412 = vpack.c.b16 %v1388, %v1384
          %v1413 = vpack.c.b16 %v1389, %v1385
          %v1414 = vpack.c.b16 %v1394, %v1390
          %v1415 = vpack.c.b16 %v1395, %v1391
          %v1416 = vpack.c.b16 %v1396, %v1392
          %v1417 = vpack.c.b16 %v1397, %v1393
          %v1418 = vpack.c.b16 %v1402, %v1398
          %v1419 = vpack.c.b16 %v1403, %v1399
          %v1420 = vpack.c.b16 %v1404, %v1400
          %v1421 = vpack.c.b16 %v1405, %v1401
          %1438 = vmatprep.subr.bf16.mxu0 %v1407
          %1439 = vmatpush1.bf16.msra.mxu0 %v1406
          %1440 = vmatprep.subr.bf16.mxu0 %v1411
          %1441 = vmatpush1.bf16.msra.mxu0 %v1410
          %1442 = vmatprep.subr.bf16.mxu0 %v1415
          %1443 = vmatpush1.bf16.msra.mxu0 %v1414
          %1444 = vmatprep.subr.bf16.mxu0 %v1419
          %1445 = vmatpush1.bf16.msra.mxu0 %v1418
          %1446 = vmatprep.subr.bf16.mxu0 0
          %1447 = vmatpush1.bf16.msra.mxu0 0
          %1448 = vmatprep.subr.bf16.mxu0 0
          %1449 = vmatpush1.bf16.msra.mxu0 0
          %1450 = vmatprep.subr.bf16.mxu0 0
          %1451 = vmatpush1.bf16.msra.mxu0 0
          %1452 = vmatprep.subr.bf16.mxu0 0
          %1453 = vmatpush1.bf16.msra.mxu0 0
          %1454 = vmatprep.subr.bf16.mxu0 0
          %1455 = vmatpush1.bf16.msra.mxu0 0
          %1456 = vmatprep.subr.bf16.mxu0 0
          %1457 = vmatpush1.bf16.msra.mxu0 0
          %1458 = vmatprep.subr.bf16.mxu0 0
          %1459 = vmatpush1.bf16.msra.mxu0 0
          %1460 = vmatprep.subr.bf16.mxu0 0
          %1461 = vmatpush1.bf16.msra.mxu0 0
          %1462 = vmatprep.subr.bf16.mxu0 0
          %1463 = vmatpush1.bf16.msra.mxu0 0
          %1464 = vmatprep.subr.bf16.mxu0 0
          %1465 = vmatpush1.bf16.msra.mxu0 0
          %1466 = vmatprep.subr.bf16.mxu0 0
          %1467 = vmatpush1.bf16.msra.mxu0 0
          %1468 = vmatprep.subr.bf16.mxu0 0
          %1469 = vmatpush1.bf16.msra.mxu0 0
          %1470 = vmatprep.mubr.bf16.mxu0 0
          %1471 = vmatmul.mubr.bf16.gmra.mrb[0].mxu0 %v1091
          %v1472 = vpop.f32.mrb[0].mxu0
          %v1473 = vadd.f32 0.0, %v1472
          %v1474 = vpop.f32.mrb[0].mxu0
          %v1475 = vadd.f32 0.0, %v1474
          %v1476 = vpop.f32.mrb[0].mxu0
          %v1477 = vadd.f32 0.0, %v1476
          %v1478 = vpop.f32.mrb[0].mxu0
          %v1479 = vadd.f32 0.0, %v1478
          %1480 = vmatprep.mubr.bf16.mxu0 0
          %1481 = vmatmul.mubr.bf16.gmra.mrb[0].mxu0 %v1094
          %v1482 = vpop.f32.mrb[0].mxu0
          %v1483 = vadd.f32 0.0, %v1482
          %v1484 = vpop.f32.mrb[0].mxu0
          %v1485 = vadd.f32 0.0, %v1484
          %v1486 = vpop.f32.mrb[0].mxu0
          %v1487 = vadd.f32 0.0, %v1486
          %v1488 = vpop.f32.mrb[0].mxu0
          %v1489 = vadd.f32 0.0, %v1488
          %1490 = vmatprep.mubr.bf16.mxu0 0
          %1491 = vmatmul.mubr.bf16.gmra.mrb[0].mxu0 %v1097
          %v1492 = vpop.f32.mrb[0].mxu0
          %v1493 = vadd.f32 0.0, %v1492
          %v1494 = vpop.f32.mrb[0].mxu0
          %v1495 = vadd.f32 0.0, %v1494
          %v1496 = vpop.f32.mrb[0].mxu0
          %v1497 = vadd.f32 0.0, %v1496
          %v1498 = vpop.f32.mrb[0].mxu0
          %v1499 = vadd.f32 0.0, %v1498
          %1500 = vmatprep.mubr.bf16.mxu0 0
          %1501 = vmatmul.mubr.bf16.gmra.mrb[0].mxu0 %v1100
          %v1502 = vpop.f32.mrb[0].mxu0
          %v1503 = vadd.f32 0.0, %v1502
          %v1504 = vpop.f32.mrb[0].mxu0
          %v1505 = vadd.f32 0.0, %v1504
          %v1506 = vpop.f32.mrb[0].mxu0
          %v1507 = vadd.f32 0.0, %v1506
          %v1508 = vpop.f32.mrb[0].mxu0
          %v1509 = vadd.f32 0.0, %v1508
          %1510 = vmatprep.mubr.bf16.mxu0 0
          %1511 = vmatmul.mubr.bf16.gmra.mrb[0].mxu0 %v1103
          %v1512 = vpop.f32.mrb[0].mxu0
          %v1513 = vadd.f32 0.0, %v1512
          %v1514 = vpop.f32.mrb[0].mxu0
          %v1515 = vadd.f32 0.0, %v1514
          %v1516 = vpop.f32.mrb[0].mxu0
          %v1517 = vadd.f32 0.0, %v1516
          %v1518 = vpop.f32.mrb[0].mxu0
          %v1519 = vadd.f32 0.0, %v1518
          %1520 = vmatprep.mubr.bf16.mxu0 0
          %1521 = vmatmul.mubr.bf16.gmra.mrb[0].mxu0 %v1106
          %v1522 = vpop.f32.mrb[0].mxu0
          %v1523 = vadd.f32 0.0, %v1522
          %v1524 = vpop.f32.mrb[0].mxu0
          %v1525 = vadd.f32 0.0, %v1524
          %v1526 = vpop.f32.mrb[0].mxu0
          %v1527 = vadd.f32 0.0, %v1526
          %v1528 = vpop.f32.mrb[0].mxu0
          %v1529 = vadd.f32 0.0, %v1528
          %1530 = vmatprep.mubr.bf16.mxu0 0
          %1531 = vmatmul.mubr.bf16.gmra.mrb[0].mxu0 %v1109
          %v1532 = vpop.f32.mrb[0].mxu0
          %v1533 = vadd.f32 0.0, %v1532
          %v1534 = vpop.f32.mrb[0].mxu0
          %v1535 = vadd.f32 0.0, %v1534
          %v1536 = vpop.f32.mrb[0].mxu0
          %v1537 = vadd.f32 0.0, %v1536
          %v1538 = vpop.f32.mrb[0].mxu0
          %v1539 = vadd.f32 0.0, %v1538
          %1540 = vmatprep.mubr.bf16.mxu0 0
          %1541 = vmatmul.mubr.bf16.gmra.mrb[0].mxu0 %v1112
          %v1542 = vpop.f32.mrb[0].mxu0
          %v1543 = vadd.f32 0.0, %v1542
          %v1544 = vpop.f32.mrb[0].mxu0
          %v1545 = vadd.f32 0.0, %v1544
          %v1546 = vpop.f32.mrb[0].mxu0
          %v1547 = vadd.f32 0.0, %v1546
          %v1548 = vpop.f32.mrb[0].mxu0
          %v1549 = vadd.f32 0.0, %v1548
          %1550 = vdwg.mxu0
          %1551 = vmatprep.subr.bf16.mxu0 %v1409
          %1552 = vmatpush1.bf16.msra.mxu0 %v1408
          %1553 = vmatprep.subr.bf16.mxu0 %v1413
          %1554 = vmatpush1.bf16.msra.mxu0 %v1412
          %1555 = vmatprep.subr.bf16.mxu0 %v1417
          %1556 = vmatpush1.bf16.msra.mxu0 %v1416
          %1557 = vmatprep.subr.bf16.mxu0 %v1421
          %1558 = vmatpush1.bf16.msra.mxu0 %v1420
          %1559 = vmatprep.subr.bf16.mxu0 0
          %1560 = vmatpush1.bf16.msra.mxu0 0
          %1561 = vmatprep.subr.bf16.mxu0 0
          %1562 = vmatpush1.bf16.msra.mxu0 0
          %1563 = vmatprep.subr.bf16.mxu0 0
          %1564 = vmatpush1.bf16.msra.mxu0 0
          %1565 = vmatprep.subr.bf16.mxu0 0
          %1566 = vmatpush1.bf16.msra.mxu0 0
          %1567 = vmatprep.subr.bf16.mxu0 0
          %1568 = vmatpush1.bf16.msra.mxu0 0
          %1569 = vmatprep.subr.bf16.mxu0 0
          %1570 = vmatpush1.bf16.msra.mxu0 0
          %1571 = vmatprep.subr.bf16.mxu0 0
          %1572 = vmatpush1.bf16.msra.mxu0 0
          %1573 = vmatprep.subr.bf16.mxu0 0
          %1574 = vmatpush1.bf16.msra.mxu0 0
          %1575 = vmatprep.subr.bf16.mxu0 0
          %1576 = vmatpush1.bf16.msra.mxu0 0
          %1577 = vmatprep.subr.bf16.mxu0 0
          %1578 = vmatpush1.bf16.msra.mxu0 0
          %1579 = vmatprep.subr.bf16.mxu0 0
          %1580 = vmatpush1.bf16.msra.mxu0 0
          %1581 = vmatprep.subr.bf16.mxu0 0
          %1582 = vmatpush1.bf16.msra.mxu0 0
          %1583 = vmatprep.mubr.bf16.mxu0 0
          %1584 = vmatmul.mubr.bf16.gmra.mrb[0].mxu0 %v1091
          %v1585 = vpop.f32.mrb[0].mxu0
          %v1586 = vadd.f32 0.0, %v1585
          %v1587 = vpop.f32.mrb[0].mxu0
          %v1588 = vadd.f32 0.0, %v1587
          %v1589 = vpop.f32.mrb[0].mxu0
          %v1590 = vadd.f32 0.0, %v1589
          %v1591 = vpop.f32.mrb[0].mxu0
          %v1592 = vadd.f32 0.0, %v1591
          %1593 = vmatprep.mubr.bf16.mxu0 0
          %1594 = vmatmul.mubr.bf16.gmra.mrb[0].mxu0 %v1094
          %v1595 = vpop.f32.mrb[0].mxu0
          %v1596 = vadd.f32 0.0, %v1595
          %v1597 = vpop.f32.mrb[0].mxu0
          %v1598 = vadd.f32 0.0, %v1597
          %v1599 = vpop.f32.mrb[0].mxu0
          %v1600 = vadd.f32 0.0, %v1599
          %v1601 = vpop.f32.mrb[0].mxu0
          %v1602 = vadd.f32 0.0, %v1601
          %1603 = vmatprep.mubr.bf16.mxu0 0
          %1604 = vmatmul.mubr.bf16.gmra.mrb[0].mxu0 %v1097
          %v1605 = vpop.f32.mrb[0].mxu0
          %v1606 = vadd.f32 0.0, %v1605
          %v1607 = vpop.f32.mrb[0].mxu0
          %v1608 = vadd.f32 0.0, %v1607
          %v1609 = vpop.f32.mrb[0].mxu0
          %v1610 = vadd.f32 0.0, %v1609
          %v1611 = vpop.f32.mrb[0].mxu0
          %v1612 = vadd.f32 0.0, %v1611
          %1613 = vmatprep.mubr.bf16.mxu0 0
          %1614 = vmatmul.mubr.bf16.gmra.mrb[0].mxu0 %v1100
          %v1615 = vpop.f32.mrb[0].mxu0
          %v1616 = vadd.f32 0.0, %v1615
          %v1617 = vpop.f32.mrb[0].mxu0
          %v1618 = vadd.f32 0.0, %v1617
          %v1619 = vpop.f32.mrb[0].mxu0
          %v1620 = vadd.f32 0.0, %v1619
          %v1621 = vpop.f32.mrb[0].mxu0
          %v1622 = vadd.f32 0.0, %v1621
          %1623 = vmatprep.mubr.bf16.mxu0 0
          %1624 = vmatmul.mubr.bf16.gmra.mrb[0].mxu0 %v1103
          %v1625 = vpop.f32.mrb[0].mxu0
          %v1626 = vadd.f32 0.0, %v1625
          %v1627 = vpop.f32.mrb[0].mxu0
          %v1628 = vadd.f32 0.0, %v1627
          %v1629 = vpop.f32.mrb[0].mxu0
          %v1630 = vadd.f32 0.0, %v1629
          %v1631 = vpop.f32.mrb[0].mxu0
          %v1632 = vadd.f32 0.0, %v1631
          %1633 = vmatprep.mubr.bf16.mxu0 0
          %1634 = vmatmul.mubr.bf16.gmra.mrb[0].mxu0 %v1106
          %v1635 = vpop.f32.mrb[0].mxu0
          %v1636 = vadd.f32 0.0, %v1635
          %v1637 = vpop.f32.mrb[0].mxu0
          %v1638 = vadd.f32 0.0, %v1637
          %v1639 = vpop.f32.mrb[0].mxu0
          %v1640 = vadd.f32 0.0, %v1639
          %v1641 = vpop.f32.mrb[0].mxu0
          %v1642 = vadd.f32 0.0, %v1641
          %1643 = vmatprep.mubr.bf16.mxu0 0
          %1644 = vmatmul.mubr.bf16.gmra.mrb[0].mxu0 %v1109
          %v1645 = vpop.f32.mrb[0].mxu0
          %v1646 = vadd.f32 0.0, %v1645
          %v1647 = vpop.f32.mrb[0].mxu0
          %v1648 = vadd.f32 0.0, %v1647
          %v1649 = vpop.f32.mrb[0].mxu0
          %v1650 = vadd.f32 0.0, %v1649
          %v1651 = vpop.f32.mrb[0].mxu0
          %v1652 = vadd.f32 0.0, %v1651
          %1653 = vmatprep.mubr.bf16.mxu0 0
          %1654 = vmatmul.mubr.bf16.gmra.mrb[0].mxu0 %v1112
          %v1655 = vpop.f32.mrb[0].mxu0
          %v1656 = vadd.f32 0.0, %v1655
          %v1657 = vpop.f32.mrb[0].mxu0
          %v1658 = vadd.f32 0.0, %v1657
          %v1659 = vpop.f32.mrb[0].mxu0
          %v1660 = vadd.f32 0.0, %v1659
          %v1661 = vpop.f32.mrb[0].mxu0
          %v1662 = vadd.f32 0.0, %v1661
          %1663 = vdwg.mxu0
          %v1664 = vpack.c.bf16 %v1153, %v1149
          %v1665 = vpack.c.bf16 %v1155, %v1151
          %v1666 = vpack.c.bf16 %v1266, %v1262
          %v1667 = vpack.c.bf16 %v1268, %v1264
          %v1668 = vpack.c.bf16 %v1163, %v1159
          %v1669 = vpack.c.bf16 %v1165, %v1161
          %v1670 = vpack.c.bf16 %v1276, %v1272
          %v1671 = vpack.c.bf16 %v1278, %v1274
          %v1672 = vpack.c.bf16 %v1173, %v1169
          %v1673 = vpack.c.bf16 %v1175, %v1171
          %v1674 = vpack.c.bf16 %v1286, %v1282
          %v1675 = vpack.c.bf16 %v1288, %v1284
          %v1676 = vpack.c.bf16 %v1183, %v1179
          %v1677 = vpack.c.bf16 %v1185, %v1181
          %v1678 = vpack.c.bf16 %v1296, %v1292
          %v1679 = vpack.c.bf16 %v1298, %v1294
          %v1680 = vpack.c.bf16 %v1193, %v1189
          %v1681 = vpack.c.bf16 %v1195, %v1191
          %v1682 = vpack.c.bf16 %v1306, %v1302
          %v1683 = vpack.c.bf16 %v1308, %v1304
          %v1684 = vpack.c.bf16 %v1203, %v1199
          %v1685 = vpack.c.bf16 %v1205, %v1201
          %v1686 = vpack.c.bf16 %v1316, %v1312
          %v1687 = vpack.c.bf16 %v1318, %v1314
          %v1688 = vpack.c.bf16 %v1213, %v1209
          %v1689 = vpack.c.bf16 %v1215, %v1211
          %v1690 = vpack.c.bf16 %v1326, %v1322
          %v1691 = vpack.c.bf16 %v1328, %v1324
          %v1692 = vpack.c.bf16 %v1223, %v1219
          %v1693 = vpack.c.bf16 %v1225, %v1221
          %v1694 = vpack.c.bf16 %v1336, %v1332
          %v1695 = vpack.c.bf16 %v1338, %v1334
          %v1696 = vpack.c.bf16 %v1477, %v1473
          %v1697 = vpack.c.bf16 %v1479, %v1475
          %v1698 = vpack.c.bf16 %v1590, %v1586
          %v1699 = vpack.c.bf16 %v1592, %v1588
          %v1700 = vpack.c.bf16 %v1487, %v1483
          %v1701 = vpack.c.bf16 %v1489, %v1485
          %v1702 = vpack.c.bf16 %v1600, %v1596
          %v1703 = vpack.c.bf16 %v1602, %v1598
          %v1704 = vpack.c.bf16 %v1497, %v1493
          %v1705 = vpack.c.bf16 %v1499, %v1495
          %v1706 = vpack.c.bf16 %v1610, %v1606
          %v1707 = vpack.c.bf16 %v1612, %v1608
          %v1708 = vpack.c.bf16 %v1507, %v1503
          %v1709 = vpack.c.bf16 %v1509, %v1505
          %v1710 = vpack.c.bf16 %v1620, %v1616
          %v1711 = vpack.c.bf16 %v1622, %v1618
          %v1712 = vpack.c.bf16 %v1517, %v1513
          %v1713 = vpack.c.bf16 %v1519, %v1515
          %v1714 = vpack.c.bf16 %v1630, %v1626
          %v1715 = vpack.c.bf16 %v1632, %v1628
          %v1716 = vpack.c.bf16 %v1527, %v1523
          %v1717 = vpack.c.bf16 %v1529, %v1525
          %v1718 = vpack.c.bf16 %v1640, %v1636
          %v1719 = vpack.c.bf16 %v1642, %v1638
          %v1720 = vpack.c.bf16 %v1537, %v1533
          %v1721 = vpack.c.bf16 %v1539, %v1535
          %v1722 = vpack.c.bf16 %v1650, %v1646
          %v1723 = vpack.c.bf16 %v1652, %v1648
          %v1724 = vpack.c.bf16 %v1547, %v1543
          %v1725 = vpack.c.bf16 %v1549, %v1545
          %v1726 = vpack.c.bf16 %v1660, %v1656
          %v1727 = vpack.c.bf16 %v1662, %v1658
          %v1729 = vsel %vm683, %v1664, 0
          %v1732 = vsel %vm683, %v1668, 0
          %v1735 = vsel %vm683, %v1672, 0
          %v1738 = vsel %vm683, %v1676, 0
          %v1741 = vsel %vm683, %v1680, 0
          %v1744 = vsel %vm683, %v1684, 0
          %v1747 = vsel %vm683, %v1688, 0
          %v1750 = vsel %vm683, %v1692, 0
          %1752 = vmatprep.subr.bf16.mxu0 0
          %1753 = vmatpush1.bf16.xpose.msra.mxu0 %v1091
          %1754 = vmatprep.subr.bf16.mxu0 0
          %1755 = vmatpush1.bf16.xpose.msra.mxu0 %v1094
          %1756 = vmatprep.subr.bf16.mxu0 0
          %1757 = vmatpush1.bf16.xpose.msra.mxu0 %v1097
          %1758 = vmatprep.subr.bf16.mxu0 0
          %1759 = vmatpush1.bf16.xpose.msra.mxu0 %v1100
          %1760 = vmatprep.subr.bf16.mxu0 0
          %1761 = vmatpush1.bf16.xpose.msra.mxu0 %v1103
          %1762 = vmatprep.subr.bf16.mxu0 0
          %1763 = vmatpush1.bf16.xpose.msra.mxu0 %v1106
          %1764 = vmatprep.subr.bf16.mxu0 0
          %1765 = vmatpush1.bf16.xpose.msra.mxu0 %v1109
          %1766 = vmatprep.subr.bf16.mxu0 0
          %1767 = vmatpush1.bf16.xpose.msra.mxu0 %v1112
          %1768 = vmatprep.subr.bf16.mxu0 0
          %1769 = vmatpush1.bf16.xpose.msra.mxu0 0
          %1770 = vmatprep.subr.bf16.mxu0 0
          %1771 = vmatpush1.bf16.xpose.msra.mxu0 0
          %1772 = vmatprep.subr.bf16.mxu0 0
          %1773 = vmatpush1.bf16.xpose.msra.mxu0 0
          %1774 = vmatprep.subr.bf16.mxu0 0
          %1775 = vmatpush1.bf16.xpose.msra.mxu0 0
          %1776 = vmatprep.subr.bf16.mxu0 0
          %1777 = vmatpush1.bf16.xpose.msra.mxu0 0
          %1778 = vmatprep.subr.bf16.mxu0 0
          %1779 = vmatpush1.bf16.xpose.msra.mxu0 0
          %1780 = vmatprep.subr.bf16.mxu0 0
          %1781 = vmatpush1.bf16.xpose.msra.mxu0 0
          %1782 = vmatprep.subr.bf16.mxu0 0
          %1783 = vmatpush1.bf16.xpose.msra.mxu0 0
          %1784 = vmatprep.mubr.bf16.mxu0 0
          %1785 = vmatmul.mubr.bf16.gmra.mrb[0].mxu0 %v1729
          %v1786 = vpop.f32.mrb[0].mxu0
          %v1787 = vadd.f32 %v703, %v1786
          %v1788 = vpop.f32.mrb[0].mxu0
          %v1789 = vpop.f32.mrb[0].mxu0
          %v1790 = vadd.f32 %v703, %v1789
          %v1791 = vpop.f32.mrb[0].mxu0
          %1792 = vmatprep.mubr.bf16.mxu0 0
          %1793 = vmatmul.mubr.bf16.gmra.mrb[0].mxu0 %v1732
          %v1794 = vpop.f32.mrb[0].mxu0
          %v1795 = vadd.f32 %v703, %v1794
          %v1796 = vpop.f32.mrb[0].mxu0
          %v1797 = vpop.f32.mrb[0].mxu0
          %v1798 = vadd.f32 %v703, %v1797
          %v1799 = vpop.f32.mrb[0].mxu0
          %1800 = vmatprep.mubr.bf16.mxu0 0
          %1801 = vmatmul.mubr.bf16.gmra.mrb[0].mxu0 %v1735
          %v1802 = vpop.f32.mrb[0].mxu0
          %v1803 = vadd.f32 %v703, %v1802
          %v1804 = vpop.f32.mrb[0].mxu0
          %v1805 = vpop.f32.mrb[0].mxu0
          %v1806 = vadd.f32 %v703, %v1805
          %v1807 = vpop.f32.mrb[0].mxu0
          %1808 = vmatprep.mubr.bf16.mxu0 0
          %1809 = vmatmul.mubr.bf16.gmra.mrb[0].mxu0 %v1738
          %v1810 = vpop.f32.mrb[0].mxu0
          %v1811 = vadd.f32 %v703, %v1810
          %v1812 = vpop.f32.mrb[0].mxu0
          %v1813 = vpop.f32.mrb[0].mxu0
          %v1814 = vadd.f32 %v703, %v1813
          %v1815 = vpop.f32.mrb[0].mxu0
          %1816 = vmatprep.mubr.bf16.mxu0 0
          %1817 = vmatmul.mubr.bf16.gmra.mrb[0].mxu0 %v1741
          %v1818 = vpop.f32.mrb[0].mxu0
          %v1819 = vadd.f32 %v703, %v1818
          %v1820 = vpop.f32.mrb[0].mxu0
          %v1821 = vpop.f32.mrb[0].mxu0
          %v1822 = vadd.f32 %v703, %v1821
          %v1823 = vpop.f32.mrb[0].mxu0
          %1824 = vmatprep.mubr.bf16.mxu0 0
          %1825 = vmatmul.mubr.bf16.gmra.mrb[0].mxu0 %v1744
          %v1826 = vpop.f32.mrb[0].mxu0
          %v1827 = vadd.f32 %v703, %v1826
          %v1828 = vpop.f32.mrb[0].mxu0
          %v1829 = vpop.f32.mrb[0].mxu0
          %v1830 = vadd.f32 %v703, %v1829
          %v1831 = vpop.f32.mrb[0].mxu0
          %1832 = vmatprep.mubr.bf16.mxu0 0
          %1833 = vmatmul.mubr.bf16.gmra.mrb[0].mxu0 %v1747
          %v1834 = vpop.f32.mrb[0].mxu0
          %v1835 = vadd.f32 %v703, %v1834
          %v1836 = vpop.f32.mrb[0].mxu0
          %v1837 = vpop.f32.mrb[0].mxu0
          %v1838 = vadd.f32 %v703, %v1837
          %v1839 = vpop.f32.mrb[0].mxu0
          %1840 = vmatprep.mubr.bf16.mxu0 0
          %1841 = vmatmul.mubr.bf16.gmra.mrb[0].mxu0 %v1750
          %v1842 = vpop.f32.mrb[0].mxu0
          %v1843 = vadd.f32 %v703, %v1842
          %v1844 = vpop.f32.mrb[0].mxu0
          %v1845 = vpop.f32.mrb[0].mxu0
          %v1846 = vadd.f32 %v703, %v1845
          %v1847 = vpop.f32.mrb[0].mxu0
          %1848 = vdwg.mxu0
          %1849 = vmax.xlane.f32.xlu0 %v1787
          %v1850 = vpop.xlane.xlu0 %1849
          %1851 = vmax.xlane.f32.xlu0 %v1790
          %v1852 = vpop.xlane.xlu0 %1851
          %1853 = vmax.xlane.f32.xlu0 %v1795
          %v1854 = vpop.xlane.xlu0 %1853
          %1855 = vmax.xlane.f32.xlu0 %v1798
          %v1856 = vpop.xlane.xlu0 %1855
          %1857 = vmax.xlane.f32.xlu0 %v1803
          %v1858 = vpop.xlane.xlu0 %1857
          %1859 = vmax.xlane.f32.xlu0 %v1806
          %v1860 = vpop.xlane.xlu0 %1859
          %1861 = vmax.xlane.f32.xlu0 %v1811
          %v1862 = vpop.xlane.xlu0 %1861
          %1863 = vmax.xlane.f32.xlu0 %v1814
          %v1864 = vpop.xlane.xlu0 %1863
          %1865 = vmax.xlane.f32.xlu0 %v1819
          %v1866 = vpop.xlane.xlu0 %1865
          %1867 = vmax.xlane.f32.xlu0 %v1822
          %v1868 = vpop.xlane.xlu0 %1867
          %1869 = vmax.xlane.f32.xlu0 %v1827
          %v1870 = vpop.xlane.xlu0 %1869
          %1871 = vmax.xlane.f32.xlu0 %v1830
          %v1872 = vpop.xlane.xlu0 %1871
          %1873 = vmax.xlane.f32.xlu0 %v1835
          %v1874 = vpop.xlane.xlu0 %1873
          %1875 = vmax.xlane.f32.xlu0 %v1838
          %v1876 = vpop.xlane.xlu0 %1875
          %1877 = vmax.xlane.f32.xlu0 %v1843
          %v1878 = vpop.xlane.xlu0 %1877
          %1879 = vmax.xlane.f32.xlu0 %v1846
          %v1880 = vpop.xlane.xlu0 %1879
          %v1881 = vsub.f32 %v1787, %v1850
          %v1882 = vsub.f32 %v1790, %v1852
          %v1883 = vsub.f32 %v1795, %v1854
          %v1884 = vsub.f32 %v1798, %v1856
          %v1885 = vsub.f32 %v1803, %v1858
          %v1886 = vsub.f32 %v1806, %v1860
          %v1887 = vsub.f32 %v1811, %v1862
          %v1888 = vsub.f32 %v1814, %v1864
          %v1889 = vsub.f32 %v1819, %v1866
          %v1890 = vsub.f32 %v1822, %v1868
          %v1891 = vsub.f32 %v1827, %v1870
          %v1892 = vsub.f32 %v1830, %v1872
          %v1893 = vsub.f32 %v1835, %v1874
          %v1894 = vsub.f32 %v1838, %v1876
          %v1895 = vsub.f32 %v1843, %v1878
          %v1896 = vsub.f32 %v1846, %v1880
          %v1897 = vmul.f32 %v1881, 1.442695
          %v1898 = vpow.pop %v1897
          %v1899 = vmul.f32 %v1882, 1.442695
          %v1900 = vpow.pop %v1899
          %v1901 = vmul.f32 %v1883, 1.442695
          %v1902 = vpow.pop %v1901
          %v1903 = vmul.f32 %v1884, 1.442695
          %v1904 = vpow.pop %v1903
          %v1905 = vmul.f32 %v1885, 1.442695
          %v1906 = vpow.pop %v1905
          %v1907 = vmul.f32 %v1886, 1.442695
          %v1908 = vpow.pop %v1907
          %v1909 = vmul.f32 %v1887, 1.442695
          %v1910 = vpow.pop %v1909
          %v1911 = vmul.f32 %v1888, 1.442695
          %v1912 = vpow.pop %v1911
          %v1913 = vmul.f32 %v1889, 1.442695
          %v1914 = vpow.pop %v1913
          %v1915 = vmul.f32 %v1890, 1.442695
          %v1916 = vpow.pop %v1915
          %v1917 = vmul.f32 %v1891, 1.442695
          %v1918 = vpow.pop %v1917
          %v1919 = vmul.f32 %v1892, 1.442695
          %v1920 = vpow.pop %v1919
          %v1921 = vmul.f32 %v1893, 1.442695
          %v1922 = vpow.pop %v1921
          %v1923 = vmul.f32 %v1894, 1.442695
          %v1924 = vpow.pop %v1923
          %v1925 = vmul.f32 %v1895, 1.442695
          %v1926 = vpow.pop %v1925
          %v1927 = vmul.f32 %v1896, 1.442695
          %v1928 = vpow.pop %v1927
          %1929 = vadd.xlane.f32.xlu0 %v1898
          %v1930 = vpop.xlane.xlu0 %1929
          %1931 = vadd.xlane.f32.xlu0 %v1900
          %v1932 = vpop.xlane.xlu0 %1931
          %1933 = vadd.xlane.f32.xlu0 %v1902
          %v1934 = vpop.xlane.xlu0 %1933
          %1935 = vadd.xlane.f32.xlu0 %v1904
          %v1936 = vpop.xlane.xlu0 %1935
          %1937 = vadd.xlane.f32.xlu0 %v1906
          %v1938 = vpop.xlane.xlu0 %1937
          %1939 = vadd.xlane.f32.xlu0 %v1908
          %v1940 = vpop.xlane.xlu0 %1939
          %1941 = vadd.xlane.f32.xlu0 %v1910
          %v1942 = vpop.xlane.xlu0 %1941
          %1943 = vadd.xlane.f32.xlu0 %v1912
          %v1944 = vpop.xlane.xlu0 %1943
          %1945 = vadd.xlane.f32.xlu0 %v1914
          %v1946 = vpop.xlane.xlu0 %1945
          %1947 = vadd.xlane.f32.xlu0 %v1916
          %v1948 = vpop.xlane.xlu0 %1947
          %1949 = vadd.xlane.f32.xlu0 %v1918
          %v1950 = vpop.xlane.xlu0 %1949
          %1951 = vadd.xlane.f32.xlu0 %v1920
          %v1952 = vpop.xlane.xlu0 %1951
          %1953 = vadd.xlane.f32.xlu0 %v1922
          %v1954 = vpop.xlane.xlu0 %1953
          %1955 = vadd.xlane.f32.xlu0 %v1924
          %v1956 = vpop.xlane.xlu0 %1955
          %1957 = vadd.xlane.f32.xlu0 %v1926
          %v1958 = vpop.xlane.xlu0 %1957
          %1959 = vadd.xlane.f32.xlu0 %v1928
          %v1960 = vpop.xlane.xlu0 %1959
          %v1961 = vrcp.pop %v1930
          %v1962 = vrcp.pop %v1932
          %v1963 = vrcp.pop %v1934
          %v1964 = vrcp.pop %v1936
          %v1965 = vrcp.pop %v1938
          %v1966 = vrcp.pop %v1940
          %v1967 = vrcp.pop %v1942
          %v1968 = vrcp.pop %v1944
          %v1969 = vrcp.pop %v1946
          %v1970 = vrcp.pop %v1948
          %v1971 = vrcp.pop %v1950
          %v1972 = vrcp.pop %v1952
          %v1973 = vrcp.pop %v1954
          %v1974 = vrcp.pop %v1956
          %v1975 = vrcp.pop %v1958
          %v1976 = vrcp.pop %v1960
          %v1977 = vpack.c.bf16 %v1900, %v1898
          %v1978 = vpack.c.bf16 %v1904, %v1902
          %v1979 = vpack.c.bf16 %v1908, %v1906
          %v1980 = vpack.c.bf16 %v1912, %v1910
          %v1981 = vpack.c.bf16 %v1916, %v1914
          %v1982 = vpack.c.bf16 %v1920, %v1918
          %v1983 = vpack.c.bf16 %v1924, %v1922
          %v1984 = vpack.c.bf16 %v1928, %v1926
          %1985 = vmatprep.subr.bf16.mxu0 0
          %1986 = vmatpush1.bf16.msra.mxu0 %v1696
          %1987 = vmatprep.subr.bf16.mxu0 0
          %1988 = vmatpush1.bf16.msra.mxu0 %v1700
          %1989 = vmatprep.subr.bf16.mxu0 0
          %1990 = vmatpush1.bf16.msra.mxu0 %v1704
          %1991 = vmatprep.subr.bf16.mxu0 0
          %1992 = vmatpush1.bf16.msra.mxu0 %v1708
          %1993 = vmatprep.subr.bf16.mxu0 0
          %1994 = vmatpush1.bf16.msra.mxu0 %v1712
          %1995 = vmatprep.subr.bf16.mxu0 0
          %1996 = vmatpush1.bf16.msra.mxu0 %v1716
          %1997 = vmatprep.subr.bf16.mxu0 0
          %1998 = vmatpush1.bf16.msra.mxu0 %v1720
          %1999 = vmatprep.subr.bf16.mxu0 0
          %2000 = vmatpush1.bf16.msra.mxu0 %v1724
          %2001 = vmatprep.subr.bf16.mxu0 0
          %2002 = vmatpush1.bf16.msra.mxu0 0
          %2003 = vmatprep.subr.bf16.mxu0 0
          %2004 = vmatpush1.bf16.msra.mxu0 0
          %2005 = vmatprep.subr.bf16.mxu0 0
          %2006 = vmatpush1.bf16.msra.mxu0 0
          %2007 = vmatprep.subr.bf16.mxu0 0
          %2008 = vmatpush1.bf16.msra.mxu0 0
          %2009 = vmatprep.subr.bf16.mxu0 0
          %2010 = vmatpush1.bf16.msra.mxu0 0
          %2011 = vmatprep.subr.bf16.mxu0 0
          %2012 = vmatpush1.bf16.msra.mxu0 0
          %2013 = vmatprep.subr.bf16.mxu0 0
          %2014 = vmatpush1.bf16.msra.mxu0 0
          %2015 = vmatprep.subr.bf16.mxu0 0
          %2016 = vmatpush1.bf16.msra.mxu0 0
          %2017 = vmatprep.mubr.bf16.mxu0 0
          %2018 = vmatmul.mubr.bf16.gmra.mrb[0].mxu0 %v1977
          %v2019 = vpop.f32.mrb[0].mxu0
          %v2020 = vadd.f32 0.0, %v2019
          %v2021 = vpop.f32.mrb[0].mxu0
          %v2022 = vpop.f32.mrb[0].mxu0
          %v2023 = vadd.f32 0.0, %v2022
          %v2024 = vpop.f32.mrb[0].mxu0
          %2025 = vmatprep.mubr.bf16.mxu0 0
          %2026 = vmatmul.mubr.bf16.gmra.mrb[0].mxu0 %v1978
          %v2027 = vpop.f32.mrb[0].mxu0
          %v2028 = vadd.f32 0.0, %v2027
          %v2029 = vpop.f32.mrb[0].mxu0
          %v2030 = vpop.f32.mrb[0].mxu0
          %v2031 = vadd.f32 0.0, %v2030
          %v2032 = vpop.f32.mrb[0].mxu0
          %2033 = vmatprep.mubr.bf16.mxu0 0
          %2034 = vmatmul.mubr.bf16.gmra.mrb[0].mxu0 %v1979
          %v2035 = vpop.f32.mrb[0].mxu0
          %v2036 = vadd.f32 0.0, %v2035
          %v2037 = vpop.f32.mrb[0].mxu0
          %v2038 = vpop.f32.mrb[0].mxu0
          %v2039 = vadd.f32 0.0, %v2038
          %v2040 = vpop.f32.mrb[0].mxu0
          %2041 = vmatprep.mubr.bf16.mxu0 0
          %2042 = vmatmul.mubr.bf16.gmra.mrb[0].mxu0 %v1980
          %v2043 = vpop.f32.mrb[0].mxu0
          %v2044 = vadd.f32 0.0, %v2043
          %v2045 = vpop.f32.mrb[0].mxu0
          %v2046 = vpop.f32.mrb[0].mxu0
          %v2047 = vadd.f32 0.0, %v2046
          %v2048 = vpop.f32.mrb[0].mxu0
          %2049 = vmatprep.mubr.bf16.mxu0 0
          %2050 = vmatmul.mubr.bf16.gmra.mrb[0].mxu0 %v1981
          %v2051 = vpop.f32.mrb[0].mxu0
          %v2052 = vadd.f32 0.0, %v2051
          %v2053 = vpop.f32.mrb[0].mxu0
          %v2054 = vpop.f32.mrb[0].mxu0
          %v2055 = vadd.f32 0.0, %v2054
          %v2056 = vpop.f32.mrb[0].mxu0
          %2057 = vmatprep.mubr.bf16.mxu0 0
          %2058 = vmatmul.mubr.bf16.gmra.mrb[0].mxu0 %v1982
          %v2059 = vpop.f32.mrb[0].mxu0
          %v2060 = vadd.f32 0.0, %v2059
          %v2061 = vpop.f32.mrb[0].mxu0
          %v2062 = vpop.f32.mrb[0].mxu0
          %v2063 = vadd.f32 0.0, %v2062
          %v2064 = vpop.f32.mrb[0].mxu0
          %2065 = vmatprep.mubr.bf16.mxu0 0
          %2066 = vmatmul.mubr.bf16.gmra.mrb[0].mxu0 %v1983
          %v2067 = vpop.f32.mrb[0].mxu0
          %v2068 = vadd.f32 0.0, %v2067
          %v2069 = vpop.f32.mrb[0].mxu0
          %v2070 = vpop.f32.mrb[0].mxu0
          %v2071 = vadd.f32 0.0, %v2070
          %v2072 = vpop.f32.mrb[0].mxu0
          %2073 = vmatprep.mubr.bf16.mxu0 0
          %2074 = vmatmul.mubr.bf16.gmra.mrb[0].mxu0 %v1984
          %v2075 = vpop.f32.mrb[0].mxu0
          %v2076 = vadd.f32 0.0, %v2075
          %v2077 = vpop.f32.mrb[0].mxu0
          %v2078 = vpop.f32.mrb[0].mxu0
          %v2079 = vadd.f32 0.0, %v2078
          %v2080 = vpop.f32.mrb[0].mxu0
          %2081 = vdwg.mxu0
          %v2082 = vmul.f32 %v2020, %v1961
          %v2083 = vmul.f32 %v2023, %v1962
          %v2084 = vmul.f32 %v2028, %v1963
          %v2085 = vmul.f32 %v2031, %v1964
          %v2086 = vmul.f32 %v2036, %v1965
          %v2087 = vmul.f32 %v2039, %v1966
          %v2088 = vmul.f32 %v2044, %v1967
          %v2089 = vmul.f32 %v2047, %v1968
          %v2090 = vmul.f32 %v2052, %v1969
          %v2091 = vmul.f32 %v2055, %v1970
          %v2092 = vmul.f32 %v2060, %v1971
          %v2093 = vmul.f32 %v2063, %v1972
          %v2094 = vmul.f32 %v2068, %v1973
          %v2095 = vmul.f32 %v2071, %v1974
          %v2096 = vmul.f32 %v2076, %v1975
          %v2097 = vmul.f32 %v2079, %v1976
          %2098 = vst.msk [vmem:[#allocation3] sm:$0xff] %vm683, %v2082
          %2099 = vst.msk [vmem:[#allocation3 + $0x8] sm:$0xff] %vm683, %v2083
          %2100 = vst.msk [vmem:[#allocation3 + $0x10] sm:$0xff] %vm683, %v2084
          %2101 = vst.msk [vmem:[#allocation3 + $0x18] sm:$0xff] %vm683, %v2085
          %2102 = vst.msk [vmem:[#allocation3 + $0x20] sm:$0xff] %vm683, %v2086
          %2103 = vst.msk [vmem:[#allocation3 + $0x28] sm:$0xff] %vm683, %v2087
          %2104 = vst.msk [vmem:[#allocation3 + $0x30] sm:$0xff] %vm683, %v2088
          %2105 = vst.msk [vmem:[#allocation3 + $0x38] sm:$0xff] %vm683, %v2089
          %2106 = vst.msk [vmem:[#allocation3 + $0x40] sm:$0xff] %vm683, %v2090
          %2107 = vst.msk [vmem:[#allocation3 + $0x48] sm:$0xff] %vm683, %v2091
          %2108 = vst.msk [vmem:[#allocation3 + $0x50] sm:$0xff] %vm683, %v2092
          %2109 = vst.msk [vmem:[#allocation3 + $0x58] sm:$0xff] %vm683, %v2093
          %2110 = vst.msk [vmem:[#allocation3 + $0x60] sm:$0xff] %vm683, %v2094
          %2111 = vst.msk [vmem:[#allocation3 + $0x68] sm:$0xff] %vm683, %v2095
          %2112 = vst.msk [vmem:[#allocation3 + $0x70] sm:$0xff] %vm683, %v2096
          %2113 = vst.msk [vmem:[#allocation3 + $0x78] sm:$0xff] %vm683, %v2097
          %2122 = vrot.lane.b32.xlu0 %v1664, 64
          %v2123 = vpop.permute.xlu0 %2122
          %2124 = vrot.lane.b32.xlu0 %v1668, 64
          %v2125 = vpop.permute.xlu0 %2124
          %2126 = vrot.lane.b32.xlu0 %v1672, 64
          %v2127 = vpop.permute.xlu0 %2126
          %2128 = vrot.lane.b32.xlu0 %v1676, 64
          %v2129 = vpop.permute.xlu0 %2128
          %2130 = vrot.lane.b32.xlu0 %v1680, 64
          %v2131 = vpop.permute.xlu0 %2130
          %2132 = vrot.lane.b32.xlu0 %v1684, 64
          %v2133 = vpop.permute.xlu0 %2132
          %2134 = vrot.lane.b32.xlu0 %v1688, 64
          %v2135 = vpop.permute.xlu0 %2134
          %2136 = vrot.lane.b32.xlu0 %v1692, 64
          %v2137 = vpop.permute.xlu0 %2136
          %v2139 = vsel %vm683, %v2123, 0
          %v2142 = vsel %vm683, %v2125, 0
          %v2145 = vsel %vm683, %v2127, 0
          %v2148 = vsel %vm683, %v2129, 0
          %v2151 = vsel %vm683, %v2131, 0
          %v2154 = vsel %vm683, %v2133, 0
          %v2157 = vsel %vm683, %v2135, 0
          %v2160 = vsel %vm683, %v2137, 0
          %2162 = vmatprep.subr.bf16.mxu0 0
          %2163 = vmatpush1.bf16.xpose.msra.mxu0 %v1091
          %2164 = vmatprep.subr.bf16.mxu0 0
          %2165 = vmatpush1.bf16.xpose.msra.mxu0 %v1094
          %2166 = vmatprep.subr.bf16.mxu0 0
          %2167 = vmatpush1.bf16.xpose.msra.mxu0 %v1097
          %2168 = vmatprep.subr.bf16.mxu0 0
          %2169 = vmatpush1.bf16.xpose.msra.mxu0 %v1100
          %2170 = vmatprep.subr.bf16.mxu0 0
          %2171 = vmatpush1.bf16.xpose.msra.mxu0 %v1103
          %2172 = vmatprep.subr.bf16.mxu0 0
          %2173 = vmatpush1.bf16.xpose.msra.mxu0 %v1106
          %2174 = vmatprep.subr.bf16.mxu0 0
          %2175 = vmatpush1.bf16.xpose.msra.mxu0 %v1109
          %2176 = vmatprep.subr.bf16.mxu0 0
          %2177 = vmatpush1.bf16.xpose.msra.mxu0 %v1112
          %2178 = vmatprep.subr.bf16.mxu0 0
          %2179 = vmatpush1.bf16.xpose.msra.mxu0 0
          %2180 = vmatprep.subr.bf16.mxu0 0
          %2181 = vmatpush1.bf16.xpose.msra.mxu0 0
          %2182 = vmatprep.subr.bf16.mxu0 0
          %2183 = vmatpush1.bf16.xpose.msra.mxu0 0
          %2184 = vmatprep.subr.bf16.mxu0 0
          %2185 = vmatpush1.bf16.xpose.msra.mxu0 0
          %2186 = vmatprep.subr.bf16.mxu0 0
          %2187 = vmatpush1.bf16.xpose.msra.mxu0 0
          %2188 = vmatprep.subr.bf16.mxu0 0
          %2189 = vmatpush1.bf16.xpose.msra.mxu0 0
          %2190 = vmatprep.subr.bf16.mxu0 0
          %2191 = vmatpush1.bf16.xpose.msra.mxu0 0
          %2192 = vmatprep.subr.bf16.mxu0 0
          %2193 = vmatpush1.bf16.xpose.msra.mxu0 0
          %2194 = vmatprep.mubr.bf16.mxu0 0
          %2195 = vmatmul.mubr.bf16.gmra.mrb[0].mxu0 %v2139
          %v2196 = vpop.f32.mrb[0].mxu0
          %v2197 = vadd.f32 %v703, %v2196
          %v2198 = vpop.f32.mrb[0].mxu0
          %v2199 = vpop.f32.mrb[0].mxu0
          %v2200 = vadd.f32 %v703, %v2199
          %v2201 = vpop.f32.mrb[0].mxu0
          %2202 = vmatprep.mubr.bf16.mxu0 0
          %2203 = vmatmul.mubr.bf16.gmra.mrb[0].mxu0 %v2142
          %v2204 = vpop.f32.mrb[0].mxu0
          %v2205 = vadd.f32 %v703, %v2204
          %v2206 = vpop.f32.mrb[0].mxu0
          %v2207 = vpop.f32.mrb[0].mxu0
          %v2208 = vadd.f32 %v703, %v2207
          %v2209 = vpop.f32.mrb[0].mxu0
          %2210 = vmatprep.mubr.bf16.mxu0 0
          %2211 = vmatmul.mubr.bf16.gmra.mrb[0].mxu0 %v2145
          %v2212 = vpop.f32.mrb[0].mxu0
          %v2213 = vadd.f32 %v703, %v2212
          %v2214 = vpop.f32.mrb[0].mxu0
          %v2215 = vpop.f32.mrb[0].mxu0
          %v2216 = vadd.f32 %v703, %v2215
          %v2217 = vpop.f32.mrb[0].mxu0
          %2218 = vmatprep.mubr.bf16.mxu0 0
          %2219 = vmatmul.mubr.bf16.gmra.mrb[0].mxu0 %v2148
          %v2220 = vpop.f32.mrb[0].mxu0
          %v2221 = vadd.f32 %v703, %v2220
          %v2222 = vpop.f32.mrb[0].mxu0
          %v2223 = vpop.f32.mrb[0].mxu0
          %v2224 = vadd.f32 %v703, %v2223
          %v2225 = vpop.f32.mrb[0].mxu0
          %2226 = vmatprep.mubr.bf16.mxu0 0
          %2227 = vmatmul.mubr.bf16.gmra.mrb[0].mxu0 %v2151
          %v2228 = vpop.f32.mrb[0].mxu0
          %v2229 = vadd.f32 %v703, %v2228
          %v2230 = vpop.f32.mrb[0].mxu0
          %v2231 = vpop.f32.mrb[0].mxu0
          %v2232 = vadd.f32 %v703, %v2231
          %v2233 = vpop.f32.mrb[0].mxu0
          %2234 = vmatprep.mubr.bf16.mxu0 0
          %2235 = vmatmul.mubr.bf16.gmra.mrb[0].mxu0 %v2154
          %v2236 = vpop.f32.mrb[0].mxu0
          %v2237 = vadd.f32 %v703, %v2236
          %v2238 = vpop.f32.mrb[0].mxu0
          %v2239 = vpop.f32.mrb[0].mxu0
          %v2240 = vadd.f32 %v703, %v2239
          %v2241 = vpop.f32.mrb[0].mxu0
          %2242 = vmatprep.mubr.bf16.mxu0 0
          %2243 = vmatmul.mubr.bf16.gmra.mrb[0].mxu0 %v2157
          %v2244 = vpop.f32.mrb[0].mxu0
          %v2245 = vadd.f32 %v703, %v2244
          %v2246 = vpop.f32.mrb[0].mxu0
          %v2247 = vpop.f32.mrb[0].mxu0
          %v2248 = vadd.f32 %v703, %v2247
          %v2249 = vpop.f32.mrb[0].mxu0
          %2250 = vmatprep.mubr.bf16.mxu0 0
          %2251 = vmatmul.mubr.bf16.gmra.mrb[0].mxu0 %v2160
          %v2252 = vpop.f32.mrb[0].mxu0
          %v2253 = vadd.f32 %v703, %v2252
          %v2254 = vpop.f32.mrb[0].mxu0
          %v2255 = vpop.f32.mrb[0].mxu0
          %v2256 = vadd.f32 %v703, %v2255
          %v2257 = vpop.f32.mrb[0].mxu0
          %2258 = vdwg.mxu0
          %2259 = vmax.xlane.f32.xlu0 %v2197
          %v2260 = vpop.xlane.xlu0 %2259
          %2261 = vmax.xlane.f32.xlu0 %v2200
          %v2262 = vpop.xlane.xlu0 %2261
          %2263 = vmax.xlane.f32.xlu0 %v2205
          %v2264 = vpop.xlane.xlu0 %2263
          %2265 = vmax.xlane.f32.xlu0 %v2208
          %v2266 = vpop.xlane.xlu0 %2265
          %2267 = vmax.xlane.f32.xlu0 %v2213
          %v2268 = vpop.xlane.xlu0 %2267
          %2269 = vmax.xlane.f32.xlu0 %v2216
          %v2270 = vpop.xlane.xlu0 %2269
          %2271 = vmax.xlane.f32.xlu0 %v2221
          %v2272 = vpop.xlane.xlu0 %2271
          %2273 = vmax.xlane.f32.xlu0 %v2224
          %v2274 = vpop.xlane.xlu0 %2273
          %2275 = vmax.xlane.f32.xlu0 %v2229
          %v2276 = vpop.xlane.xlu0 %2275
          %2277 = vmax.xlane.f32.xlu0 %v2232
          %v2278 = vpop.xlane.xlu0 %2277
          %2279 = vmax.xlane.f32.xlu0 %v2237
          %v2280 = vpop.xlane.xlu0 %2279
          %2281 = vmax.xlane.f32.xlu0 %v2240
          %v2282 = vpop.xlane.xlu0 %2281
          %2283 = vmax.xlane.f32.xlu0 %v2245
          %v2284 = vpop.xlane.xlu0 %2283
          %2285 = vmax.xlane.f32.xlu0 %v2248
          %v2286 = vpop.xlane.xlu0 %2285
          %2287 = vmax.xlane.f32.xlu0 %v2253
          %v2288 = vpop.xlane.xlu0 %2287
          %2289 = vmax.xlane.f32.xlu0 %v2256
          %v2290 = vpop.xlane.xlu0 %2289
          %v2291 = vsub.f32 %v2197, %v2260
          %v2292 = vsub.f32 %v2200, %v2262
          %v2293 = vsub.f32 %v2205, %v2264
          %v2294 = vsub.f32 %v2208, %v2266
          %v2295 = vsub.f32 %v2213, %v2268
          %v2296 = vsub.f32 %v2216, %v2270
          %v2297 = vsub.f32 %v2221, %v2272
          %v2298 = vsub.f32 %v2224, %v2274
          %v2299 = vsub.f32 %v2229, %v2276
          %v2300 = vsub.f32 %v2232, %v2278
          %v2301 = vsub.f32 %v2237, %v2280
          %v2302 = vsub.f32 %v2240, %v2282
          %v2303 = vsub.f32 %v2245, %v2284
          %v2304 = vsub.f32 %v2248, %v2286
          %v2305 = vsub.f32 %v2253, %v2288
          %v2306 = vsub.f32 %v2256, %v2290
          %v2307 = vmul.f32 %v2291, 1.442695
          %v2308 = vpow.pop %v2307
          %v2309 = vmul.f32 %v2292, 1.442695
          %v2310 = vpow.pop %v2309
          %v2311 = vmul.f32 %v2293, 1.442695
          %v2312 = vpow.pop %v2311
          %v2313 = vmul.f32 %v2294, 1.442695
          %v2314 = vpow.pop %v2313
          %v2315 = vmul.f32 %v2295, 1.442695
          %v2316 = vpow.pop %v2315
          %v2317 = vmul.f32 %v2296, 1.442695
          %v2318 = vpow.pop %v2317
          %v2319 = vmul.f32 %v2297, 1.442695
          %v2320 = vpow.pop %v2319
          %v2321 = vmul.f32 %v2298, 1.442695
          %v2322 = vpow.pop %v2321
          %v2323 = vmul.f32 %v2299, 1.442695
          %v2324 = vpow.pop %v2323
          %v2325 = vmul.f32 %v2300, 1.442695
          %v2326 = vpow.pop %v2325
          %v2327 = vmul.f32 %v2301, 1.442695
          %v2328 = vpow.pop %v2327
          %v2329 = vmul.f32 %v2302, 1.442695
          %v2330 = vpow.pop %v2329
          %v2331 = vmul.f32 %v2303, 1.442695
          %v2332 = vpow.pop %v2331
          %v2333 = vmul.f32 %v2304, 1.442695
          %v2334 = vpow.pop %v2333
          %v2335 = vmul.f32 %v2305, 1.442695
          %v2336 = vpow.pop %v2335
          %v2337 = vmul.f32 %v2306, 1.442695
          %v2338 = vpow.pop %v2337
          %2339 = vadd.xlane.f32.xlu0 %v2308
          %v2340 = vpop.xlane.xlu0 %2339
          %2341 = vadd.xlane.f32.xlu0 %v2310
          %v2342 = vpop.xlane.xlu0 %2341
          %2343 = vadd.xlane.f32.xlu0 %v2312
          %v2344 = vpop.xlane.xlu0 %2343
          %2345 = vadd.xlane.f32.xlu0 %v2314
          %v2346 = vpop.xlane.xlu0 %2345
          %2347 = vadd.xlane.f32.xlu0 %v2316
          %v2348 = vpop.xlane.xlu0 %2347
          %2349 = vadd.xlane.f32.xlu0 %v2318
          %v2350 = vpop.xlane.xlu0 %2349
          %2351 = vadd.xlane.f32.xlu0 %v2320
          %v2352 = vpop.xlane.xlu0 %2351
          %2353 = vadd.xlane.f32.xlu0 %v2322
          %v2354 = vpop.xlane.xlu0 %2353
          %2355 = vadd.xlane.f32.xlu0 %v2324
          %v2356 = vpop.xlane.xlu0 %2355
          %2357 = vadd.xlane.f32.xlu0 %v2326
          %v2358 = vpop.xlane.xlu0 %2357
          %2359 = vadd.xlane.f32.xlu0 %v2328
          %v2360 = vpop.xlane.xlu0 %2359
          %2361 = vadd.xlane.f32.xlu0 %v2330
          %v2362 = vpop.xlane.xlu0 %2361
          %2363 = vadd.xlane.f32.xlu0 %v2332
          %v2364 = vpop.xlane.xlu0 %2363
          %2365 = vadd.xlane.f32.xlu0 %v2334
          %v2366 = vpop.xlane.xlu0 %2365
          %2367 = vadd.xlane.f32.xlu0 %v2336
          %v2368 = vpop.xlane.xlu0 %2367
          %2369 = vadd.xlane.f32.xlu0 %v2338
          %v2370 = vpop.xlane.xlu0 %2369
          %v2371 = vrcp.pop %v2340
          %v2372 = vrcp.pop %v2342
          %v2373 = vrcp.pop %v2344
          %v2374 = vrcp.pop %v2346
          %v2375 = vrcp.pop %v2348
          %v2376 = vrcp.pop %v2350
          %v2377 = vrcp.pop %v2352
          %v2378 = vrcp.pop %v2354
          %v2379 = vrcp.pop %v2356
          %v2380 = vrcp.pop %v2358
          %v2381 = vrcp.pop %v2360
          %v2382 = vrcp.pop %v2362
          %v2383 = vrcp.pop %v2364
          %v2384 = vrcp.pop %v2366
          %v2385 = vrcp.pop %v2368
          %v2386 = vrcp.pop %v2370
          %v2387 = vpack.c.bf16 %v2310, %v2308
          %v2388 = vpack.c.bf16 %v2314, %v2312
          %v2389 = vpack.c.bf16 %v2318, %v2316
          %v2390 = vpack.c.bf16 %v2322, %v2320
          %v2391 = vpack.c.bf16 %v2326, %v2324
          %v2392 = vpack.c.bf16 %v2330, %v2328
          %v2393 = vpack.c.bf16 %v2334, %v2332
          %v2394 = vpack.c.bf16 %v2338, %v2336
          %2403 = vrot.lane.b32.xlu0 %v1696, 64
          %v2404 = vpop.permute.xlu0 %2403
          %2405 = vrot.lane.b32.xlu0 %v1700, 64
          %v2406 = vpop.permute.xlu0 %2405
          %2407 = vrot.lane.b32.xlu0 %v1704, 64
          %v2408 = vpop.permute.xlu0 %2407
          %2409 = vrot.lane.b32.xlu0 %v1708, 64
          %v2410 = vpop.permute.xlu0 %2409
          %2411 = vrot.lane.b32.xlu0 %v1712, 64
          %v2412 = vpop.permute.xlu0 %2411
          %2413 = vrot.lane.b32.xlu0 %v1716, 64
          %v2414 = vpop.permute.xlu0 %2413
          %2415 = vrot.lane.b32.xlu0 %v1720, 64
          %v2416 = vpop.permute.xlu0 %2415
          %2417 = vrot.lane.b32.xlu0 %v1724, 64
          %v2418 = vpop.permute.xlu0 %2417
          %2427 = vmatprep.subr.bf16.mxu0 0
          %2428 = vmatpush1.bf16.msra.mxu0 %v2404
          %2429 = vmatprep.subr.bf16.mxu0 0
          %2430 = vmatpush1.bf16.msra.mxu0 %v2406
          %2431 = vmatprep.subr.bf16.mxu0 0
          %2432 = vmatpush1.bf16.msra.mxu0 %v2408
          %2433 = vmatprep.subr.bf16.mxu0 0
          %2434 = vmatpush1.bf16.msra.mxu0 %v2410
          %2435 = vmatprep.subr.bf16.mxu0 0
          %2436 = vmatpush1.bf16.msra.mxu0 %v2412
          %2437 = vmatprep.subr.bf16.mxu0 0
          %2438 = vmatpush1.bf16.msra.mxu0 %v2414
          %2439 = vmatprep.subr.bf16.mxu0 0
          %2440 = vmatpush1.bf16.msra.mxu0 %v2416
          %2441 = vmatprep.subr.bf16.mxu0 0
          %2442 = vmatpush1.bf16.msra.mxu0 %v2418
          %2443 = vmatprep.subr.bf16.mxu0 0
          %2444 = vmatpush1.bf16.msra.mxu0 0
          %2445 = vmatprep.subr.bf16.mxu0 0
          %2446 = vmatpush1.bf16.msra.mxu0 0
          %2447 = vmatprep.subr.bf16.mxu0 0
          %2448 = vmatpush1.bf16.msra.mxu0 0
          %2449 = vmatprep.subr.bf16.mxu0 0
          %2450 = vmatpush1.bf16.msra.mxu0 0
          %2451 = vmatprep.subr.bf16.mxu0 0
          %2452 = vmatpush1.bf16.msra.mxu0 0
          %2453 = vmatprep.subr.bf16.mxu0 0
          %2454 = vmatpush1.bf16.msra.mxu0 0
          %2455 = vmatprep.subr.bf16.mxu0 0
          %2456 = vmatpush1.bf16.msra.mxu0 0
          %2457 = vmatprep.subr.bf16.mxu0 0
          %2458 = vmatpush1.bf16.msra.mxu0 0
          %2459 = vmatprep.mubr.bf16.mxu0 0
          %2460 = vmatmul.mubr.bf16.gmra.mrb[0].mxu0 %v2387
          %v2461 = vpop.f32.mrb[0].mxu0
          %v2462 = vadd.f32 0.0, %v2461
          %v2463 = vpop.f32.mrb[0].mxu0
          %v2464 = vpop.f32.mrb[0].mxu0
          %v2465 = vadd.f32 0.0, %v2464
          %v2466 = vpop.f32.mrb[0].mxu0
          %2467 = vmatprep.mubr.bf16.mxu0 0
          %2468 = vmatmul.mubr.bf16.gmra.mrb[0].mxu0 %v2388
          %v2469 = vpop.f32.mrb[0].mxu0
          %v2470 = vadd.f32 0.0, %v2469
          %v2471 = vpop.f32.mrb[0].mxu0
          %v2472 = vpop.f32.mrb[0].mxu0
          %v2473 = vadd.f32 0.0, %v2472
          %v2474 = vpop.f32.mrb[0].mxu0
          %2475 = vmatprep.mubr.bf16.mxu0 0
          %2476 = vmatmul.mubr.bf16.gmra.mrb[0].mxu0 %v2389
          %v2477 = vpop.f32.mrb[0].mxu0
          %v2478 = vadd.f32 0.0, %v2477
          %v2479 = vpop.f32.mrb[0].mxu0
          %v2480 = vpop.f32.mrb[0].mxu0
          %v2481 = vadd.f32 0.0, %v2480
          %v2482 = vpop.f32.mrb[0].mxu0
          %2483 = vmatprep.mubr.bf16.mxu0 0
          %2484 = vmatmul.mubr.bf16.gmra.mrb[0].mxu0 %v2390
          %v2485 = vpop.f32.mrb[0].mxu0
          %v2486 = vadd.f32 0.0, %v2485
          %v2487 = vpop.f32.mrb[0].mxu0
          %v2488 = vpop.f32.mrb[0].mxu0
          %v2489 = vadd.f32 0.0, %v2488
          %v2490 = vpop.f32.mrb[0].mxu0
          %2491 = vmatprep.mubr.bf16.mxu0 0
          %2492 = vmatmul.mubr.bf16.gmra.mrb[0].mxu0 %v2391
          %v2493 = vpop.f32.mrb[0].mxu0
          %v2494 = vadd.f32 0.0, %v2493
          %v2495 = vpop.f32.mrb[0].mxu0
          %v2496 = vpop.f32.mrb[0].mxu0
          %v2497 = vadd.f32 0.0, %v2496
          %v2498 = vpop.f32.mrb[0].mxu0
          %2499 = vmatprep.mubr.bf16.mxu0 0
          %2500 = vmatmul.mubr.bf16.gmra.mrb[0].mxu0 %v2392
          %v2501 = vpop.f32.mrb[0].mxu0
          %v2502 = vadd.f32 0.0, %v2501
          %v2503 = vpop.f32.mrb[0].mxu0
          %v2504 = vpop.f32.mrb[0].mxu0
          %v2505 = vadd.f32 0.0, %v2504
          %v2506 = vpop.f32.mrb[0].mxu0
          %2507 = vmatprep.mubr.bf16.mxu0 0
          %2508 = vmatmul.mubr.bf16.gmra.mrb[0].mxu0 %v2393
          %v2509 = vpop.f32.mrb[0].mxu0
          %v2510 = vadd.f32 0.0, %v2509
          %v2511 = vpop.f32.mrb[0].mxu0
          %v2512 = vpop.f32.mrb[0].mxu0
          %v2513 = vadd.f32 0.0, %v2512
          %v2514 = vpop.f32.mrb[0].mxu0
          %2515 = vmatprep.mubr.bf16.mxu0 0
          %2516 = vmatmul.mubr.bf16.gmra.mrb[0].mxu0 %v2394
          %v2517 = vpop.f32.mrb[0].mxu0
          %v2518 = vadd.f32 0.0, %v2517
          %v2519 = vpop.f32.mrb[0].mxu0
          %v2520 = vpop.f32.mrb[0].mxu0
          %v2521 = vadd.f32 0.0, %v2520
          %v2522 = vpop.f32.mrb[0].mxu0
          %2523 = vdwg.mxu0
          %v2524 = vmul.f32 %v2462, %v2371
          %v2525 = vmul.f32 %v2465, %v2372
          %v2526 = vmul.f32 %v2470, %v2373
          %v2527 = vmul.f32 %v2473, %v2374
          %v2528 = vmul.f32 %v2478, %v2375
          %v2529 = vmul.f32 %v2481, %v2376
          %v2530 = vmul.f32 %v2486, %v2377
          %v2531 = vmul.f32 %v2489, %v2378
          %v2532 = vmul.f32 %v2494, %v2379
          %v2533 = vmul.f32 %v2497, %v2380
          %v2534 = vmul.f32 %v2502, %v2381
          %v2535 = vmul.f32 %v2505, %v2382
          %v2536 = vmul.f32 %v2510, %v2383
          %v2537 = vmul.f32 %v2513, %v2384
          %v2538 = vmul.f32 %v2518, %v2385
          %v2539 = vmul.f32 %v2521, %v2386
          %v2540 = vld [vmem:[#allocation3] sm:$0xff]
          %v2541 = vld [vmem:[#allocation3 + $0x8] sm:$0xff]
          %v2542 = vld [vmem:[#allocation3 + $0x10] sm:$0xff]
          %v2543 = vld [vmem:[#allocation3 + $0x18] sm:$0xff]
          %v2544 = vld [vmem:[#allocation3 + $0x20] sm:$0xff]
          %v2545 = vld [vmem:[#allocation3 + $0x28] sm:$0xff]
          %v2546 = vld [vmem:[#allocation3 + $0x30] sm:$0xff]
          %v2547 = vld [vmem:[#allocation3 + $0x38] sm:$0xff]
          %v2548 = vld [vmem:[#allocation3 + $0x40] sm:$0xff]
          %v2549 = vld [vmem:[#allocation3 + $0x48] sm:$0xff]
          %v2550 = vld [vmem:[#allocation3 + $0x50] sm:$0xff]
          %v2551 = vld [vmem:[#allocation3 + $0x58] sm:$0xff]
          %v2552 = vld [vmem:[#allocation3 + $0x60] sm:$0xff]
          %v2553 = vld [vmem:[#allocation3 + $0x68] sm:$0xff]
          %v2554 = vld [vmem:[#allocation3 + $0x70] sm:$0xff]
          %v2555 = vld [vmem:[#allocation3 + $0x78] sm:$0xff]
          %v2556 = vadd.f32 %v2540, %v2524
          %v2557 = vadd.f32 %v2541, %v2525
          %v2558 = vadd.f32 %v2542, %v2526
          %v2559 = vadd.f32 %v2543, %v2527
          %v2560 = vadd.f32 %v2544, %v2528
          %v2561 = vadd.f32 %v2545, %v2529
          %v2562 = vadd.f32 %v2546, %v2530
          %v2563 = vadd.f32 %v2547, %v2531
          %v2564 = vadd.f32 %v2548, %v2532
          %v2565 = vadd.f32 %v2549, %v2533
          %v2566 = vadd.f32 %v2550, %v2534
          %v2567 = vadd.f32 %v2551, %v2535
          %v2568 = vadd.f32 %v2552, %v2536
          %v2569 = vadd.f32 %v2553, %v2537
          %v2570 = vadd.f32 %v2554, %v2538
          %v2571 = vadd.f32 %v2555, %v2539
          %2572 = vst.msk [vmem:[#allocation3] sm:$0xff] %vm683, %v2556
          %2573 = vst.msk [vmem:[#allocation3 + $0x8] sm:$0xff] %vm683, %v2557
          %2574 = vst.msk [vmem:[#allocation3 + $0x10] sm:$0xff] %vm683, %v2558
          %2575 = vst.msk [vmem:[#allocation3 + $0x18] sm:$0xff] %vm683, %v2559
          %2576 = vst.msk [vmem:[#allocation3 + $0x20] sm:$0xff] %vm683, %v2560
          %2577 = vst.msk [vmem:[#allocation3 + $0x28] sm:$0xff] %vm683, %v2561
          %2578 = vst.msk [vmem:[#allocation3 + $0x30] sm:$0xff] %vm683, %v2562
          %2579 = vst.msk [vmem:[#allocation3 + $0x38] sm:$0xff] %vm683, %v2563
          %2580 = vst.msk [vmem:[#allocation3 + $0x40] sm:$0xff] %vm683, %v2564
          %2581 = vst.msk [vmem:[#allocation3 + $0x48] sm:$0xff] %vm683, %v2565
          %2582 = vst.msk [vmem:[#allocation3 + $0x50] sm:$0xff] %vm683, %v2566
          %2583 = vst.msk [vmem:[#allocation3 + $0x58] sm:$0xff] %vm683, %v2567
          %2584 = vst.msk [vmem:[#allocation3 + $0x60] sm:$0xff] %vm683, %v2568
          %2585 = vst.msk [vmem:[#allocation3 + $0x68] sm:$0xff] %vm683, %v2569
          %2586 = vst.msk [vmem:[#allocation3 + $0x70] sm:$0xff] %vm683, %v2570
          %2587 = vst.msk [vmem:[#allocation3 + $0x78] sm:$0xff] %vm683, %v2571
          %v2589 = vsel %vm683, %v1665, 0
          %v2592 = vsel %vm683, %v1669, 0
          %v2595 = vsel %vm683, %v1673, 0
          %v2598 = vsel %vm683, %v1677, 0
          %v2601 = vsel %vm683, %v1681, 0
          %v2604 = vsel %vm683, %v1685, 0
          %v2607 = vsel %vm683, %v1689, 0
          %v2610 = vsel %vm683, %v1693, 0
          %2612 = vmatprep.subr.bf16.mxu0 0
          %2613 = vmatpush1.bf16.xpose.msra.mxu0 %v1091
          %2614 = vmatprep.subr.bf16.mxu0 0
          %2615 = vmatpush1.bf16.xpose.msra.mxu0 %v1094
          %2616 = vmatprep.subr.bf16.mxu0 0
          %2617 = vmatpush1.bf16.xpose.msra.mxu0 %v1097
          %2618 = vmatprep.subr.bf16.mxu0 0
          %2619 = vmatpush1.bf16.xpose.msra.mxu0 %v1100
          %2620 = vmatprep.subr.bf16.mxu0 0
          %2621 = vmatpush1.bf16.xpose.msra.mxu0 %v1103
          %2622 = vmatprep.subr.bf16.mxu0 0
          %2623 = vmatpush1.bf16.xpose.msra.mxu0 %v1106
          %2624 = vmatprep.subr.bf16.mxu0 0
          %2625 = vmatpush1.bf16.xpose.msra.mxu0 %v1109
          %2626 = vmatprep.subr.bf16.mxu0 0
          %2627 = vmatpush1.bf16.xpose.msra.mxu0 %v1112
          %2628 = vmatprep.subr.bf16.mxu0 0
          %2629 = vmatpush1.bf16.xpose.msra.mxu0 0
          %2630 = vmatprep.subr.bf16.mxu0 0
          %2631 = vmatpush1.bf16.xpose.msra.mxu0 0
          %2632 = vmatprep.subr.bf16.mxu0 0
          %2633 = vmatpush1.bf16.xpose.msra.mxu0 0
          %2634 = vmatprep.subr.bf16.mxu0 0
          %2635 = vmatpush1.bf16.xpose.msra.mxu0 0
          %2636 = vmatprep.subr.bf16.mxu0 0
          %2637 = vmatpush1.bf16.xpose.msra.mxu0 0
          %2638 = vmatprep.subr.bf16.mxu0 0
          %2639 = vmatpush1.bf16.xpose.msra.mxu0 0
          %2640 = vmatprep.subr.bf16.mxu0 0
          %2641 = vmatpush1.bf16.xpose.msra.mxu0 0
          %2642 = vmatprep.subr.bf16.mxu0 0
          %2643 = vmatpush1.bf16.xpose.msra.mxu0 0
          %2644 = vmatprep.mubr.bf16.mxu0 0
          %2645 = vmatmul.mubr.bf16.gmra.mrb[0].mxu0 %v2589
          %v2646 = vpop.f32.mrb[0].mxu0
          %v2647 = vadd.f32 %v703, %v2646
          %v2648 = vpop.f32.mrb[0].mxu0
          %v2649 = vpop.f32.mrb[0].mxu0
          %v2650 = vadd.f32 %v703, %v2649
          %v2651 = vpop.f32.mrb[0].mxu0
          %2652 = vmatprep.mubr.bf16.mxu0 0
          %2653 = vmatmul.mubr.bf16.gmra.mrb[0].mxu0 %v2592
          %v2654 = vpop.f32.mrb[0].mxu0
          %v2655 = vadd.f32 %v703, %v2654
          %v2656 = vpop.f32.mrb[0].mxu0
          %v2657 = vpop.f32.mrb[0].mxu0
          %v2658 = vadd.f32 %v703, %v2657
          %v2659 = vpop.f32.mrb[0].mxu0
          %2660 = vmatprep.mubr.bf16.mxu0 0
          %2661 = vmatmul.mubr.bf16.gmra.mrb[0].mxu0 %v2595
          %v2662 = vpop.f32.mrb[0].mxu0
          %v2663 = vadd.f32 %v703, %v2662
          %v2664 = vpop.f32.mrb[0].mxu0
          %v2665 = vpop.f32.mrb[0].mxu0
          %v2666 = vadd.f32 %v703, %v2665
          %v2667 = vpop.f32.mrb[0].mxu0
          %2668 = vmatprep.mubr.bf16.mxu0 0
          %2669 = vmatmul.mubr.bf16.gmra.mrb[0].mxu0 %v2598
          %v2670 = vpop.f32.mrb[0].mxu0
          %v2671 = vadd.f32 %v703, %v2670
          %v2672 = vpop.f32.mrb[0].mxu0
          %v2673 = vpop.f32.mrb[0].mxu0
          %v2674 = vadd.f32 %v703, %v2673
          %v2675 = vpop.f32.mrb[0].mxu0
          %2676 = vmatprep.mubr.bf16.mxu0 0
          %2677 = vmatmul.mubr.bf16.gmra.mrb[0].mxu0 %v2601
          %v2678 = vpop.f32.mrb[0].mxu0
          %v2679 = vadd.f32 %v703, %v2678
          %v2680 = vpop.f32.mrb[0].mxu0
          %v2681 = vpop.f32.mrb[0].mxu0
          %v2682 = vadd.f32 %v703, %v2681
          %v2683 = vpop.f32.mrb[0].mxu0
          %2684 = vmatprep.mubr.bf16.mxu0 0
          %2685 = vmatmul.mubr.bf16.gmra.mrb[0].mxu0 %v2604
          %v2686 = vpop.f32.mrb[0].mxu0
          %v2687 = vadd.f32 %v703, %v2686
          %v2688 = vpop.f32.mrb[0].mxu0
          %v2689 = vpop.f32.mrb[0].mxu0
          %v2690 = vadd.f32 %v703, %v2689
          %v2691 = vpop.f32.mrb[0].mxu0
          %2692 = vmatprep.mubr.bf16.mxu0 0
          %2693 = vmatmul.mubr.bf16.gmra.mrb[0].mxu0 %v2607
          %v2694 = vpop.f32.mrb[0].mxu0
          %v2695 = vadd.f32 %v703, %v2694
          %v2696 = vpop.f32.mrb[0].mxu0
          %v2697 = vpop.f32.mrb[0].mxu0
          %v2698 = vadd.f32 %v703, %v2697
          %v2699 = vpop.f32.mrb[0].mxu0
          %2700 = vmatprep.mubr.bf16.mxu0 0
          %2701 = vmatmul.mubr.bf16.gmra.mrb[0].mxu0 %v2610
          %v2702 = vpop.f32.mrb[0].mxu0
          %v2703 = vadd.f32 %v703, %v2702
          %v2704 = vpop.f32.mrb[0].mxu0
          %v2705 = vpop.f32.mrb[0].mxu0
          %v2706 = vadd.f32 %v703, %v2705
          %v2707 = vpop.f32.mrb[0].mxu0
          %2708 = vdwg.mxu0
          %2709 = vmax.xlane.f32.xlu0 %v2647
          %v2710 = vpop.xlane.xlu0 %2709
          %2711 = vmax.xlane.f32.xlu0 %v2650
          %v2712 = vpop.xlane.xlu0 %2711
          %2713 = vmax.xlane.f32.xlu0 %v2655
          %v2714 = vpop.xlane.xlu0 %2713
          %2715 = vmax.xlane.f32.xlu0 %v2658
          %v2716 = vpop.xlane.xlu0 %2715
          %2717 = vmax.xlane.f32.xlu0 %v2663
          %v2718 = vpop.xlane.xlu0 %2717
          %2719 = vmax.xlane.f32.xlu0 %v2666
          %v2720 = vpop.xlane.xlu0 %2719
          %2721 = vmax.xlane.f32.xlu0 %v2671
          %v2722 = vpop.xlane.xlu0 %2721
          %2723 = vmax.xlane.f32.xlu0 %v2674
          %v2724 = vpop.xlane.xlu0 %2723
          %2725 = vmax.xlane.f32.xlu0 %v2679
          %v2726 = vpop.xlane.xlu0 %2725
          %2727 = vmax.xlane.f32.xlu0 %v2682
          %v2728 = vpop.xlane.xlu0 %2727
          %2729 = vmax.xlane.f32.xlu0 %v2687
          %v2730 = vpop.xlane.xlu0 %2729
          %2731 = vmax.xlane.f32.xlu0 %v2690
          %v2732 = vpop.xlane.xlu0 %2731
          %2733 = vmax.xlane.f32.xlu0 %v2695
          %v2734 = vpop.xlane.xlu0 %2733
          %2735 = vmax.xlane.f32.xlu0 %v2698
          %v2736 = vpop.xlane.xlu0 %2735
          %2737 = vmax.xlane.f32.xlu0 %v2703
          %v2738 = vpop.xlane.xlu0 %2737
          %2739 = vmax.xlane.f32.xlu0 %v2706
          %v2740 = vpop.xlane.xlu0 %2739
          %v2741 = vsub.f32 %v2647, %v2710
          %v2742 = vsub.f32 %v2650, %v2712
          %v2743 = vsub.f32 %v2655, %v2714
          %v2744 = vsub.f32 %v2658, %v2716
          %v2745 = vsub.f32 %v2663, %v2718
          %v2746 = vsub.f32 %v2666, %v2720
          %v2747 = vsub.f32 %v2671, %v2722
          %v2748 = vsub.f32 %v2674, %v2724
          %v2749 = vsub.f32 %v2679, %v2726
          %v2750 = vsub.f32 %v2682, %v2728
          %v2751 = vsub.f32 %v2687, %v2730
          %v2752 = vsub.f32 %v2690, %v2732
          %v2753 = vsub.f32 %v2695, %v2734
          %v2754 = vsub.f32 %v2698, %v2736
          %v2755 = vsub.f32 %v2703, %v2738
          %v2756 = vsub.f32 %v2706, %v2740
          %v2757 = vmul.f32 %v2741, 1.442695
          %v2758 = vpow.pop %v2757
          %v2759 = vmul.f32 %v2742, 1.442695
          %v2760 = vpow.pop %v2759
          %v2761 = vmul.f32 %v2743, 1.442695
          %v2762 = vpow.pop %v2761
          %v2763 = vmul.f32 %v2744, 1.442695
          %v2764 = vpow.pop %v2763
          %v2765 = vmul.f32 %v2745, 1.442695
          %v2766 = vpow.pop %v2765
          %v2767 = vmul.f32 %v2746, 1.442695
          %v2768 = vpow.pop %v2767
          %v2769 = vmul.f32 %v2747, 1.442695
          %v2770 = vpow.pop %v2769
          %v2771 = vmul.f32 %v2748, 1.442695
          %v2772 = vpow.pop %v2771
          %v2773 = vmul.f32 %v2749, 1.442695
          %v2774 = vpow.pop %v2773
          %v2775 = vmul.f32 %v2750, 1.442695
          %v2776 = vpow.pop %v2775
          %v2777 = vmul.f32 %v2751, 1.442695
          %v2778 = vpow.pop %v2777
          %v2779 = vmul.f32 %v2752, 1.442695
          %v2780 = vpow.pop %v2779
          %v2781 = vmul.f32 %v2753, 1.442695
          %v2782 = vpow.pop %v2781
          %v2783 = vmul.f32 %v2754, 1.442695
          %v2784 = vpow.pop %v2783
          %v2785 = vmul.f32 %v2755, 1.442695
          %v2786 = vpow.pop %v2785
          %v2787 = vmul.f32 %v2756, 1.442695
          %v2788 = vpow.pop %v2787
          %2789 = vadd.xlane.f32.xlu0 %v2758
          %v2790 = vpop.xlane.xlu0 %2789
          %2791 = vadd.xlane.f32.xlu0 %v2760
          %v2792 = vpop.xlane.xlu0 %2791
          %2793 = vadd.xlane.f32.xlu0 %v2762
          %v2794 = vpop.xlane.xlu0 %2793
          %2795 = vadd.xlane.f32.xlu0 %v2764
          %v2796 = vpop.xlane.xlu0 %2795
          %2797 = vadd.xlane.f32.xlu0 %v2766
          %v2798 = vpop.xlane.xlu0 %2797
          %2799 = vadd.xlane.f32.xlu0 %v2768
          %v2800 = vpop.xlane.xlu0 %2799
          %2801 = vadd.xlane.f32.xlu0 %v2770
          %v2802 = vpop.xlane.xlu0 %2801
          %2803 = vadd.xlane.f32.xlu0 %v2772
          %v2804 = vpop.xlane.xlu0 %2803
          %2805 = vadd.xlane.f32.xlu0 %v2774
          %v2806 = vpop.xlane.xlu0 %2805
          %2807 = vadd.xlane.f32.xlu0 %v2776
          %v2808 = vpop.xlane.xlu0 %2807
          %2809 = vadd.xlane.f32.xlu0 %v2778
          %v2810 = vpop.xlane.xlu0 %2809
          %2811 = vadd.xlane.f32.xlu0 %v2780
          %v2812 = vpop.xlane.xlu0 %2811
          %2813 = vadd.xlane.f32.xlu0 %v2782
          %v2814 = vpop.xlane.xlu0 %2813
          %2815 = vadd.xlane.f32.xlu0 %v2784
          %v2816 = vpop.xlane.xlu0 %2815
          %2817 = vadd.xlane.f32.xlu0 %v2786
          %v2818 = vpop.xlane.xlu0 %2817
          %2819 = vadd.xlane.f32.xlu0 %v2788
          %v2820 = vpop.xlane.xlu0 %2819
          %v2821 = vrcp.pop %v2790
          %v2822 = vrcp.pop %v2792
          %v2823 = vrcp.pop %v2794
          %v2824 = vrcp.pop %v2796
          %v2825 = vrcp.pop %v2798
          %v2826 = vrcp.pop %v2800
          %v2827 = vrcp.pop %v2802
          %v2828 = vrcp.pop %v2804
          %v2829 = vrcp.pop %v2806
          %v2830 = vrcp.pop %v2808
          %v2831 = vrcp.pop %v2810
          %v2832 = vrcp.pop %v2812
          %v2833 = vrcp.pop %v2814
          %v2834 = vrcp.pop %v2816
          %v2835 = vrcp.pop %v2818
          %v2836 = vrcp.pop %v2820
          %v2837 = vpack.c.bf16 %v2760, %v2758
          %v2838 = vpack.c.bf16 %v2764, %v2762
          %v2839 = vpack.c.bf16 %v2768, %v2766
          %v2840 = vpack.c.bf16 %v2772, %v2770
          %v2841 = vpack.c.bf16 %v2776, %v2774
          %v2842 = vpack.c.bf16 %v2780, %v2778
          %v2843 = vpack.c.bf16 %v2784, %v2782
          %v2844 = vpack.c.bf16 %v2788, %v2786
          %2845 = vmatprep.subr.bf16.mxu0 0
          %2846 = vmatpush1.bf16.msra.mxu0 %v1697
          %2847 = vmatprep.subr.bf16.mxu0 0
          %2848 = vmatpush1.bf16.msra.mxu0 %v1701
          %2849 = vmatprep.subr.bf16.mxu0 0
          %2850 = vmatpush1.bf16.msra.mxu0 %v1705
          %2851 = vmatprep.subr.bf16.mxu0 0
          %2852 = vmatpush1.bf16.msra.mxu0 %v1709
          %2853 = vmatprep.subr.bf16.mxu0 0
          %2854 = vmatpush1.bf16.msra.mxu0 %v1713
          %2855 = vmatprep.subr.bf16.mxu0 0
          %2856 = vmatpush1.bf16.msra.mxu0 %v1717
          %2857 = vmatprep.subr.bf16.mxu0 0
          %2858 = vmatpush1.bf16.msra.mxu0 %v1721
          %2859 = vmatprep.subr.bf16.mxu0 0
          %2860 = vmatpush1.bf16.msra.mxu0 %v1725
          %2861 = vmatprep.subr.bf16.mxu0 0
          %2862 = vmatpush1.bf16.msra.mxu0 0
          %2863 = vmatprep.subr.bf16.mxu0 0
          %2864 = vmatpush1.bf16.msra.mxu0 0
          %2865 = vmatprep.subr.bf16.mxu0 0
          %2866 = vmatpush1.bf16.msra.mxu0 0
          %2867 = vmatprep.subr.bf16.mxu0 0
          %2868 = vmatpush1.bf16.msra.mxu0 0
          %2869 = vmatprep.subr.bf16.mxu0 0
          %2870 = vmatpush1.bf16.msra.mxu0 0
          %2871 = vmatprep.subr.bf16.mxu0 0
          %2872 = vmatpush1.bf16.msra.mxu0 0
          %2873 = vmatprep.subr.bf16.mxu0 0
          %2874 = vmatpush1.bf16.msra.mxu0 0
          %2875 = vmatprep.subr.bf16.mxu0 0
          %2876 = vmatpush1.bf16.msra.mxu0 0
          %2877 = vmatprep.mubr.bf16.mxu0 0
          %2878 = vmatmul.mubr.bf16.gmra.mrb[0].mxu0 %v2837
          %v2879 = vpop.f32.mrb[0].mxu0
          %v2880 = vadd.f32 0.0, %v2879
          %v2881 = vpop.f32.mrb[0].mxu0
          %v2882 = vpop.f32.mrb[0].mxu0
          %v2883 = vadd.f32 0.0, %v2882
          %v2884 = vpop.f32.mrb[0].mxu0
          %2885 = vmatprep.mubr.bf16.mxu0 0
          %2886 = vmatmul.mubr.bf16.gmra.mrb[0].mxu0 %v2838
          %v2887 = vpop.f32.mrb[0].mxu0
          %v2888 = vadd.f32 0.0, %v2887
          %v2889 = vpop.f32.mrb[0].mxu0
          %v2890 = vpop.f32.mrb[0].mxu0
          %v2891 = vadd.f32 0.0, %v2890
          %v2892 = vpop.f32.mrb[0].mxu0
          %2893 = vmatprep.mubr.bf16.mxu0 0
          %2894 = vmatmul.mubr.bf16.gmra.mrb[0].mxu0 %v2839
          %v2895 = vpop.f32.mrb[0].mxu0
          %v2896 = vadd.f32 0.0, %v2895
          %v2897 = vpop.f32.mrb[0].mxu0
          %v2898 = vpop.f32.mrb[0].mxu0
          %v2899 = vadd.f32 0.0, %v2898
          %v2900 = vpop.f32.mrb[0].mxu0
          %2901 = vmatprep.mubr.bf16.mxu0 0
          %2902 = vmatmul.mubr.bf16.gmra.mrb[0].mxu0 %v2840
          %v2903 = vpop.f32.mrb[0].mxu0
          %v2904 = vadd.f32 0.0, %v2903
          %v2905 = vpop.f32.mrb[0].mxu0
          %v2906 = vpop.f32.mrb[0].mxu0
          %v2907 = vadd.f32 0.0, %v2906
          %v2908 = vpop.f32.mrb[0].mxu0
          %2909 = vmatprep.mubr.bf16.mxu0 0
          %2910 = vmatmul.mubr.bf16.gmra.mrb[0].mxu0 %v2841
          %v2911 = vpop.f32.mrb[0].mxu0
          %v2912 = vadd.f32 0.0, %v2911
          %v2913 = vpop.f32.mrb[0].mxu0
          %v2914 = vpop.f32.mrb[0].mxu0
          %v2915 = vadd.f32 0.0, %v2914
          %v2916 = vpop.f32.mrb[0].mxu0
          %2917 = vmatprep.mubr.bf16.mxu0 0
          %2918 = vmatmul.mubr.bf16.gmra.mrb[0].mxu0 %v2842
          %v2919 = vpop.f32.mrb[0].mxu0
          %v2920 = vadd.f32 0.0, %v2919
          %v2921 = vpop.f32.mrb[0].mxu0
          %v2922 = vpop.f32.mrb[0].mxu0
          %v2923 = vadd.f32 0.0, %v2922
          %v2924 = vpop.f32.mrb[0].mxu0
          %2925 = vmatprep.mubr.bf16.mxu0 0
          %2926 = vmatmul.mubr.bf16.gmra.mrb[0].mxu0 %v2843
          %v2927 = vpop.f32.mrb[0].mxu0
          %v2928 = vadd.f32 0.0, %v2927
          %v2929 = vpop.f32.mrb[0].mxu0
          %v2930 = vpop.f32.mrb[0].mxu0
          %v2931 = vadd.f32 0.0, %v2930
          %v2932 = vpop.f32.mrb[0].mxu0
          %2933 = vmatprep.mubr.bf16.mxu0 0
          %2934 = vmatmul.mubr.bf16.gmra.mrb[0].mxu0 %v2844
          %v2935 = vpop.f32.mrb[0].mxu0
          %v2936 = vadd.f32 0.0, %v2935
          %v2937 = vpop.f32.mrb[0].mxu0
          %v2938 = vpop.f32.mrb[0].mxu0
          %v2939 = vadd.f32 0.0, %v2938
          %v2940 = vpop.f32.mrb[0].mxu0
          %2941 = vdwg.mxu0
          %v2942 = vmul.f32 %v2880, %v2821
          %v2943 = vmul.f32 %v2883, %v2822
          %v2944 = vmul.f32 %v2888, %v2823
          %v2945 = vmul.f32 %v2891, %v2824
          %v2946 = vmul.f32 %v2896, %v2825
          %v2947 = vmul.f32 %v2899, %v2826
          %v2948 = vmul.f32 %v2904, %v2827
          %v2949 = vmul.f32 %v2907, %v2828
          %v2950 = vmul.f32 %v2912, %v2829
          %v2951 = vmul.f32 %v2915, %v2830
          %v2952 = vmul.f32 %v2920, %v2831
          %v2953 = vmul.f32 %v2923, %v2832
          %v2954 = vmul.f32 %v2928, %v2833
          %v2955 = vmul.f32 %v2931, %v2834
          %v2956 = vmul.f32 %v2936, %v2835
          %v2957 = vmul.f32 %v2939, %v2836
          %v2958 = vld [vmem:[#allocation3] sm:$0xff]
          %v2959 = vld [vmem:[#allocation3 + $0x8] sm:$0xff]
          %v2960 = vld [vmem:[#allocation3 + $0x10] sm:$0xff]
          %v2961 = vld [vmem:[#allocation3 + $0x18] sm:$0xff]
          %v2962 = vld [vmem:[#allocation3 + $0x20] sm:$0xff]
          %v2963 = vld [vmem:[#allocation3 + $0x28] sm:$0xff]
          %v2964 = vld [vmem:[#allocation3 + $0x30] sm:$0xff]
          %v2965 = vld [vmem:[#allocation3 + $0x38] sm:$0xff]
          %v2966 = vld [vmem:[#allocation3 + $0x40] sm:$0xff]
          %v2967 = vld [vmem:[#allocation3 + $0x48] sm:$0xff]
          %v2968 = vld [vmem:[#allocation3 + $0x50] sm:$0xff]
          %v2969 = vld [vmem:[#allocation3 + $0x58] sm:$0xff]
          %v2970 = vld [vmem:[#allocation3 + $0x60] sm:$0xff]
          %v2971 = vld [vmem:[#allocation3 + $0x68] sm:$0xff]
          %v2972 = vld [vmem:[#allocation3 + $0x70] sm:$0xff]
          %v2973 = vld [vmem:[#allocation3 + $0x78] sm:$0xff]
          %v2974 = vadd.f32 %v2958, %v2942
          %v2975 = vadd.f32 %v2959, %v2943
          %v2976 = vadd.f32 %v2960, %v2944
          %v2977 = vadd.f32 %v2961, %v2945
          %v2978 = vadd.f32 %v2962, %v2946
          %v2979 = vadd.f32 %v2963, %v2947
          %v2980 = vadd.f32 %v2964, %v2948
          %v2981 = vadd.f32 %v2965, %v2949
          %v2982 = vadd.f32 %v2966, %v2950
          %v2983 = vadd.f32 %v2967, %v2951
          %v2984 = vadd.f32 %v2968, %v2952
          %v2985 = vadd.f32 %v2969, %v2953
          %v2986 = vadd.f32 %v2970, %v2954
          %v2987 = vadd.f32 %v2971, %v2955
          %v2988 = vadd.f32 %v2972, %v2956
          %v2989 = vadd.f32 %v2973, %v2957
          %2990 = vst.msk [vmem:[#allocation3] sm:$0xff] %vm683, %v2974
          %2991 = vst.msk [vmem:[#allocation3 + $0x8] sm:$0xff] %vm683, %v2975
          %2992 = vst.msk [vmem:[#allocation3 + $0x10] sm:$0xff] %vm683, %v2976
          %2993 = vst.msk [vmem:[#allocation3 + $0x18] sm:$0xff] %vm683, %v2977
          %2994 = vst.msk [vmem:[#allocation3 + $0x20] sm:$0xff] %vm683, %v2978
          %2995 = vst.msk [vmem:[#allocation3 + $0x28] sm:$0xff] %vm683, %v2979
          %2996 = vst.msk [vmem:[#allocation3 + $0x30] sm:$0xff] %vm683, %v2980
          %2997 = vst.msk [vmem:[#allocation3 + $0x38] sm:$0xff] %vm683, %v2981
          %2998 = vst.msk [vmem:[#allocation3 + $0x40] sm:$0xff] %vm683, %v2982
          %2999 = vst.msk [vmem:[#allocation3 + $0x48] sm:$0xff] %vm683, %v2983
          %3000 = vst.msk [vmem:[#allocation3 + $0x50] sm:$0xff] %vm683, %v2984
          %3001 = vst.msk [vmem:[#allocation3 + $0x58] sm:$0xff] %vm683, %v2985
          %3002 = vst.msk [vmem:[#allocation3 + $0x60] sm:$0xff] %vm683, %v2986
          %3003 = vst.msk [vmem:[#allocation3 + $0x68] sm:$0xff] %vm683, %v2987
          %3004 = vst.msk [vmem:[#allocation3 + $0x70] sm:$0xff] %vm683, %v2988
          %3005 = vst.msk [vmem:[#allocation3 + $0x78] sm:$0xff] %vm683, %v2989
          %3014 = vrot.lane.b32.xlu0 %v1665, 64
          %v3015 = vpop.permute.xlu0 %3014
          %3016 = vrot.lane.b32.xlu0 %v1669, 64
          %v3017 = vpop.permute.xlu0 %3016
          %3018 = vrot.lane.b32.xlu0 %v1673, 64
          %v3019 = vpop.permute.xlu0 %3018
          %3020 = vrot.lane.b32.xlu0 %v1677, 64
          %v3021 = vpop.permute.xlu0 %3020
          %3022 = vrot.lane.b32.xlu0 %v1681, 64
          %v3023 = vpop.permute.xlu0 %3022
          %3024 = vrot.lane.b32.xlu0 %v1685, 64
          %v3025 = vpop.permute.xlu0 %3024
          %3026 = vrot.lane.b32.xlu0 %v1689, 64
          %v3027 = vpop.permute.xlu0 %3026
          %3028 = vrot.lane.b32.xlu0 %v1693, 64
          %v3029 = vpop.permute.xlu0 %3028
          %v3031 = vsel %vm683, %v3015, 0
          %v3034 = vsel %vm683, %v3017, 0
          %v3037 = vsel %vm683, %v3019, 0
          %v3040 = vsel %vm683, %v3021, 0
          %v3043 = vsel %vm683, %v3023, 0
          %v3046 = vsel %vm683, %v3025, 0
          %v3049 = vsel %vm683, %v3027, 0
          %v3052 = vsel %vm683, %v3029, 0
          %3054 = vmatprep.subr.bf16.mxu0 0
          %3055 = vmatpush1.bf16.xpose.msra.mxu0 %v1091
          %3056 = vmatprep.subr.bf16.mxu0 0
          %3057 = vmatpush1.bf16.xpose.msra.mxu0 %v1094
          %3058 = vmatprep.subr.bf16.mxu0 0
          %3059 = vmatpush1.bf16.xpose.msra.mxu0 %v1097
          %3060 = vmatprep.subr.bf16.mxu0 0
          %3061 = vmatpush1.bf16.xpose.msra.mxu0 %v1100
          %3062 = vmatprep.subr.bf16.mxu0 0
          %3063 = vmatpush1.bf16.xpose.msra.mxu0 %v1103
          %3064 = vmatprep.subr.bf16.mxu0 0
          %3065 = vmatpush1.bf16.xpose.msra.mxu0 %v1106
          %3066 = vmatprep.subr.bf16.mxu0 0
          %3067 = vmatpush1.bf16.xpose.msra.mxu0 %v1109
          %3068 = vmatprep.subr.bf16.mxu0 0
          %3069 = vmatpush1.bf16.xpose.msra.mxu0 %v1112
          %3070 = vmatprep.subr.bf16.mxu0 0
          %3071 = vmatpush1.bf16.xpose.msra.mxu0 0
          %3072 = vmatprep.subr.bf16.mxu0 0
          %3073 = vmatpush1.bf16.xpose.msra.mxu0 0
          %3074 = vmatprep.subr.bf16.mxu0 0
          %3075 = vmatpush1.bf16.xpose.msra.mxu0 0
          %3076 = vmatprep.subr.bf16.mxu0 0
          %3077 = vmatpush1.bf16.xpose.msra.mxu0 0
          %3078 = vmatprep.subr.bf16.mxu0 0
          %3079 = vmatpush1.bf16.xpose.msra.mxu0 0
          %3080 = vmatprep.subr.bf16.mxu0 0
          %3081 = vmatpush1.bf16.xpose.msra.mxu0 0
          %3082 = vmatprep.subr.bf16.mxu0 0
          %3083 = vmatpush1.bf16.xpose.msra.mxu0 0
          %3084 = vmatprep.subr.bf16.mxu0 0
          %3085 = vmatpush1.bf16.xpose.msra.mxu0 0
          %3086 = vmatprep.mubr.bf16.mxu0 0
          %3087 = vmatmul.mubr.bf16.gmra.mrb[0].mxu0 %v3031
          %v3088 = vpop.f32.mrb[0].mxu0
          %v3089 = vadd.f32 %v703, %v3088
          %v3090 = vpop.f32.mrb[0].mxu0
          %v3091 = vpop.f32.mrb[0].mxu0
          %v3092 = vadd.f32 %v703, %v3091
          %v3093 = vpop.f32.mrb[0].mxu0
          %3094 = vmatprep.mubr.bf16.mxu0 0
          %3095 = vmatmul.mubr.bf16.gmra.mrb[0].mxu0 %v3034
          %v3096 = vpop.f32.mrb[0].mxu0
          %v3097 = vadd.f32 %v703, %v3096
          %v3098 = vpop.f32.mrb[0].mxu0
          %v3099 = vpop.f32.mrb[0].mxu0
          %v3100 = vadd.f32 %v703, %v3099
          %v3101 = vpop.f32.mrb[0].mxu0
          %3102 = vmatprep.mubr.bf16.mxu0 0
          %3103 = vmatmul.mubr.bf16.gmra.mrb[0].mxu0 %v3037
          %v3104 = vpop.f32.mrb[0].mxu0
          %v3105 = vadd.f32 %v703, %v3104
          %v3106 = vpop.f32.mrb[0].mxu0
          %v3107 = vpop.f32.mrb[0].mxu0
          %v3108 = vadd.f32 %v703, %v3107
          %v3109 = vpop.f32.mrb[0].mxu0
          %3110 = vmatprep.mubr.bf16.mxu0 0
          %3111 = vmatmul.mubr.bf16.gmra.mrb[0].mxu0 %v3040
          %v3112 = vpop.f32.mrb[0].mxu0
          %v3113 = vadd.f32 %v703, %v3112
          %v3114 = vpop.f32.mrb[0].mxu0
          %v3115 = vpop.f32.mrb[0].mxu0
          %v3116 = vadd.f32 %v703, %v3115
          %v3117 = vpop.f32.mrb[0].mxu0
          %3118 = vmatprep.mubr.bf16.mxu0 0
          %3119 = vmatmul.mubr.bf16.gmra.mrb[0].mxu0 %v3043
          %v3120 = vpop.f32.mrb[0].mxu0
          %v3121 = vadd.f32 %v703, %v3120
          %v3122 = vpop.f32.mrb[0].mxu0
          %v3123 = vpop.f32.mrb[0].mxu0
          %v3124 = vadd.f32 %v703, %v3123
          %v3125 = vpop.f32.mrb[0].mxu0
          %3126 = vmatprep.mubr.bf16.mxu0 0
          %3127 = vmatmul.mubr.bf16.gmra.mrb[0].mxu0 %v3046
          %v3128 = vpop.f32.mrb[0].mxu0
          %v3129 = vadd.f32 %v703, %v3128
          %v3130 = vpop.f32.mrb[0].mxu0
          %v3131 = vpop.f32.mrb[0].mxu0
          %v3132 = vadd.f32 %v703, %v3131
          %v3133 = vpop.f32.mrb[0].mxu0
          %3134 = vmatprep.mubr.bf16.mxu0 0
          %3135 = vmatmul.mubr.bf16.gmra.mrb[0].mxu0 %v3049
          %v3136 = vpop.f32.mrb[0].mxu0
          %v3137 = vadd.f32 %v703, %v3136
          %v3138 = vpop.f32.mrb[0].mxu0
          %v3139 = vpop.f32.mrb[0].mxu0
          %v3140 = vadd.f32 %v703, %v3139
          %v3141 = vpop.f32.mrb[0].mxu0
          %3142 = vmatprep.mubr.bf16.mxu0 0
          %3143 = vmatmul.mubr.bf16.gmra.mrb[0].mxu0 %v3052
          %v3144 = vpop.f32.mrb[0].mxu0
          %v3145 = vadd.f32 %v703, %v3144
          %v3146 = vpop.f32.mrb[0].mxu0
          %v3147 = vpop.f32.mrb[0].mxu0
          %v3148 = vadd.f32 %v703, %v3147
          %v3149 = vpop.f32.mrb[0].mxu0
          %3150 = vdwg.mxu0
          %3151 = vmax.xlane.f32.xlu0 %v3089
          %v3152 = vpop.xlane.xlu0 %3151
          %3153 = vmax.xlane.f32.xlu0 %v3092
          %v3154 = vpop.xlane.xlu0 %3153
          %3155 = vmax.xlane.f32.xlu0 %v3097
          %v3156 = vpop.xlane.xlu0 %3155
          %3157 = vmax.xlane.f32.xlu0 %v3100
          %v3158 = vpop.xlane.xlu0 %3157
          %3159 = vmax.xlane.f32.xlu0 %v3105
          %v3160 = vpop.xlane.xlu0 %3159
          %3161 = vmax.xlane.f32.xlu0 %v3108
          %v3162 = vpop.xlane.xlu0 %3161
          %3163 = vmax.xlane.f32.xlu0 %v3113
          %v3164 = vpop.xlane.xlu0 %3163
          %3165 = vmax.xlane.f32.xlu0 %v3116
          %v3166 = vpop.xlane.xlu0 %3165
          %3167 = vmax.xlane.f32.xlu0 %v3121
          %v3168 = vpop.xlane.xlu0 %3167
          %3169 = vmax.xlane.f32.xlu0 %v3124
          %v3170 = vpop.xlane.xlu0 %3169
          %3171 = vmax.xlane.f32.xlu0 %v3129
          %v3172 = vpop.xlane.xlu0 %3171
          %3173 = vmax.xlane.f32.xlu0 %v3132
          %v3174 = vpop.xlane.xlu0 %3173
          %3175 = vmax.xlane.f32.xlu0 %v3137
          %v3176 = vpop.xlane.xlu0 %3175
          %3177 = vmax.xlane.f32.xlu0 %v3140
          %v3178 = vpop.xlane.xlu0 %3177
          %3179 = vmax.xlane.f32.xlu0 %v3145
          %v3180 = vpop.xlane.xlu0 %3179
          %3181 = vmax.xlane.f32.xlu0 %v3148
          %v3182 = vpop.xlane.xlu0 %3181
          %v3183 = vsub.f32 %v3089, %v3152
          %v3184 = vsub.f32 %v3092, %v3154
          %v3185 = vsub.f32 %v3097, %v3156
          %v3186 = vsub.f32 %v3100, %v3158
          %v3187 = vsub.f32 %v3105, %v3160
          %v3188 = vsub.f32 %v3108, %v3162
          %v3189 = vsub.f32 %v3113, %v3164
          %v3190 = vsub.f32 %v3116, %v3166
          %v3191 = vsub.f32 %v3121, %v3168
          %v3192 = vsub.f32 %v3124, %v3170
          %v3193 = vsub.f32 %v3129, %v3172
          %v3194 = vsub.f32 %v3132, %v3174
          %v3195 = vsub.f32 %v3137, %v3176
          %v3196 = vsub.f32 %v3140, %v3178
          %v3197 = vsub.f32 %v3145, %v3180
          %v3198 = vsub.f32 %v3148, %v3182
          %v3199 = vmul.f32 %v3183, 1.442695
          %v3200 = vpow.pop %v3199
          %v3201 = vmul.f32 %v3184, 1.442695
          %v3202 = vpow.pop %v3201
          %v3203 = vmul.f32 %v3185, 1.442695
          %v3204 = vpow.pop %v3203
          %v3205 = vmul.f32 %v3186, 1.442695
          %v3206 = vpow.pop %v3205
          %v3207 = vmul.f32 %v3187, 1.442695
          %v3208 = vpow.pop %v3207
          %v3209 = vmul.f32 %v3188, 1.442695
          %v3210 = vpow.pop %v3209
          %v3211 = vmul.f32 %v3189, 1.442695
          %v3212 = vpow.pop %v3211
          %v3213 = vmul.f32 %v3190, 1.442695
          %v3214 = vpow.pop %v3213
          %v3215 = vmul.f32 %v3191, 1.442695
          %v3216 = vpow.pop %v3215
          %v3217 = vmul.f32 %v3192, 1.442695
          %v3218 = vpow.pop %v3217
          %v3219 = vmul.f32 %v3193, 1.442695
          %v3220 = vpow.pop %v3219
          %v3221 = vmul.f32 %v3194, 1.442695
          %v3222 = vpow.pop %v3221
          %v3223 = vmul.f32 %v3195, 1.442695
          %v3224 = vpow.pop %v3223
          %v3225 = vmul.f32 %v3196, 1.442695
          %v3226 = vpow.pop %v3225
          %v3227 = vmul.f32 %v3197, 1.442695
          %v3228 = vpow.pop %v3227
          %v3229 = vmul.f32 %v3198, 1.442695
          %v3230 = vpow.pop %v3229
          %3231 = vadd.xlane.f32.xlu0 %v3200
          %v3232 = vpop.xlane.xlu0 %3231
          %3233 = vadd.xlane.f32.xlu0 %v3202
          %v3234 = vpop.xlane.xlu0 %3233
          %3235 = vadd.xlane.f32.xlu0 %v3204
          %v3236 = vpop.xlane.xlu0 %3235
          %3237 = vadd.xlane.f32.xlu0 %v3206
          %v3238 = vpop.xlane.xlu0 %3237
          %3239 = vadd.xlane.f32.xlu0 %v3208
          %v3240 = vpop.xlane.xlu0 %3239
          %3241 = vadd.xlane.f32.xlu0 %v3210
          %v3242 = vpop.xlane.xlu0 %3241
          %3243 = vadd.xlane.f32.xlu0 %v3212
          %v3244 = vpop.xlane.xlu0 %3243
          %3245 = vadd.xlane.f32.xlu0 %v3214
          %v3246 = vpop.xlane.xlu0 %3245
          %3247 = vadd.xlane.f32.xlu0 %v3216
          %v3248 = vpop.xlane.xlu0 %3247
          %3249 = vadd.xlane.f32.xlu0 %v3218
          %v3250 = vpop.xlane.xlu0 %3249
          %3251 = vadd.xlane.f32.xlu0 %v3220
          %v3252 = vpop.xlane.xlu0 %3251
          %3253 = vadd.xlane.f32.xlu0 %v3222
          %v3254 = vpop.xlane.xlu0 %3253
          %3255 = vadd.xlane.f32.xlu0 %v3224
          %v3256 = vpop.xlane.xlu0 %3255
          %3257 = vadd.xlane.f32.xlu0 %v3226
          %v3258 = vpop.xlane.xlu0 %3257
          %3259 = vadd.xlane.f32.xlu0 %v3228
          %v3260 = vpop.xlane.xlu0 %3259
          %3261 = vadd.xlane.f32.xlu0 %v3230
          %v3262 = vpop.xlane.xlu0 %3261
          %v3263 = vrcp.pop %v3232
          %v3264 = vrcp.pop %v3234
          %v3265 = vrcp.pop %v3236
          %v3266 = vrcp.pop %v3238
          %v3267 = vrcp.pop %v3240
          %v3268 = vrcp.pop %v3242
          %v3269 = vrcp.pop %v3244
          %v3270 = vrcp.pop %v3246
          %v3271 = vrcp.pop %v3248
          %v3272 = vrcp.pop %v3250
          %v3273 = vrcp.pop %v3252
          %v3274 = vrcp.pop %v3254
          %v3275 = vrcp.pop %v3256
          %v3276 = vrcp.pop %v3258
          %v3277 = vrcp.pop %v3260
          %v3278 = vrcp.pop %v3262
          %v3279 = vpack.c.bf16 %v3202, %v3200
          %v3280 = vpack.c.bf16 %v3206, %v3204
          %v3281 = vpack.c.bf16 %v3210, %v3208
          %v3282 = vpack.c.bf16 %v3214, %v3212
          %v3283 = vpack.c.bf16 %v3218, %v3216
          %v3284 = vpack.c.bf16 %v3222, %v3220
          %v3285 = vpack.c.bf16 %v3226, %v3224
          %v3286 = vpack.c.bf16 %v3230, %v3228
          %3295 = vrot.lane.b32.xlu0 %v1697, 64
          %v3296 = vpop.permute.xlu0 %3295
          %3297 = vrot.lane.b32.xlu0 %v1701, 64
          %v3298 = vpop.permute.xlu0 %3297
          %3299 = vrot.lane.b32.xlu0 %v1705, 64
          %v3300 = vpop.permute.xlu0 %3299
          %3301 = vrot.lane.b32.xlu0 %v1709, 64
          %v3302 = vpop.permute.xlu0 %3301
          %3303 = vrot.lane.b32.xlu0 %v1713, 64
          %v3304 = vpop.permute.xlu0 %3303
          %3305 = vrot.lane.b32.xlu0 %v1717, 64
          %v3306 = vpop.permute.xlu0 %3305
          %3307 = vrot.lane.b32.xlu0 %v1721, 64
          %v3308 = vpop.permute.xlu0 %3307
          %3309 = vrot.lane.b32.xlu0 %v1725, 64
          %v3310 = vpop.permute.xlu0 %3309
          %3319 = vmatprep.subr.bf16.mxu0 0
          %3320 = vmatpush1.bf16.msra.mxu0 %v3296
          %3321 = vmatprep.subr.bf16.mxu0 0
          %3322 = vmatpush1.bf16.msra.mxu0 %v3298
          %3323 = vmatprep.subr.bf16.mxu0 0
          %3324 = vmatpush1.bf16.msra.mxu0 %v3300
          %3325 = vmatprep.subr.bf16.mxu0 0
          %3326 = vmatpush1.bf16.msra.mxu0 %v3302
          %3327 = vmatprep.subr.bf16.mxu0 0
          %3328 = vmatpush1.bf16.msra.mxu0 %v3304
          %3329 = vmatprep.subr.bf16.mxu0 0
          %3330 = vmatpush1.bf16.msra.mxu0 %v3306
          %3331 = vmatprep.subr.bf16.mxu0 0
          %3332 = vmatpush1.bf16.msra.mxu0 %v3308
          %3333 = vmatprep.subr.bf16.mxu0 0
          %3334 = vmatpush1.bf16.msra.mxu0 %v3310
          %3335 = vmatprep.subr.bf16.mxu0 0
          %3336 = vmatpush1.bf16.msra.mxu0 0
          %3337 = vmatprep.subr.bf16.mxu0 0
          %3338 = vmatpush1.bf16.msra.mxu0 0
          %3339 = vmatprep.subr.bf16.mxu0 0
          %3340 = vmatpush1.bf16.msra.mxu0 0
          %3341 = vmatprep.subr.bf16.mxu0 0
          %3342 = vmatpush1.bf16.msra.mxu0 0
          %3343 = vmatprep.subr.bf16.mxu0 0
          %3344 = vmatpush1.bf16.msra.mxu0 0
          %3345 = vmatprep.subr.bf16.mxu0 0
          %3346 = vmatpush1.bf16.msra.mxu0 0
          %3347 = vmatprep.subr.bf16.mxu0 0
          %3348 = vmatpush1.bf16.msra.mxu0 0
          %3349 = vmatprep.subr.bf16.mxu0 0
          %3350 = vmatpush1.bf16.msra.mxu0 0
          %3351 = vmatprep.mubr.bf16.mxu0 0
          %3352 = vmatmul.mubr.bf16.gmra.mrb[0].mxu0 %v3279
          %v3353 = vpop.f32.mrb[0].mxu0
          %v3354 = vadd.f32 0.0, %v3353
          %v3355 = vpop.f32.mrb[0].mxu0
          %v3356 = vpop.f32.mrb[0].mxu0
          %v3357 = vadd.f32 0.0, %v3356
          %v3358 = vpop.f32.mrb[0].mxu0
          %3359 = vmatprep.mubr.bf16.mxu0 0
          %3360 = vmatmul.mubr.bf16.gmra.mrb[0].mxu0 %v3280
          %v3361 = vpop.f32.mrb[0].mxu0
          %v3362 = vadd.f32 0.0, %v3361
          %v3363 = vpop.f32.mrb[0].mxu0
          %v3364 = vpop.f32.mrb[0].mxu0
          %v3365 = vadd.f32 0.0, %v3364
          %v3366 = vpop.f32.mrb[0].mxu0
          %3367 = vmatprep.mubr.bf16.mxu0 0
          %3368 = vmatmul.mubr.bf16.gmra.mrb[0].mxu0 %v3281
          %v3369 = vpop.f32.mrb[0].mxu0
          %v3370 = vadd.f32 0.0, %v3369
          %v3371 = vpop.f32.mrb[0].mxu0
          %v3372 = vpop.f32.mrb[0].mxu0
          %v3373 = vadd.f32 0.0, %v3372
          %v3374 = vpop.f32.mrb[0].mxu0
          %3375 = vmatprep.mubr.bf16.mxu0 0
          %3376 = vmatmul.mubr.bf16.gmra.mrb[0].mxu0 %v3282
          %v3377 = vpop.f32.mrb[0].mxu0
          %v3378 = vadd.f32 0.0, %v3377
          %v3379 = vpop.f32.mrb[0].mxu0
          %v3380 = vpop.f32.mrb[0].mxu0
          %v3381 = vadd.f32 0.0, %v3380
          %v3382 = vpop.f32.mrb[0].mxu0
          %3383 = vmatprep.mubr.bf16.mxu0 0
          %3384 = vmatmul.mubr.bf16.gmra.mrb[0].mxu0 %v3283
          %v3385 = vpop.f32.mrb[0].mxu0
          %v3386 = vadd.f32 0.0, %v3385
          %v3387 = vpop.f32.mrb[0].mxu0
          %v3388 = vpop.f32.mrb[0].mxu0
          %v3389 = vadd.f32 0.0, %v3388
          %v3390 = vpop.f32.mrb[0].mxu0
          %3391 = vmatprep.mubr.bf16.mxu0 0
          %3392 = vmatmul.mubr.bf16.gmra.mrb[0].mxu0 %v3284
          %v3393 = vpop.f32.mrb[0].mxu0
          %v3394 = vadd.f32 0.0, %v3393
          %v3395 = vpop.f32.mrb[0].mxu0
          %v3396 = vpop.f32.mrb[0].mxu0
          %v3397 = vadd.f32 0.0, %v3396
          %v3398 = vpop.f32.mrb[0].mxu0
          %3399 = vmatprep.mubr.bf16.mxu0 0
          %3400 = vmatmul.mubr.bf16.gmra.mrb[0].mxu0 %v3285
          %v3401 = vpop.f32.mrb[0].mxu0
          %v3402 = vadd.f32 0.0, %v3401
          %v3403 = vpop.f32.mrb[0].mxu0
          %v3404 = vpop.f32.mrb[0].mxu0
          %v3405 = vadd.f32 0.0, %v3404
          %v3406 = vpop.f32.mrb[0].mxu0
          %3407 = vmatprep.mubr.bf16.mxu0 0
          %3408 = vmatmul.mubr.bf16.gmra.mrb[0].mxu0 %v3286
          %v3409 = vpop.f32.mrb[0].mxu0
          %v3410 = vadd.f32 0.0, %v3409
          %v3411 = vpop.f32.mrb[0].mxu0
          %v3412 = vpop.f32.mrb[0].mxu0
          %v3413 = vadd.f32 0.0, %v3412
          %v3414 = vpop.f32.mrb[0].mxu0
          %3415 = vdwg.mxu0
          %v3416 = vmul.f32 %v3354, %v3263
          %v3417 = vmul.f32 %v3357, %v3264
          %v3418 = vmul.f32 %v3362, %v3265
          %v3419 = vmul.f32 %v3365, %v3266
          %v3420 = vmul.f32 %v3370, %v3267
          %v3421 = vmul.f32 %v3373, %v3268
          %v3422 = vmul.f32 %v3378, %v3269
          %v3423 = vmul.f32 %v3381, %v3270
          %v3424 = vmul.f32 %v3386, %v3271
          %v3425 = vmul.f32 %v3389, %v3272
          %v3426 = vmul.f32 %v3394, %v3273
          %v3427 = vmul.f32 %v3397, %v3274
          %v3428 = vmul.f32 %v3402, %v3275
          %v3429 = vmul.f32 %v3405, %v3276
          %v3430 = vmul.f32 %v3410, %v3277
          %v3431 = vmul.f32 %v3413, %v3278
          %v3432 = vld [vmem:[#allocation3] sm:$0xff]
          %v3433 = vld [vmem:[#allocation3 + $0x8] sm:$0xff]
          %v3434 = vld [vmem:[#allocation3 + $0x10] sm:$0xff]
          %v3435 = vld [vmem:[#allocation3 + $0x18] sm:$0xff]
          %v3436 = vld [vmem:[#allocation3 + $0x20] sm:$0xff]
          %v3437 = vld [vmem:[#allocation3 + $0x28] sm:$0xff]
          %v3438 = vld [vmem:[#allocation3 + $0x30] sm:$0xff]
          %v3439 = vld [vmem:[#allocation3 + $0x38] sm:$0xff]
          %v3440 = vld [vmem:[#allocation3 + $0x40] sm:$0xff]
          %v3441 = vld [vmem:[#allocation3 + $0x48] sm:$0xff]
          %v3442 = vld [vmem:[#allocation3 + $0x50] sm:$0xff]
          %v3443 = vld [vmem:[#allocation3 + $0x58] sm:$0xff]
          %v3444 = vld [vmem:[#allocation3 + $0x60] sm:$0xff]
          %v3445 = vld [vmem:[#allocation3 + $0x68] sm:$0xff]
          %v3446 = vld [vmem:[#allocation3 + $0x70] sm:$0xff]
          %v3447 = vld [vmem:[#allocation3 + $0x78] sm:$0xff]
          %v3448 = vadd.f32 %v3432, %v3416
          %v3449 = vadd.f32 %v3433, %v3417
          %v3450 = vadd.f32 %v3434, %v3418
          %v3451 = vadd.f32 %v3435, %v3419
          %v3452 = vadd.f32 %v3436, %v3420
          %v3453 = vadd.f32 %v3437, %v3421
          %v3454 = vadd.f32 %v3438, %v3422
          %v3455 = vadd.f32 %v3439, %v3423
          %v3456 = vadd.f32 %v3440, %v3424
          %v3457 = vadd.f32 %v3441, %v3425
          %v3458 = vadd.f32 %v3442, %v3426
          %v3459 = vadd.f32 %v3443, %v3427
          %v3460 = vadd.f32 %v3444, %v3428
          %v3461 = vadd.f32 %v3445, %v3429
          %v3462 = vadd.f32 %v3446, %v3430
          %v3463 = vadd.f32 %v3447, %v3431
          %3464 = vst.msk [vmem:[#allocation3] sm:$0xff] %vm683, %v3448
          %3465 = vst.msk [vmem:[#allocation3 + $0x8] sm:$0xff] %vm683, %v3449
          %3466 = vst.msk [vmem:[#allocation3 + $0x10] sm:$0xff] %vm683, %v3450
          %3467 = vst.msk [vmem:[#allocation3 + $0x18] sm:$0xff] %vm683, %v3451
          %3468 = vst.msk [vmem:[#allocation3 + $0x20] sm:$0xff] %vm683, %v3452
          %3469 = vst.msk [vmem:[#allocation3 + $0x28] sm:$0xff] %vm683, %v3453
          %3470 = vst.msk [vmem:[#allocation3 + $0x30] sm:$0xff] %vm683, %v3454
          %3471 = vst.msk [vmem:[#allocation3 + $0x38] sm:$0xff] %vm683, %v3455
          %3472 = vst.msk [vmem:[#allocation3 + $0x40] sm:$0xff] %vm683, %v3456
          %3473 = vst.msk [vmem:[#allocation3 + $0x48] sm:$0xff] %vm683, %v3457
          %3474 = vst.msk [vmem:[#allocation3 + $0x50] sm:$0xff] %vm683, %v3458
          %3475 = vst.msk [vmem:[#allocation3 + $0x58] sm:$0xff] %vm683, %v3459
          %3476 = vst.msk [vmem:[#allocation3 + $0x60] sm:$0xff] %vm683, %v3460
          %3477 = vst.msk [vmem:[#allocation3 + $0x68] sm:$0xff] %vm683, %v3461
          %3478 = vst.msk [vmem:[#allocation3 + $0x70] sm:$0xff] %vm683, %v3462
          %3479 = vst.msk [vmem:[#allocation3 + $0x78] sm:$0xff] %vm683, %v3463
          %v3481 = vsel %vm683, %v1666, 0
          %v3484 = vsel %vm683, %v1670, 0
          %v3487 = vsel %vm683, %v1674, 0
          %v3490 = vsel %vm683, %v1678, 0
          %v3493 = vsel %vm683, %v1682, 0
          %v3496 = vsel %vm683, %v1686, 0
          %v3499 = vsel %vm683, %v1690, 0
          %v3502 = vsel %vm683, %v1694, 0
          %3504 = vmatprep.subr.bf16.mxu0 0
          %3505 = vmatpush1.bf16.xpose.msra.mxu0 %v1091
          %3506 = vmatprep.subr.bf16.mxu0 0
          %3507 = vmatpush1.bf16.xpose.msra.mxu0 %v1094
          %3508 = vmatprep.subr.bf16.mxu0 0
          %3509 = vmatpush1.bf16.xpose.msra.mxu0 %v1097
          %3510 = vmatprep.subr.bf16.mxu0 0
          %3511 = vmatpush1.bf16.xpose.msra.mxu0 %v1100
          %3512 = vmatprep.subr.bf16.mxu0 0
          %3513 = vmatpush1.bf16.xpose.msra.mxu0 %v1103
          %3514 = vmatprep.subr.bf16.mxu0 0
          %3515 = vmatpush1.bf16.xpose.msra.mxu0 %v1106
          %3516 = vmatprep.subr.bf16.mxu0 0
          %3517 = vmatpush1.bf16.xpose.msra.mxu0 %v1109
          %3518 = vmatprep.subr.bf16.mxu0 0
          %3519 = vmatpush1.bf16.xpose.msra.mxu0 %v1112
          %3520 = vmatprep.subr.bf16.mxu0 0
          %3521 = vmatpush1.bf16.xpose.msra.mxu0 0
          %3522 = vmatprep.subr.bf16.mxu0 0
          %3523 = vmatpush1.bf16.xpose.msra.mxu0 0
          %3524 = vmatprep.subr.bf16.mxu0 0
          %3525 = vmatpush1.bf16.xpose.msra.mxu0 0
          %3526 = vmatprep.subr.bf16.mxu0 0
          %3527 = vmatpush1.bf16.xpose.msra.mxu0 0
          %3528 = vmatprep.subr.bf16.mxu0 0
          %3529 = vmatpush1.bf16.xpose.msra.mxu0 0
          %3530 = vmatprep.subr.bf16.mxu0 0
          %3531 = vmatpush1.bf16.xpose.msra.mxu0 0
          %3532 = vmatprep.subr.bf16.mxu0 0
          %3533 = vmatpush1.bf16.xpose.msra.mxu0 0
          %3534 = vmatprep.subr.bf16.mxu0 0
          %3535 = vmatpush1.bf16.xpose.msra.mxu0 0
          %3536 = vmatprep.mubr.bf16.mxu0 0
          %3537 = vmatmul.mubr.bf16.gmra.mrb[0].mxu0 %v3481
          %v3538 = vpop.f32.mrb[0].mxu0
          %v3539 = vadd.f32 %v703, %v3538
          %v3540 = vpop.f32.mrb[0].mxu0
          %v3541 = vpop.f32.mrb[0].mxu0
          %v3542 = vadd.f32 %v703, %v3541
          %v3543 = vpop.f32.mrb[0].mxu0
          %3544 = vmatprep.mubr.bf16.mxu0 0
          %3545 = vmatmul.mubr.bf16.gmra.mrb[0].mxu0 %v3484
          %v3546 = vpop.f32.mrb[0].mxu0
          %v3547 = vadd.f32 %v703, %v3546
          %v3548 = vpop.f32.mrb[0].mxu0
          %v3549 = vpop.f32.mrb[0].mxu0
          %v3550 = vadd.f32 %v703, %v3549
          %v3551 = vpop.f32.mrb[0].mxu0
          %3552 = vmatprep.mubr.bf16.mxu0 0
          %3553 = vmatmul.mubr.bf16.gmra.mrb[0].mxu0 %v3487
          %v3554 = vpop.f32.mrb[0].mxu0
          %v3555 = vadd.f32 %v703, %v3554
          %v3556 = vpop.f32.mrb[0].mxu0
          %v3557 = vpop.f32.mrb[0].mxu0
          %v3558 = vadd.f32 %v703, %v3557
          %v3559 = vpop.f32.mrb[0].mxu0
          %3560 = vmatprep.mubr.bf16.mxu0 0
          %3561 = vmatmul.mubr.bf16.gmra.mrb[0].mxu0 %v3490
          %v3562 = vpop.f32.mrb[0].mxu0
          %v3563 = vadd.f32 %v703, %v3562
          %v3564 = vpop.f32.mrb[0].mxu0
          %v3565 = vpop.f32.mrb[0].mxu0
          %v3566 = vadd.f32 %v703, %v3565
          %v3567 = vpop.f32.mrb[0].mxu0
          %3568 = vmatprep.mubr.bf16.mxu0 0
          %3569 = vmatmul.mubr.bf16.gmra.mrb[0].mxu0 %v3493
          %v3570 = vpop.f32.mrb[0].mxu0
          %v3571 = vadd.f32 %v703, %v3570
          %v3572 = vpop.f32.mrb[0].mxu0
          %v3573 = vpop.f32.mrb[0].mxu0
          %v3574 = vadd.f32 %v703, %v3573
          %v3575 = vpop.f32.mrb[0].mxu0
          %3576 = vmatprep.mubr.bf16.mxu0 0
          %3577 = vmatmul.mubr.bf16.gmra.mrb[0].mxu0 %v3496
          %v3578 = vpop.f32.mrb[0].mxu0
          %v3579 = vadd.f32 %v703, %v3578
          %v3580 = vpop.f32.mrb[0].mxu0
          %v3581 = vpop.f32.mrb[0].mxu0
          %v3582 = vadd.f32 %v703, %v3581
          %v3583 = vpop.f32.mrb[0].mxu0
          %3584 = vmatprep.mubr.bf16.mxu0 0
          %3585 = vmatmul.mubr.bf16.gmra.mrb[0].mxu0 %v3499
          %v3586 = vpop.f32.mrb[0].mxu0
          %v3587 = vadd.f32 %v703, %v3586
          %v3588 = vpop.f32.mrb[0].mxu0
          %v3589 = vpop.f32.mrb[0].mxu0
          %v3590 = vadd.f32 %v703, %v3589
          %v3591 = vpop.f32.mrb[0].mxu0
          %3592 = vmatprep.mubr.bf16.mxu0 0
          %3593 = vmatmul.mubr.bf16.gmra.mrb[0].mxu0 %v3502
          %v3594 = vpop.f32.mrb[0].mxu0
          %v3595 = vadd.f32 %v703, %v3594
          %v3596 = vpop.f32.mrb[0].mxu0
          %v3597 = vpop.f32.mrb[0].mxu0
          %v3598 = vadd.f32 %v703, %v3597
          %v3599 = vpop.f32.mrb[0].mxu0
          %3600 = vdwg.mxu0
          %3601 = vmax.xlane.f32.xlu0 %v3539
          %v3602 = vpop.xlane.xlu0 %3601
          %3603 = vmax.xlane.f32.xlu0 %v3542
          %v3604 = vpop.xlane.xlu0 %3603
          %3605 = vmax.xlane.f32.xlu0 %v3547
          %v3606 = vpop.xlane.xlu0 %3605
          %3607 = vmax.xlane.f32.xlu0 %v3550
          %v3608 = vpop.xlane.xlu0 %3607
          %3609 = vmax.xlane.f32.xlu0 %v3555
          %v3610 = vpop.xlane.xlu0 %3609
          %3611 = vmax.xlane.f32.xlu0 %v3558
          %v3612 = vpop.xlane.xlu0 %3611
          %3613 = vmax.xlane.f32.xlu0 %v3563
          %v3614 = vpop.xlane.xlu0 %3613
          %3615 = vmax.xlane.f32.xlu0 %v3566
          %v3616 = vpop.xlane.xlu0 %3615
          %3617 = vmax.xlane.f32.xlu0 %v3571
          %v3618 = vpop.xlane.xlu0 %3617
          %3619 = vmax.xlane.f32.xlu0 %v3574
          %v3620 = vpop.xlane.xlu0 %3619
          %3621 = vmax.xlane.f32.xlu0 %v3579
          %v3622 = vpop.xlane.xlu0 %3621
          %3623 = vmax.xlane.f32.xlu0 %v3582
          %v3624 = vpop.xlane.xlu0 %3623
          %3625 = vmax.xlane.f32.xlu0 %v3587
          %v3626 = vpop.xlane.xlu0 %3625
          %3627 = vmax.xlane.f32.xlu0 %v3590
          %v3628 = vpop.xlane.xlu0 %3627
          %3629 = vmax.xlane.f32.xlu0 %v3595
          %v3630 = vpop.xlane.xlu0 %3629
          %3631 = vmax.xlane.f32.xlu0 %v3598
          %v3632 = vpop.xlane.xlu0 %3631
          %v3633 = vsub.f32 %v3539, %v3602
          %v3634 = vsub.f32 %v3542, %v3604
          %v3635 = vsub.f32 %v3547, %v3606
          %v3636 = vsub.f32 %v3550, %v3608
          %v3637 = vsub.f32 %v3555, %v3610
          %v3638 = vsub.f32 %v3558, %v3612
          %v3639 = vsub.f32 %v3563, %v3614
          %v3640 = vsub.f32 %v3566, %v3616
          %v3641 = vsub.f32 %v3571, %v3618
          %v3642 = vsub.f32 %v3574, %v3620
          %v3643 = vsub.f32 %v3579, %v3622
          %v3644 = vsub.f32 %v3582, %v3624
          %v3645 = vsub.f32 %v3587, %v3626
          %v3646 = vsub.f32 %v3590, %v3628
          %v3647 = vsub.f32 %v3595, %v3630
          %v3648 = vsub.f32 %v3598, %v3632
          %v3649 = vmul.f32 %v3633, 1.442695
          %v3650 = vpow.pop %v3649
          %v3651 = vmul.f32 %v3634, 1.442695
          %v3652 = vpow.pop %v3651
          %v3653 = vmul.f32 %v3635, 1.442695
          %v3654 = vpow.pop %v3653
          %v3655 = vmul.f32 %v3636, 1.442695
          %v3656 = vpow.pop %v3655
          %v3657 = vmul.f32 %v3637, 1.442695
          %v3658 = vpow.pop %v3657
          %v3659 = vmul.f32 %v3638, 1.442695
          %v3660 = vpow.pop %v3659
          %v3661 = vmul.f32 %v3639, 1.442695
          %v3662 = vpow.pop %v3661
          %v3663 = vmul.f32 %v3640, 1.442695
          %v3664 = vpow.pop %v3663
          %v3665 = vmul.f32 %v3641, 1.442695
          %v3666 = vpow.pop %v3665
          %v3667 = vmul.f32 %v3642, 1.442695
          %v3668 = vpow.pop %v3667
          %v3669 = vmul.f32 %v3643, 1.442695
          %v3670 = vpow.pop %v3669
          %v3671 = vmul.f32 %v3644, 1.442695
          %v3672 = vpow.pop %v3671
          %v3673 = vmul.f32 %v3645, 1.442695
          %v3674 = vpow.pop %v3673
          %v3675 = vmul.f32 %v3646, 1.442695
          %v3676 = vpow.pop %v3675
          %v3677 = vmul.f32 %v3647, 1.442695
          %v3678 = vpow.pop %v3677
          %v3679 = vmul.f32 %v3648, 1.442695
          %v3680 = vpow.pop %v3679
          %3681 = vadd.xlane.f32.xlu0 %v3650
          %v3682 = vpop.xlane.xlu0 %3681
          %3683 = vadd.xlane.f32.xlu0 %v3652
          %v3684 = vpop.xlane.xlu0 %3683
          %3685 = vadd.xlane.f32.xlu0 %v3654
          %v3686 = vpop.xlane.xlu0 %3685
          %3687 = vadd.xlane.f32.xlu0 %v3656
          %v3688 = vpop.xlane.xlu0 %3687
          %3689 = vadd.xlane.f32.xlu0 %v3658
          %v3690 = vpop.xlane.xlu0 %3689
          %3691 = vadd.xlane.f32.xlu0 %v3660
          %v3692 = vpop.xlane.xlu0 %3691
          %3693 = vadd.xlane.f32.xlu0 %v3662
          %v3694 = vpop.xlane.xlu0 %3693
          %3695 = vadd.xlane.f32.xlu0 %v3664
          %v3696 = vpop.xlane.xlu0 %3695
          %3697 = vadd.xlane.f32.xlu0 %v3666
          %v3698 = vpop.xlane.xlu0 %3697
          %3699 = vadd.xlane.f32.xlu0 %v3668
          %v3700 = vpop.xlane.xlu0 %3699
          %3701 = vadd.xlane.f32.xlu0 %v3670
          %v3702 = vpop.xlane.xlu0 %3701
          %3703 = vadd.xlane.f32.xlu0 %v3672
          %v3704 = vpop.xlane.xlu0 %3703
          %3705 = vadd.xlane.f32.xlu0 %v3674
          %v3706 = vpop.xlane.xlu0 %3705
          %3707 = vadd.xlane.f32.xlu0 %v3676
          %v3708 = vpop.xlane.xlu0 %3707
          %3709 = vadd.xlane.f32.xlu0 %v3678
          %v3710 = vpop.xlane.xlu0 %3709
          %3711 = vadd.xlane.f32.xlu0 %v3680
          %v3712 = vpop.xlane.xlu0 %3711
          %v3713 = vrcp.pop %v3682
          %v3714 = vrcp.pop %v3684
          %v3715 = vrcp.pop %v3686
          %v3716 = vrcp.pop %v3688
          %v3717 = vrcp.pop %v3690
          %v3718 = vrcp.pop %v3692
          %v3719 = vrcp.pop %v3694
          %v3720 = vrcp.pop %v3696
          %v3721 = vrcp.pop %v3698
          %v3722 = vrcp.pop %v3700
          %v3723 = vrcp.pop %v3702
          %v3724 = vrcp.pop %v3704
          %v3725 = vrcp.pop %v3706
          %v3726 = vrcp.pop %v3708
          %v3727 = vrcp.pop %v3710
          %v3728 = vrcp.pop %v3712
          %v3729 = vpack.c.bf16 %v3652, %v3650
          %v3730 = vpack.c.bf16 %v3656, %v3654
          %v3731 = vpack.c.bf16 %v3660, %v3658
          %v3732 = vpack.c.bf16 %v3664, %v3662
          %v3733 = vpack.c.bf16 %v3668, %v3666
          %v3734 = vpack.c.bf16 %v3672, %v3670
          %v3735 = vpack.c.bf16 %v3676, %v3674
          %v3736 = vpack.c.bf16 %v3680, %v3678
          %3737 = vmatprep.subr.bf16.mxu0 0
          %3738 = vmatpush1.bf16.msra.mxu0 %v1698
          %3739 = vmatprep.subr.bf16.mxu0 0
          %3740 = vmatpush1.bf16.msra.mxu0 %v1702
          %3741 = vmatprep.subr.bf16.mxu0 0
          %3742 = vmatpush1.bf16.msra.mxu0 %v1706
          %3743 = vmatprep.subr.bf16.mxu0 0
          %3744 = vmatpush1.bf16.msra.mxu0 %v1710
          %3745 = vmatprep.subr.bf16.mxu0 0
          %3746 = vmatpush1.bf16.msra.mxu0 %v1714
          %3747 = vmatprep.subr.bf16.mxu0 0
          %3748 = vmatpush1.bf16.msra.mxu0 %v1718
          %3749 = vmatprep.subr.bf16.mxu0 0
          %3750 = vmatpush1.bf16.msra.mxu0 %v1722
          %3751 = vmatprep.subr.bf16.mxu0 0
          %3752 = vmatpush1.bf16.msra.mxu0 %v1726
          %3753 = vmatprep.subr.bf16.mxu0 0
          %3754 = vmatpush1.bf16.msra.mxu0 0
          %3755 = vmatprep.subr.bf16.mxu0 0
          %3756 = vmatpush1.bf16.msra.mxu0 0
          %3757 = vmatprep.subr.bf16.mxu0 0
          %3758 = vmatpush1.bf16.msra.mxu0 0
          %3759 = vmatprep.subr.bf16.mxu0 0
          %3760 = vmatpush1.bf16.msra.mxu0 0
          %3761 = vmatprep.subr.bf16.mxu0 0
          %3762 = vmatpush1.bf16.msra.mxu0 0
          %3763 = vmatprep.subr.bf16.mxu0 0
          %3764 = vmatpush1.bf16.msra.mxu0 0
          %3765 = vmatprep.subr.bf16.mxu0 0
          %3766 = vmatpush1.bf16.msra.mxu0 0
          %3767 = vmatprep.subr.bf16.mxu0 0
          %3768 = vmatpush1.bf16.msra.mxu0 0
          %3769 = vmatprep.mubr.bf16.mxu0 0
          %3770 = vmatmul.mubr.bf16.gmra.mrb[0].mxu0 %v3729
          %v3771 = vpop.f32.mrb[0].mxu0
          %v3772 = vadd.f32 0.0, %v3771
          %v3773 = vpop.f32.mrb[0].mxu0
          %v3774 = vpop.f32.mrb[0].mxu0
          %v3775 = vadd.f32 0.0, %v3774
          %v3776 = vpop.f32.mrb[0].mxu0
          %3777 = vmatprep.mubr.bf16.mxu0 0
          %3778 = vmatmul.mubr.bf16.gmra.mrb[0].mxu0 %v3730
          %v3779 = vpop.f32.mrb[0].mxu0
          %v3780 = vadd.f32 0.0, %v3779
          %v3781 = vpop.f32.mrb[0].mxu0
          %v3782 = vpop.f32.mrb[0].mxu0
          %v3783 = vadd.f32 0.0, %v3782
          %v3784 = vpop.f32.mrb[0].mxu0
          %3785 = vmatprep.mubr.bf16.mxu0 0
          %3786 = vmatmul.mubr.bf16.gmra.mrb[0].mxu0 %v3731
          %v3787 = vpop.f32.mrb[0].mxu0
          %v3788 = vadd.f32 0.0, %v3787
          %v3789 = vpop.f32.mrb[0].mxu0
          %v3790 = vpop.f32.mrb[0].mxu0
          %v3791 = vadd.f32 0.0, %v3790
          %v3792 = vpop.f32.mrb[0].mxu0
          %3793 = vmatprep.mubr.bf16.mxu0 0
          %3794 = vmatmul.mubr.bf16.gmra.mrb[0].mxu0 %v3732
          %v3795 = vpop.f32.mrb[0].mxu0
          %v3796 = vadd.f32 0.0, %v3795
          %v3797 = vpop.f32.mrb[0].mxu0
          %v3798 = vpop.f32.mrb[0].mxu0
          %v3799 = vadd.f32 0.0, %v3798
          %v3800 = vpop.f32.mrb[0].mxu0
          %3801 = vmatprep.mubr.bf16.mxu0 0
          %3802 = vmatmul.mubr.bf16.gmra.mrb[0].mxu0 %v3733
          %v3803 = vpop.f32.mrb[0].mxu0
          %v3804 = vadd.f32 0.0, %v3803
          %v3805 = vpop.f32.mrb[0].mxu0
          %v3806 = vpop.f32.mrb[0].mxu0
          %v3807 = vadd.f32 0.0, %v3806
          %v3808 = vpop.f32.mrb[0].mxu0
          %3809 = vmatprep.mubr.bf16.mxu0 0
          %3810 = vmatmul.mubr.bf16.gmra.mrb[0].mxu0 %v3734
          %v3811 = vpop.f32.mrb[0].mxu0
          %v3812 = vadd.f32 0.0, %v3811
          %v3813 = vpop.f32.mrb[0].mxu0
          %v3814 = vpop.f32.mrb[0].mxu0
          %v3815 = vadd.f32 0.0, %v3814
          %v3816 = vpop.f32.mrb[0].mxu0
          %3817 = vmatprep.mubr.bf16.mxu0 0
          %3818 = vmatmul.mubr.bf16.gmra.mrb[0].mxu0 %v3735
          %v3819 = vpop.f32.mrb[0].mxu0
          %v3820 = vadd.f32 0.0, %v3819
          %v3821 = vpop.f32.mrb[0].mxu0
          %v3822 = vpop.f32.mrb[0].mxu0
          %v3823 = vadd.f32 0.0, %v3822
          %v3824 = vpop.f32.mrb[0].mxu0
          %3825 = vmatprep.mubr.bf16.mxu0 0
          %3826 = vmatmul.mubr.bf16.gmra.mrb[0].mxu0 %v3736
          %v3827 = vpop.f32.mrb[0].mxu0
          %v3828 = vadd.f32 0.0, %v3827
          %v3829 = vpop.f32.mrb[0].mxu0
          %v3830 = vpop.f32.mrb[0].mxu0
          %v3831 = vadd.f32 0.0, %v3830
          %v3832 = vpop.f32.mrb[0].mxu0
          %3833 = vdwg.mxu0
          %v3834 = vmul.f32 %v3772, %v3713
          %v3835 = vmul.f32 %v3775, %v3714
          %v3836 = vmul.f32 %v3780, %v3715
          %v3837 = vmul.f32 %v3783, %v3716
          %v3838 = vmul.f32 %v3788, %v3717
          %v3839 = vmul.f32 %v3791, %v3718
          %v3840 = vmul.f32 %v3796, %v3719
          %v3841 = vmul.f32 %v3799, %v3720
          %v3842 = vmul.f32 %v3804, %v3721
          %v3843 = vmul.f32 %v3807, %v3722
          %v3844 = vmul.f32 %v3812, %v3723
          %v3845 = vmul.f32 %v3815, %v3724
          %v3846 = vmul.f32 %v3820, %v3725
          %v3847 = vmul.f32 %v3823, %v3726
          %v3848 = vmul.f32 %v3828, %v3727
          %v3849 = vmul.f32 %v3831, %v3728
          %v3850 = vld [vmem:[#allocation3] sm:$0xff]
          %v3851 = vld [vmem:[#allocation3 + $0x8] sm:$0xff]
          %v3852 = vld [vmem:[#allocation3 + $0x10] sm:$0xff]
          %v3853 = vld [vmem:[#allocation3 + $0x18] sm:$0xff]
          %v3854 = vld [vmem:[#allocation3 + $0x20] sm:$0xff]
          %v3855 = vld [vmem:[#allocation3 + $0x28] sm:$0xff]
          %v3856 = vld [vmem:[#allocation3 + $0x30] sm:$0xff]
          %v3857 = vld [vmem:[#allocation3 + $0x38] sm:$0xff]
          %v3858 = vld [vmem:[#allocation3 + $0x40] sm:$0xff]
          %v3859 = vld [vmem:[#allocation3 + $0x48] sm:$0xff]
          %v3860 = vld [vmem:[#allocation3 + $0x50] sm:$0xff]
          %v3861 = vld [vmem:[#allocation3 + $0x58] sm:$0xff]
          %v3862 = vld [vmem:[#allocation3 + $0x60] sm:$0xff]
          %v3863 = vld [vmem:[#allocation3 + $0x68] sm:$0xff]
          %v3864 = vld [vmem:[#allocation3 + $0x70] sm:$0xff]
          %v3865 = vld [vmem:[#allocation3 + $0x78] sm:$0xff]
          %v3866 = vadd.f32 %v3850, %v3834
          %v3867 = vadd.f32 %v3851, %v3835
          %v3868 = vadd.f32 %v3852, %v3836
          %v3869 = vadd.f32 %v3853, %v3837
          %v3870 = vadd.f32 %v3854, %v3838
          %v3871 = vadd.f32 %v3855, %v3839
          %v3872 = vadd.f32 %v3856, %v3840
          %v3873 = vadd.f32 %v3857, %v3841
          %v3874 = vadd.f32 %v3858, %v3842
          %v3875 = vadd.f32 %v3859, %v3843
          %v3876 = vadd.f32 %v3860, %v3844
          %v3877 = vadd.f32 %v3861, %v3845
          %v3878 = vadd.f32 %v3862, %v3846
          %v3879 = vadd.f32 %v3863, %v3847
          %v3880 = vadd.f32 %v3864, %v3848
          %v3881 = vadd.f32 %v3865, %v3849
          %3882 = vst.msk [vmem:[#allocation3] sm:$0xff] %vm683, %v3866
          %3883 = vst.msk [vmem:[#allocation3 + $0x8] sm:$0xff] %vm683, %v3867
          %3884 = vst.msk [vmem:[#allocation3 + $0x10] sm:$0xff] %vm683, %v3868
          %3885 = vst.msk [vmem:[#allocation3 + $0x18] sm:$0xff] %vm683, %v3869
          %3886 = vst.msk [vmem:[#allocation3 + $0x20] sm:$0xff] %vm683, %v3870
          %3887 = vst.msk [vmem:[#allocation3 + $0x28] sm:$0xff] %vm683, %v3871
          %3888 = vst.msk [vmem:[#allocation3 + $0x30] sm:$0xff] %vm683, %v3872
          %3889 = vst.msk [vmem:[#allocation3 + $0x38] sm:$0xff] %vm683, %v3873
          %3890 = vst.msk [vmem:[#allocation3 + $0x40] sm:$0xff] %vm683, %v3874
          %3891 = vst.msk [vmem:[#allocation3 + $0x48] sm:$0xff] %vm683, %v3875
          %3892 = vst.msk [vmem:[#allocation3 + $0x50] sm:$0xff] %vm683, %v3876
          %3893 = vst.msk [vmem:[#allocation3 + $0x58] sm:$0xff] %vm683, %v3877
          %3894 = vst.msk [vmem:[#allocation3 + $0x60] sm:$0xff] %vm683, %v3878
          %3895 = vst.msk [vmem:[#allocation3 + $0x68] sm:$0xff] %vm683, %v3879
          %3896 = vst.msk [vmem:[#allocation3 + $0x70] sm:$0xff] %vm683, %v3880
          %3897 = vst.msk [vmem:[#allocation3 + $0x78] sm:$0xff] %vm683, %v3881
          %3906 = vrot.lane.b32.xlu0 %v1666, 64
          %v3907 = vpop.permute.xlu0 %3906
          %3908 = vrot.lane.b32.xlu0 %v1670, 64
          %v3909 = vpop.permute.xlu0 %3908
          %3910 = vrot.lane.b32.xlu0 %v1674, 64
          %v3911 = vpop.permute.xlu0 %3910
          %3912 = vrot.lane.b32.xlu0 %v1678, 64
          %v3913 = vpop.permute.xlu0 %3912
          %3914 = vrot.lane.b32.xlu0 %v1682, 64
          %v3915 = vpop.permute.xlu0 %3914
          %3916 = vrot.lane.b32.xlu0 %v1686, 64
          %v3917 = vpop.permute.xlu0 %3916
          %3918 = vrot.lane.b32.xlu0 %v1690, 64
          %v3919 = vpop.permute.xlu0 %3918
          %3920 = vrot.lane.b32.xlu0 %v1694, 64
          %v3921 = vpop.permute.xlu0 %3920
          %v3923 = vsel %vm683, %v3907, 0
          %v3926 = vsel %vm683, %v3909, 0
          %v3929 = vsel %vm683, %v3911, 0
          %v3932 = vsel %vm683, %v3913, 0
          %v3935 = vsel %vm683, %v3915, 0
          %v3938 = vsel %vm683, %v3917, 0
          %v3941 = vsel %vm683, %v3919, 0
          %v3944 = vsel %vm683, %v3921, 0
          %3946 = vmatprep.subr.bf16.mxu0 0
          %3947 = vmatpush1.bf16.xpose.msra.mxu0 %v1091
          %3948 = vmatprep.subr.bf16.mxu0 0
          %3949 = vmatpush1.bf16.xpose.msra.mxu0 %v1094
          %3950 = vmatprep.subr.bf16.mxu0 0
          %3951 = vmatpush1.bf16.xpose.msra.mxu0 %v1097
          %3952 = vmatprep.subr.bf16.mxu0 0
          %3953 = vmatpush1.bf16.xpose.msra.mxu0 %v1100
          %3954 = vmatprep.subr.bf16.mxu0 0
          %3955 = vmatpush1.bf16.xpose.msra.mxu0 %v1103
          %3956 = vmatprep.subr.bf16.mxu0 0
          %3957 = vmatpush1.bf16.xpose.msra.mxu0 %v1106
          %3958 = vmatprep.subr.bf16.mxu0 0
          %3959 = vmatpush1.bf16.xpose.msra.mxu0 %v1109
          %3960 = vmatprep.subr.bf16.mxu0 0
          %3961 = vmatpush1.bf16.xpose.msra.mxu0 %v1112
          %3962 = vmatprep.subr.bf16.mxu0 0
          %3963 = vmatpush1.bf16.xpose.msra.mxu0 0
          %3964 = vmatprep.subr.bf16.mxu0 0
          %3965 = vmatpush1.bf16.xpose.msra.mxu0 0
          %3966 = vmatprep.subr.bf16.mxu0 0
          %3967 = vmatpush1.bf16.xpose.msra.mxu0 0
          %3968 = vmatprep.subr.bf16.mxu0 0
          %3969 = vmatpush1.bf16.xpose.msra.mxu0 0
          %3970 = vmatprep.subr.bf16.mxu0 0
          %3971 = vmatpush1.bf16.xpose.msra.mxu0 0
          %3972 = vmatprep.subr.bf16.mxu0 0
          %3973 = vmatpush1.bf16.xpose.msra.mxu0 0
          %3974 = vmatprep.subr.bf16.mxu0 0
          %3975 = vmatpush1.bf16.xpose.msra.mxu0 0
          %3976 = vmatprep.subr.bf16.mxu0 0
          %3977 = vmatpush1.bf16.xpose.msra.mxu0 0
          %3978 = vmatprep.mubr.bf16.mxu0 0
          %3979 = vmatmul.mubr.bf16.gmra.mrb[0].mxu0 %v3923
          %v3980 = vpop.f32.mrb[0].mxu0
          %v3981 = vadd.f32 %v703, %v3980
          %v3982 = vpop.f32.mrb[0].mxu0
          %v3983 = vpop.f32.mrb[0].mxu0
          %v3984 = vadd.f32 %v703, %v3983
          %v3985 = vpop.f32.mrb[0].mxu0
          %3986 = vmatprep.mubr.bf16.mxu0 0
          %3987 = vmatmul.mubr.bf16.gmra.mrb[0].mxu0 %v3926
          %v3988 = vpop.f32.mrb[0].mxu0
          %v3989 = vadd.f32 %v703, %v3988
          %v3990 = vpop.f32.mrb[0].mxu0
          %v3991 = vpop.f32.mrb[0].mxu0
          %v3992 = vadd.f32 %v703, %v3991
          %v3993 = vpop.f32.mrb[0].mxu0
          %3994 = vmatprep.mubr.bf16.mxu0 0
          %3995 = vmatmul.mubr.bf16.gmra.mrb[0].mxu0 %v3929
          %v3996 = vpop.f32.mrb[0].mxu0
          %v3997 = vadd.f32 %v703, %v3996
          %v3998 = vpop.f32.mrb[0].mxu0
          %v3999 = vpop.f32.mrb[0].mxu0
          %v4000 = vadd.f32 %v703, %v3999
          %v4001 = vpop.f32.mrb[0].mxu0
          %4002 = vmatprep.mubr.bf16.mxu0 0
          %4003 = vmatmul.mubr.bf16.gmra.mrb[0].mxu0 %v3932
          %v4004 = vpop.f32.mrb[0].mxu0
          %v4005 = vadd.f32 %v703, %v4004
          %v4006 = vpop.f32.mrb[0].mxu0
          %v4007 = vpop.f32.mrb[0].mxu0
          %v4008 = vadd.f32 %v703, %v4007
          %v4009 = vpop.f32.mrb[0].mxu0
          %4010 = vmatprep.mubr.bf16.mxu0 0
          %4011 = vmatmul.mubr.bf16.gmra.mrb[0].mxu0 %v3935
          %v4012 = vpop.f32.mrb[0].mxu0
          %v4013 = vadd.f32 %v703, %v4012
          %v4014 = vpop.f32.mrb[0].mxu0
          %v4015 = vpop.f32.mrb[0].mxu0
          %v4016 = vadd.f32 %v703, %v4015
          %v4017 = vpop.f32.mrb[0].mxu0
          %4018 = vmatprep.mubr.bf16.mxu0 0
          %4019 = vmatmul.mubr.bf16.gmra.mrb[0].mxu0 %v3938
          %v4020 = vpop.f32.mrb[0].mxu0
          %v4021 = vadd.f32 %v703, %v4020
          %v4022 = vpop.f32.mrb[0].mxu0
          %v4023 = vpop.f32.mrb[0].mxu0
          %v4024 = vadd.f32 %v703, %v4023
          %v4025 = vpop.f32.mrb[0].mxu0
          %4026 = vmatprep.mubr.bf16.mxu0 0
          %4027 = vmatmul.mubr.bf16.gmra.mrb[0].mxu0 %v3941
          %v4028 = vpop.f32.mrb[0].mxu0
          %v4029 = vadd.f32 %v703, %v4028
          %v4030 = vpop.f32.mrb[0].mxu0
          %v4031 = vpop.f32.mrb[0].mxu0
          %v4032 = vadd.f32 %v703, %v4031
          %v4033 = vpop.f32.mrb[0].mxu0
          %4034 = vmatprep.mubr.bf16.mxu0 0
          %4035 = vmatmul.mubr.bf16.gmra.mrb[0].mxu0 %v3944
          %v4036 = vpop.f32.mrb[0].mxu0
          %v4037 = vadd.f32 %v703, %v4036
          %v4038 = vpop.f32.mrb[0].mxu0
          %v4039 = vpop.f32.mrb[0].mxu0
          %v4040 = vadd.f32 %v703, %v4039
          %v4041 = vpop.f32.mrb[0].mxu0
          %4042 = vdwg.mxu0
          %4043 = vmax.xlane.f32.xlu0 %v3981
          %v4044 = vpop.xlane.xlu0 %4043
          %4045 = vmax.xlane.f32.xlu0 %v3984
          %v4046 = vpop.xlane.xlu0 %4045
          %4047 = vmax.xlane.f32.xlu0 %v3989
          %v4048 = vpop.xlane.xlu0 %4047
          %4049 = vmax.xlane.f32.xlu0 %v3992
          %v4050 = vpop.xlane.xlu0 %4049
          %4051 = vmax.xlane.f32.xlu0 %v3997
          %v4052 = vpop.xlane.xlu0 %4051
          %4053 = vmax.xlane.f32.xlu0 %v4000
          %v4054 = vpop.xlane.xlu0 %4053
          %4055 = vmax.xlane.f32.xlu0 %v4005
          %v4056 = vpop.xlane.xlu0 %4055
          %4057 = vmax.xlane.f32.xlu0 %v4008
          %v4058 = vpop.xlane.xlu0 %4057
          %4059 = vmax.xlane.f32.xlu0 %v4013
          %v4060 = vpop.xlane.xlu0 %4059
          %4061 = vmax.xlane.f32.xlu0 %v4016
          %v4062 = vpop.xlane.xlu0 %4061
          %4063 = vmax.xlane.f32.xlu0 %v4021
          %v4064 = vpop.xlane.xlu0 %4063
          %4065 = vmax.xlane.f32.xlu0 %v4024
          %v4066 = vpop.xlane.xlu0 %4065
          %4067 = vmax.xlane.f32.xlu0 %v4029
          %v4068 = vpop.xlane.xlu0 %4067
          %4069 = vmax.xlane.f32.xlu0 %v4032
          %v4070 = vpop.xlane.xlu0 %4069
          %4071 = vmax.xlane.f32.xlu0 %v4037
          %v4072 = vpop.xlane.xlu0 %4071
          %4073 = vmax.xlane.f32.xlu0 %v4040
          %v4074 = vpop.xlane.xlu0 %4073
          %v4075 = vsub.f32 %v3981, %v4044
          %v4076 = vsub.f32 %v3984, %v4046
          %v4077 = vsub.f32 %v3989, %v4048
          %v4078 = vsub.f32 %v3992, %v4050
          %v4079 = vsub.f32 %v3997, %v4052
          %v4080 = vsub.f32 %v4000, %v4054
          %v4081 = vsub.f32 %v4005, %v4056
          %v4082 = vsub.f32 %v4008, %v4058
          %v4083 = vsub.f32 %v4013, %v4060
          %v4084 = vsub.f32 %v4016, %v4062
          %v4085 = vsub.f32 %v4021, %v4064
          %v4086 = vsub.f32 %v4024, %v4066
          %v4087 = vsub.f32 %v4029, %v4068
          %v4088 = vsub.f32 %v4032, %v4070
          %v4089 = vsub.f32 %v4037, %v4072
          %v4090 = vsub.f32 %v4040, %v4074
          %v4091 = vmul.f32 %v4075, 1.442695
          %v4092 = vpow.pop %v4091
          %v4093 = vmul.f32 %v4076, 1.442695
          %v4094 = vpow.pop %v4093
          %v4095 = vmul.f32 %v4077, 1.442695
          %v4096 = vpow.pop %v4095
          %v4097 = vmul.f32 %v4078, 1.442695
          %v4098 = vpow.pop %v4097
          %v4099 = vmul.f32 %v4079, 1.442695
          %v4100 = vpow.pop %v4099
          %v4101 = vmul.f32 %v4080, 1.442695
          %v4102 = vpow.pop %v4101
          %v4103 = vmul.f32 %v4081, 1.442695
          %v4104 = vpow.pop %v4103
          %v4105 = vmul.f32 %v4082, 1.442695
          %v4106 = vpow.pop %v4105
          %v4107 = vmul.f32 %v4083, 1.442695
          %v4108 = vpow.pop %v4107
          %v4109 = vmul.f32 %v4084, 1.442695
          %v4110 = vpow.pop %v4109
          %v4111 = vmul.f32 %v4085, 1.442695
          %v4112 = vpow.pop %v4111
          %v4113 = vmul.f32 %v4086, 1.442695
          %v4114 = vpow.pop %v4113
          %v4115 = vmul.f32 %v4087, 1.442695
          %v4116 = vpow.pop %v4115
          %v4117 = vmul.f32 %v4088, 1.442695
          %v4118 = vpow.pop %v4117
          %v4119 = vmul.f32 %v4089, 1.442695
          %v4120 = vpow.pop %v4119
          %v4121 = vmul.f32 %v4090, 1.442695
          %v4122 = vpow.pop %v4121
          %4123 = vadd.xlane.f32.xlu0 %v4092
          %v4124 = vpop.xlane.xlu0 %4123
          %4125 = vadd.xlane.f32.xlu0 %v4094
          %v4126 = vpop.xlane.xlu0 %4125
          %4127 = vadd.xlane.f32.xlu0 %v4096
          %v4128 = vpop.xlane.xlu0 %4127
          %4129 = vadd.xlane.f32.xlu0 %v4098
          %v4130 = vpop.xlane.xlu0 %4129
          %4131 = vadd.xlane.f32.xlu0 %v4100
          %v4132 = vpop.xlane.xlu0 %4131
          %4133 = vadd.xlane.f32.xlu0 %v4102
          %v4134 = vpop.xlane.xlu0 %4133
          %4135 = vadd.xlane.f32.xlu0 %v4104
          %v4136 = vpop.xlane.xlu0 %4135
          %4137 = vadd.xlane.f32.xlu0 %v4106
          %v4138 = vpop.xlane.xlu0 %4137
          %4139 = vadd.xlane.f32.xlu0 %v4108
          %v4140 = vpop.xlane.xlu0 %4139
          %4141 = vadd.xlane.f32.xlu0 %v4110
          %v4142 = vpop.xlane.xlu0 %4141
          %4143 = vadd.xlane.f32.xlu0 %v4112
          %v4144 = vpop.xlane.xlu0 %4143
          %4145 = vadd.xlane.f32.xlu0 %v4114
          %v4146 = vpop.xlane.xlu0 %4145
          %4147 = vadd.xlane.f32.xlu0 %v4116
          %v4148 = vpop.xlane.xlu0 %4147
          %4149 = vadd.xlane.f32.xlu0 %v4118
          %v4150 = vpop.xlane.xlu0 %4149
          %4151 = vadd.xlane.f32.xlu0 %v4120
          %v4152 = vpop.xlane.xlu0 %4151
          %4153 = vadd.xlane.f32.xlu0 %v4122
          %v4154 = vpop.xlane.xlu0 %4153
          %v4155 = vrcp.pop %v4124
          %v4156 = vrcp.pop %v4126
          %v4157 = vrcp.pop %v4128
          %v4158 = vrcp.pop %v4130
          %v4159 = vrcp.pop %v4132
          %v4160 = vrcp.pop %v4134
          %v4161 = vrcp.pop %v4136
          %v4162 = vrcp.pop %v4138
          %v4163 = vrcp.pop %v4140
          %v4164 = vrcp.pop %v4142
          %v4165 = vrcp.pop %v4144
          %v4166 = vrcp.pop %v4146
          %v4167 = vrcp.pop %v4148
          %v4168 = vrcp.pop %v4150
          %v4169 = vrcp.pop %v4152
          %v4170 = vrcp.pop %v4154
          %v4171 = vpack.c.bf16 %v4094, %v4092
          %v4172 = vpack.c.bf16 %v4098, %v4096
          %v4173 = vpack.c.bf16 %v4102, %v4100
          %v4174 = vpack.c.bf16 %v4106, %v4104
          %v4175 = vpack.c.bf16 %v4110, %v4108
          %v4176 = vpack.c.bf16 %v4114, %v4112
          %v4177 = vpack.c.bf16 %v4118, %v4116
          %v4178 = vpack.c.bf16 %v4122, %v4120
          %4187 = vrot.lane.b32.xlu0 %v1698, 64
          %v4188 = vpop.permute.xlu0 %4187
          %4189 = vrot.lane.b32.xlu0 %v1702, 64
          %v4190 = vpop.permute.xlu0 %4189
          %4191 = vrot.lane.b32.xlu0 %v1706, 64
          %v4192 = vpop.permute.xlu0 %4191
          %4193 = vrot.lane.b32.xlu0 %v1710, 64
          %v4194 = vpop.permute.xlu0 %4193
          %4195 = vrot.lane.b32.xlu0 %v1714, 64
          %v4196 = vpop.permute.xlu0 %4195
          %4197 = vrot.lane.b32.xlu0 %v1718, 64
          %v4198 = vpop.permute.xlu0 %4197
          %4199 = vrot.lane.b32.xlu0 %v1722, 64
          %v4200 = vpop.permute.xlu0 %4199
          %4201 = vrot.lane.b32.xlu0 %v1726, 64
          %v4202 = vpop.permute.xlu0 %4201
          %4211 = vmatprep.subr.bf16.mxu0 0
          %4212 = vmatpush1.bf16.msra.mxu0 %v4188
          %4213 = vmatprep.subr.bf16.mxu0 0
          %4214 = vmatpush1.bf16.msra.mxu0 %v4190
          %4215 = vmatprep.subr.bf16.mxu0 0
          %4216 = vmatpush1.bf16.msra.mxu0 %v4192
          %4217 = vmatprep.subr.bf16.mxu0 0
          %4218 = vmatpush1.bf16.msra.mxu0 %v4194
          %4219 = vmatprep.subr.bf16.mxu0 0
          %4220 = vmatpush1.bf16.msra.mxu0 %v4196
          %4221 = vmatprep.subr.bf16.mxu0 0
          %4222 = vmatpush1.bf16.msra.mxu0 %v4198
          %4223 = vmatprep.subr.bf16.mxu0 0
          %4224 = vmatpush1.bf16.msra.mxu0 %v4200
          %4225 = vmatprep.subr.bf16.mxu0 0
          %4226 = vmatpush1.bf16.msra.mxu0 %v4202
          %4227 = vmatprep.subr.bf16.mxu0 0
          %4228 = vmatpush1.bf16.msra.mxu0 0
          %4229 = vmatprep.subr.bf16.mxu0 0
          %4230 = vmatpush1.bf16.msra.mxu0 0
          %4231 = vmatprep.subr.bf16.mxu0 0
          %4232 = vmatpush1.bf16.msra.mxu0 0
          %4233 = vmatprep.subr.bf16.mxu0 0
          %4234 = vmatpush1.bf16.msra.mxu0 0
          %4235 = vmatprep.subr.bf16.mxu0 0
          %4236 = vmatpush1.bf16.msra.mxu0 0
          %4237 = vmatprep.subr.bf16.mxu0 0
          %4238 = vmatpush1.bf16.msra.mxu0 0
          %4239 = vmatprep.subr.bf16.mxu0 0
          %4240 = vmatpush1.bf16.msra.mxu0 0
          %4241 = vmatprep.subr.bf16.mxu0 0
          %4242 = vmatpush1.bf16.msra.mxu0 0
          %4243 = vmatprep.mubr.bf16.mxu0 0
          %4244 = vmatmul.mubr.bf16.gmra.mrb[0].mxu0 %v4171
          %v4245 = vpop.f32.mrb[0].mxu0
          %v4246 = vadd.f32 0.0, %v4245
          %v4247 = vpop.f32.mrb[0].mxu0
          %v4248 = vpop.f32.mrb[0].mxu0
          %v4249 = vadd.f32 0.0, %v4248
          %v4250 = vpop.f32.mrb[0].mxu0
          %4251 = vmatprep.mubr.bf16.mxu0 0
          %4252 = vmatmul.mubr.bf16.gmra.mrb[0].mxu0 %v4172
          %v4253 = vpop.f32.mrb[0].mxu0
          %v4254 = vadd.f32 0.0, %v4253
          %v4255 = vpop.f32.mrb[0].mxu0
          %v4256 = vpop.f32.mrb[0].mxu0
          %v4257 = vadd.f32 0.0, %v4256
          %v4258 = vpop.f32.mrb[0].mxu0
          %4259 = vmatprep.mubr.bf16.mxu0 0
          %4260 = vmatmul.mubr.bf16.gmra.mrb[0].mxu0 %v4173
          %v4261 = vpop.f32.mrb[0].mxu0
          %v4262 = vadd.f32 0.0, %v4261
          %v4263 = vpop.f32.mrb[0].mxu0
          %v4264 = vpop.f32.mrb[0].mxu0
          %v4265 = vadd.f32 0.0, %v4264
          %v4266 = vpop.f32.mrb[0].mxu0
          %4267 = vmatprep.mubr.bf16.mxu0 0
          %4268 = vmatmul.mubr.bf16.gmra.mrb[0].mxu0 %v4174
          %v4269 = vpop.f32.mrb[0].mxu0
          %v4270 = vadd.f32 0.0, %v4269
          %v4271 = vpop.f32.mrb[0].mxu0
          %v4272 = vpop.f32.mrb[0].mxu0
          %v4273 = vadd.f32 0.0, %v4272
          %v4274 = vpop.f32.mrb[0].mxu0
          %4275 = vmatprep.mubr.bf16.mxu0 0
          %4276 = vmatmul.mubr.bf16.gmra.mrb[0].mxu0 %v4175
          %v4277 = vpop.f32.mrb[0].mxu0
          %v4278 = vadd.f32 0.0, %v4277
          %v4279 = vpop.f32.mrb[0].mxu0
          %v4280 = vpop.f32.mrb[0].mxu0
          %v4281 = vadd.f32 0.0, %v4280
          %v4282 = vpop.f32.mrb[0].mxu0
          %4283 = vmatprep.mubr.bf16.mxu0 0
          %4284 = vmatmul.mubr.bf16.gmra.mrb[0].mxu0 %v4176
          %v4285 = vpop.f32.mrb[0].mxu0
          %v4286 = vadd.f32 0.0, %v4285
          %v4287 = vpop.f32.mrb[0].mxu0
          %v4288 = vpop.f32.mrb[0].mxu0
          %v4289 = vadd.f32 0.0, %v4288
          %v4290 = vpop.f32.mrb[0].mxu0
          %4291 = vmatprep.mubr.bf16.mxu0 0
          %4292 = vmatmul.mubr.bf16.gmra.mrb[0].mxu0 %v4177
          %v4293 = vpop.f32.mrb[0].mxu0
          %v4294 = vadd.f32 0.0, %v4293
          %v4295 = vpop.f32.mrb[0].mxu0
          %v4296 = vpop.f32.mrb[0].mxu0
          %v4297 = vadd.f32 0.0, %v4296
          %v4298 = vpop.f32.mrb[0].mxu0
          %4299 = vmatprep.mubr.bf16.mxu0 0
          %4300 = vmatmul.mubr.bf16.gmra.mrb[0].mxu0 %v4178
          %v4301 = vpop.f32.mrb[0].mxu0
          %v4302 = vadd.f32 0.0, %v4301
          %v4303 = vpop.f32.mrb[0].mxu0
          %v4304 = vpop.f32.mrb[0].mxu0
          %v4305 = vadd.f32 0.0, %v4304
          %v4306 = vpop.f32.mrb[0].mxu0
          %4307 = vdwg.mxu0
          %v4308 = vmul.f32 %v4246, %v4155
          %v4309 = vmul.f32 %v4249, %v4156
          %v4310 = vmul.f32 %v4254, %v4157
          %v4311 = vmul.f32 %v4257, %v4158
          %v4312 = vmul.f32 %v4262, %v4159
          %v4313 = vmul.f32 %v4265, %v4160
          %v4314 = vmul.f32 %v4270, %v4161
          %v4315 = vmul.f32 %v4273, %v4162
          %v4316 = vmul.f32 %v4278, %v4163
          %v4317 = vmul.f32 %v4281, %v4164
          %v4318 = vmul.f32 %v4286, %v4165
          %v4319 = vmul.f32 %v4289, %v4166
          %v4320 = vmul.f32 %v4294, %v4167
          %v4321 = vmul.f32 %v4297, %v4168
          %v4322 = vmul.f32 %v4302, %v4169
          %v4323 = vmul.f32 %v4305, %v4170
          %v4324 = vld [vmem:[#allocation3] sm:$0xff]
          %v4325 = vld [vmem:[#allocation3 + $0x8] sm:$0xff]
          %v4326 = vld [vmem:[#allocation3 + $0x10] sm:$0xff]
          %v4327 = vld [vmem:[#allocation3 + $0x18] sm:$0xff]
          %v4328 = vld [vmem:[#allocation3 + $0x20] sm:$0xff]
          %v4329 = vld [vmem:[#allocation3 + $0x28] sm:$0xff]
          %v4330 = vld [vmem:[#allocation3 + $0x30] sm:$0xff]
          %v4331 = vld [vmem:[#allocation3 + $0x38] sm:$0xff]
          %v4332 = vld [vmem:[#allocation3 + $0x40] sm:$0xff]
          %v4333 = vld [vmem:[#allocation3 + $0x48] sm:$0xff]
          %v4334 = vld [vmem:[#allocation3 + $0x50] sm:$0xff]
          %v4335 = vld [vmem:[#allocation3 + $0x58] sm:$0xff]
          %v4336 = vld [vmem:[#allocation3 + $0x60] sm:$0xff]
          %v4337 = vld [vmem:[#allocation3 + $0x68] sm:$0xff]
          %v4338 = vld [vmem:[#allocation3 + $0x70] sm:$0xff]
          %v4339 = vld [vmem:[#allocation3 + $0x78] sm:$0xff]
          %v4340 = vadd.f32 %v4324, %v4308
          %v4341 = vadd.f32 %v4325, %v4309
          %v4342 = vadd.f32 %v4326, %v4310
          %v4343 = vadd.f32 %v4327, %v4311
          %v4344 = vadd.f32 %v4328, %v4312
          %v4345 = vadd.f32 %v4329, %v4313
          %v4346 = vadd.f32 %v4330, %v4314
          %v4347 = vadd.f32 %v4331, %v4315
          %v4348 = vadd.f32 %v4332, %v4316
          %v4349 = vadd.f32 %v4333, %v4317
          %v4350 = vadd.f32 %v4334, %v4318
          %v4351 = vadd.f32 %v4335, %v4319
          %v4352 = vadd.f32 %v4336, %v4320
          %v4353 = vadd.f32 %v4337, %v4321
          %v4354 = vadd.f32 %v4338, %v4322
          %v4355 = vadd.f32 %v4339, %v4323
          %4356 = vst.msk [vmem:[#allocation3] sm:$0xff] %vm683, %v4340
          %4357 = vst.msk [vmem:[#allocation3 + $0x8] sm:$0xff] %vm683, %v4341
          %4358 = vst.msk [vmem:[#allocation3 + $0x10] sm:$0xff] %vm683, %v4342
          %4359 = vst.msk [vmem:[#allocation3 + $0x18] sm:$0xff] %vm683, %v4343
          %4360 = vst.msk [vmem:[#allocation3 + $0x20] sm:$0xff] %vm683, %v4344
          %4361 = vst.msk [vmem:[#allocation3 + $0x28] sm:$0xff] %vm683, %v4345
          %4362 = vst.msk [vmem:[#allocation3 + $0x30] sm:$0xff] %vm683, %v4346
          %4363 = vst.msk [vmem:[#allocation3 + $0x38] sm:$0xff] %vm683, %v4347
          %4364 = vst.msk [vmem:[#allocation3 + $0x40] sm:$0xff] %vm683, %v4348
          %4365 = vst.msk [vmem:[#allocation3 + $0x48] sm:$0xff] %vm683, %v4349
          %4366 = vst.msk [vmem:[#allocation3 + $0x50] sm:$0xff] %vm683, %v4350
          %4367 = vst.msk [vmem:[#allocation3 + $0x58] sm:$0xff] %vm683, %v4351
          %4368 = vst.msk [vmem:[#allocation3 + $0x60] sm:$0xff] %vm683, %v4352
          %4369 = vst.msk [vmem:[#allocation3 + $0x68] sm:$0xff] %vm683, %v4353
          %4370 = vst.msk [vmem:[#allocation3 + $0x70] sm:$0xff] %vm683, %v4354
          %4371 = vst.msk [vmem:[#allocation3 + $0x78] sm:$0xff] %vm683, %v4355
          %v4373 = vsel %vm683, %v1667, 0
          %v4376 = vsel %vm683, %v1671, 0
          %v4379 = vsel %vm683, %v1675, 0
          %v4382 = vsel %vm683, %v1679, 0
          %v4385 = vsel %vm683, %v1683, 0
          %v4388 = vsel %vm683, %v1687, 0
          %v4391 = vsel %vm683, %v1691, 0
          %v4394 = vsel %vm683, %v1695, 0
          %4396 = vmatprep.subr.bf16.mxu0 0
          %4397 = vmatpush1.bf16.xpose.msra.mxu0 %v1091
          %4398 = vmatprep.subr.bf16.mxu0 0
          %4399 = vmatpush1.bf16.xpose.msra.mxu0 %v1094
          %4400 = vmatprep.subr.bf16.mxu0 0
          %4401 = vmatpush1.bf16.xpose.msra.mxu0 %v1097
          %4402 = vmatprep.subr.bf16.mxu0 0
          %4403 = vmatpush1.bf16.xpose.msra.mxu0 %v1100
          %4404 = vmatprep.subr.bf16.mxu0 0
          %4405 = vmatpush1.bf16.xpose.msra.mxu0 %v1103
          %4406 = vmatprep.subr.bf16.mxu0 0
          %4407 = vmatpush1.bf16.xpose.msra.mxu0 %v1106
          %4408 = vmatprep.subr.bf16.mxu0 0
          %4409 = vmatpush1.bf16.xpose.msra.mxu0 %v1109
          %4410 = vmatprep.subr.bf16.mxu0 0
          %4411 = vmatpush1.bf16.xpose.msra.mxu0 %v1112
          %4412 = vmatprep.subr.bf16.mxu0 0
          %4413 = vmatpush1.bf16.xpose.msra.mxu0 0
          %4414 = vmatprep.subr.bf16.mxu0 0
          %4415 = vmatpush1.bf16.xpose.msra.mxu0 0
          %4416 = vmatprep.subr.bf16.mxu0 0
          %4417 = vmatpush1.bf16.xpose.msra.mxu0 0
          %4418 = vmatprep.subr.bf16.mxu0 0
          %4419 = vmatpush1.bf16.xpose.msra.mxu0 0
          %4420 = vmatprep.subr.bf16.mxu0 0
          %4421 = vmatpush1.bf16.xpose.msra.mxu0 0
          %4422 = vmatprep.subr.bf16.mxu0 0
          %4423 = vmatpush1.bf16.xpose.msra.mxu0 0
          %4424 = vmatprep.subr.bf16.mxu0 0
          %4425 = vmatpush1.bf16.xpose.msra.mxu0 0
          %4426 = vmatprep.subr.bf16.mxu0 0
          %4427 = vmatpush1.bf16.xpose.msra.mxu0 0
          %4428 = vmatprep.mubr.bf16.mxu0 0
          %4429 = vmatmul.mubr.bf16.gmra.mrb[0].mxu0 %v4373
          %v4430 = vpop.f32.mrb[0].mxu0
          %v4431 = vadd.f32 %v703, %v4430
          %v4432 = vpop.f32.mrb[0].mxu0
          %v4433 = vpop.f32.mrb[0].mxu0
          %v4434 = vadd.f32 %v703, %v4433
          %v4435 = vpop.f32.mrb[0].mxu0
          %4436 = vmatprep.mubr.bf16.mxu0 0
          %4437 = vmatmul.mubr.bf16.gmra.mrb[0].mxu0 %v4376
          %v4438 = vpop.f32.mrb[0].mxu0
          %v4439 = vadd.f32 %v703, %v4438
          %v4440 = vpop.f32.mrb[0].mxu0
          %v4441 = vpop.f32.mrb[0].mxu0
          %v4442 = vadd.f32 %v703, %v4441
          %v4443 = vpop.f32.mrb[0].mxu0
          %4444 = vmatprep.mubr.bf16.mxu0 0
          %4445 = vmatmul.mubr.bf16.gmra.mrb[0].mxu0 %v4379
          %v4446 = vpop.f32.mrb[0].mxu0
          %v4447 = vadd.f32 %v703, %v4446
          %v4448 = vpop.f32.mrb[0].mxu0
          %v4449 = vpop.f32.mrb[0].mxu0
          %v4450 = vadd.f32 %v703, %v4449
          %v4451 = vpop.f32.mrb[0].mxu0
          %4452 = vmatprep.mubr.bf16.mxu0 0
          %4453 = vmatmul.mubr.bf16.gmra.mrb[0].mxu0 %v4382
          %v4454 = vpop.f32.mrb[0].mxu0
          %v4455 = vadd.f32 %v703, %v4454
          %v4456 = vpop.f32.mrb[0].mxu0
          %v4457 = vpop.f32.mrb[0].mxu0
          %v4458 = vadd.f32 %v703, %v4457
          %v4459 = vpop.f32.mrb[0].mxu0
          %4460 = vmatprep.mubr.bf16.mxu0 0
          %4461 = vmatmul.mubr.bf16.gmra.mrb[0].mxu0 %v4385
          %v4462 = vpop.f32.mrb[0].mxu0
          %v4463 = vadd.f32 %v703, %v4462
          %v4464 = vpop.f32.mrb[0].mxu0
          %v4465 = vpop.f32.mrb[0].mxu0
          %v4466 = vadd.f32 %v703, %v4465
          %v4467 = vpop.f32.mrb[0].mxu0
          %4468 = vmatprep.mubr.bf16.mxu0 0
          %4469 = vmatmul.mubr.bf16.gmra.mrb[0].mxu0 %v4388
          %v4470 = vpop.f32.mrb[0].mxu0
          %v4471 = vadd.f32 %v703, %v4470
          %v4472 = vpop.f32.mrb[0].mxu0
          %v4473 = vpop.f32.mrb[0].mxu0
          %v4474 = vadd.f32 %v703, %v4473
          %v4475 = vpop.f32.mrb[0].mxu0
          %4476 = vmatprep.mubr.bf16.mxu0 0
          %4477 = vmatmul.mubr.bf16.gmra.mrb[0].mxu0 %v4391
          %v4478 = vpop.f32.mrb[0].mxu0
          %v4479 = vadd.f32 %v703, %v4478
          %v4480 = vpop.f32.mrb[0].mxu0
          %v4481 = vpop.f32.mrb[0].mxu0
          %v4482 = vadd.f32 %v703, %v4481
          %v4483 = vpop.f32.mrb[0].mxu0
          %4484 = vmatprep.mubr.bf16.mxu0 0
          %4485 = vmatmul.mubr.bf16.gmra.mrb[0].mxu0 %v4394
          %v4486 = vpop.f32.mrb[0].mxu0
          %v4487 = vadd.f32 %v703, %v4486
          %v4488 = vpop.f32.mrb[0].mxu0
          %v4489 = vpop.f32.mrb[0].mxu0
          %v4490 = vadd.f32 %v703, %v4489
          %v4491 = vpop.f32.mrb[0].mxu0
          %4492 = vdwg.mxu0
          %4493 = vmax.xlane.f32.xlu0 %v4431
          %v4494 = vpop.xlane.xlu0 %4493
          %4495 = vmax.xlane.f32.xlu0 %v4434
          %v4496 = vpop.xlane.xlu0 %4495
          %4497 = vmax.xlane.f32.xlu0 %v4439
          %v4498 = vpop.xlane.xlu0 %4497
          %4499 = vmax.xlane.f32.xlu0 %v4442
          %v4500 = vpop.xlane.xlu0 %4499
          %4501 = vmax.xlane.f32.xlu0 %v4447
          %v4502 = vpop.xlane.xlu0 %4501
          %4503 = vmax.xlane.f32.xlu0 %v4450
          %v4504 = vpop.xlane.xlu0 %4503
          %4505 = vmax.xlane.f32.xlu0 %v4455
          %v4506 = vpop.xlane.xlu0 %4505
          %4507 = vmax.xlane.f32.xlu0 %v4458
          %v4508 = vpop.xlane.xlu0 %4507
          %4509 = vmax.xlane.f32.xlu0 %v4463
          %v4510 = vpop.xlane.xlu0 %4509
          %4511 = vmax.xlane.f32.xlu0 %v4466
          %v4512 = vpop.xlane.xlu0 %4511
          %4513 = vmax.xlane.f32.xlu0 %v4471
          %v4514 = vpop.xlane.xlu0 %4513
          %4515 = vmax.xlane.f32.xlu0 %v4474
          %v4516 = vpop.xlane.xlu0 %4515
          %4517 = vmax.xlane.f32.xlu0 %v4479
          %v4518 = vpop.xlane.xlu0 %4517
          %4519 = vmax.xlane.f32.xlu0 %v4482
          %v4520 = vpop.xlane.xlu0 %4519
          %4521 = vmax.xlane.f32.xlu0 %v4487
          %v4522 = vpop.xlane.xlu0 %4521
          %4523 = vmax.xlane.f32.xlu0 %v4490
          %v4524 = vpop.xlane.xlu0 %4523
          %v4525 = vsub.f32 %v4431, %v4494
          %v4526 = vsub.f32 %v4434, %v4496
          %v4527 = vsub.f32 %v4439, %v4498
          %v4528 = vsub.f32 %v4442, %v4500
          %v4529 = vsub.f32 %v4447, %v4502
          %v4530 = vsub.f32 %v4450, %v4504
          %v4531 = vsub.f32 %v4455, %v4506
          %v4532 = vsub.f32 %v4458, %v4508
          %v4533 = vsub.f32 %v4463, %v4510
          %v4534 = vsub.f32 %v4466, %v4512
          %v4535 = vsub.f32 %v4471, %v4514
          %v4536 = vsub.f32 %v4474, %v4516
          %v4537 = vsub.f32 %v4479, %v4518
          %v4538 = vsub.f32 %v4482, %v4520
          %v4539 = vsub.f32 %v4487, %v4522
          %v4540 = vsub.f32 %v4490, %v4524
          %v4541 = vmul.f32 %v4525, 1.442695
          %v4542 = vpow.pop %v4541
          %v4543 = vmul.f32 %v4526, 1.442695
          %v4544 = vpow.pop %v4543
          %v4545 = vmul.f32 %v4527, 1.442695
          %v4546 = vpow.pop %v4545
          %v4547 = vmul.f32 %v4528, 1.442695
          %v4548 = vpow.pop %v4547
          %v4549 = vmul.f32 %v4529, 1.442695
          %v4550 = vpow.pop %v4549
          %v4551 = vmul.f32 %v4530, 1.442695
          %v4552 = vpow.pop %v4551
          %v4553 = vmul.f32 %v4531, 1.442695
          %v4554 = vpow.pop %v4553
          %v4555 = vmul.f32 %v4532, 1.442695
          %v4556 = vpow.pop %v4555
          %v4557 = vmul.f32 %v4533, 1.442695
          %v4558 = vpow.pop %v4557
          %v4559 = vmul.f32 %v4534, 1.442695
          %v4560 = vpow.pop %v4559
          %v4561 = vmul.f32 %v4535, 1.442695
          %v4562 = vpow.pop %v4561
          %v4563 = vmul.f32 %v4536, 1.442695
          %v4564 = vpow.pop %v4563
          %v4565 = vmul.f32 %v4537, 1.442695
          %v4566 = vpow.pop %v4565
          %v4567 = vmul.f32 %v4538, 1.442695
          %v4568 = vpow.pop %v4567
          %v4569 = vmul.f32 %v4539, 1.442695
          %v4570 = vpow.pop %v4569
          %v4571 = vmul.f32 %v4540, 1.442695
          %v4572 = vpow.pop %v4571
          %4573 = vadd.xlane.f32.xlu0 %v4542
          %v4574 = vpop.xlane.xlu0 %4573
          %4575 = vadd.xlane.f32.xlu0 %v4544
          %v4576 = vpop.xlane.xlu0 %4575
          %4577 = vadd.xlane.f32.xlu0 %v4546
          %v4578 = vpop.xlane.xlu0 %4577
          %4579 = vadd.xlane.f32.xlu0 %v4548
          %v4580 = vpop.xlane.xlu0 %4579
          %4581 = vadd.xlane.f32.xlu0 %v4550
          %v4582 = vpop.xlane.xlu0 %4581
          %4583 = vadd.xlane.f32.xlu0 %v4552
          %v4584 = vpop.xlane.xlu0 %4583
          %4585 = vadd.xlane.f32.xlu0 %v4554
          %v4586 = vpop.xlane.xlu0 %4585
          %4587 = vadd.xlane.f32.xlu0 %v4556
          %v4588 = vpop.xlane.xlu0 %4587
          %4589 = vadd.xlane.f32.xlu0 %v4558
          %v4590 = vpop.xlane.xlu0 %4589
          %4591 = vadd.xlane.f32.xlu0 %v4560
          %v4592 = vpop.xlane.xlu0 %4591
          %4593 = vadd.xlane.f32.xlu0 %v4562
          %v4594 = vpop.xlane.xlu0 %4593
          %4595 = vadd.xlane.f32.xlu0 %v4564
          %v4596 = vpop.xlane.xlu0 %4595
          %4597 = vadd.xlane.f32.xlu0 %v4566
          %v4598 = vpop.xlane.xlu0 %4597
          %4599 = vadd.xlane.f32.xlu0 %v4568
          %v4600 = vpop.xlane.xlu0 %4599
          %4601 = vadd.xlane.f32.xlu0 %v4570
          %v4602 = vpop.xlane.xlu0 %4601
          %4603 = vadd.xlane.f32.xlu0 %v4572
          %v4604 = vpop.xlane.xlu0 %4603
          %v4605 = vrcp.pop %v4574
          %v4606 = vrcp.pop %v4576
          %v4607 = vrcp.pop %v4578
          %v4608 = vrcp.pop %v4580
          %v4609 = vrcp.pop %v4582
          %v4610 = vrcp.pop %v4584
          %v4611 = vrcp.pop %v4586
          %v4612 = vrcp.pop %v4588
          %v4613 = vrcp.pop %v4590
          %v4614 = vrcp.pop %v4592
          %v4615 = vrcp.pop %v4594
          %v4616 = vrcp.pop %v4596
          %v4617 = vrcp.pop %v4598
          %v4618 = vrcp.pop %v4600
          %v4619 = vrcp.pop %v4602
          %v4620 = vrcp.pop %v4604
          %v4621 = vpack.c.bf16 %v4544, %v4542
          %v4622 = vpack.c.bf16 %v4548, %v4546
          %v4623 = vpack.c.bf16 %v4552, %v4550
          %v4624 = vpack.c.bf16 %v4556, %v4554
          %v4625 = vpack.c.bf16 %v4560, %v4558
          %v4626 = vpack.c.bf16 %v4564, %v4562
          %v4627 = vpack.c.bf16 %v4568, %v4566
          %v4628 = vpack.c.bf16 %v4572, %v4570
          %4629 = vmatprep.subr.bf16.mxu0 0
          %4630 = vmatpush1.bf16.msra.mxu0 %v1699
          %4631 = vmatprep.subr.bf16.mxu0 0
          %4632 = vmatpush1.bf16.msra.mxu0 %v1703
          %4633 = vmatprep.subr.bf16.mxu0 0
          %4634 = vmatpush1.bf16.msra.mxu0 %v1707
          %4635 = vmatprep.subr.bf16.mxu0 0
          %4636 = vmatpush1.bf16.msra.mxu0 %v1711
          %4637 = vmatprep.subr.bf16.mxu0 0
          %4638 = vmatpush1.bf16.msra.mxu0 %v1715
          %4639 = vmatprep.subr.bf16.mxu0 0
          %4640 = vmatpush1.bf16.msra.mxu0 %v1719
          %4641 = vmatprep.subr.bf16.mxu0 0
          %4642 = vmatpush1.bf16.msra.mxu0 %v1723
          %4643 = vmatprep.subr.bf16.mxu0 0
          %4644 = vmatpush1.bf16.msra.mxu0 %v1727
          %4645 = vmatprep.subr.bf16.mxu0 0
          %4646 = vmatpush1.bf16.msra.mxu0 0
          %4647 = vmatprep.subr.bf16.mxu0 0
          %4648 = vmatpush1.bf16.msra.mxu0 0
          %4649 = vmatprep.subr.bf16.mxu0 0
          %4650 = vmatpush1.bf16.msra.mxu0 0
          %4651 = vmatprep.subr.bf16.mxu0 0
          %4652 = vmatpush1.bf16.msra.mxu0 0
          %4653 = vmatprep.subr.bf16.mxu0 0
          %4654 = vmatpush1.bf16.msra.mxu0 0
          %4655 = vmatprep.subr.bf16.mxu0 0
          %4656 = vmatpush1.bf16.msra.mxu0 0
          %4657 = vmatprep.subr.bf16.mxu0 0
          %4658 = vmatpush1.bf16.msra.mxu0 0
          %4659 = vmatprep.subr.bf16.mxu0 0
          %4660 = vmatpush1.bf16.msra.mxu0 0
          %4661 = vmatprep.mubr.bf16.mxu0 0
          %4662 = vmatmul.mubr.bf16.gmra.mrb[0].mxu0 %v4621
          %v4663 = vpop.f32.mrb[0].mxu0
          %v4664 = vadd.f32 0.0, %v4663
          %v4665 = vpop.f32.mrb[0].mxu0
          %v4666 = vpop.f32.mrb[0].mxu0
          %v4667 = vadd.f32 0.0, %v4666
          %v4668 = vpop.f32.mrb[0].mxu0
          %4669 = vmatprep.mubr.bf16.mxu0 0
          %4670 = vmatmul.mubr.bf16.gmra.mrb[0].mxu0 %v4622
          %v4671 = vpop.f32.mrb[0].mxu0
          %v4672 = vadd.f32 0.0, %v4671
          %v4673 = vpop.f32.mrb[0].mxu0
          %v4674 = vpop.f32.mrb[0].mxu0
          %v4675 = vadd.f32 0.0, %v4674
          %v4676 = vpop.f32.mrb[0].mxu0
          %4677 = vmatprep.mubr.bf16.mxu0 0
          %4678 = vmatmul.mubr.bf16.gmra.mrb[0].mxu0 %v4623
          %v4679 = vpop.f32.mrb[0].mxu0
          %v4680 = vadd.f32 0.0, %v4679
          %v4681 = vpop.f32.mrb[0].mxu0
          %v4682 = vpop.f32.mrb[0].mxu0
          %v4683 = vadd.f32 0.0, %v4682
          %v4684 = vpop.f32.mrb[0].mxu0
          %4685 = vmatprep.mubr.bf16.mxu0 0
          %4686 = vmatmul.mubr.bf16.gmra.mrb[0].mxu0 %v4624
          %v4687 = vpop.f32.mrb[0].mxu0
          %v4688 = vadd.f32 0.0, %v4687
          %v4689 = vpop.f32.mrb[0].mxu0
          %v4690 = vpop.f32.mrb[0].mxu0
          %v4691 = vadd.f32 0.0, %v4690
          %v4692 = vpop.f32.mrb[0].mxu0
          %4693 = vmatprep.mubr.bf16.mxu0 0
          %4694 = vmatmul.mubr.bf16.gmra.mrb[0].mxu0 %v4625
          %v4695 = vpop.f32.mrb[0].mxu0
          %v4696 = vadd.f32 0.0, %v4695
          %v4697 = vpop.f32.mrb[0].mxu0
          %v4698 = vpop.f32.mrb[0].mxu0
          %v4699 = vadd.f32 0.0, %v4698
          %v4700 = vpop.f32.mrb[0].mxu0
          %4701 = vmatprep.mubr.bf16.mxu0 0
          %4702 = vmatmul.mubr.bf16.gmra.mrb[0].mxu0 %v4626
          %v4703 = vpop.f32.mrb[0].mxu0
          %v4704 = vadd.f32 0.0, %v4703
          %v4705 = vpop.f32.mrb[0].mxu0
          %v4706 = vpop.f32.mrb[0].mxu0
          %v4707 = vadd.f32 0.0, %v4706
          %v4708 = vpop.f32.mrb[0].mxu0
          %4709 = vmatprep.mubr.bf16.mxu0 0
          %4710 = vmatmul.mubr.bf16.gmra.mrb[0].mxu0 %v4627
          %v4711 = vpop.f32.mrb[0].mxu0
          %v4712 = vadd.f32 0.0, %v4711
          %v4713 = vpop.f32.mrb[0].mxu0
          %v4714 = vpop.f32.mrb[0].mxu0
          %v4715 = vadd.f32 0.0, %v4714
          %v4716 = vpop.f32.mrb[0].mxu0
          %4717 = vmatprep.mubr.bf16.mxu0 0
          %4718 = vmatmul.mubr.bf16.gmra.mrb[0].mxu0 %v4628
          %v4719 = vpop.f32.mrb[0].mxu0
          %v4720 = vadd.f32 0.0, %v4719
          %v4721 = vpop.f32.mrb[0].mxu0
          %v4722 = vpop.f32.mrb[0].mxu0
          %v4723 = vadd.f32 0.0, %v4722
          %v4724 = vpop.f32.mrb[0].mxu0
          %4725 = vdwg.mxu0
          %v4726 = vmul.f32 %v4664, %v4605
          %v4727 = vmul.f32 %v4667, %v4606
          %v4728 = vmul.f32 %v4672, %v4607
          %v4729 = vmul.f32 %v4675, %v4608
          %v4730 = vmul.f32 %v4680, %v4609
          %v4731 = vmul.f32 %v4683, %v4610
          %v4732 = vmul.f32 %v4688, %v4611
          %v4733 = vmul.f32 %v4691, %v4612
          %v4734 = vmul.f32 %v4696, %v4613
          %v4735 = vmul.f32 %v4699, %v4614
          %v4736 = vmul.f32 %v4704, %v4615
          %v4737 = vmul.f32 %v4707, %v4616
          %v4738 = vmul.f32 %v4712, %v4617
          %v4739 = vmul.f32 %v4715, %v4618
          %v4740 = vmul.f32 %v4720, %v4619
          %v4741 = vmul.f32 %v4723, %v4620
          %v4742 = vld [vmem:[#allocation3] sm:$0xff]
          %v4743 = vld [vmem:[#allocation3 + $0x8] sm:$0xff]
          %v4744 = vld [vmem:[#allocation3 + $0x10] sm:$0xff]
          %v4745 = vld [vmem:[#allocation3 + $0x18] sm:$0xff]
          %v4746 = vld [vmem:[#allocation3 + $0x20] sm:$0xff]
          %v4747 = vld [vmem:[#allocation3 + $0x28] sm:$0xff]
          %v4748 = vld [vmem:[#allocation3 + $0x30] sm:$0xff]
          %v4749 = vld [vmem:[#allocation3 + $0x38] sm:$0xff]
          %v4750 = vld [vmem:[#allocation3 + $0x40] sm:$0xff]
          %v4751 = vld [vmem:[#allocation3 + $0x48] sm:$0xff]
          %v4752 = vld [vmem:[#allocation3 + $0x50] sm:$0xff]
          %v4753 = vld [vmem:[#allocation3 + $0x58] sm:$0xff]
          %v4754 = vld [vmem:[#allocation3 + $0x60] sm:$0xff]
          %v4755 = vld [vmem:[#allocation3 + $0x68] sm:$0xff]
          %v4756 = vld [vmem:[#allocation3 + $0x70] sm:$0xff]
          %v4757 = vld [vmem:[#allocation3 + $0x78] sm:$0xff]
          %v4758 = vadd.f32 %v4742, %v4726
          %v4759 = vadd.f32 %v4743, %v4727
          %v4760 = vadd.f32 %v4744, %v4728
          %v4761 = vadd.f32 %v4745, %v4729
          %v4762 = vadd.f32 %v4746, %v4730
          %v4763 = vadd.f32 %v4747, %v4731
          %v4764 = vadd.f32 %v4748, %v4732
          %v4765 = vadd.f32 %v4749, %v4733
          %v4766 = vadd.f32 %v4750, %v4734
          %v4767 = vadd.f32 %v4751, %v4735
          %v4768 = vadd.f32 %v4752, %v4736
          %v4769 = vadd.f32 %v4753, %v4737
          %v4770 = vadd.f32 %v4754, %v4738
          %v4771 = vadd.f32 %v4755, %v4739
          %v4772 = vadd.f32 %v4756, %v4740
          %v4773 = vadd.f32 %v4757, %v4741
          %4774 = vst.msk [vmem:[#allocation3] sm:$0xff] %vm683, %v4758
          %4775 = vst.msk [vmem:[#allocation3 + $0x8] sm:$0xff] %vm683, %v4759
          %4776 = vst.msk [vmem:[#allocation3 + $0x10] sm:$0xff] %vm683, %v4760
          %4777 = vst.msk [vmem:[#allocation3 + $0x18] sm:$0xff] %vm683, %v4761
          %4778 = vst.msk [vmem:[#allocation3 + $0x20] sm:$0xff] %vm683, %v4762
          %4779 = vst.msk [vmem:[#allocation3 + $0x28] sm:$0xff] %vm683, %v4763
          %4780 = vst.msk [vmem:[#allocation3 + $0x30] sm:$0xff] %vm683, %v4764
          %4781 = vst.msk [vmem:[#allocation3 + $0x38] sm:$0xff] %vm683, %v4765
          %4782 = vst.msk [vmem:[#allocation3 + $0x40] sm:$0xff] %vm683, %v4766
          %4783 = vst.msk [vmem:[#allocation3 + $0x48] sm:$0xff] %vm683, %v4767
          %4784 = vst.msk [vmem:[#allocation3 + $0x50] sm:$0xff] %vm683, %v4768
          %4785 = vst.msk [vmem:[#allocation3 + $0x58] sm:$0xff] %vm683, %v4769
          %4786 = vst.msk [vmem:[#allocation3 + $0x60] sm:$0xff] %vm683, %v4770
          %4787 = vst.msk [vmem:[#allocation3 + $0x68] sm:$0xff] %vm683, %v4771
          %4788 = vst.msk [vmem:[#allocation3 + $0x70] sm:$0xff] %vm683, %v4772
          %4789 = vst.msk [vmem:[#allocation3 + $0x78] sm:$0xff] %vm683, %v4773
          %4798 = vrot.lane.b32.xlu0 %v1667, 64
          %v4799 = vpop.permute.xlu0 %4798
          %4800 = vrot.lane.b32.xlu0 %v1671, 64
          %v4801 = vpop.permute.xlu0 %4800
          %4802 = vrot.lane.b32.xlu0 %v1675, 64
          %v4803 = vpop.permute.xlu0 %4802
          %4804 = vrot.lane.b32.xlu0 %v1679, 64
          %v4805 = vpop.permute.xlu0 %4804
          %4806 = vrot.lane.b32.xlu0 %v1683, 64
          %v4807 = vpop.permute.xlu0 %4806
          %4808 = vrot.lane.b32.xlu0 %v1687, 64
          %v4809 = vpop.permute.xlu0 %4808
          %4810 = vrot.lane.b32.xlu0 %v1691, 64
          %v4811 = vpop.permute.xlu0 %4810
          %4812 = vrot.lane.b32.xlu0 %v1695, 64
          %v4813 = vpop.permute.xlu0 %4812
          %v4815 = vsel %vm683, %v4799, 0
          %v4818 = vsel %vm683, %v4801, 0
          %v4821 = vsel %vm683, %v4803, 0
          %v4824 = vsel %vm683, %v4805, 0
          %v4827 = vsel %vm683, %v4807, 0
          %v4830 = vsel %vm683, %v4809, 0
          %v4833 = vsel %vm683, %v4811, 0
          %v4836 = vsel %vm683, %v4813, 0
          %4838 = vmatprep.subr.bf16.mxu0 0
          %4839 = vmatpush1.bf16.xpose.msra.mxu0 %v1091
          %4840 = vmatprep.subr.bf16.mxu0 0
          %4841 = vmatpush1.bf16.xpose.msra.mxu0 %v1094
          %4842 = vmatprep.subr.bf16.mxu0 0
          %4843 = vmatpush1.bf16.xpose.msra.mxu0 %v1097
          %4844 = vmatprep.subr.bf16.mxu0 0
          %4845 = vmatpush1.bf16.xpose.msra.mxu0 %v1100
          %4846 = vmatprep.subr.bf16.mxu0 0
          %4847 = vmatpush1.bf16.xpose.msra.mxu0 %v1103
          %4848 = vmatprep.subr.bf16.mxu0 0
          %4849 = vmatpush1.bf16.xpose.msra.mxu0 %v1106
          %4850 = vmatprep.subr.bf16.mxu0 0
          %4851 = vmatpush1.bf16.xpose.msra.mxu0 %v1109
          %4852 = vmatprep.subr.bf16.mxu0 0
          %4853 = vmatpush1.bf16.xpose.msra.mxu0 %v1112
          %4854 = vmatprep.subr.bf16.mxu0 0
          %4855 = vmatpush1.bf16.xpose.msra.mxu0 0
          %4856 = vmatprep.subr.bf16.mxu0 0
          %4857 = vmatpush1.bf16.xpose.msra.mxu0 0
          %4858 = vmatprep.subr.bf16.mxu0 0
          %4859 = vmatpush1.bf16.xpose.msra.mxu0 0
          %4860 = vmatprep.subr.bf16.mxu0 0
          %4861 = vmatpush1.bf16.xpose.msra.mxu0 0
          %4862 = vmatprep.subr.bf16.mxu0 0
          %4863 = vmatpush1.bf16.xpose.msra.mxu0 0
          %4864 = vmatprep.subr.bf16.mxu0 0
          %4865 = vmatpush1.bf16.xpose.msra.mxu0 0
          %4866 = vmatprep.subr.bf16.mxu0 0
          %4867 = vmatpush1.bf16.xpose.msra.mxu0 0
          %4868 = vmatprep.subr.bf16.mxu0 0
          %4869 = vmatpush1.bf16.xpose.msra.mxu0 0
          %4870 = vmatprep.mubr.bf16.mxu0 0
          %4871 = vmatmul.mubr.bf16.gmra.mrb[0].mxu0 %v4815
          %v4872 = vpop.f32.mrb[0].mxu0
          %v4873 = vadd.f32 %v703, %v4872
          %v4874 = vpop.f32.mrb[0].mxu0
          %v4875 = vpop.f32.mrb[0].mxu0
          %v4876 = vadd.f32 %v703, %v4875
          %v4877 = vpop.f32.mrb[0].mxu0
          %4878 = vmatprep.mubr.bf16.mxu0 0
          %4879 = vmatmul.mubr.bf16.gmra.mrb[0].mxu0 %v4818
          %v4880 = vpop.f32.mrb[0].mxu0
          %v4881 = vadd.f32 %v703, %v4880
          %v4882 = vpop.f32.mrb[0].mxu0
          %v4883 = vpop.f32.mrb[0].mxu0
          %v4884 = vadd.f32 %v703, %v4883
          %v4885 = vpop.f32.mrb[0].mxu0
          %4886 = vmatprep.mubr.bf16.mxu0 0
          %4887 = vmatmul.mubr.bf16.gmra.mrb[0].mxu0 %v4821
          %v4888 = vpop.f32.mrb[0].mxu0
          %v4889 = vadd.f32 %v703, %v4888
          %v4890 = vpop.f32.mrb[0].mxu0
          %v4891 = vpop.f32.mrb[0].mxu0
          %v4892 = vadd.f32 %v703, %v4891
          %v4893 = vpop.f32.mrb[0].mxu0
          %4894 = vmatprep.mubr.bf16.mxu0 0
          %4895 = vmatmul.mubr.bf16.gmra.mrb[0].mxu0 %v4824
          %v4896 = vpop.f32.mrb[0].mxu0
          %v4897 = vadd.f32 %v703, %v4896
          %v4898 = vpop.f32.mrb[0].mxu0
          %v4899 = vpop.f32.mrb[0].mxu0
          %v4900 = vadd.f32 %v703, %v4899
          %v4901 = vpop.f32.mrb[0].mxu0
          %4902 = vmatprep.mubr.bf16.mxu0 0
          %4903 = vmatmul.mubr.bf16.gmra.mrb[0].mxu0 %v4827
          %v4904 = vpop.f32.mrb[0].mxu0
          %v4905 = vadd.f32 %v703, %v4904
          %v4906 = vpop.f32.mrb[0].mxu0
          %v4907 = vpop.f32.mrb[0].mxu0
          %v4908 = vadd.f32 %v703, %v4907
          %v4909 = vpop.f32.mrb[0].mxu0
          %4910 = vmatprep.mubr.bf16.mxu0 0
          %4911 = vmatmul.mubr.bf16.gmra.mrb[0].mxu0 %v4830
          %v4912 = vpop.f32.mrb[0].mxu0
          %v4913 = vadd.f32 %v703, %v4912
          %v4914 = vpop.f32.mrb[0].mxu0
          %v4915 = vpop.f32.mrb[0].mxu0
          %v4916 = vadd.f32 %v703, %v4915
          %v4917 = vpop.f32.mrb[0].mxu0
          %4918 = vmatprep.mubr.bf16.mxu0 0
          %4919 = vmatmul.mubr.bf16.gmra.mrb[0].mxu0 %v4833
          %v4920 = vpop.f32.mrb[0].mxu0
          %v4921 = vadd.f32 %v703, %v4920
          %v4922 = vpop.f32.mrb[0].mxu0
          %v4923 = vpop.f32.mrb[0].mxu0
          %v4924 = vadd.f32 %v703, %v4923
          %v4925 = vpop.f32.mrb[0].mxu0
          %4926 = vmatprep.mubr.bf16.mxu0 0
          %4927 = vmatmul.mubr.bf16.gmra.mrb[0].mxu0 %v4836
          %v4928 = vpop.f32.mrb[0].mxu0
          %v4929 = vadd.f32 %v703, %v4928
          %v4930 = vpop.f32.mrb[0].mxu0
          %v4931 = vpop.f32.mrb[0].mxu0
          %v4932 = vadd.f32 %v703, %v4931
          %v4933 = vpop.f32.mrb[0].mxu0
          %4934 = vdwg.mxu0
          %4935 = vmax.xlane.f32.xlu0 %v4873
          %v4936 = vpop.xlane.xlu0 %4935
          %4937 = vmax.xlane.f32.xlu0 %v4876
          %v4938 = vpop.xlane.xlu0 %4937
          %4939 = vmax.xlane.f32.xlu0 %v4881
          %v4940 = vpop.xlane.xlu0 %4939
          %4941 = vmax.xlane.f32.xlu0 %v4884
          %v4942 = vpop.xlane.xlu0 %4941
          %4943 = vmax.xlane.f32.xlu0 %v4889
          %v4944 = vpop.xlane.xlu0 %4943
          %4945 = vmax.xlane.f32.xlu0 %v4892
          %v4946 = vpop.xlane.xlu0 %4945
          %4947 = vmax.xlane.f32.xlu0 %v4897
          %v4948 = vpop.xlane.xlu0 %4947
          %4949 = vmax.xlane.f32.xlu0 %v4900
          %v4950 = vpop.xlane.xlu0 %4949
          %4951 = vmax.xlane.f32.xlu0 %v4905
          %v4952 = vpop.xlane.xlu0 %4951
          %4953 = vmax.xlane.f32.xlu0 %v4908
          %v4954 = vpop.xlane.xlu0 %4953
          %4955 = vmax.xlane.f32.xlu0 %v4913
          %v4956 = vpop.xlane.xlu0 %4955
          %4957 = vmax.xlane.f32.xlu0 %v4916
          %v4958 = vpop.xlane.xlu0 %4957
          %4959 = vmax.xlane.f32.xlu0 %v4921
          %v4960 = vpop.xlane.xlu0 %4959
          %4961 = vmax.xlane.f32.xlu0 %v4924
          %v4962 = vpop.xlane.xlu0 %4961
          %4963 = vmax.xlane.f32.xlu0 %v4929
          %v4964 = vpop.xlane.xlu0 %4963
          %4965 = vmax.xlane.f32.xlu0 %v4932
          %v4966 = vpop.xlane.xlu0 %4965
          %v4967 = vsub.f32 %v4873, %v4936
          %v4968 = vsub.f32 %v4876, %v4938
          %v4969 = vsub.f32 %v4881, %v4940
          %v4970 = vsub.f32 %v4884, %v4942
          %v4971 = vsub.f32 %v4889, %v4944
          %v4972 = vsub.f32 %v4892, %v4946
          %v4973 = vsub.f32 %v4897, %v4948
          %v4974 = vsub.f32 %v4900, %v4950
          %v4975 = vsub.f32 %v4905, %v4952
          %v4976 = vsub.f32 %v4908, %v4954
          %v4977 = vsub.f32 %v4913, %v4956
          %v4978 = vsub.f32 %v4916, %v4958
          %v4979 = vsub.f32 %v4921, %v4960
          %v4980 = vsub.f32 %v4924, %v4962
          %v4981 = vsub.f32 %v4929, %v4964
          %v4982 = vsub.f32 %v4932, %v4966
          %v4983 = vmul.f32 %v4967, 1.442695
          %v4984 = vpow.pop %v4983
          %v4985 = vmul.f32 %v4968, 1.442695
          %v4986 = vpow.pop %v4985
          %v4987 = vmul.f32 %v4969, 1.442695
          %v4988 = vpow.pop %v4987
          %v4989 = vmul.f32 %v4970, 1.442695
          %v4990 = vpow.pop %v4989
          %v4991 = vmul.f32 %v4971, 1.442695
          %v4992 = vpow.pop %v4991
          %v4993 = vmul.f32 %v4972, 1.442695
          %v4994 = vpow.pop %v4993
          %v4995 = vmul.f32 %v4973, 1.442695
          %v4996 = vpow.pop %v4995
          %v4997 = vmul.f32 %v4974, 1.442695
          %v4998 = vpow.pop %v4997
          %v4999 = vmul.f32 %v4975, 1.442695
          %v5000 = vpow.pop %v4999
          %v5001 = vmul.f32 %v4976, 1.442695
          %v5002 = vpow.pop %v5001
          %v5003 = vmul.f32 %v4977, 1.442695
          %v5004 = vpow.pop %v5003
          %v5005 = vmul.f32 %v4978, 1.442695
          %v5006 = vpow.pop %v5005
          %v5007 = vmul.f32 %v4979, 1.442695
          %v5008 = vpow.pop %v5007
          %v5009 = vmul.f32 %v4980, 1.442695
          %v5010 = vpow.pop %v5009
          %v5011 = vmul.f32 %v4981, 1.442695
          %v5012 = vpow.pop %v5011
          %v5013 = vmul.f32 %v4982, 1.442695
          %v5014 = vpow.pop %v5013
          %5015 = vadd.xlane.f32.xlu0 %v4984
          %v5016 = vpop.xlane.xlu0 %5015
          %5017 = vadd.xlane.f32.xlu0 %v4986
          %v5018 = vpop.xlane.xlu0 %5017
          %5019 = vadd.xlane.f32.xlu0 %v4988
          %v5020 = vpop.xlane.xlu0 %5019
          %5021 = vadd.xlane.f32.xlu0 %v4990
          %v5022 = vpop.xlane.xlu0 %5021
          %5023 = vadd.xlane.f32.xlu0 %v4992
          %v5024 = vpop.xlane.xlu0 %5023
          %5025 = vadd.xlane.f32.xlu0 %v4994
          %v5026 = vpop.xlane.xlu0 %5025
          %5027 = vadd.xlane.f32.xlu0 %v4996
          %v5028 = vpop.xlane.xlu0 %5027
          %5029 = vadd.xlane.f32.xlu0 %v4998
          %v5030 = vpop.xlane.xlu0 %5029
          %5031 = vadd.xlane.f32.xlu0 %v5000
          %v5032 = vpop.xlane.xlu0 %5031
          %5033 = vadd.xlane.f32.xlu0 %v5002
          %v5034 = vpop.xlane.xlu0 %5033
          %5035 = vadd.xlane.f32.xlu0 %v5004
          %v5036 = vpop.xlane.xlu0 %5035
          %5037 = vadd.xlane.f32.xlu0 %v5006
          %v5038 = vpop.xlane.xlu0 %5037
          %5039 = vadd.xlane.f32.xlu0 %v5008
          %v5040 = vpop.xlane.xlu0 %5039
          %5041 = vadd.xlane.f32.xlu0 %v5010
          %v5042 = vpop.xlane.xlu0 %5041
          %5043 = vadd.xlane.f32.xlu0 %v5012
          %v5044 = vpop.xlane.xlu0 %5043
          %5045 = vadd.xlane.f32.xlu0 %v5014
          %v5046 = vpop.xlane.xlu0 %5045
          %v5047 = vrcp.pop %v5016
          %v5048 = vrcp.pop %v5018
          %v5049 = vrcp.pop %v5020
          %v5050 = vrcp.pop %v5022
          %v5051 = vrcp.pop %v5024
          %v5052 = vrcp.pop %v5026
          %v5053 = vrcp.pop %v5028
          %v5054 = vrcp.pop %v5030
          %v5055 = vrcp.pop %v5032
          %v5056 = vrcp.pop %v5034
          %v5057 = vrcp.pop %v5036
          %v5058 = vrcp.pop %v5038
          %v5059 = vrcp.pop %v5040
          %v5060 = vrcp.pop %v5042
          %v5061 = vrcp.pop %v5044
          %v5062 = vrcp.pop %v5046
          %v5063 = vpack.c.bf16 %v4986, %v4984
          %v5064 = vpack.c.bf16 %v4990, %v4988
          %v5065 = vpack.c.bf16 %v4994, %v4992
          %v5066 = vpack.c.bf16 %v4998, %v4996
          %v5067 = vpack.c.bf16 %v5002, %v5000
          %v5068 = vpack.c.bf16 %v5006, %v5004
          %v5069 = vpack.c.bf16 %v5010, %v5008
          %v5070 = vpack.c.bf16 %v5014, %v5012
          %5079 = vrot.lane.b32.xlu0 %v1699, 64
          %v5080 = vpop.permute.xlu0 %5079
          %5081 = vrot.lane.b32.xlu0 %v1703, 64
          %v5082 = vpop.permute.xlu0 %5081
          %5083 = vrot.lane.b32.xlu0 %v1707, 64
          %v5084 = vpop.permute.xlu0 %5083
          %5085 = vrot.lane.b32.xlu0 %v1711, 64
          %v5086 = vpop.permute.xlu0 %5085
          %5087 = vrot.lane.b32.xlu0 %v1715, 64
          %v5088 = vpop.permute.xlu0 %5087
          %5089 = vrot.lane.b32.xlu0 %v1719, 64
          %v5090 = vpop.permute.xlu0 %5089
          %5091 = vrot.lane.b32.xlu0 %v1723, 64
          %v5092 = vpop.permute.xlu0 %5091
          %5093 = vrot.lane.b32.xlu0 %v1727, 64
          %v5094 = vpop.permute.xlu0 %5093
          %5103 = vmatprep.subr.bf16.mxu0 0
          %5104 = vmatpush1.bf16.msra.mxu0 %v5080
          %5105 = vmatprep.subr.bf16.mxu0 0
          %5106 = vmatpush1.bf16.msra.mxu0 %v5082
          %5107 = vmatprep.subr.bf16.mxu0 0
          %5108 = vmatpush1.bf16.msra.mxu0 %v5084
          %5109 = vmatprep.subr.bf16.mxu0 0
          %5110 = vmatpush1.bf16.msra.mxu0 %v5086
          %5111 = vmatprep.subr.bf16.mxu0 0
          %5112 = vmatpush1.bf16.msra.mxu0 %v5088
          %5113 = vmatprep.subr.bf16.mxu0 0
          %5114 = vmatpush1.bf16.msra.mxu0 %v5090
          %5115 = vmatprep.subr.bf16.mxu0 0
          %5116 = vmatpush1.bf16.msra.mxu0 %v5092
          %5117 = vmatprep.subr.bf16.mxu0 0
          %5118 = vmatpush1.bf16.msra.mxu0 %v5094
          %5119 = vmatprep.subr.bf16.mxu0 0
          %5120 = vmatpush1.bf16.msra.mxu0 0
          %5121 = vmatprep.subr.bf16.mxu0 0
          %5122 = vmatpush1.bf16.msra.mxu0 0
          %5123 = vmatprep.subr.bf16.mxu0 0
          %5124 = vmatpush1.bf16.msra.mxu0 0
          %5125 = vmatprep.subr.bf16.mxu0 0
          %5126 = vmatpush1.bf16.msra.mxu0 0
          %5127 = vmatprep.subr.bf16.mxu0 0
          %5128 = vmatpush1.bf16.msra.mxu0 0
          %5129 = vmatprep.subr.bf16.mxu0 0
          %5130 = vmatpush1.bf16.msra.mxu0 0
          %5131 = vmatprep.subr.bf16.mxu0 0
          %5132 = vmatpush1.bf16.msra.mxu0 0
          %5133 = vmatprep.subr.bf16.mxu0 0
          %5134 = vmatpush1.bf16.msra.mxu0 0
          %5135 = vmatprep.mubr.bf16.mxu0 0
          %5136 = vmatmul.mubr.bf16.gmra.mrb[0].mxu0 %v5063
          %v5137 = vpop.f32.mrb[0].mxu0
          %v5138 = vadd.f32 0.0, %v5137
          %v5139 = vpop.f32.mrb[0].mxu0
          %v5140 = vpop.f32.mrb[0].mxu0
          %v5141 = vadd.f32 0.0, %v5140
          %v5142 = vpop.f32.mrb[0].mxu0
          %5143 = vmatprep.mubr.bf16.mxu0 0
          %5144 = vmatmul.mubr.bf16.gmra.mrb[0].mxu0 %v5064
          %v5145 = vpop.f32.mrb[0].mxu0
          %v5146 = vadd.f32 0.0, %v5145
          %v5147 = vpop.f32.mrb[0].mxu0
          %v5148 = vpop.f32.mrb[0].mxu0
          %v5149 = vadd.f32 0.0, %v5148
          %v5150 = vpop.f32.mrb[0].mxu0
          %5151 = vmatprep.mubr.bf16.mxu0 0
          %5152 = vmatmul.mubr.bf16.gmra.mrb[0].mxu0 %v5065
          %v5153 = vpop.f32.mrb[0].mxu0
          %v5154 = vadd.f32 0.0, %v5153
          %v5155 = vpop.f32.mrb[0].mxu0
          %v5156 = vpop.f32.mrb[0].mxu0
          %v5157 = vadd.f32 0.0, %v5156
          %v5158 = vpop.f32.mrb[0].mxu0
          %5159 = vmatprep.mubr.bf16.mxu0 0
          %5160 = vmatmul.mubr.bf16.gmra.mrb[0].mxu0 %v5066
          %v5161 = vpop.f32.mrb[0].mxu0
          %v5162 = vadd.f32 0.0, %v5161
          %v5163 = vpop.f32.mrb[0].mxu0
          %v5164 = vpop.f32.mrb[0].mxu0
          %v5165 = vadd.f32 0.0, %v5164
          %v5166 = vpop.f32.mrb[0].mxu0
          %5167 = vmatprep.mubr.bf16.mxu0 0
          %5168 = vmatmul.mubr.bf16.gmra.mrb[0].mxu0 %v5067
          %v5169 = vpop.f32.mrb[0].mxu0
          %v5170 = vadd.f32 0.0, %v5169
          %v5171 = vpop.f32.mrb[0].mxu0
          %v5172 = vpop.f32.mrb[0].mxu0
          %v5173 = vadd.f32 0.0, %v5172
          %v5174 = vpop.f32.mrb[0].mxu0
          %5175 = vmatprep.mubr.bf16.mxu0 0
          %5176 = vmatmul.mubr.bf16.gmra.mrb[0].mxu0 %v5068
          %v5177 = vpop.f32.mrb[0].mxu0
          %v5178 = vadd.f32 0.0, %v5177
          %v5179 = vpop.f32.mrb[0].mxu0
          %v5180 = vpop.f32.mrb[0].mxu0
          %v5181 = vadd.f32 0.0, %v5180
          %v5182 = vpop.f32.mrb[0].mxu0
          %5183 = vmatprep.mubr.bf16.mxu0 0
          %5184 = vmatmul.mubr.bf16.gmra.mrb[0].mxu0 %v5069
          %v5185 = vpop.f32.mrb[0].mxu0
          %v5186 = vadd.f32 0.0, %v5185
          %v5187 = vpop.f32.mrb[0].mxu0
          %v5188 = vpop.f32.mrb[0].mxu0
          %v5189 = vadd.f32 0.0, %v5188
          %v5190 = vpop.f32.mrb[0].mxu0
          %5191 = vmatprep.mubr.bf16.mxu0 0
          %5192 = vmatmul.mubr.bf16.gmra.mrb[0].mxu0 %v5070
          %v5193 = vpop.f32.mrb[0].mxu0
          %v5194 = vadd.f32 0.0, %v5193
          %v5195 = vpop.f32.mrb[0].mxu0
          %v5196 = vpop.f32.mrb[0].mxu0
          %v5197 = vadd.f32 0.0, %v5196
          %v5198 = vpop.f32.mrb[0].mxu0
          %5199 = vdwg.mxu0
          %v5200 = vmul.f32 %v5138, %v5047
          %v5201 = vmul.f32 %v5141, %v5048
          %v5202 = vmul.f32 %v5146, %v5049
          %v5203 = vmul.f32 %v5149, %v5050
          %v5204 = vmul.f32 %v5154, %v5051
          %v5205 = vmul.f32 %v5157, %v5052
          %v5206 = vmul.f32 %v5162, %v5053
          %v5207 = vmul.f32 %v5165, %v5054
          %v5208 = vmul.f32 %v5170, %v5055
          %v5209 = vmul.f32 %v5173, %v5056
          %v5210 = vmul.f32 %v5178, %v5057
          %v5211 = vmul.f32 %v5181, %v5058
          %v5212 = vmul.f32 %v5186, %v5059
          %v5213 = vmul.f32 %v5189, %v5060
          %v5214 = vmul.f32 %v5194, %v5061
          %v5215 = vmul.f32 %v5197, %v5062
          %v5216 = vld [vmem:[#allocation3] sm:$0xff]
          %v5217 = vld [vmem:[#allocation3 + $0x8] sm:$0xff]
          %v5218 = vld [vmem:[#allocation3 + $0x10] sm:$0xff]
          %v5219 = vld [vmem:[#allocation3 + $0x18] sm:$0xff]
          %v5220 = vld [vmem:[#allocation3 + $0x20] sm:$0xff]
          %v5221 = vld [vmem:[#allocation3 + $0x28] sm:$0xff]
          %v5222 = vld [vmem:[#allocation3 + $0x30] sm:$0xff]
          %v5223 = vld [vmem:[#allocation3 + $0x38] sm:$0xff]
          %v5224 = vld [vmem:[#allocation3 + $0x40] sm:$0xff]
          %v5225 = vld [vmem:[#allocation3 + $0x48] sm:$0xff]
          %v5226 = vld [vmem:[#allocation3 + $0x50] sm:$0xff]
          %v5227 = vld [vmem:[#allocation3 + $0x58] sm:$0xff]
          %v5228 = vld [vmem:[#allocation3 + $0x60] sm:$0xff]
          %v5229 = vld [vmem:[#allocation3 + $0x68] sm:$0xff]
          %v5230 = vld [vmem:[#allocation3 + $0x70] sm:$0xff]
          %v5231 = vld [vmem:[#allocation3 + $0x78] sm:$0xff]
          %v5232 = vadd.f32 %v5216, %v5200
          %v5233 = vadd.f32 %v5217, %v5201
          %v5234 = vadd.f32 %v5218, %v5202
          %v5235 = vadd.f32 %v5219, %v5203
          %v5236 = vadd.f32 %v5220, %v5204
          %v5237 = vadd.f32 %v5221, %v5205
          %v5238 = vadd.f32 %v5222, %v5206
          %v5239 = vadd.f32 %v5223, %v5207
          %v5240 = vadd.f32 %v5224, %v5208
          %v5241 = vadd.f32 %v5225, %v5209
          %v5242 = vadd.f32 %v5226, %v5210
          %v5243 = vadd.f32 %v5227, %v5211
          %v5244 = vadd.f32 %v5228, %v5212
          %v5245 = vadd.f32 %v5229, %v5213
          %v5246 = vadd.f32 %v5230, %v5214
          %v5247 = vadd.f32 %v5231, %v5215
          %5248 = vst.msk [vmem:[#allocation3] sm:$0xff] %vm683, %v5232
          %5249 = vst.msk [vmem:[#allocation3 + $0x8] sm:$0xff] %vm683, %v5233
          %5250 = vst.msk [vmem:[#allocation3 + $0x10] sm:$0xff] %vm683, %v5234
          %5251 = vst.msk [vmem:[#allocation3 + $0x18] sm:$0xff] %vm683, %v5235
          %5252 = vst.msk [vmem:[#allocation3 + $0x20] sm:$0xff] %vm683, %v5236
          %5253 = vst.msk [vmem:[#allocation3 + $0x28] sm:$0xff] %vm683, %v5237
          %5254 = vst.msk [vmem:[#allocation3 + $0x30] sm:$0xff] %vm683, %v5238
          %5255 = vst.msk [vmem:[#allocation3 + $0x38] sm:$0xff] %vm683, %v5239
          %5256 = vst.msk [vmem:[#allocation3 + $0x40] sm:$0xff] %vm683, %v5240
          %5257 = vst.msk [vmem:[#allocation3 + $0x48] sm:$0xff] %vm683, %v5241
          %5258 = vst.msk [vmem:[#allocation3 + $0x50] sm:$0xff] %vm683, %v5242
          %5259 = vst.msk [vmem:[#allocation3 + $0x58] sm:$0xff] %vm683, %v5243
          %5260 = vst.msk [vmem:[#allocation3 + $0x60] sm:$0xff] %vm683, %v5244
          %5261 = vst.msk [vmem:[#allocation3 + $0x68] sm:$0xff] %vm683, %v5245
          %5262 = vst.msk [vmem:[#allocation3 + $0x70] sm:$0xff] %vm683, %v5246
          %5263 = vst.msk [vmem:[#allocation3 + $0x78] sm:$0xff] %vm683, %v5247
          %v5264 = vld [vmem:[#allocation3] sm:$0xff]
          %v5265 = vld [vmem:[#allocation3 + $0x8] sm:$0xff]
          %v5266 = vld [vmem:[#allocation3 + $0x10] sm:$0xff]
          %v5267 = vld [vmem:[#allocation3 + $0x18] sm:$0xff]
          %v5268 = vld [vmem:[#allocation3 + $0x20] sm:$0xff]
          %v5269 = vld [vmem:[#allocation3 + $0x28] sm:$0xff]
          %v5270 = vld [vmem:[#allocation3 + $0x30] sm:$0xff]
          %v5271 = vld [vmem:[#allocation3 + $0x38] sm:$0xff]
          %v5272 = vld [vmem:[#allocation3 + $0x40] sm:$0xff]
          %v5273 = vld [vmem:[#allocation3 + $0x48] sm:$0xff]
          %v5274 = vld [vmem:[#allocation3 + $0x50] sm:$0xff]
          %v5275 = vld [vmem:[#allocation3 + $0x58] sm:$0xff]
          %v5276 = vld [vmem:[#allocation3 + $0x60] sm:$0xff]
          %v5277 = vld [vmem:[#allocation3 + $0x68] sm:$0xff]
          %v5278 = vld [vmem:[#allocation3 + $0x70] sm:$0xff]
          %v5279 = vld [vmem:[#allocation3 + $0x78] sm:$0xff]
          %v5280 = vadd.f32 %v710, %v5264
          %v5281 = vadd.f32 %v711, %v5265
          %v5282 = vadd.f32 %v712, %v5266
          %v5283 = vadd.f32 %v713, %v5267
          %v5284 = vadd.f32 %v714, %v5268
          %v5285 = vadd.f32 %v715, %v5269
          %v5286 = vadd.f32 %v716, %v5270
          %v5287 = vadd.f32 %v717, %v5271
          %v5288 = vadd.f32 %v718, %v5272
          %v5289 = vadd.f32 %v719, %v5273
          %v5290 = vadd.f32 %v720, %v5274
          %v5291 = vadd.f32 %v721, %v5275
          %v5292 = vadd.f32 %v722, %v5276
          %v5293 = vadd.f32 %v723, %v5277
          %v5294 = vadd.f32 %v724, %v5278
          %v5295 = vadd.f32 %v725, %v5279
          %s5296 = scalar_lea.vmem [#allocation8], %s705
          %v5297 = vld [vmem:[%s5296] sm:$0x1]
          %v5299 = vlaneseq
          %v5300 = vshrl.u32 %v5299, 7
          %v5301 = vsub.s32 0, %v5300
          %v5302 = vrot.slane %v5297, %v5301
          %v5304 = vadd.f32 %v5280, %v5302
          %v5305 = vadd.f32 %v5281, %v5302
          %v5306 = vadd.f32 %v5282, %v5302
          %v5307 = vadd.f32 %v5283, %v5302
          %v5308 = vadd.f32 %v5284, %v5302
          %v5309 = vadd.f32 %v5285, %v5302
          %v5310 = vadd.f32 %v5286, %v5302
          %v5311 = vadd.f32 %v5287, %v5302
          %v5312 = vadd.f32 %v5288, %v5302
          %v5313 = vadd.f32 %v5289, %v5302
          %v5314 = vadd.f32 %v5290, %v5302
          %v5315 = vadd.f32 %v5291, %v5302
          %v5316 = vadd.f32 %v5292, %v5302
          %v5317 = vadd.f32 %v5293, %v5302
          %v5318 = vadd.f32 %v5294, %v5302
          %v5319 = vadd.f32 %v5295, %v5302
          %s5320 = scalar_lea.vmem [#allocation9], %s705
          %v5321 = vld [vmem:[%s5320] sm:$0x1]
          %s5322 = scalar_lea.vmem [#allocation11], %s705
          %v5323 = vld [vmem:[%s5322] sm:$0x1]
          %v5324 = vsel %vm683, %v5304, 0.0
          %5325 = vadd.xlane.f32.xlu0 %v5324
          %v5326 = vpop.xlane.xlu0 %5325
          %v5327 = vsel %vm683, %v5305, 0.0
          %5328 = vadd.xlane.f32.xlu0 %v5327
          %v5329 = vpop.xlane.xlu0 %5328
          %v5330 = vsel %vm683, %v5306, 0.0
          %5331 = vadd.xlane.f32.xlu0 %v5330
          %v5332 = vpop.xlane.xlu0 %5331
          %v5333 = vsel %vm683, %v5307, 0.0
          %5334 = vadd.xlane.f32.xlu0 %v5333
          %v5335 = vpop.xlane.xlu0 %5334
          %v5336 = vsel %vm683, %v5308, 0.0
          %5337 = vadd.xlane.f32.xlu0 %v5336
          %v5338 = vpop.xlane.xlu0 %5337
          %v5339 = vsel %vm683, %v5309, 0.0
          %5340 = vadd.xlane.f32.xlu0 %v5339
          %v5341 = vpop.xlane.xlu0 %5340
          %v5342 = vsel %vm683, %v5310, 0.0
          %5343 = vadd.xlane.f32.xlu0 %v5342
          %v5344 = vpop.xlane.xlu0 %5343
          %v5345 = vsel %vm683, %v5311, 0.0
          %5346 = vadd.xlane.f32.xlu0 %v5345
          %v5347 = vpop.xlane.xlu0 %5346
          %v5348 = vsel %vm683, %v5312, 0.0
          %5349 = vadd.xlane.f32.xlu0 %v5348
          %v5350 = vpop.xlane.xlu0 %5349
          %v5351 = vsel %vm683, %v5313, 0.0
          %5352 = vadd.xlane.f32.xlu0 %v5351
          %v5353 = vpop.xlane.xlu0 %5352
          %v5354 = vsel %vm683, %v5314, 0.0
          %5355 = vadd.xlane.f32.xlu0 %v5354
          %v5356 = vpop.xlane.xlu0 %5355
          %v5357 = vsel %vm683, %v5315, 0.0
          %5358 = vadd.xlane.f32.xlu0 %v5357
          %v5359 = vpop.xlane.xlu0 %5358
          %v5360 = vsel %vm683, %v5316, 0.0
          %5361 = vadd.xlane.f32.xlu0 %v5360
          %v5362 = vpop.xlane.xlu0 %5361
          %v5363 = vsel %vm683, %v5317, 0.0
          %5364 = vadd.xlane.f32.xlu0 %v5363
          %v5365 = vpop.xlane.xlu0 %5364
          %v5366 = vsel %vm683, %v5318, 0.0
          %5367 = vadd.xlane.f32.xlu0 %v5366
          %v5368 = vpop.xlane.xlu0 %5367
          %v5369 = vsel %vm683, %v5319, 0.0
          %5370 = vadd.xlane.f32.xlu0 %v5369
          %v5371 = vpop.xlane.xlu0 %5370
          %v5372 = vmul.f32 %v5326, %v778
          %v5373 = vmul.f32 %v5329, %v778
          %v5374 = vmul.f32 %v5332, %v778
          %v5375 = vmul.f32 %v5335, %v778
          %v5376 = vmul.f32 %v5338, %v778
          %v5377 = vmul.f32 %v5341, %v778
          %v5378 = vmul.f32 %v5344, %v778
          %v5379 = vmul.f32 %v5347, %v778
          %v5380 = vmul.f32 %v5350, %v778
          %v5381 = vmul.f32 %v5353, %v778
          %v5382 = vmul.f32 %v5356, %v778
          %v5383 = vmul.f32 %v5359, %v778
          %v5384 = vmul.f32 %v5362, %v778
          %v5385 = vmul.f32 %v5365, %v778
          %v5386 = vmul.f32 %v5368, %v778
          %v5387 = vmul.f32 %v5371, %v778
          %v5388 = vsub.f32 %v5304, %v5372
          %v5389 = vsub.f32 %v5305, %v5373
          %v5390 = vsub.f32 %v5306, %v5374
          %v5391 = vsub.f32 %v5307, %v5375
          %v5392 = vsub.f32 %v5308, %v5376
          %v5393 = vsub.f32 %v5309, %v5377
          %v5394 = vsub.f32 %v5310, %v5378
          %v5395 = vsub.f32 %v5311, %v5379
          %v5396 = vsub.f32 %v5312, %v5380
          %v5397 = vsub.f32 %v5313, %v5381
          %v5398 = vsub.f32 %v5314, %v5382
          %v5399 = vsub.f32 %v5315, %v5383
          %v5400 = vsub.f32 %v5316, %v5384
          %v5401 = vsub.f32 %v5317, %v5385
          %v5402 = vsub.f32 %v5318, %v5386
          %v5403 = vsub.f32 %v5319, %v5387
          %v5404 = vmul.f32 %v5388, %v5388
          %v5405 = vmul.f32 %v5389, %v5389
          %v5406 = vmul.f32 %v5390, %v5390
          %v5407 = vmul.f32 %v5391, %v5391
          %v5408 = vmul.f32 %v5392, %v5392
          %v5409 = vmul.f32 %v5393, %v5393
          %v5410 = vmul.f32 %v5394, %v5394
          %v5411 = vmul.f32 %v5395, %v5395
          %v5412 = vmul.f32 %v5396, %v5396
          %v5413 = vmul.f32 %v5397, %v5397
          %v5414 = vmul.f32 %v5398, %v5398
          %v5415 = vmul.f32 %v5399, %v5399
          %v5416 = vmul.f32 %v5400, %v5400
          %v5417 = vmul.f32 %v5401, %v5401
          %v5418 = vmul.f32 %v5402, %v5402
          %v5419 = vmul.f32 %v5403, %v5403
          %v5420 = vsel %vm683, %v5404, 0.0
          %5421 = vadd.xlane.f32.xlu0 %v5420
          %v5422 = vpop.xlane.xlu0 %5421
          %v5423 = vsel %vm683, %v5405, 0.0
          %5424 = vadd.xlane.f32.xlu0 %v5423
          %v5425 = vpop.xlane.xlu0 %5424
          %v5426 = vsel %vm683, %v5406, 0.0
          %5427 = vadd.xlane.f32.xlu0 %v5426
          %v5428 = vpop.xlane.xlu0 %5427
          %v5429 = vsel %vm683, %v5407, 0.0
          %5430 = vadd.xlane.f32.xlu0 %v5429
          %v5431 = vpop.xlane.xlu0 %5430
          %v5432 = vsel %vm683, %v5408, 0.0
          %5433 = vadd.xlane.f32.xlu0 %v5432
          %v5434 = vpop.xlane.xlu0 %5433
          %v5435 = vsel %vm683, %v5409, 0.0
          %5436 = vadd.xlane.f32.xlu0 %v5435
          %v5437 = vpop.xlane.xlu0 %5436
          %v5438 = vsel %vm683, %v5410, 0.0
          %5439 = vadd.xlane.f32.xlu0 %v5438
          %v5440 = vpop.xlane.xlu0 %5439
          %v5441 = vsel %vm683, %v5411, 0.0
          %5442 = vadd.xlane.f32.xlu0 %v5441
          %v5443 = vpop.xlane.xlu0 %5442
          %v5444 = vsel %vm683, %v5412, 0.0
          %5445 = vadd.xlane.f32.xlu0 %v5444
          %v5446 = vpop.xlane.xlu0 %5445
          %v5447 = vsel %vm683, %v5413, 0.0
          %5448 = vadd.xlane.f32.xlu0 %v5447
          %v5449 = vpop.xlane.xlu0 %5448
          %v5450 = vsel %vm683, %v5414, 0.0
          %5451 = vadd.xlane.f32.xlu0 %v5450
          %v5452 = vpop.xlane.xlu0 %5451
          %v5453 = vsel %vm683, %v5415, 0.0
          %5454 = vadd.xlane.f32.xlu0 %v5453
          %v5455 = vpop.xlane.xlu0 %5454
          %v5456 = vsel %vm683, %v5416, 0.0
          %5457 = vadd.xlane.f32.xlu0 %v5456
          %v5458 = vpop.xlane.xlu0 %5457
          %v5459 = vsel %vm683, %v5417, 0.0
          %5460 = vadd.xlane.f32.xlu0 %v5459
          %v5461 = vpop.xlane.xlu0 %5460
          %v5462 = vsel %vm683, %v5418, 0.0
          %5463 = vadd.xlane.f32.xlu0 %v5462
          %v5464 = vpop.xlane.xlu0 %5463
          %v5465 = vsel %vm683, %v5419, 0.0
          %5466 = vadd.xlane.f32.xlu0 %v5465
          %v5467 = vpop.xlane.xlu0 %5466
          %v5468 = vmul.f32 %v5422, %v778
          %v5469 = vmul.f32 %v5425, %v778
          %v5470 = vmul.f32 %v5428, %v778
          %v5471 = vmul.f32 %v5431, %v778
          %v5472 = vmul.f32 %v5434, %v778
          %v5473 = vmul.f32 %v5437, %v778
          %v5474 = vmul.f32 %v5440, %v778
          %v5475 = vmul.f32 %v5443, %v778
          %v5476 = vmul.f32 %v5446, %v778
          %v5477 = vmul.f32 %v5449, %v778
          %v5478 = vmul.f32 %v5452, %v778
          %v5479 = vmul.f32 %v5455, %v778
          %v5480 = vmul.f32 %v5458, %v778
          %v5481 = vmul.f32 %v5461, %v778
          %v5482 = vmul.f32 %v5464, %v778
          %v5483 = vmul.f32 %v5467, %v778
          %v5484 = vadd.f32 %v5468, 1e-05
          %v5485 = vadd.f32 %v5469, 1e-05
          %v5486 = vadd.f32 %v5470, 1e-05
          %v5487 = vadd.f32 %v5471, 1e-05
          %v5488 = vadd.f32 %v5472, 1e-05
          %v5489 = vadd.f32 %v5473, 1e-05
          %v5490 = vadd.f32 %v5474, 1e-05
          %v5491 = vadd.f32 %v5475, 1e-05
          %v5492 = vadd.f32 %v5476, 1e-05
          %v5493 = vadd.f32 %v5477, 1e-05
          %v5494 = vadd.f32 %v5478, 1e-05
          %v5495 = vadd.f32 %v5479, 1e-05
          %v5496 = vadd.f32 %v5480, 1e-05
          %v5497 = vadd.f32 %v5481, 1e-05
          %v5498 = vadd.f32 %v5482, 1e-05
          %v5499 = vadd.f32 %v5483, 1e-05
          %v5500 = vrsqrt.pop %v5484
          %v5501 = vrsqrt.pop %v5485
          %v5502 = vrsqrt.pop %v5486
          %v5503 = vrsqrt.pop %v5487
          %v5504 = vrsqrt.pop %v5488
          %v5505 = vrsqrt.pop %v5489
          %v5506 = vrsqrt.pop %v5490
          %v5507 = vrsqrt.pop %v5491
          %v5508 = vrsqrt.pop %v5492
          %v5509 = vrsqrt.pop %v5493
          %v5510 = vrsqrt.pop %v5494
          %v5511 = vrsqrt.pop %v5495
          %v5512 = vrsqrt.pop %v5496
          %v5513 = vrsqrt.pop %v5497
          %v5514 = vrsqrt.pop %v5498
          %v5515 = vrsqrt.pop %v5499
          %v5516 = vmul.f32 %v5388, %v5500
          %v5517 = vmul.f32 %v5389, %v5501
          %v5518 = vmul.f32 %v5390, %v5502
          %v5519 = vmul.f32 %v5391, %v5503
          %v5520 = vmul.f32 %v5392, %v5504
          %v5521 = vmul.f32 %v5393, %v5505
          %v5522 = vmul.f32 %v5394, %v5506
          %v5523 = vmul.f32 %v5395, %v5507
          %v5524 = vmul.f32 %v5396, %v5508
          %v5525 = vmul.f32 %v5397, %v5509
          %v5526 = vmul.f32 %v5398, %v5510
          %v5527 = vmul.f32 %v5399, %v5511
          %v5528 = vmul.f32 %v5400, %v5512
          %v5529 = vmul.f32 %v5401, %v5513
          %v5530 = vmul.f32 %v5402, %v5514
          %v5531 = vmul.f32 %v5403, %v5515
          %v5533 = vlaneseq
          %v5534 = vshrl.u32 %v5533, 7
          %v5535 = vsub.s32 0, %v5534
          %v5536 = vrot.slane %v5321, %v5535
          %v5538 = vmul.f32 %v5516, %v5536
          %v5539 = vmul.f32 %v5517, %v5536
          %v5540 = vmul.f32 %v5518, %v5536
          %v5541 = vmul.f32 %v5519, %v5536
          %v5542 = vmul.f32 %v5520, %v5536
          %v5543 = vmul.f32 %v5521, %v5536
          %v5544 = vmul.f32 %v5522, %v5536
          %v5545 = vmul.f32 %v5523, %v5536
          %v5546 = vmul.f32 %v5524, %v5536
          %v5547 = vmul.f32 %v5525, %v5536
          %v5548 = vmul.f32 %v5526, %v5536
          %v5549 = vmul.f32 %v5527, %v5536
          %v5550 = vmul.f32 %v5528, %v5536
          %v5551 = vmul.f32 %v5529, %v5536
          %v5552 = vmul.f32 %v5530, %v5536
          %v5553 = vmul.f32 %v5531, %v5536
          %v5555 = vlaneseq
          %v5556 = vshrl.u32 %v5555, 7
          %v5557 = vsub.s32 0, %v5556
          %v5558 = vrot.slane %v5323, %v5557
          %v5560 = vadd.f32 %v5538, %v5558
          %v5561 = vadd.f32 %v5539, %v5558
          %v5562 = vadd.f32 %v5540, %v5558
          %v5563 = vadd.f32 %v5541, %v5558
          %v5564 = vadd.f32 %v5542, %v5558
          %v5565 = vadd.f32 %v5543, %v5558
          %v5566 = vadd.f32 %v5544, %v5558
          %v5567 = vadd.f32 %v5545, %v5558
          %v5568 = vadd.f32 %v5546, %v5558
          %v5569 = vadd.f32 %v5547, %v5558
          %v5570 = vadd.f32 %v5548, %v5558
          %v5571 = vadd.f32 %v5549, %v5558
          %v5572 = vadd.f32 %v5550, %v5558
          %v5573 = vadd.f32 %v5551, %v5558
          %v5574 = vadd.f32 %v5552, %v5558
          %v5575 = vadd.f32 %v5553, %v5558
          %v5576 = vpack.c.bf16 %v5561, %v5560
          %v5577 = vpack.c.bf16 %v5563, %v5562
          %v5578 = vpack.c.bf16 %v5565, %v5564
          %v5579 = vpack.c.bf16 %v5567, %v5566
          %v5580 = vpack.c.bf16 %v5569, %v5568
          %v5581 = vpack.c.bf16 %v5571, %v5570
          %v5582 = vpack.c.bf16 %v5573, %v5572
          %v5583 = vpack.c.bf16 %v5575, %v5574
          %s5584 = smul.u32 %s705, 16
          %s5585 = smul.addr %s5584, 4
          %s5586 = scalar_lea.vmem [#allocation12], %s5585
          %v5587 = vld [vmem:[%s5586] sm:$0xff]
          %v5588 = vld [vmem:[%s5586 + $0x8] sm:$0xff]
          %v5589 = vld [vmem:[%s5586 + $0x10] sm:$0xff]
          %v5590 = vld [vmem:[%s5586 + $0x18] sm:$0xff]
          %v5591 = vld [vmem:[%s5586 + $0x20] sm:$0xff]
          %v5592 = vld [vmem:[%s5586 + $0x28] sm:$0xff]
          %v5593 = vld [vmem:[%s5586 + $0x30] sm:$0xff]
          %v5594 = vld [vmem:[%s5586 + $0x38] sm:$0xff]
          %s5595 = smul.u32 %s705, 2
          %s5596 = scalar_lea.vmem [#allocation14], %s5595
          %v5597 = vld [vmem:[%s5596] sm:$0x3]
          %v5599 = vlaneseq
          %v5600 = vshrl.u32 %v5599, 7
          %v5601 = vsub.s32 0, %v5600
          %v5602 = vrot.slane %v5597, %v5601
          %v5603 = vlaneseq
          %v5604 = vshrl.u32 %v5603, 7
          %v5605 = vsub.s32 1, %v5604
          %v5606 = vrot.slane %v5597, %v5605
          %v5617 = vunpack.c.l.b16 %v5587
          %v5618 = vunpack.c.h.b16 %v5587
          %v5619 = vunpack.c.l.b16 %v5588
          %v5620 = vunpack.c.h.b16 %v5588
          %v5621 = vunpack.c.l.b16 %v5589
          %v5622 = vunpack.c.h.b16 %v5589
          %v5623 = vunpack.c.l.b16 %v5590
          %v5624 = vunpack.c.h.b16 %v5590
          %v5625 = vunpack.c.l.b16 %v5591
          %v5626 = vunpack.c.h.b16 %v5591
          %v5627 = vunpack.c.l.b16 %v5592
          %v5628 = vunpack.c.h.b16 %v5592
          %v5629 = vunpack.c.l.b16 %v5593
          %v5630 = vunpack.c.h.b16 %v5593
          %v5631 = vunpack.c.l.b16 %v5594
          %v5632 = vunpack.c.h.b16 %v5594
          %v5633 = vpack.c.b16 %v5619, %v5617
          %v5634 = vpack.c.b16 %v5620, %v5618
          %v5635 = vpack.c.b16 %v5623, %v5621
          %v5636 = vpack.c.b16 %v5624, %v5622
          %v5637 = vpack.c.b16 %v5627, %v5625
          %v5638 = vpack.c.b16 %v5628, %v5626
          %v5639 = vpack.c.b16 %v5631, %v5629
          %v5640 = vpack.c.b16 %v5632, %v5630
          %v5650 = vsel %vm683, %v5576, 0
          %v5653 = vsel %vm683, %v5577, 0
          %v5656 = vsel %vm683, %v5578, 0
          %v5659 = vsel %vm683, %v5579, 0
          %v5662 = vsel %vm683, %v5580, 0
          %v5665 = vsel %vm683, %v5581, 0
          %v5668 = vsel %vm683, %v5582, 0
          %v5671 = vsel %vm683, %v5583, 0
          %5673 = vmatprep.subr.bf16.mxu0 %v5634
          %5674 = vmatpush1.bf16.msra.mxu0 %v5633
          %5675 = vmatprep.subr.bf16.mxu0 %v5636
          %5676 = vmatpush1.bf16.msra.mxu0 %v5635
          %5677 = vmatprep.subr.bf16.mxu0 %v5638
          %5678 = vmatpush1.bf16.msra.mxu0 %v5637
          %5679 = vmatprep.subr.bf16.mxu0 %v5640
          %5680 = vmatpush1.bf16.msra.mxu0 %v5639
          %5681 = vmatprep.subr.bf16.mxu0 0
          %5682 = vmatpush1.bf16.msra.mxu0 0
          %5683 = vmatprep.subr.bf16.mxu0 0
          %5684 = vmatpush1.bf16.msra.mxu0 0
          %5685 = vmatprep.subr.bf16.mxu0 0
          %5686 = vmatpush1.bf16.msra.mxu0 0
          %5687 = vmatprep.subr.bf16.mxu0 0
          %5688 = vmatpush1.bf16.msra.mxu0 0
          %5689 = vmatprep.subr.bf16.mxu0 0
          %5690 = vmatpush1.bf16.msra.mxu0 0
          %5691 = vmatprep.subr.bf16.mxu0 0
          %5692 = vmatpush1.bf16.msra.mxu0 0
          %5693 = vmatprep.subr.bf16.mxu0 0
          %5694 = vmatpush1.bf16.msra.mxu0 0
          %5695 = vmatprep.subr.bf16.mxu0 0
          %5696 = vmatpush1.bf16.msra.mxu0 0
          %5697 = vmatprep.subr.bf16.mxu0 0
          %5698 = vmatpush1.bf16.msra.mxu0 0
          %5699 = vmatprep.subr.bf16.mxu0 0
          %5700 = vmatpush1.bf16.msra.mxu0 0
          %5701 = vmatprep.subr.bf16.mxu0 0
          %5702 = vmatpush1.bf16.msra.mxu0 0
          %5703 = vmatprep.subr.bf16.mxu0 0
          %5704 = vmatpush1.bf16.msra.mxu0 0
          %5705 = vmatprep.mubr.bf16.mxu0 0
          %5706 = vmatmul.mubr.bf16.gmra.mrb[0].mxu0 %v5650
          %v5707 = vpop.f32.mrb[0].mxu0
          %v5708 = vadd.f32 %v5602, %v5707
          %v5709 = vpop.f32.mrb[0].mxu0
          %v5710 = vadd.f32 %v5606, %v5709
          %v5711 = vpop.f32.mrb[0].mxu0
          %v5712 = vadd.f32 %v5602, %v5711
          %v5713 = vpop.f32.mrb[0].mxu0
          %v5714 = vadd.f32 %v5606, %v5713
          %5715 = vmatprep.mubr.bf16.mxu0 0
          %5716 = vmatmul.mubr.bf16.gmra.mrb[0].mxu0 %v5653
          %v5717 = vpop.f32.mrb[0].mxu0
          %v5718 = vadd.f32 %v5602, %v5717
          %v5719 = vpop.f32.mrb[0].mxu0
          %v5720 = vadd.f32 %v5606, %v5719
          %v5721 = vpop.f32.mrb[0].mxu0
          %v5722 = vadd.f32 %v5602, %v5721
          %v5723 = vpop.f32.mrb[0].mxu0
          %v5724 = vadd.f32 %v5606, %v5723
          %5725 = vmatprep.mubr.bf16.mxu0 0
          %5726 = vmatmul.mubr.bf16.gmra.mrb[0].mxu0 %v5656
          %v5727 = vpop.f32.mrb[0].mxu0
          %v5728 = vadd.f32 %v5602, %v5727
          %v5729 = vpop.f32.mrb[0].mxu0
          %v5730 = vadd.f32 %v5606, %v5729
          %v5731 = vpop.f32.mrb[0].mxu0
          %v5732 = vadd.f32 %v5602, %v5731
          %v5733 = vpop.f32.mrb[0].mxu0
          %v5734 = vadd.f32 %v5606, %v5733
          %5735 = vmatprep.mubr.bf16.mxu0 0
          %5736 = vmatmul.mubr.bf16.gmra.mrb[0].mxu0 %v5659
          %v5737 = vpop.f32.mrb[0].mxu0
          %v5738 = vadd.f32 %v5602, %v5737
          %v5739 = vpop.f32.mrb[0].mxu0
          %v5740 = vadd.f32 %v5606, %v5739
          %v5741 = vpop.f32.mrb[0].mxu0
          %v5742 = vadd.f32 %v5602, %v5741
          %v5743 = vpop.f32.mrb[0].mxu0
          %v5744 = vadd.f32 %v5606, %v5743
          %5745 = vmatprep.mubr.bf16.mxu0 0
          %5746 = vmatmul.mubr.bf16.gmra.mrb[0].mxu0 %v5662
          %v5747 = vpop.f32.mrb[0].mxu0
          %v5748 = vadd.f32 %v5602, %v5747
          %v5749 = vpop.f32.mrb[0].mxu0
          %v5750 = vadd.f32 %v5606, %v5749
          %v5751 = vpop.f32.mrb[0].mxu0
          %v5752 = vadd.f32 %v5602, %v5751
          %v5753 = vpop.f32.mrb[0].mxu0
          %v5754 = vadd.f32 %v5606, %v5753
          %5755 = vmatprep.mubr.bf16.mxu0 0
          %5756 = vmatmul.mubr.bf16.gmra.mrb[0].mxu0 %v5665
          %v5757 = vpop.f32.mrb[0].mxu0
          %v5758 = vadd.f32 %v5602, %v5757
          %v5759 = vpop.f32.mrb[0].mxu0
          %v5760 = vadd.f32 %v5606, %v5759
          %v5761 = vpop.f32.mrb[0].mxu0
          %v5762 = vadd.f32 %v5602, %v5761
          %v5763 = vpop.f32.mrb[0].mxu0
          %v5764 = vadd.f32 %v5606, %v5763
          %5765 = vmatprep.mubr.bf16.mxu0 0
          %5766 = vmatmul.mubr.bf16.gmra.mrb[0].mxu0 %v5668
          %v5767 = vpop.f32.mrb[0].mxu0
          %v5768 = vadd.f32 %v5602, %v5767
          %v5769 = vpop.f32.mrb[0].mxu0
          %v5770 = vadd.f32 %v5606, %v5769
          %v5771 = vpop.f32.mrb[0].mxu0
          %v5772 = vadd.f32 %v5602, %v5771
          %v5773 = vpop.f32.mrb[0].mxu0
          %v5774 = vadd.f32 %v5606, %v5773
          %5775 = vmatprep.mubr.bf16.mxu0 0
          %5776 = vmatmul.mubr.bf16.gmra.mrb[0].mxu0 %v5671
          %v5777 = vpop.f32.mrb[0].mxu0
          %v5778 = vadd.f32 %v5602, %v5777
          %v5779 = vpop.f32.mrb[0].mxu0
          %v5780 = vadd.f32 %v5606, %v5779
          %v5781 = vpop.f32.mrb[0].mxu0
          %v5782 = vadd.f32 %v5602, %v5781
          %v5783 = vpop.f32.mrb[0].mxu0
          %v5784 = vadd.f32 %v5606, %v5783
          %5785 = vdwg.mxu0
          %v5786 = vmax.f32 %v5708, 0.0
          %v5787 = vmax.f32 %v5710, 0.0
          %v5788 = vmax.f32 %v5712, 0.0
          %v5789 = vmax.f32 %v5714, 0.0
          %v5790 = vmax.f32 %v5718, 0.0
          %v5791 = vmax.f32 %v5720, 0.0
          %v5792 = vmax.f32 %v5722, 0.0
          %v5793 = vmax.f32 %v5724, 0.0
          %v5794 = vmax.f32 %v5728, 0.0
          %v5795 = vmax.f32 %v5730, 0.0
          %v5796 = vmax.f32 %v5732, 0.0
          %v5797 = vmax.f32 %v5734, 0.0
          %v5798 = vmax.f32 %v5738, 0.0
          %v5799 = vmax.f32 %v5740, 0.0
          %v5800 = vmax.f32 %v5742, 0.0
          %v5801 = vmax.f32 %v5744, 0.0
          %v5802 = vmax.f32 %v5748, 0.0
          %v5803 = vmax.f32 %v5750, 0.0
          %v5804 = vmax.f32 %v5752, 0.0
          %v5805 = vmax.f32 %v5754, 0.0
          %v5806 = vmax.f32 %v5758, 0.0
          %v5807 = vmax.f32 %v5760, 0.0
          %v5808 = vmax.f32 %v5762, 0.0
          %v5809 = vmax.f32 %v5764, 0.0
          %v5810 = vmax.f32 %v5768, 0.0
          %v5811 = vmax.f32 %v5770, 0.0
          %v5812 = vmax.f32 %v5772, 0.0
          %v5813 = vmax.f32 %v5774, 0.0
          %v5814 = vmax.f32 %v5778, 0.0
          %v5815 = vmax.f32 %v5780, 0.0
          %v5816 = vmax.f32 %v5782, 0.0
          %v5817 = vmax.f32 %v5784, 0.0
          %v5818 = vpack.c.bf16 %v5788, %v5786
          %v5819 = vpack.c.bf16 %v5789, %v5787
          %v5820 = vpack.c.bf16 %v5792, %v5790
          %v5821 = vpack.c.bf16 %v5793, %v5791
          %v5822 = vpack.c.bf16 %v5796, %v5794
          %v5823 = vpack.c.bf16 %v5797, %v5795
          %v5824 = vpack.c.bf16 %v5800, %v5798
          %v5825 = vpack.c.bf16 %v5801, %v5799
          %v5826 = vpack.c.bf16 %v5804, %v5802
          %v5827 = vpack.c.bf16 %v5805, %v5803
          %v5828 = vpack.c.bf16 %v5808, %v5806
          %v5829 = vpack.c.bf16 %v5809, %v5807
          %v5830 = vpack.c.bf16 %v5812, %v5810
          %v5831 = vpack.c.bf16 %v5813, %v5811
          %v5832 = vpack.c.bf16 %v5816, %v5814
          %v5833 = vpack.c.bf16 %v5817, %v5815
          %s5834 = smul.addr %s991, 4
          %s5835 = scalar_lea.vmem %s10, %s5834
          %v5836 = vld [vmem:[%s5835] sm:$0xf]
          %v5837 = vld [vmem:[%s5835 + $0x4] sm:$0xf]
          %v5838 = vld [vmem:[%s5835 + $0x8] sm:$0xf]
          %v5839 = vld [vmem:[%s5835 + $0xc] sm:$0xf]
          %v5840 = vld [vmem:[%s5835 + $0x10] sm:$0xf]
          %v5841 = vld [vmem:[%s5835 + $0x14] sm:$0xf]
          %v5842 = vld [vmem:[%s5835 + $0x18] sm:$0xf]
          %v5843 = vld [vmem:[%s5835 + $0x1c] sm:$0xf]
          %v5844 = vld [vmem:[%s5835 + $0x20] sm:$0xf]
          %v5845 = vld [vmem:[%s5835 + $0x24] sm:$0xf]
          %v5846 = vld [vmem:[%s5835 + $0x28] sm:$0xf]
          %v5847 = vld [vmem:[%s5835 + $0x2c] sm:$0xf]
          %v5848 = vld [vmem:[%s5835 + $0x30] sm:$0xf]
          %v5849 = vld [vmem:[%s5835 + $0x34] sm:$0xf]
          %v5850 = vld [vmem:[%s5835 + $0x38] sm:$0xf]
          %v5851 = vld [vmem:[%s5835 + $0x3c] sm:$0xf]
          %v5852 = vld [vmem:[%s5835 + $0x40] sm:$0xf]
          %v5853 = vld [vmem:[%s5835 + $0x44] sm:$0xf]
          %v5854 = vld [vmem:[%s5835 + $0x48] sm:$0xf]
          %v5855 = vld [vmem:[%s5835 + $0x4c] sm:$0xf]
          %v5856 = vld [vmem:[%s5835 + $0x50] sm:$0xf]
          %v5857 = vld [vmem:[%s5835 + $0x54] sm:$0xf]
          %v5858 = vld [vmem:[%s5835 + $0x58] sm:$0xf]
          %v5859 = vld [vmem:[%s5835 + $0x5c] sm:$0xf]
          %v5860 = vld [vmem:[%s5835 + $0x60] sm:$0xf]
          %v5861 = vld [vmem:[%s5835 + $0x64] sm:$0xf]
          %v5862 = vld [vmem:[%s5835 + $0x68] sm:$0xf]
          %v5863 = vld [vmem:[%s5835 + $0x6c] sm:$0xf]
          %v5864 = vld [vmem:[%s5835 + $0x70] sm:$0xf]
          %v5865 = vld [vmem:[%s5835 + $0x74] sm:$0xf]
          %v5866 = vld [vmem:[%s5835 + $0x78] sm:$0xf]
          %v5867 = vld [vmem:[%s5835 + $0x7c] sm:$0xf]
          %s5868 = scalar_lea.vmem [#allocation15], %s705
          %v5869 = vld [vmem:[%s5868] sm:$0x1]
          %v5871 = vlaneseq
          %v5872 = vshrl.u32 %v5871, 7
          %v5873 = vsub.s32 0, %v5872
          %v5874 = vrot.slane %v5869, %v5873
          %v5908 = vunpack.c.l.b16 %v5836
          %v5909 = vunpack.c.l.b16 %v5837
          %v5910 = vunpack.c.l.b16 %v5838
          %v5911 = vunpack.c.l.b16 %v5839
          %v5912 = vunpack.c.l.b16 %v5840
          %v5913 = vunpack.c.l.b16 %v5841
          %v5914 = vunpack.c.l.b16 %v5842
          %v5915 = vunpack.c.l.b16 %v5843
          %v5916 = vunpack.c.l.b16 %v5844
          %v5917 = vunpack.c.l.b16 %v5845
          %v5918 = vunpack.c.l.b16 %v5846
          %v5919 = vunpack.c.l.b16 %v5847
          %v5920 = vunpack.c.l.b16 %v5848
          %v5921 = vunpack.c.l.b16 %v5849
          %v5922 = vunpack.c.l.b16 %v5850
          %v5923 = vunpack.c.l.b16 %v5851
          %v5924 = vunpack.c.l.b16 %v5852
          %v5925 = vunpack.c.l.b16 %v5853
          %v5926 = vunpack.c.l.b16 %v5854
          %v5927 = vunpack.c.l.b16 %v5855
          %v5928 = vunpack.c.l.b16 %v5856
          %v5929 = vunpack.c.l.b16 %v5857
          %v5930 = vunpack.c.l.b16 %v5858
          %v5931 = vunpack.c.l.b16 %v5859
          %v5932 = vunpack.c.l.b16 %v5860
          %v5933 = vunpack.c.l.b16 %v5861
          %v5934 = vunpack.c.l.b16 %v5862
          %v5935 = vunpack.c.l.b16 %v5863
          %v5936 = vunpack.c.l.b16 %v5864
          %v5937 = vunpack.c.l.b16 %v5865
          %v5938 = vunpack.c.l.b16 %v5866
          %v5939 = vunpack.c.l.b16 %v5867
          %v5940 = vpack.c.b16 %v5909, %v5908
          %v5941 = vpack.c.b16 %v5911, %v5910
          %v5942 = vpack.c.b16 %v5913, %v5912
          %v5943 = vpack.c.b16 %v5915, %v5914
          %v5944 = vpack.c.b16 %v5917, %v5916
          %v5945 = vpack.c.b16 %v5919, %v5918
          %v5946 = vpack.c.b16 %v5921, %v5920
          %v5947 = vpack.c.b16 %v5923, %v5922
          %v5948 = vpack.c.b16 %v5925, %v5924
          %v5949 = vpack.c.b16 %v5927, %v5926
          %v5950 = vpack.c.b16 %v5929, %v5928
          %v5951 = vpack.c.b16 %v5931, %v5930
          %v5952 = vpack.c.b16 %v5933, %v5932
          %v5953 = vpack.c.b16 %v5935, %v5934
          %v5954 = vpack.c.b16 %v5937, %v5936
          %v5955 = vpack.c.b16 %v5939, %v5938
          %5972 = vmatprep.subr.bf16.mxu0 0
          %5973 = vmatpush1.bf16.msra.mxu0 %v5940
          %5974 = vmatprep.subr.bf16.mxu0 0
          %5975 = vmatpush1.bf16.msra.mxu0 %v5941
          %5976 = vmatprep.subr.bf16.mxu0 0
          %5977 = vmatpush1.bf16.msra.mxu0 %v5942
          %5978 = vmatprep.subr.bf16.mxu0 0
          %5979 = vmatpush1.bf16.msra.mxu0 %v5943
          %5980 = vmatprep.subr.bf16.mxu0 0
          %5981 = vmatpush1.bf16.msra.mxu0 %v5944
          %5982 = vmatprep.subr.bf16.mxu0 0
          %5983 = vmatpush1.bf16.msra.mxu0 %v5945
          %5984 = vmatprep.subr.bf16.mxu0 0
          %5985 = vmatpush1.bf16.msra.mxu0 %v5946
          %5986 = vmatprep.subr.bf16.mxu0 0
          %5987 = vmatpush1.bf16.msra.mxu0 %v5947
          %5988 = vmatprep.subr.bf16.mxu0 0
          %5989 = vmatpush1.bf16.msra.mxu0 %v5948
          %5990 = vmatprep.subr.bf16.mxu0 0
          %5991 = vmatpush1.bf16.msra.mxu0 %v5949
          %5992 = vmatprep.subr.bf16.mxu0 0
          %5993 = vmatpush1.bf16.msra.mxu0 %v5950
          %5994 = vmatprep.subr.bf16.mxu0 0
          %5995 = vmatpush1.bf16.msra.mxu0 %v5951
          %5996 = vmatprep.subr.bf16.mxu0 0
          %5997 = vmatpush1.bf16.msra.mxu0 %v5952
          %5998 = vmatprep.subr.bf16.mxu0 0
          %5999 = vmatpush1.bf16.msra.mxu0 %v5953
          %6000 = vmatprep.subr.bf16.mxu0 0
          %6001 = vmatpush1.bf16.msra.mxu0 %v5954
          %6002 = vmatprep.subr.bf16.mxu0 0
          %6003 = vmatpush1.bf16.msra.mxu0 %v5955
          %6004 = vmatprep.mubr.bf16.mxu0 %v5819
          %6005 = vmatmul.mubr.bf16.gmra.mrb[0].mxu0 %v5818
          %v6006 = vpop.f32.mrb[0].mxu0
          %v6007 = vadd.f32 %v5874, %v6006
          %v6008 = vpop.f32.mrb[0].mxu0
          %v6009 = vpop.f32.mrb[0].mxu0
          %v6010 = vadd.f32 %v5874, %v6009
          %v6011 = vpop.f32.mrb[0].mxu0
          %6012 = vmatprep.mubr.bf16.mxu0 %v5821
          %6013 = vmatmul.mubr.bf16.gmra.mrb[0].mxu0 %v5820
          %v6014 = vpop.f32.mrb[0].mxu0
          %v6015 = vadd.f32 %v5874, %v6014
          %v6016 = vpop.f32.mrb[0].mxu0
          %v6017 = vpop.f32.mrb[0].mxu0
          %v6018 = vadd.f32 %v5874, %v6017
          %v6019 = vpop.f32.mrb[0].mxu0
          %6020 = vmatprep.mubr.bf16.mxu0 %v5823
          %6021 = vmatmul.mubr.bf16.gmra.mrb[0].mxu0 %v5822
          %v6022 = vpop.f32.mrb[0].mxu0
          %v6023 = vadd.f32 %v5874, %v6022
          %v6024 = vpop.f32.mrb[0].mxu0
          %v6025 = vpop.f32.mrb[0].mxu0
          %v6026 = vadd.f32 %v5874, %v6025
          %v6027 = vpop.f32.mrb[0].mxu0
          %6028 = vmatprep.mubr.bf16.mxu0 %v5825
          %6029 = vmatmul.mubr.bf16.gmra.mrb[0].mxu0 %v5824
          %v6030 = vpop.f32.mrb[0].mxu0
          %v6031 = vadd.f32 %v5874, %v6030
          %v6032 = vpop.f32.mrb[0].mxu0
          %v6033 = vpop.f32.mrb[0].mxu0
          %v6034 = vadd.f32 %v5874, %v6033
          %v6035 = vpop.f32.mrb[0].mxu0
          %6036 = vmatprep.mubr.bf16.mxu0 %v5827
          %6037 = vmatmul.mubr.bf16.gmra.mrb[0].mxu0 %v5826
          %v6038 = vpop.f32.mrb[0].mxu0
          %v6039 = vadd.f32 %v5874, %v6038
          %v6040 = vpop.f32.mrb[0].mxu0
          %v6041 = vpop.f32.mrb[0].mxu0
          %v6042 = vadd.f32 %v5874, %v6041
          %v6043 = vpop.f32.mrb[0].mxu0
          %6044 = vmatprep.mubr.bf16.mxu0 %v5829
          %6045 = vmatmul.mubr.bf16.gmra.mrb[0].mxu0 %v5828
          %v6046 = vpop.f32.mrb[0].mxu0
          %v6047 = vadd.f32 %v5874, %v6046
          %v6048 = vpop.f32.mrb[0].mxu0
          %v6049 = vpop.f32.mrb[0].mxu0
          %v6050 = vadd.f32 %v5874, %v6049
          %v6051 = vpop.f32.mrb[0].mxu0
          %6052 = vmatprep.mubr.bf16.mxu0 %v5831
          %6053 = vmatmul.mubr.bf16.gmra.mrb[0].mxu0 %v5830
          %v6054 = vpop.f32.mrb[0].mxu0
          %v6055 = vadd.f32 %v5874, %v6054
          %v6056 = vpop.f32.mrb[0].mxu0
          %v6057 = vpop.f32.mrb[0].mxu0
          %v6058 = vadd.f32 %v5874, %v6057
          %v6059 = vpop.f32.mrb[0].mxu0
          %6060 = vmatprep.mubr.bf16.mxu0 %v5833
          %6061 = vmatmul.mubr.bf16.gmra.mrb[0].mxu0 %v5832
          %v6062 = vpop.f32.mrb[0].mxu0
          %v6063 = vadd.f32 %v5874, %v6062
          %v6064 = vpop.f32.mrb[0].mxu0
          %v6065 = vpop.f32.mrb[0].mxu0
          %v6066 = vadd.f32 %v5874, %v6065
          %v6067 = vpop.f32.mrb[0].mxu0
          %6068 = vdwg.mxu0
          %v6069 = vadd.f32 %v5304, %v6007
          %v6070 = vadd.f32 %v5305, %v6010
          %v6071 = vadd.f32 %v5306, %v6015
          %v6072 = vadd.f32 %v5307, %v6018
          %v6073 = vadd.f32 %v5308, %v6023
          %v6074 = vadd.f32 %v5309, %v6026
          %v6075 = vadd.f32 %v5310, %v6031
          %v6076 = vadd.f32 %v5311, %v6034
          %v6077 = vadd.f32 %v5312, %v6039
          %v6078 = vadd.f32 %v5313, %v6042
          %v6079 = vadd.f32 %v5314, %v6047
          %v6080 = vadd.f32 %v5315, %v6050
          %v6081 = vadd.f32 %v5316, %v6055
          %v6082 = vadd.f32 %v5317, %v6058
          %v6083 = vadd.f32 %v5318, %v6063
          %v6084 = vadd.f32 %v5319, %v6066
          %6085 = vst.msk [vmem:[#allocation2] sm:$0xff] %vm683, %v6069
          %6086 = vst.msk [vmem:[#allocation2 + $0x8] sm:$0xff] %vm683, %v6070
          %6087 = vst.msk [vmem:[#allocation2 + $0x10] sm:$0xff] %vm683, %v6071
          %6088 = vst.msk [vmem:[#allocation2 + $0x18] sm:$0xff] %vm683, %v6072
          %6089 = vst.msk [vmem:[#allocation2 + $0x20] sm:$0xff] %vm683, %v6073
          %6090 = vst.msk [vmem:[#allocation2 + $0x28] sm:$0xff] %vm683, %v6074
          %6091 = vst.msk [vmem:[#allocation2 + $0x30] sm:$0xff] %vm683, %v6075
          %6092 = vst.msk [vmem:[#allocation2 + $0x38] sm:$0xff] %vm683, %v6076
          %6093 = vst.msk [vmem:[#allocation2 + $0x40] sm:$0xff] %vm683, %v6077
          %6094 = vst.msk [vmem:[#allocation2 + $0x48] sm:$0xff] %vm683, %v6078
          %6095 = vst.msk [vmem:[#allocation2 + $0x50] sm:$0xff] %vm683, %v6079
          %6096 = vst.msk [vmem:[#allocation2 + $0x58] sm:$0xff] %vm683, %v6080
          %6097 = vst.msk [vmem:[#allocation2 + $0x60] sm:$0xff] %vm683, %v6081
          %6098 = vst.msk [vmem:[#allocation2 + $0x68] sm:$0xff] %vm683, %v6082
          %6099 = vst.msk [vmem:[#allocation2 + $0x70] sm:$0xff] %vm683, %v6083
          %6100 = vst.msk [vmem:[#allocation2 + $0x78] sm:$0xff] %vm683, %v6084
        $region129: #{heart_gpt_forward.1} parent=83 // loop_footer
          %s709 = sadd.s32 1, %s705
        $region130: #{heart_gpt_forward.1} parent=83 // loop_footer_branch
          %704 = sbr.rel target = $region126
        $region131: #{heart_gpt_forward.1} parent=83 // loop_exit
          _
        %v6101 = vld [vmem:[#allocation2] sm:$0xff]
        %v6102 = vld [vmem:[#allocation2 + $0x8] sm:$0xff]
        %v6103 = vld [vmem:[#allocation2 + $0x10] sm:$0xff]
        %v6104 = vld [vmem:[#allocation2 + $0x18] sm:$0xff]
        %v6105 = vld [vmem:[#allocation2 + $0x20] sm:$0xff]
        %v6106 = vld [vmem:[#allocation2 + $0x28] sm:$0xff]
        %v6107 = vld [vmem:[#allocation2 + $0x30] sm:$0xff]
        %v6108 = vld [vmem:[#allocation2 + $0x38] sm:$0xff]
        %v6109 = vld [vmem:[#allocation2 + $0x40] sm:$0xff]
        %v6110 = vld [vmem:[#allocation2 + $0x48] sm:$0xff]
        %v6111 = vld [vmem:[#allocation2 + $0x50] sm:$0xff]
        %v6112 = vld [vmem:[#allocation2 + $0x58] sm:$0xff]
        %v6113 = vld [vmem:[#allocation2 + $0x60] sm:$0xff]
        %v6114 = vld [vmem:[#allocation2 + $0x68] sm:$0xff]
        %v6115 = vld [vmem:[#allocation2 + $0x70] sm:$0xff]
        %v6116 = vld [vmem:[#allocation2 + $0x78] sm:$0xff]
        %v6117 = vld [vmem:[%s12] sm:$0x1]
        %v6118 = vld [vmem:[%s13] sm:$0x1]
        %v6119 = vsel %vm683, %v6101, 0.0
        %6120 = vadd.xlane.f32.xlu0 %v6119
        %v6121 = vpop.xlane.xlu0 %6120
        %v6122 = vsel %vm683, %v6102, 0.0
        %6123 = vadd.xlane.f32.xlu0 %v6122
        %v6124 = vpop.xlane.xlu0 %6123
        %v6125 = vsel %vm683, %v6103, 0.0
        %6126 = vadd.xlane.f32.xlu0 %v6125
        %v6127 = vpop.xlane.xlu0 %6126
        %v6128 = vsel %vm683, %v6104, 0.0
        %6129 = vadd.xlane.f32.xlu0 %v6128
        %v6130 = vpop.xlane.xlu0 %6129
        %v6131 = vsel %vm683, %v6105, 0.0
        %6132 = vadd.xlane.f32.xlu0 %v6131
        %v6133 = vpop.xlane.xlu0 %6132
        %v6134 = vsel %vm683, %v6106, 0.0
        %6135 = vadd.xlane.f32.xlu0 %v6134
        %v6136 = vpop.xlane.xlu0 %6135
        %v6137 = vsel %vm683, %v6107, 0.0
        %6138 = vadd.xlane.f32.xlu0 %v6137
        %v6139 = vpop.xlane.xlu0 %6138
        %v6140 = vsel %vm683, %v6108, 0.0
        %6141 = vadd.xlane.f32.xlu0 %v6140
        %v6142 = vpop.xlane.xlu0 %6141
        %v6143 = vsel %vm683, %v6109, 0.0
        %6144 = vadd.xlane.f32.xlu0 %v6143
        %v6145 = vpop.xlane.xlu0 %6144
        %v6146 = vsel %vm683, %v6110, 0.0
        %6147 = vadd.xlane.f32.xlu0 %v6146
        %v6148 = vpop.xlane.xlu0 %6147
        %v6149 = vsel %vm683, %v6111, 0.0
        %6150 = vadd.xlane.f32.xlu0 %v6149
        %v6151 = vpop.xlane.xlu0 %6150
        %v6152 = vsel %vm683, %v6112, 0.0
        %6153 = vadd.xlane.f32.xlu0 %v6152
        %v6154 = vpop.xlane.xlu0 %6153
        %v6155 = vsel %vm683, %v6113, 0.0
        %6156 = vadd.xlane.f32.xlu0 %v6155
        %v6157 = vpop.xlane.xlu0 %6156
        %v6158 = vsel %vm683, %v6114, 0.0
        %6159 = vadd.xlane.f32.xlu0 %v6158
        %v6160 = vpop.xlane.xlu0 %6159
        %v6161 = vsel %vm683, %v6115, 0.0
        %6162 = vadd.xlane.f32.xlu0 %v6161
        %v6163 = vpop.xlane.xlu0 %6162
        %v6164 = vsel %vm683, %v6116, 0.0
        %6165 = vadd.xlane.f32.xlu0 %v6164
        %v6166 = vpop.xlane.xlu0 %6165
        %v6167 = vrcp.pop 64.0
        %v6168 = vmul.f32 %v6121, %v6167
        %v6169 = vmul.f32 %v6124, %v6167
        %v6170 = vmul.f32 %v6127, %v6167
        %v6171 = vmul.f32 %v6130, %v6167
        %v6172 = vmul.f32 %v6133, %v6167
        %v6173 = vmul.f32 %v6136, %v6167
        %v6174 = vmul.f32 %v6139, %v6167
        %v6175 = vmul.f32 %v6142, %v6167
        %v6176 = vmul.f32 %v6145, %v6167
        %v6177 = vmul.f32 %v6148, %v6167
        %v6178 = vmul.f32 %v6151, %v6167
        %v6179 = vmul.f32 %v6154, %v6167
        %v6180 = vmul.f32 %v6157, %v6167
        %v6181 = vmul.f32 %v6160, %v6167
        %v6182 = vmul.f32 %v6163, %v6167
        %v6183 = vmul.f32 %v6166, %v6167
        %v6184 = vsub.f32 %v6101, %v6168
        %v6185 = vsub.f32 %v6102, %v6169
        %v6186 = vsub.f32 %v6103, %v6170
        %v6187 = vsub.f32 %v6104, %v6171
        %v6188 = vsub.f32 %v6105, %v6172
        %v6189 = vsub.f32 %v6106, %v6173
        %v6190 = vsub.f32 %v6107, %v6174
        %v6191 = vsub.f32 %v6108, %v6175
        %v6192 = vsub.f32 %v6109, %v6176
        %v6193 = vsub.f32 %v6110, %v6177
        %v6194 = vsub.f32 %v6111, %v6178
        %v6195 = vsub.f32 %v6112, %v6179
        %v6196 = vsub.f32 %v6113, %v6180
        %v6197 = vsub.f32 %v6114, %v6181
        %v6198 = vsub.f32 %v6115, %v6182
        %v6199 = vsub.f32 %v6116, %v6183
        %v6200 = vmul.f32 %v6184, %v6184
        %v6201 = vmul.f32 %v6185, %v6185
        %v6202 = vmul.f32 %v6186, %v6186
        %v6203 = vmul.f32 %v6187, %v6187
        %v6204 = vmul.f32 %v6188, %v6188
        %v6205 = vmul.f32 %v6189, %v6189
        %v6206 = vmul.f32 %v6190, %v6190
        %v6207 = vmul.f32 %v6191, %v6191
        %v6208 = vmul.f32 %v6192, %v6192
        %v6209 = vmul.f32 %v6193, %v6193
        %v6210 = vmul.f32 %v6194, %v6194
        %v6211 = vmul.f32 %v6195, %v6195
        %v6212 = vmul.f32 %v6196, %v6196
        %v6213 = vmul.f32 %v6197, %v6197
        %v6214 = vmul.f32 %v6198, %v6198
        %v6215 = vmul.f32 %v6199, %v6199
        %v6216 = vsel %vm683, %v6200, 0.0
        %6217 = vadd.xlane.f32.xlu0 %v6216
        %v6218 = vpop.xlane.xlu0 %6217
        %v6219 = vsel %vm683, %v6201, 0.0
        %6220 = vadd.xlane.f32.xlu0 %v6219
        %v6221 = vpop.xlane.xlu0 %6220
        %v6222 = vsel %vm683, %v6202, 0.0
        %6223 = vadd.xlane.f32.xlu0 %v6222
        %v6224 = vpop.xlane.xlu0 %6223
        %v6225 = vsel %vm683, %v6203, 0.0
        %6226 = vadd.xlane.f32.xlu0 %v6225
        %v6227 = vpop.xlane.xlu0 %6226
        %v6228 = vsel %vm683, %v6204, 0.0
        %6229 = vadd.xlane.f32.xlu0 %v6228
        %v6230 = vpop.xlane.xlu0 %6229
        %v6231 = vsel %vm683, %v6205, 0.0
        %6232 = vadd.xlane.f32.xlu0 %v6231
        %v6233 = vpop.xlane.xlu0 %6232
        %v6234 = vsel %vm683, %v6206, 0.0
        %6235 = vadd.xlane.f32.xlu0 %v6234
        %v6236 = vpop.xlane.xlu0 %6235
        %v6237 = vsel %vm683, %v6207, 0.0
        %6238 = vadd.xlane.f32.xlu0 %v6237
        %v6239 = vpop.xlane.xlu0 %6238
        %v6240 = vsel %vm683, %v6208, 0.0
        %6241 = vadd.xlane.f32.xlu0 %v6240
        %v6242 = vpop.xlane.xlu0 %6241
        %v6243 = vsel %vm683, %v6209, 0.0
        %6244 = vadd.xlane.f32.xlu0 %v6243
        %v6245 = vpop.xlane.xlu0 %6244
        %v6246 = vsel %vm683, %v6210, 0.0
        %6247 = vadd.xlane.f32.xlu0 %v6246
        %v6248 = vpop.xlane.xlu0 %6247
        %v6249 = vsel %vm683, %v6211, 0.0
        %6250 = vadd.xlane.f32.xlu0 %v6249
        %v6251 = vpop.xlane.xlu0 %6250
        %v6252 = vsel %vm683, %v6212, 0.0
        %6253 = vadd.xlane.f32.xlu0 %v6252
        %v6254 = vpop.xlane.xlu0 %6253
        %v6255 = vsel %vm683, %v6213, 0.0
        %6256 = vadd.xlane.f32.xlu0 %v6255
        %v6257 = vpop.xlane.xlu0 %6256
        %v6258 = vsel %vm683, %v6214, 0.0
        %6259 = vadd.xlane.f32.xlu0 %v6258
        %v6260 = vpop.xlane.xlu0 %6259
        %v6261 = vsel %vm683, %v6215, 0.0
        %6262 = vadd.xlane.f32.xlu0 %v6261
        %v6263 = vpop.xlane.xlu0 %6262
        %v6264 = vmul.f32 %v6218, %v6167
        %v6265 = vmul.f32 %v6221, %v6167
        %v6266 = vmul.f32 %v6224, %v6167
        %v6267 = vmul.f32 %v6227, %v6167
        %v6268 = vmul.f32 %v6230, %v6167
        %v6269 = vmul.f32 %v6233, %v6167
        %v6270 = vmul.f32 %v6236, %v6167
        %v6271 = vmul.f32 %v6239, %v6167
        %v6272 = vmul.f32 %v6242, %v6167
        %v6273 = vmul.f32 %v6245, %v6167
        %v6274 = vmul.f32 %v6248, %v6167
        %v6275 = vmul.f32 %v6251, %v6167
        %v6276 = vmul.f32 %v6254, %v6167
        %v6277 = vmul.f32 %v6257, %v6167
        %v6278 = vmul.f32 %v6260, %v6167
        %v6279 = vmul.f32 %v6263, %v6167
        %v6280 = vadd.f32 %v6264, 1e-05
        %v6281 = vadd.f32 %v6265, 1e-05
        %v6282 = vadd.f32 %v6266, 1e-05
        %v6283 = vadd.f32 %v6267, 1e-05
        %v6284 = vadd.f32 %v6268, 1e-05
        %v6285 = vadd.f32 %v6269, 1e-05
        %v6286 = vadd.f32 %v6270, 1e-05
        %v6287 = vadd.f32 %v6271, 1e-05
        %v6288 = vadd.f32 %v6272, 1e-05
        %v6289 = vadd.f32 %v6273, 1e-05
        %v6290 = vadd.f32 %v6274, 1e-05
        %v6291 = vadd.f32 %v6275, 1e-05
        %v6292 = vadd.f32 %v6276, 1e-05
        %v6293 = vadd.f32 %v6277, 1e-05
        %v6294 = vadd.f32 %v6278, 1e-05
        %v6295 = vadd.f32 %v6279, 1e-05
        %v6296 = vrsqrt.pop %v6280
        %v6297 = vrsqrt.pop %v6281
        %v6298 = vrsqrt.pop %v6282
        %v6299 = vrsqrt.pop %v6283
        %v6300 = vrsqrt.pop %v6284
        %v6301 = vrsqrt.pop %v6285
        %v6302 = vrsqrt.pop %v6286
        %v6303 = vrsqrt.pop %v6287
        %v6304 = vrsqrt.pop %v6288
        %v6305 = vrsqrt.pop %v6289
        %v6306 = vrsqrt.pop %v6290
        %v6307 = vrsqrt.pop %v6291
        %v6308 = vrsqrt.pop %v6292
        %v6309 = vrsqrt.pop %v6293
        %v6310 = vrsqrt.pop %v6294
        %v6311 = vrsqrt.pop %v6295
        %v6312 = vmul.f32 %v6184, %v6296
        %v6313 = vmul.f32 %v6185, %v6297
        %v6314 = vmul.f32 %v6186, %v6298
        %v6315 = vmul.f32 %v6187, %v6299
        %v6316 = vmul.f32 %v6188, %v6300
        %v6317 = vmul.f32 %v6189, %v6301
        %v6318 = vmul.f32 %v6190, %v6302
        %v6319 = vmul.f32 %v6191, %v6303
        %v6320 = vmul.f32 %v6192, %v6304
        %v6321 = vmul.f32 %v6193, %v6305
        %v6322 = vmul.f32 %v6194, %v6306
        %v6323 = vmul.f32 %v6195, %v6307
        %v6324 = vmul.f32 %v6196, %v6308
        %v6325 = vmul.f32 %v6197, %v6309
        %v6326 = vmul.f32 %v6198, %v6310
        %v6327 = vmul.f32 %v6199, %v6311
        %v6329 = vlaneseq
        %v6330 = vshrl.u32 %v6329, 7
        %v6331 = vsub.s32 0, %v6330
        %v6332 = vrot.slane %v6117, %v6331
        %v6334 = vmul.f32 %v6312, %v6332
        %v6335 = vmul.f32 %v6313, %v6332
        %v6336 = vmul.f32 %v6314, %v6332
        %v6337 = vmul.f32 %v6315, %v6332
        %v6338 = vmul.f32 %v6316, %v6332
        %v6339 = vmul.f32 %v6317, %v6332
        %v6340 = vmul.f32 %v6318, %v6332
        %v6341 = vmul.f32 %v6319, %v6332
        %v6342 = vmul.f32 %v6320, %v6332
        %v6343 = vmul.f32 %v6321, %v6332
        %v6344 = vmul.f32 %v6322, %v6332
        %v6345 = vmul.f32 %v6323, %v6332
        %v6346 = vmul.f32 %v6324, %v6332
        %v6347 = vmul.f32 %v6325, %v6332
        %v6348 = vmul.f32 %v6326, %v6332
        %v6349 = vmul.f32 %v6327, %v6332
        %v6351 = vlaneseq
        %v6352 = vshrl.u32 %v6351, 7
        %v6353 = vsub.s32 0, %v6352
        %v6354 = vrot.slane %v6118, %v6353
        %v6356 = vadd.f32 %v6334, %v6354
        %v6357 = vadd.f32 %v6335, %v6354
        %v6358 = vadd.f32 %v6336, %v6354
        %v6359 = vadd.f32 %v6337, %v6354
        %v6360 = vadd.f32 %v6338, %v6354
        %v6361 = vadd.f32 %v6339, %v6354
        %v6362 = vadd.f32 %v6340, %v6354
        %v6363 = vadd.f32 %v6341, %v6354
        %v6364 = vadd.f32 %v6342, %v6354
        %v6365 = vadd.f32 %v6343, %v6354
        %v6366 = vadd.f32 %v6344, %v6354
        %v6367 = vadd.f32 %v6345, %v6354
        %v6368 = vadd.f32 %v6346, %v6354
        %v6369 = vadd.f32 %v6347, %v6354
        %v6370 = vadd.f32 %v6348, %v6354
        %v6371 = vadd.f32 %v6349, %v6354
        %v6372 = vpack.c.bf16 %v6357, %v6356
        %v6373 = vpack.c.bf16 %v6359, %v6358
        %v6374 = vpack.c.bf16 %v6361, %v6360
        %v6375 = vpack.c.bf16 %v6363, %v6362
        %v6376 = vpack.c.bf16 %v6365, %v6364
        %v6377 = vpack.c.bf16 %v6367, %v6366
        %v6378 = vpack.c.bf16 %v6369, %v6368
        %v6379 = vpack.c.bf16 %v6371, %v6370
        %v6380 = vld [vmem:[#allocation17] sm:$0xf]
        %v6381 = vld [vmem:[#allocation17 + $0x4] sm:$0xf]
        %v6382 = vld [vmem:[#allocation17 + $0x8] sm:$0xf]
        %v6383 = vld [vmem:[#allocation17 + $0xc] sm:$0xf]
        %v6384 = vld [vmem:[#allocation17 + $0x10] sm:$0xf]
        %v6385 = vld [vmem:[#allocation17 + $0x14] sm:$0xf]
        %v6386 = vld [vmem:[#allocation17 + $0x18] sm:$0xf]
        %v6387 = vld [vmem:[#allocation17 + $0x1c] sm:$0xf]
        %v6388 = vld [vmem:[#allocation18] sm:$0x1]
        %v6390 = vlaneseq
        %v6391 = vshrl.u32 %v6390, 7
        %v6392 = vsub.s32 0, %v6391
        %v6393 = vrot.slane %v6388, %v6392
        %v6403 = vunpack.c.l.b16 %v6380
        %v6404 = vunpack.c.l.b16 %v6381
        %v6405 = vunpack.c.l.b16 %v6382
        %v6406 = vunpack.c.l.b16 %v6383
        %v6407 = vunpack.c.l.b16 %v6384
        %v6408 = vunpack.c.l.b16 %v6385
        %v6409 = vunpack.c.l.b16 %v6386
        %v6410 = vunpack.c.l.b16 %v6387
        %v6411 = vpack.c.b16 %v6404, %v6403
        %v6412 = vpack.c.b16 %v6406, %v6405
        %v6413 = vpack.c.b16 %v6408, %v6407
        %v6414 = vpack.c.b16 %v6410, %v6409
        %v6420 = vsel %vm683, %v6372, 0
        %v6423 = vsel %vm683, %v6373, 0
        %v6426 = vsel %vm683, %v6374, 0
        %v6429 = vsel %vm683, %v6375, 0
        %v6432 = vsel %vm683, %v6376, 0
        %v6435 = vsel %vm683, %v6377, 0
        %v6438 = vsel %vm683, %v6378, 0
        %v6441 = vsel %vm683, %v6379, 0
        %6443 = vmatprep.subr.bf16.mxu0 0
        %6444 = vmatpush1.bf16.msra.mxu0 %v6411
        %6445 = vmatprep.subr.bf16.mxu0 0
        %6446 = vmatpush1.bf16.msra.mxu0 %v6412
        %6447 = vmatprep.subr.bf16.mxu0 0
        %6448 = vmatpush1.bf16.msra.mxu0 %v6413
        %6449 = vmatprep.subr.bf16.mxu0 0
        %6450 = vmatpush1.bf16.msra.mxu0 %v6414
        %6451 = vmatprep.subr.bf16.mxu0 0
        %6452 = vmatpush1.bf16.msra.mxu0 0
        %6453 = vmatprep.subr.bf16.mxu0 0
        %6454 = vmatpush1.bf16.msra.mxu0 0
        %6455 = vmatprep.subr.bf16.mxu0 0
        %6456 = vmatpush1.bf16.msra.mxu0 0
        %6457 = vmatprep.subr.bf16.mxu0 0
        %6458 = vmatpush1.bf16.msra.mxu0 0
        %6459 = vmatprep.subr.bf16.mxu0 0
        %6460 = vmatpush1.bf16.msra.mxu0 0
        %6461 = vmatprep.subr.bf16.mxu0 0
        %6462 = vmatpush1.bf16.msra.mxu0 0
        %6463 = vmatprep.subr.bf16.mxu0 0
        %6464 = vmatpush1.bf16.msra.mxu0 0
        %6465 = vmatprep.subr.bf16.mxu0 0
        %6466 = vmatpush1.bf16.msra.mxu0 0
        %6467 = vmatprep.subr.bf16.mxu0 0
        %6468 = vmatpush1.bf16.msra.mxu0 0
        %6469 = vmatprep.subr.bf16.mxu0 0
        %6470 = vmatpush1.bf16.msra.mxu0 0
        %6471 = vmatprep.subr.bf16.mxu0 0
        %6472 = vmatpush1.bf16.msra.mxu0 0
        %6473 = vmatprep.subr.bf16.mxu0 0
        %6474 = vmatpush1.bf16.msra.mxu0 0
        %6475 = vmatprep.mubr.bf16.mxu0 0
        %6476 = vmatmul.mubr.bf16.gmra.mrb[0].mxu0 %v6420
        %v6477 = vpop.f32.mrb[0].mxu0
        %v6478 = vadd.f32 %v6393, %v6477
        %v6479 = vpop.f32.mrb[0].mxu0
        %v6480 = vpop.f32.mrb[0].mxu0
        %v6481 = vadd.f32 %v6393, %v6480
        %v6482 = vpop.f32.mrb[0].mxu0
        %6483 = vmatprep.mubr.bf16.mxu0 0
        %6484 = vmatmul.mubr.bf16.gmra.mrb[0].mxu0 %v6423
        %v6485 = vpop.f32.mrb[0].mxu0
        %v6486 = vadd.f32 %v6393, %v6485
        %v6487 = vpop.f32.mrb[0].mxu0
        %v6488 = vpop.f32.mrb[0].mxu0
        %v6489 = vadd.f32 %v6393, %v6488
        %v6490 = vpop.f32.mrb[0].mxu0
        %6491 = vmatprep.mubr.bf16.mxu0 0
        %6492 = vmatmul.mubr.bf16.gmra.mrb[0].mxu0 %v6426
        %v6493 = vpop.f32.mrb[0].mxu0
        %v6494 = vadd.f32 %v6393, %v6493
        %v6495 = vpop.f32.mrb[0].mxu0
        %v6496 = vpop.f32.mrb[0].mxu0
        %v6497 = vadd.f32 %v6393, %v6496
        %v6498 = vpop.f32.mrb[0].mxu0
        %6499 = vmatprep.mubr.bf16.mxu0 0
        %6500 = vmatmul.mubr.bf16.gmra.mrb[0].mxu0 %v6429
        %v6501 = vpop.f32.mrb[0].mxu0
        %v6502 = vadd.f32 %v6393, %v6501
        %v6503 = vpop.f32.mrb[0].mxu0
        %v6504 = vpop.f32.mrb[0].mxu0
        %v6505 = vadd.f32 %v6393, %v6504
        %v6506 = vpop.f32.mrb[0].mxu0
        %6507 = vmatprep.mubr.bf16.mxu0 0
        %6508 = vmatmul.mubr.bf16.gmra.mrb[0].mxu0 %v6432
        %v6509 = vpop.f32.mrb[0].mxu0
        %v6510 = vadd.f32 %v6393, %v6509
        %v6511 = vpop.f32.mrb[0].mxu0
        %v6512 = vpop.f32.mrb[0].mxu0
        %v6513 = vadd.f32 %v6393, %v6512
        %v6514 = vpop.f32.mrb[0].mxu0
        %6515 = vmatprep.mubr.bf16.mxu0 0
        %6516 = vmatmul.mubr.bf16.gmra.mrb[0].mxu0 %v6435
        %v6517 = vpop.f32.mrb[0].mxu0
        %v6518 = vadd.f32 %v6393, %v6517
        %v6519 = vpop.f32.mrb[0].mxu0
        %v6520 = vpop.f32.mrb[0].mxu0
        %v6521 = vadd.f32 %v6393, %v6520
        %v6522 = vpop.f32.mrb[0].mxu0
        %6523 = vmatprep.mubr.bf16.mxu0 0
        %6524 = vmatmul.mubr.bf16.gmra.mrb[0].mxu0 %v6438
        %v6525 = vpop.f32.mrb[0].mxu0
        %v6526 = vadd.f32 %v6393, %v6525
        %v6527 = vpop.f32.mrb[0].mxu0
        %v6528 = vpop.f32.mrb[0].mxu0
        %v6529 = vadd.f32 %v6393, %v6528
        %v6530 = vpop.f32.mrb[0].mxu0
        %6531 = vmatprep.mubr.bf16.mxu0 0
        %6532 = vmatmul.mubr.bf16.gmra.mrb[0].mxu0 %v6441
        %v6533 = vpop.f32.mrb[0].mxu0
        %v6534 = vadd.f32 %v6393, %v6533
        %v6535 = vpop.f32.mrb[0].mxu0
        %v6536 = vpop.f32.mrb[0].mxu0
        %v6537 = vadd.f32 %v6393, %v6536
        %v6538 = vpop.f32.mrb[0].mxu0
        %6539 = vdwg.mxu0
        %6540 = vst [vmem:[%s665] sm:$0xff] %v6478
        %6541 = vst [vmem:[%s665 + $0x8] sm:$0xff] %v6481
        %6542 = vst [vmem:[%s665 + $0x10] sm:$0xff] %v6486
        %6543 = vst [vmem:[%s665 + $0x18] sm:$0xff] %v6489
        %6544 = vst [vmem:[%s665 + $0x20] sm:$0xff] %v6494
        %6545 = vst [vmem:[%s665 + $0x28] sm:$0xff] %v6497
        %6546 = vst [vmem:[%s665 + $0x30] sm:$0xff] %v6502
        %6547 = vst [vmem:[%s665 + $0x38] sm:$0xff] %v6505
        %6548 = vst [vmem:[%s665 + $0x40] sm:$0xff] %v6510
        %6549 = vst [vmem:[%s665 + $0x48] sm:$0xff] %v6513
        %6550 = vst [vmem:[%s665 + $0x50] sm:$0xff] %v6518
        %6551 = vst [vmem:[%s665 + $0x58] sm:$0xff] %v6521
        %6552 = vst [vmem:[%s665 + $0x60] sm:$0xff] %v6526
        %6553 = vst [vmem:[%s665 + $0x68] sm:$0xff] %v6529
        %6554 = vst [vmem:[%s665 + $0x70] sm:$0xff] %v6534
        %6555 = vst [vmem:[%s665 + $0x78] sm:$0xff] %v6537
        %p6556 = scmp.lt.s32.totalorder %s33, 1
        %s6557 = scalar_select %p6556, %s33, 1
        %s6558 = smul.addr %s6557, 16
        %s6559 = smul.addr %s6558, 8
        %s6560 = scalar_lea.vmem %s16, %s6559
        // Predicated region
        $region132: #{heart_gpt_forward.1} parent=83 // pred_check
          %p6561 = pneg %p392
        $region133: #{heart_gpt_forward.1} parent=83 // pred_check_branch
          %6563 = sbr.rel (%p6561) target = $region135
        $region134: #{heart_gpt_forward.1} parent=83 // pred_region
          _
        $region135: #{heart_gpt_forward.1} parent=83 // pred_fallthru
          _
      $region84: #{heart_gpt_forward.1} parent=5 // pred_fallthru
        _
      %p6564 = scmp.le.s32.totalorder 2, %s28
      // Predicated region
      $region136: #{heart_gpt_forward.1} parent=5 // pred_check
        %p6565 = pneg %p6564
      $region137: #{heart_gpt_forward.1} parent=5 // pred_check_branch
        %6567 = sbr.rel (%p6565) target = $region139
      $region138: #{heart_gpt_forward.1} parent=5 // pred_region
        %s6568 = ssub.s32 %s28, 2
        // Predicated region
        $region140: #{heart_gpt_forward.1} parent=138 // pred_check
          %p6569 = pneg %p398
        $region141: #{heart_gpt_forward.1} parent=138 // pred_check_branch
          %6571 = sbr.rel (%p6569) target = $region143
        $region142: #{heart_gpt_forward.1} parent=138 // pred_region
          %p6572 = scmp.lt.s32.totalorder %s34, 1
          %s6573 = scalar_select %p6572, %s34, 1
          %s6574 = smul.addr %s6573, 16
          %s6575 = smul.addr %s6574, 8
          %s6576 = scalar_lea.vmem %s16, %s6575
        $region143: #{heart_gpt_forward.1} parent=138 // pred_fallthru
          _
      $region139: #{heart_gpt_forward.1} parent=5 // pred_fallthru
        _
    $region6: #{heart_gpt_forward.1} parent=1 // loop_footer
      %s32 = sadd.s32 1, %s28
    $region7: #{heart_gpt_forward.1} parent=1 // loop_footer_branch
      %27 = sbr.rel target = $region3
    $region8: #{heart_gpt_forward.1} parent=1 // loop_exit
      _
    %6577 = vsyncpa [#allocation5], 1
    %s6578 = scalar_lea.sflag [#allocation5], 1
    %6579 = vsyncpa %s6578, 1
    %6580 = vsyncpa [#allocation7], 1
    %6581 = vsyncpa [#allocation10], 1
    %6582 = vsyncpa [#allocation13], 1
    %6583 = vsyncpa [#allocation16], 1
    %6584 = vsyncpa [#allocation19], 1

</llo_original>
